<compile_context>
chip_gen: v5e
topology: v5e:2x2
jax: 0.10.0
libtpu: 0.0.40
codegen_flags: <defaults>
</compile_context>

<pallas_src>
import re

import jax
import jax.numpy as jnp
import numpy as np
from jax.experimental import pallas as pl
from jax.experimental.pallas import tpu as pltpu

H = W = 100            # input spatial size implied by Linear(50*50*64, 128)
PH = PW = 50           # pooled spatial size
C_OUT = 64
HIDDEN = 128

ROWS = 1280            # 1250 pooled-pixel pairs padded to a multiple of 8/128
LANE = 2 * C_OUT       # 128: two pixels' channel vectors side by side
PACK_K = 2 * 4 * 9     # 72 packed taps per row (pair x pool-offset x tap)
K_FLAT = PH * PW * C_OUT        # 160000 (real dense fan-in)
K_PAD = ROWS * LANE             # 163840 (padded, tile-aligned fan-in)


# ---------------------------------------------------------------------------
# Generation-aware dense-stage config (TK, K-split, VMEM limit).
# ---------------------------------------------------------------------------
def _tpu_generation():
    try:
        kind = jax.devices()[0].device_kind
    except Exception:
        return 0
    m = re.search(r"(\d+)", kind)
    return int(m.group(1)) if m else 0


_GEN = _tpu_generation()
if _GEN >= 7:
    # v7x: 2 TensorCores, 64 MiB VMEM/TC -> keep K-split, modest tiles.
    DENSE_TK, DENSE_N_SPLIT, DENSE_VMEM = 16384, 2, 48 * 1024 * 1024
elif _GEN in (5, 6):
    # v5e / v6e: 1 TC, 128 MiB VMEM -> no split, bigger w1 tiles, fused head.
    DENSE_TK, DENSE_N_SPLIT, DENSE_VMEM = 40960, 1, 96 * 1024 * 1024
else:
    DENSE_TK, DENSE_N_SPLIT, DENSE_VMEM = 16384, 1, 48 * 1024 * 1024

assert K_PAD % DENSE_TK == 0 and (K_PAD // DENSE_TK) % DENSE_N_SPLIT == 0


# ---------------------------------------------------------------------------
# Kernel 1: conv(3x3, pad=1) + bias + ReLU fused with the 2x2 max-pool.
# Input patches are lane-dense (bt, 1280, 128); one K=128 matmul against the
# packed (128, 512) conv weight, then a running max over the four 128-lane
# column groups (the 4 pool-window offsets).  Output (bt, 1280, 128).
# ---------------------------------------------------------------------------
def _conv_pool_kernel(p_ref, w_ref, b_ref, o_ref):
    bt = p_ref.shape[0]
    wblk = w_ref[...]                                        # (128, 512)
    bias = b_ref[...]                                        # (1, 128)
    for b in range(bt):                                      # bt in {1, 2}; unrolled
        conv = jnp.dot(p_ref[b, :, :], wblk,
                       preferred_element_type=jnp.float32)   # (1280, 512)
        m = jnp.maximum(jnp.maximum(conv[:, 0:128], conv[:, 128:256]),
                        jnp.maximum(conv[:, 256:384], conv[:, 384:512]))
        o_ref[b, :, :] = jnp.maximum(m + bias, 0.0)          # bias + ReLU, lane-dense store


def conv_relu_maxpool(patches, wblk, bias2):
    B = patches.shape[0]
    # Keep the grid length >= 2 so megacore sharding / DMA-compute overlap kicks in.
    bt = 1 if (B < 4 or B % 2) else 2
    return pl.pallas_call(
        _conv_pool_kernel,
        out_shape=jax.ShapeDtypeStruct((B, ROWS, LANE), jnp.float32),
        grid_spec=pltpu.PrefetchScalarGridSpec(
            num_scalar_prefetch=0,
            grid=(B // bt,),
            in_specs=[
                pl.BlockSpec((bt, ROWS, LANE), lambda b: (b, 0, 0)),
                pl.BlockSpec((LANE, 4 * LANE), lambda b: (0, 0)),
                pl.BlockSpec((1, LANE), lambda b: (0, 0)),
            ],
            out_specs=pl.BlockSpec((bt, ROWS, LANE), lambda b: (b, 0, 0)),
        ),
        compiler_params=pltpu.CompilerParams(
            dimension_semantics=("parallel",),
            vmem_limit_bytes=32 * 1024 * 1024,
        ),
    )(patches, wblk, bias2)


# ---------------------------------------------------------------------------
# Kernel 2a (single-TC gens): K-tiled dense matmul (163840 -> 128) with the
# head (bias + ReLU + 128->1 + sigmoid) fused into the last reduction step.
# ---------------------------------------------------------------------------
def _dense_fused_kernel(x_ref, w1_ref, b1_ref, w2_ref, b2_ref, o_ref, acc_ref):
    k = pl.program_id(0)

    @pl.when(k == 0)
    def _():
        acc_ref[...] = jnp.zeros_like(acc_ref)

    acc_ref[...] += jnp.dot(x_ref[...], w1_ref[...],
                            preferred_element_type=jnp.float32)

    @pl.when(k == pl.num_programs(0) - 1)
    def _():
        h = jnp.maximum(acc_ref[...] + b1_ref[...], 0.0)                   # ReLU(xW1+b1)
        logits = jnp.sum(h * w2_ref[...], axis=-1, keepdims=True) + b2_ref[...]
        o_ref[...] = 1.0 / (1.0 + jnp.exp(-logits))                        # sigmoid


def dense_fused(flat, w1p, b1, w2_row, b2, *, tk, vmem_bytes):
    B = flat.shape[0]
    kt = K_PAD // tk
    return pl.pallas_call(
        _dense_fused_kernel,
        out_shape=jax.ShapeDtypeStruct((B, 1), jnp.float32),
        grid_spec=pltpu.PrefetchScalarGridSpec(
            num_scalar_prefetch=0,
            grid=(kt,),
            in_specs=[
                pl.BlockSpec((B, tk), lambda k: (0, k)),
                pl.BlockSpec((tk, HIDDEN), lambda k: (k, 0)),
                pl.BlockSpec((1, HIDDEN), lambda k: (0, 0)),
                pl.BlockSpec((1, HIDDEN), lambda k: (0, 0)),
                pl.BlockSpec((1, 1), lambda k: (0, 0)),
            ],
            out_specs=pl.BlockSpec((B, 1), lambda k: (0, 0)),
            scratch_shapes=[pltpu.VMEM((B, HIDDEN), jnp.float32)],
        ),
        compiler_params=pltpu.CompilerParams(
            dimension_semantics=("arbitrary",),
            vmem_limit_bytes=vmem_bytes,
        ),
    )(flat, w1p, b1, w2_row, b2)


# ---------------------------------------------------------------------------
# Kernel 2b (v7x): K-split dense matmul.  Leading "parallel" axis gives each
# TensorCore a disjoint half of w1; each half accumulates into its own
# resident (1, B, 128) output block.  The tiny head runs as plain XLA.
# ---------------------------------------------------------------------------
def _dense_split_kernel(x_ref, w1_ref, o_ref):
    @pl.when(pl.program_id(1) == 0)
    def _():
        o_ref[...] = jnp.zeros_like(o_ref)
    o_ref[0, :, :] += jnp.dot(x_ref[...], w1_ref[...],
                              preferred_element_type=jnp.float32)


def dense_split(flat, w1p, *, tk, n_split, vmem_bytes):
    B = flat.shape[0]
    kt_per = (K_PAD // tk) // n_split
    return pl.pallas_call(
        _dense_split_kernel,
        out_shape=jax.ShapeDtypeStruct((n_split, B, HIDDEN), jnp.float32),
        grid_spec=pltpu.PrefetchScalarGridSpec(
            num_scalar_prefetch=0,
            grid=(n_split, kt_per),
            in_specs=[
                pl.BlockSpec((B, tk), lambda c, k: (0, c * kt_per + k)),
                pl.BlockSpec((tk, HIDDEN), lambda c, k: (c * kt_per + k, 0)),
            ],
            out_specs=pl.BlockSpec((1, B, HIDDEN), lambda c, k: (c, 0, 0)),
        ),
        compiler_params=pltpu.CompilerParams(
            dimension_semantics=("parallel", "arbitrary"),
            vmem_limit_bytes=vmem_bytes,
        ),
    )(flat, w1p)


# ---------------------------------------------------------------------------
# Plain-JAX glue: per-call im2col packing; one-time parameter preparation.
# ---------------------------------------------------------------------------
def im2col_packed(x):
    """x: (B, 100, 100) -> (B, 1280, 128) lane-dense packed conv/pool patches.

    Row r holds the pooled-pixel pair (2r, 2r+1).  Lane column
    pair*36 + s*9 + t is tap t = ki*3+kj of pool-window offset s = di*2+dj of
    pixel 2r+pair; columns 72..127 and rows 1250..1279 are zero padding."""
    B = x.shape[0]
    xpad = jnp.pad(x, ((0, 0), (1, 1), (1, 1)))                    # conv padding=1
    cols = []
    for di in range(2):
        for dj in range(2):
            for ki in range(3):
                for kj in range(3):
                    sub = xpad[:, di + ki::2, dj + kj::2][:, :PH, :PW]   # (B,50,50)
                    cols.append(sub.reshape(B, PH * PW))
    pats = jnp.stack(cols, axis=-1)                                # (B, 2500, 36)
    pats = pats.reshape(B, PH * PW // 2, PACK_K)                   # (B, 1250, 72)
    return jnp.pad(pats, ((0, 0), (0, ROWS - PH * PW // 2), (0, LANE - PACK_K)))


def prepare_params(params):
    """One-time, out-of-jit parameter preparation (hoisted per perf review)."""
    # Packed conv weight (128, 512): input lane pair*36 + s*9 + t maps to
    # output column s*128 + pair*64 + ch.
    w9x64 = params["w_conv"].reshape(C_OUT, 9).T                   # (9, 64): [tap, ch]
    wblk = jnp.zeros((LANE, 4 * LANE), jnp.float32)
    for pair in range(2):
        for s in range(4):
            r0 = pair * 36 + s * 9
            c0 = s * LANE + pair * C_OUT
            wblk = wblk.at[r0:r0 + 9, c0:c0 + C_OUT].set(w9x64)
    bias2 = jnp.tile(params["b_conv"].reshape(1, C_OUT), (1, 2))   # (1, 128)

    # Dense weight permuted from PyTorch NCHW-flatten order (ch*2500 + pix)
    # into the kernel's lane-dense order f = r*128 + pair*64 + ch (pix=2r+pair),
    # zero-padded so the 30 padded pooled rows contribute nothing.
    w1 = (params["w1"].reshape(HIDDEN, C_OUT, PH * PW)   # (H, ch, pix)
          .transpose(2, 1, 0)                            # (pix, ch, H)
          .reshape(PH * PW // 2, 2, C_OUT, HIDDEN)       # (r, pair, ch, H)
          .reshape(K_FLAT, HIDDEN))
    w1p = jnp.pad(w1, ((0, K_PAD - K_FLAT), (0, 0)))     # (163840, 128)
    # TODO(synk): cast w1p to bfloat16 (fp8 on v7x) to halve/quarter the
    # dominant HBM stream once the 1e-4/1e-5 accuracy check is relaxed.
    return dict(
        wblk=wblk, bias2=bias2, w1p=w1p,
        b1=params["b1"].reshape(1, HIDDEN),
        w2_row=params["w2"].reshape(1, HIDDEN),
        b2=params["b2"].reshape(1, 1),
    )


def init_params(key):
    """Deterministic PyTorch-default-style (uniform +/- 1/sqrt(fan_in)) init."""
    k1, k2, k3, k4, k5, k6 = jax.random.split(key, 6)

    def unif(k, shape, fan_in):
        bound = 1.0 / np.sqrt(fan_in)
        return jax.random.uniform(k, shape, jnp.float32, -bound, bound)

    return dict(
        w_conv=unif(k1, (C_OUT, 1, 3, 3), 9),        # Conv2d weight (O, I, kh, kw)
        b_conv=unif(k2, (C_OUT,), 9),
        w1=unif(k3, (HIDDEN, K_FLAT), K_FLAT),       # Linear weight (out, in)
        b1=unif(k4, (HIDDEN,), K_FLAT),
        w2=unif(k5, (1, HIDDEN), HIDDEN),
        b2=unif(k6, (1,), HIDDEN),
    )


def forward(x_nchw, prep):
    """x_nchw: (B, 1, 100, 100) float32 — same as the PyTorch module input.
    `prep` is the output of prepare_params() (computed once, outside jit)."""
    B = x_nchw.shape[0]
    x = x_nchw[:, 0]                                              # (B, 100, 100)
    patches = im2col_packed(x)                                    # (B, 1280, 128)

    pooled = conv_relu_maxpool(patches, prep["wblk"], prep["bias2"])   # (B, 1280, 128)
    flat = pooled.reshape(B, K_PAD)                               # lane-dense flatten (free)

    if DENSE_N_SPLIT == 1:
        # Single TC: head fused into the dense kernel's final reduction step.
        out = dense_fused(flat, prep["w1p"], prep["b1"], prep["w2_row"], prep["b2"],
                          tk=DENSE_TK, vmem_bytes=DENSE_VMEM)     # (B, 1)
    else:
        # v7x: each TC streams a disjoint half of w1; trivial head as one XLA fusion.
        partial = dense_split(flat, prep["w1p"], tk=DENSE_TK,
                              n_split=DENSE_N_SPLIT, vmem_bytes=DENSE_VMEM)
        h = jnp.maximum(jnp.sum(partial, axis=0) + prep["b1"], 0.0)
        out = jax.nn.sigmoid(h @ prep["w2_row"].T + prep["b2"])   # (B, 1)
    return out[:, 0]                                              # .squeeze() -> (B,)


def reference(x_nchw, params):
    conv = jax.lax.conv_general_dilated(
        x_nchw, params["w_conv"], (1, 1), ((1, 1), (1, 1)),
        dimension_numbers=("NCHW", "OIHW", "NCHW"))
    conv = jnp.maximum(conv + params["b_conv"][None, :, None, None], 0.0)
    B = x_nchw.shape[0]
    pooled = conv.reshape(B, C_OUT, PH, 2, PW, 2).max(axis=(3, 5))
    flat = pooled.reshape(B, -1)
    h = jnp.maximum(flat @ params["w1"].T + params["b1"], 0.0)
    out = jax.nn.sigmoid(h @ params["w2"].T + params["b2"])
    return jnp.squeeze(out)


if __name__ == "__main__":
    key = jax.random.PRNGKey(0)
    kx, kp = jax.random.split(key)
    B = 2
    x = jax.random.normal(kx, (B, 1, H, W), jnp.float32)
    params = init_params(kp)

    prep = prepare_params(params)          # one-time prep, hoisted out of forward

    out = jax.jit(forward)(x, prep)
    out = jax.block_until_ready(out)

    ref = reference(x, params)
    assert out.shape == (B,), out.shape
    np.testing.assert_allclose(np.asarray(out), np.asarray(ref),
                               rtol=1e-4, atol=1e-5)
    print("KERNEL_OK")
</pallas_src>

<mosaic_0001>
module attributes {stable_mosaic.version = 11 : i64} {
  func.func @_conv_pool_kernel(%arg0: i32, %arg1: memref<1x1280x128xf32, #tpu.memory_space<vmem>>, %arg2: memref<128x512xf32, #tpu.memory_space<vmem>>, %arg3: memref<1x128xf32, #tpu.memory_space<vmem>>, %arg4: memref<1x1280x128xf32, #tpu.memory_space<vmem>>) attributes {dimension_semantics = [#tpu.dimension_semantics<parallel>], iteration_bounds = array<i64: 2>, scalar_prefetch = 0 : i64, scratch_operands = 0 : i64, tpu.core_type = #tpu.core_type<tc>, window_params = [{transform_indices = @transform_0, window_bounds = array<i64: 1, 1280, 128>}, {pipeline_mode = #tpu.pipeline_mode<synchronous>, transform_indices = @transform_1, window_bounds = array<i64: 128, 512>}, {pipeline_mode = #tpu.pipeline_mode<synchronous>, transform_indices = @transform_2, window_bounds = array<i64: 1, 128>}, {transform_indices = @transform_3, window_bounds = array<i64: 1, 1280, 128>}]} {
    %c0 = arith.constant 0 : index
    %c0_0 = arith.constant 0 : index
    %0 = vector.load %arg2[%c0, %c0_0] : memref<128x512xf32, #tpu.memory_space<vmem>>, vector<128x512xf32>
    %c0_1 = arith.constant 0 : index
    %c0_2 = arith.constant 0 : index
    %1 = vector.load %arg3[%c0_1, %c0_2] : memref<1x128xf32, #tpu.memory_space<vmem>>, vector<1x128xf32>
    %c0_3 = arith.constant 0 : index
    %c0_4 = arith.constant 0 : index
    %c0_5 = arith.constant 0 : index
    %2 = vector.load %arg1[%c0_3, %c0_4, %c0_5] : memref<1x1280x128xf32, #tpu.memory_space<vmem>>, vector<1x1280x128xf32>
    %3 = vector.shape_cast %2 : vector<1x1280x128xf32> to vector<1280x128xf32>
    %cst = arith.constant dense<0.000000e+00> : vector<1280x512xf32>
    %4 = tpu.matmul %3, %0, %cst {dimension_numbers = #tpu.dot_dimension_numbers<[1], [0], [0], [1], [0, 0, 1, 1], [], []>} : vector<1280x128xf32>, vector<128x512xf32>, vector<1280x512xf32> -> vector<1280x512xf32>
    %5 = vector.extract_strided_slice %4 {offsets = [0, 0], sizes = [1280, 128], strides = [1, 1]} : vector<1280x512xf32> to vector<1280x128xf32>
    %6 = vector.extract_strided_slice %4 {offsets = [0, 128], sizes = [1280, 128], strides = [1, 1]} : vector<1280x512xf32> to vector<1280x128xf32>
    %7 = arith.maximumf %5, %6 : vector<1280x128xf32>
    %8 = vector.extract_strided_slice %4 {offsets = [0, 256], sizes = [1280, 128], strides = [1, 1]} : vector<1280x512xf32> to vector<1280x128xf32>
    %9 = vector.extract_strided_slice %4 {offsets = [0, 384], sizes = [1280, 128], strides = [1, 1]} : vector<1280x512xf32> to vector<1280x128xf32>
    %10 = arith.maximumf %8, %9 : vector<1280x128xf32>
    %11 = arith.maximumf %7, %10 : vector<1280x128xf32>
    %12 = vector.broadcast %1 : vector<1x128xf32> to vector<1280x128xf32>
    %13 = arith.addf %11, %12 : vector<1280x128xf32>
    %cst_6 = arith.constant 0.000000e+00 : f32
    %14 = vector.broadcast %cst_6 : f32 to vector<1280x128xf32>
    %15 = arith.maximumf %13, %14 : vector<1280x128xf32>
    %c0_7 = arith.constant 0 : index
    %c0_8 = arith.constant 0 : index
    %c0_9 = arith.constant 0 : index
    %16 = vector.load %arg4[%c0_7, %c0_8, %c0_9] : memref<1x1280x128xf32, #tpu.memory_space<vmem>>, vector<1x1280x128xf32>
    %17 = vector.shape_cast %16 : vector<1x1280x128xf32> to vector<1280x128xf32>
    %18 = vector.shape_cast %15 : vector<1280x128xf32> to vector<1x1280x128xf32>
    tpu.vector_store %arg4[%c0_7, %c0_8, %c0_9], %18 {strides = array<i32>} : memref<1x1280x128xf32, #tpu.memory_space<vmem>>, vector<1x1280x128xf32>,
    return
  }
  func.func @transform_0(%arg0: i32) -> (i32, i32, i32) {
    %c0_i32 = arith.constant 0 : i32
    %c0_i32_0 = arith.constant 0 : i32
    %c0_i32_1 = arith.constant 0 : i32
    return %arg0, %c0_i32, %c0_i32_0 : i32, i32, i32
  }
  func.func @transform_1(%arg0: i32) -> (i32, i32) {
    %c0_i32 = arith.constant 0 : i32
    %c0_i32_0 = arith.constant 0 : i32
    %c0_i32_1 = arith.constant 0 : i32
    return %c0_i32, %c0_i32_0 : i32, i32
  }
  func.func @transform_2(%arg0: i32) -> (i32, i32) {
    %c0_i32 = arith.constant 0 : i32
    %c0_i32_0 = arith.constant 0 : i32
    %c0_i32_1 = arith.constant 0 : i32
    return %c0_i32, %c0_i32_0 : i32, i32
  }
  func.func @transform_3(%arg0: i32) -> (i32, i32, i32) {
    %c0_i32 = arith.constant 0 : i32
    %c0_i32_0 = arith.constant 0 : i32
    %c0_i32_1 = arith.constant 0 : i32
    return %arg0, %c0_i32, %c0_i32_0 : i32, i32, i32
  }
}

module attributes {stable_mosaic.version = 11 : i64} {
  func.func @_dense_fused_kernel(%arg0: i32, %arg1: memref<2x16384xf32, #tpu.memory_space<vmem>>, %arg2: memref<16384x128xf32, #tpu.memory_space<vmem>>, %arg3: memref<1x128xf32, #tpu.memory_space<vmem>>, %arg4: memref<1x128xf32, #tpu.memory_space<vmem>>, %arg5: memref<1x1xf32, #tpu.memory_space<vmem>>, %arg6: memref<2x1xf32, #tpu.memory_space<vmem>>, %arg7: memref<2x128xf32, #tpu.memory_space<vmem>>) attributes {dimension_semantics = [#tpu.dimension_semantics<arbitrary>], iteration_bounds = array<i64: 10>, scalar_prefetch = 0 : i64, scratch_operands = 1 : i64, tpu.core_type = #tpu.core_type<tc>, window_params = [{transform_indices = @transform_0, window_bounds = array<i64: 2, 16384>}, {transform_indices = @transform_1, window_bounds = array<i64: 16384, 128>}, {pipeline_mode = #tpu.pipeline_mode<synchronous>, transform_indices = @transform_2, window_bounds = array<i64: 1, 128>}, {pipeline_mode = #tpu.pipeline_mode<synchronous>, transform_indices = @transform_3, window_bounds = array<i64: 1, 128>}, {pipeline_mode = #tpu.pipeline_mode<synchronous>, transform_indices = @transform_4, window_bounds = array<i64: 1, 1>}, {pipeline_mode = #tpu.pipeline_mode<synchronous>, transform_indices = @transform_5, window_bounds = array<i64: 2, 1>}]} {
    %c0_i32 = arith.constant 0 : i32
    %0 = arith.cmpi eq, %arg0, %c0_i32 : i32
    %1 = arith.extui %0 : i1 to i32
    %c0_i32_0 = arith.constant 0 : i32
    %2 = arith.cmpi ne, %1, %c0_i32_0 : i32
    scf.if %2 {
      %cst_9 = arith.constant 0.000000e+00 : f32
      %12 = vector.broadcast %cst_9 : f32 to vector<2x128xf32>
      %c0_10 = arith.constant 0 : index
      %c0_11 = arith.constant 0 : index
      %13 = vector.load %arg7[%c0_10, %c0_11] : memref<2x128xf32, #tpu.memory_space<vmem>>, vector<2x128xf32>
      tpu.vector_store %arg7[%c0_10, %c0_11], %12 {strides = array<i32>} : memref<2x128xf32, #tpu.memory_space<vmem>>, vector<2x128xf32>,
    } else {
    }
    %c0 = arith.constant 0 : index
    %c0_1 = arith.constant 0 : index
    %3 = vector.load %arg7[%c0, %c0_1] : memref<2x128xf32, #tpu.memory_space<vmem>>, vector<2x128xf32>
    %c0_2 = arith.constant 0 : index
    %c0_3 = arith.constant 0 : index
    %4 = vector.load %arg1[%c0_2, %c0_3] : memref<2x16384xf32, #tpu.memory_space<vmem>>, vector<2x16384xf32>
    %c0_4 = arith.constant 0 : index
    %c0_5 = arith.constant 0 : index
    %5 = vector.load %arg2[%c0_4, %c0_5] : memref<16384x128xf32, #tpu.memory_space<vmem>>, vector<16384x128xf32>
    %cst = arith.constant dense<0.000000e+00> : vector<2x128xf32>
    %6 = tpu.matmul %4, %5, %cst {dimension_numbers = #tpu.dot_dimension_numbers<[1], [0], [0], [1], [0, 0, 1, 1], [], []>} : vector<2x16384xf32>, vector<16384x128xf32>, vector<2x128xf32> -> vector<2x128xf32>
    %7 = arith.addf %3, %6 : vector<2x128xf32>
    %c0_6 = arith.constant 0 : index
    %c0_7 = arith.constant 0 : index
    %8 = vector.load %arg7[%c0_6, %c0_7] : memref<2x128xf32, #tpu.memory_space<vmem>>, vector<2x128xf32>
    tpu.vector_store %arg7[%c0_6, %c0_7], %7 {strides = array<i32>} : memref<2x128xf32, #tpu.memory_space<vmem>>, vector<2x128xf32>,
    %c9_i32 = arith.constant 9 : i32
    %9 = arith.cmpi eq, %arg0, %c9_i32 : i32
    %10 = arith.extui %9 : i1 to i32
    %c0_i32_8 = arith.constant 0 : i32
    %11 = arith.cmpi ne, %10, %c0_i32_8 : i32
    scf.if %11 {
      %c0_9 = arith.constant 0 : index
      %c0_10 = arith.constant 0 : index
      %12 = vector.load %arg7[%c0_9, %c0_10] : memref<2x128xf32, #tpu.memory_space<vmem>>, vector<2x128xf32>
      %c0_11 = arith.constant 0 : index
      %c0_12 = arith.constant 0 : index
      %13 = vector.load %arg3[%c0_11, %c0_12] : memref<1x128xf32, #tpu.memory_space<vmem>>, vector<1x128xf32>
      %14 = vector.broadcast %13 : vector<1x128xf32> to vector<2x128xf32>
      %15 = arith.addf %12, %14 : vector<2x128xf32>
      %cst_13 = arith.constant 0.000000e+00 : f32
      %16 = vector.broadcast %cst_13 : f32 to vector<2x128xf32>
      %17 = arith.maximumf %15, %16 : vector<2x128xf32>
      %c0_14 = arith.constant 0 : index
      %c0_15 = arith.constant 0 : index
      %18 = vector.load %arg4[%c0_14, %c0_15] : memref<1x128xf32, #tpu.memory_space<vmem>>, vector<1x128xf32>
      %19 = vector.broadcast %18 : vector<1x128xf32> to vector<2x128xf32>
      %20 = arith.mulf %17, %19 : vector<2x128xf32>
      %cst_16 = arith.constant dense<0.000000e+00> : vector<2xf32>
      %21 = vector.multi_reduction <add>, %20, %cst_16 [1] : vector<2x128xf32> to vector<2xf32>
      %22 = vector.shape_cast %21 : vector<2xf32> to vector<2x1xf32>
      %c0_17 = arith.constant 0 : index
      %c0_18 = arith.constant 0 : index
      %23 = vector.load %arg5[%c0_17, %c0_18] : memref<1x1xf32, #tpu.memory_space<vmem>>, vector<1x1xf32>
      %24 = vector.broadcast %23 : vector<1x1xf32> to vector<2x1xf32>
      %25 = arith.addf %22, %24 : vector<2x1xf32>
      %cst_19 = arith.constant 0.000000e+00 : f32
      %26 = vector.broadcast %cst_19 : f32 to vector<2x1xf32>
      %27 = arith.subf %26, %25 : vector<2x1xf32>
      %28 = math.exp %27 : vector<2x1xf32>
      %cst_20 = arith.constant 1.000000e+00 : f32
      %29 = vector.broadcast %cst_20 : f32 to vector<2x1xf32>
      %30 = arith.addf %29, %28 : vector<2x1xf32>
      %cst_21 = arith.constant 1.000000e+00 : f32
      %31 = vector.broadcast %cst_21 : f32 to vector<2x1xf32>
      %32 = arith.divf %31, %30 : vector<2x1xf32>
      %c0_22 = arith.constant 0 : index
      %c0_23 = arith.constant 0 : index
      %33 = vector.load %arg6[%c0_22, %c0_23] : memref<2x1xf32, #tpu.memory_space<vmem>>, vector<2x1xf32>
      tpu.vector_store %arg6[%c0_22, %c0_23], %32 {strides = array<i32>} : memref<2x1xf32, #tpu.memory_space<vmem>>, vector<2x1xf32>,
    } else {
    }
    return
  }
  func.func @transform_0(%arg0: i32) -> (i32, i32) {
    %c0_i32 = arith.constant 0 : i32
    %c0_i32_0 = arith.constant 0 : i32
    return %c0_i32, %arg0 : i32, i32
  }
  func.func @transform_1(%arg0: i32) -> (i32, i32) {
    %c0_i32 = arith.constant 0 : i32
    %c0_i32_0 = arith.constant 0 : i32
    return %arg0, %c0_i32 : i32, i32
  }
  func.func @transform_2(%arg0: i32) -> (i32, i32) {
    %c0_i32 = arith.constant 0 : i32
    %c0_i32_0 = arith.constant 0 : i32
    %c0_i32_1 = arith.constant 0 : i32
    return %c0_i32, %c0_i32_0 : i32, i32
  }
  func.func @transform_3(%arg0: i32) -> (i32, i32) {
    %c0_i32 = arith.constant 0 : i32
    %c0_i32_0 = arith.constant 0 : i32
    %c0_i32_1 = arith.constant 0 : i32
    return %c0_i32, %c0_i32_0 : i32, i32
  }
  func.func @transform_4(%arg0: i32) -> (i32, i32) {
    %c0_i32 = arith.constant 0 : i32
    %c0_i32_0 = arith.constant 0 : i32
    %c0_i32_1 = arith.constant 0 : i32
    return %c0_i32, %c0_i32_0 : i32, i32
  }
  func.func @transform_5(%arg0: i32) -> (i32, i32) {
    %c0_i32 = arith.constant 0 : i32
    %c0_i32_0 = arith.constant 0 : i32
    %c0_i32_1 = arith.constant 0 : i32
    return %c0_i32, %c0_i32_0 : i32, i32
  }
}

</mosaic_0001>

<llo_original>
// kernel: forward.2
$region0: #{forward.2}
  #allocation0 [shape = 'u32[]', space=smem, size = 0x4, offset = 0x4, fixed_abs, tag = 'smem constant byte address 0x4 - core index']
  #allocation1 [shape = 'u32[72,128]{1,0:T(1,128)}', space=vmem, size = 0x9000, scoped, tag = 'internal scratch']
  %s0 = inlined_call_operand.vmem [shape: f32[2,1280,128], index: 0, kind: input, shape index: {}]
  %s1 = inlined_call_operand.vmem [shape: f32[128,512], index: 1, kind: input, shape index: {}]
  %s2 = inlined_call_operand.vmem [shape: f32[1,128], index: 2, kind: input, shape index: {}]
  %s3 = inlined_call_operand.vmem [shape: f32[2,1280,128], index: 3, kind: output, shape index: {}]
  %s4 = sld [smem:[#allocation0]]
  $region45: #{forward.2} parent=0
    _
  %s6 = ssub.s32 1, %s4
  %s7 = scalar_select 0, %s6, %s4
  loop: start=0, step=1, limit=4
  $region2: #{forward.2} parent=0 // loop_pre_header
    _
  $region3: #{forward.2} parent=0 // loop_header
    %s9 = sphi 0, %s13
    %p10 = scmp.ge.s32.totalorder %s9, 4
    %s19 = sphi 0, %s21
    %s22 = sphi 0, %s19
    %s23 = sphi 0, %s22
    %s39 = sphi 0, %s23
    %s43 = sphi 0, %s43
    %s45 = sphi 0, %s43
    %s46 = sphi 0, %s45
    %s60 = sphi 0, %s46
    %s64 = sphi 0, %s64
    %s66 = sphi 0, %s64
    %s67 = sphi 0, %s66
    %s81 = sphi 0, %s67
    %s87 = sphi 0, %s89
    %s90 = sphi 0, %s87
    %s91 = sphi 0, %s90
    %s107 = sphi 0, %s91
  $region4: #{forward.2} parent=0 // loop_header_branch
    %12 = sbr.rel (%p10) target = $region8
  $region5: #{forward.2} parent=0 // loop_body
    %s14 = ssub.s32 %s9, 1
    %s15 = ssub.s32 %s9, 2
    %s16 = sadd.s32 %s9, 1
    %s17 = ssub.s32 %s9, %s16
    %p18 = scmp.eq.s32.totalorder %s17, 0
    %s20 = sadd.s32 %s19, 1
    %s21 = scalar_select %p18, %s19, %s20
    %p24 = pneg %p18
    %p25 = scmp.eq.s32.totalorder %s9, 1
    %p26 = por %p24, %p25
    %p27 = scmp.ne.s32.totalorder %s19, %s22
    %p28 = scmp.eq.s32.totalorder %s9, 0
    %p29 = por %p27, %p28
    %p30 = scmp.ne.s32.totalorder %s19, %s22
    %p31 = scmp.eq.s32.totalorder %s14, 1
    %p32 = por %p30, %p31
    %p33 = scmp.ne.s32.totalorder %s22, %s23
    %p34 = scmp.eq.s32.totalorder %s14, 0
    %p35 = por %p33, %p34
    %p36 = scmp.ne.s32.totalorder %s22, %s23
    %p37 = scmp.eq.s32.totalorder %s15, 1
    %p38 = por %p36, %p37
    %p40 = scmp.ne.s32.totalorder %s23, %s39
    %p41 = scmp.eq.s32.totalorder %s15, 0
    %p42 = por %p40, %p41
    %s44 = sadd.s32 %s43, 1
    %p47 = scmp.eq.s32.totalorder %s9, 1
    %p48 = scmp.ne.s32.totalorder %s43, %s45
    %p49 = scmp.eq.s32.totalorder %s9, 0
    %p50 = por %p48, %p49
    %p51 = scmp.ne.s32.totalorder %s43, %s45
    %p52 = scmp.eq.s32.totalorder %s14, 1
    %p53 = por %p51, %p52
    %p54 = scmp.ne.s32.totalorder %s45, %s46
    %p55 = scmp.eq.s32.totalorder %s14, 0
    %p56 = por %p54, %p55
    %p57 = scmp.ne.s32.totalorder %s45, %s46
    %p58 = scmp.eq.s32.totalorder %s15, 1
    %p59 = por %p57, %p58
    %p61 = scmp.ne.s32.totalorder %s46, %s60
    %p62 = scmp.eq.s32.totalorder %s15, 0
    %p63 = por %p61, %p62
    %s65 = sadd.s32 %s64, 1
    %p68 = scmp.eq.s32.totalorder %s9, 1
    %p69 = scmp.ne.s32.totalorder %s64, %s66
    %p70 = scmp.eq.s32.totalorder %s9, 0
    %p71 = por %p69, %p70
    %p72 = scmp.ne.s32.totalorder %s64, %s66
    %p73 = scmp.eq.s32.totalorder %s14, 1
    %p74 = por %p72, %p73
    %p75 = scmp.ne.s32.totalorder %s66, %s67
    %p76 = scmp.eq.s32.totalorder %s14, 0
    %p77 = por %p75, %p76
    %p78 = scmp.ne.s32.totalorder %s66, %s67
    %p79 = scmp.eq.s32.totalorder %s15, 1
    %p80 = por %p78, %p79
    %p82 = scmp.ne.s32.totalorder %s67, %s81
    %p83 = scmp.eq.s32.totalorder %s15, 0
    %p84 = por %p82, %p83
    %s85 = ssub.s32 %s9, %s16
    %p86 = scmp.eq.s32.totalorder %s85, 0
    %s88 = sadd.s32 %s87, 1
    %s89 = scalar_select %p86, %s87, %s88
    %p92 = pneg %p86
    %p93 = scmp.eq.s32.totalorder %s9, 1
    %p94 = por %p92, %p93
    %p95 = scmp.ne.s32.totalorder %s87, %s90
    %p96 = scmp.eq.s32.totalorder %s9, 0
    %p97 = por %p95, %p96
    %p98 = scmp.ne.s32.totalorder %s87, %s90
    %p99 = scmp.eq.s32.totalorder %s14, 1
    %p100 = por %p98, %p99
    %p101 = scmp.ne.s32.totalorder %s90, %s91
    %p102 = scmp.eq.s32.totalorder %s14, 0
    %p103 = por %p101, %p102
    %p104 = scmp.ne.s32.totalorder %s90, %s91
    %p105 = scmp.eq.s32.totalorder %s15, 1
    %p106 = por %p104, %p105
    %p108 = scmp.ne.s32.totalorder %s91, %s107
    %p109 = scmp.eq.s32.totalorder %s15, 0
    %p110 = por %p108, %p109
    %p111 = scmp.le.s32.totalorder 1, %s9
    %p112 = scmp.lt.s32.totalorder %s9, 3
    %p113 = pnand %p111, %p112
    %p114 = pneg %p113
    // Predicated region
    $region9: #{forward.2} parent=5 // pred_check
      _
    $region10: #{forward.2} parent=5 // pred_check_branch
      %116 = sbr.rel (%p113) target = $region12
    $region11: #{forward.2} parent=5 // pred_region
      %s117 = ssub.s32 %s9, 1
      // Predicated region
      $region13: #{forward.2} parent=11 // pred_check
        %p118 = pneg %p56
      $region14: #{forward.2} parent=11 // pred_check_branch
        %120 = sbr.rel (%p118) target = $region16
      $region15: #{forward.2} parent=11 // pred_region
        _
      $region16: #{forward.2} parent=11 // pred_fallthru
        _
      // Predicated region
      $region17: #{forward.2} parent=11 // pred_check
        %p121 = pneg %p77
      $region18: #{forward.2} parent=11 // pred_check_branch
        %123 = sbr.rel (%p121) target = $region20
      $region19: #{forward.2} parent=11 // pred_region
        _
      $region20: #{forward.2} parent=11 // pred_fallthru
        _
    $region12: #{forward.2} parent=5 // pred_fallthru
      _
    %p124 = scmp.lt.s32.totalorder %s9, 2
    // Predicated region
    $region21: #{forward.2} parent=5 // pred_check
      %p125 = pneg %p124
    $region22: #{forward.2} parent=5 // pred_check_branch
      %127 = sbr.rel (%p125) target = $region24
    $region23: #{forward.2} parent=5 // pred_region
      // Predicated region
      $region25: #{forward.2} parent=23 // pred_check
        %p128 = pneg %p29
      $region26: #{forward.2} parent=23 // pred_check_branch
        %130 = sbr.rel (%p128) target = $region28
      $region27: #{forward.2} parent=23 // pred_region
        %p131 = scmp.lt.s32.totalorder %s9, 1
        %s132 = scalar_select %p131, %s9, 1
        %s133 = smul.addr %s132, 160
        %s134 = smul.addr %s133, 8
        %s135 = scalar_lea.vmem %s0, %s134
      $region28: #{forward.2} parent=23 // pred_fallthru
        _
    $region24: #{forward.2} parent=5 // pred_fallthru
      _
    %p136 = scmp.le.s32.totalorder 1, %s9
    %p137 = scmp.lt.s32.totalorder %s9, 3
    %p138 = pnand %p136, %p137
    %p139 = pneg %p138
    // Predicated region
    $region29: #{forward.2} parent=5 // pred_check
      _
    $region30: #{forward.2} parent=5 // pred_check_branch
      %141 = sbr.rel (%p138) target = $region32
    $region31: #{forward.2} parent=5 // pred_region
      %s142 = ssub.s32 %s9, 1
      %p143 = scmp.lt.s32.totalorder %s14, 1
      %s144 = scalar_select %p143, %s14, 1
      %s145 = smul.addr %s144, 160
      %s146 = smul.addr %s145, 8
      %s147 = scalar_lea.vmem %s0, %s146
      %p148 = pneg %p35
      %p149 = pneg %p32
      %p150 = pneg %p56
      %p151 = pneg %p53
      %p152 = pneg %p77
      %p153 = pneg %p74
      %p154 = pneg %p103
      %p155 = pneg %p100
      %p156 = scmp.lt.s32.totalorder %s14, 1
      %s157 = scalar_select %p156, %s14, 1
      %s158 = smul.addr %s157, 160
      %s159 = smul.addr %s158, 8
      %s160 = scalar_lea.vmem %s3, %s159
      %p161 = scmp.lt.s32.totalorder %s14, 1
      %s162 = scalar_select %p161, %s14, 1
      %s163 = smul.addr %s162, 160
      %s164 = smul.addr %s163, 8
      %s165 = scalar_lea.vmem %s0, %s164
      %p166 = scmp.lt.s32.totalorder %s14, 1
      %s167 = scalar_select %p166, %s14, 1
      %s168 = smul.addr %s167, 160
      %s169 = smul.addr %s168, 8
      %s170 = scalar_lea.vmem %s3, %s169
      %v171 = vld [vmem:[%s1] sm:$0xff]
      %v172 = vld [vmem:[%s1 + $0x8] sm:$0xff]
      %v173 = vld [vmem:[%s1 + $0x10] sm:$0xff]
      %v174 = vld [vmem:[%s1 + $0x18] sm:$0xff]
      %v175 = vld [vmem:[%s1 + $0x20] sm:$0xff]
      %v176 = vld [vmem:[%s1 + $0x28] sm:$0xff]
      %v177 = vld [vmem:[%s1 + $0x30] sm:$0xff]
      %v178 = vld [vmem:[%s1 + $0x38] sm:$0xff]
      %v179 = vld [vmem:[%s1 + $0x40] sm:$0xff]
      %v180 = vld [vmem:[%s1 + $0x48] sm:$0xff]
      %v181 = vld [vmem:[%s1 + $0x50] sm:$0xff]
      %v182 = vld [vmem:[%s1 + $0x58] sm:$0xff]
      %v183 = vld [vmem:[%s1 + $0x60] sm:$0xff]
      %v184 = vld [vmem:[%s1 + $0x68] sm:$0xff]
      %v185 = vld [vmem:[%s1 + $0x70] sm:$0xff]
      %v186 = vld [vmem:[%s1 + $0x78] sm:$0xff]
      %v187 = vld [vmem:[%s1 + $0x80] sm:$0xff]
      %v188 = vld [vmem:[%s1 + $0x88] sm:$0xff]
      %v189 = vld [vmem:[%s1 + $0x90] sm:$0xff]
      %v190 = vld [vmem:[%s1 + $0x98] sm:$0xff]
      %v191 = vld [vmem:[%s1 + $0xa0] sm:$0xff]
      %v192 = vld [vmem:[%s1 + $0xa8] sm:$0xff]
      %v193 = vld [vmem:[%s1 + $0xb0] sm:$0xff]
      %v194 = vld [vmem:[%s1 + $0xb8] sm:$0xff]
      %v195 = vld [vmem:[%s1 + $0xc0] sm:$0xff]
      %v196 = vld [vmem:[%s1 + $0xc8] sm:$0xff]
      %v197 = vld [vmem:[%s1 + $0xd0] sm:$0xff]
      %v198 = vld [vmem:[%s1 + $0xd8] sm:$0xff]
      %v199 = vld [vmem:[%s1 + $0xe0] sm:$0xff]
      %v200 = vld [vmem:[%s1 + $0xe8] sm:$0xff]
      %v201 = vld [vmem:[%s1 + $0xf0] sm:$0xff]
      %v202 = vld [vmem:[%s1 + $0xf8] sm:$0xff]
      %v203 = vld [vmem:[%s1 + $0x100] sm:$0xff]
      %v204 = vld [vmem:[%s1 + $0x108] sm:$0xff]
      %v205 = vld [vmem:[%s1 + $0x110] sm:$0xff]
      %v206 = vld [vmem:[%s1 + $0x118] sm:$0xff]
      %v207 = vld [vmem:[%s1 + $0x120] sm:$0xff]
      %v208 = vld [vmem:[%s1 + $0x128] sm:$0xff]
      %v209 = vld [vmem:[%s1 + $0x130] sm:$0xff]
      %v210 = vld [vmem:[%s1 + $0x138] sm:$0xff]
      %v211 = vld [vmem:[%s1 + $0x140] sm:$0xff]
      %v212 = vld [vmem:[%s1 + $0x148] sm:$0xff]
      %v213 = vld [vmem:[%s1 + $0x150] sm:$0xff]
      %v214 = vld [vmem:[%s1 + $0x158] sm:$0xff]
      %v215 = vld [vmem:[%s1 + $0x160] sm:$0xff]
      %v216 = vld [vmem:[%s1 + $0x168] sm:$0xff]
      %v217 = vld [vmem:[%s1 + $0x170] sm:$0xff]
      %v218 = vld [vmem:[%s1 + $0x178] sm:$0xff]
      %v219 = vld [vmem:[%s1 + $0x180] sm:$0xff]
      %v220 = vld [vmem:[%s1 + $0x188] sm:$0xff]
      %v221 = vld [vmem:[%s1 + $0x190] sm:$0xff]
      %v222 = vld [vmem:[%s1 + $0x198] sm:$0xff]
      %v223 = vld [vmem:[%s1 + $0x1a0] sm:$0xff]
      %v224 = vld [vmem:[%s1 + $0x1a8] sm:$0xff]
      %v225 = vld [vmem:[%s1 + $0x1b0] sm:$0xff]
      %v226 = vld [vmem:[%s1 + $0x1b8] sm:$0xff]
      %v227 = vld [vmem:[%s1 + $0x1c0] sm:$0xff]
      %v228 = vld [vmem:[%s1 + $0x1c8] sm:$0xff]
      %v229 = vld [vmem:[%s1 + $0x1d0] sm:$0xff]
      %v230 = vld [vmem:[%s1 + $0x1d8] sm:$0xff]
      %v231 = vld [vmem:[%s1 + $0x1e0] sm:$0xff]
      %v232 = vld [vmem:[%s1 + $0x1e8] sm:$0xff]
      %v233 = vld [vmem:[%s1 + $0x1f0] sm:$0xff]
      %v234 = vld [vmem:[%s1 + $0x1f8] sm:$0xff]
      %v235 = vld [vmem:[%s2] sm:$0x1]
      %v236 = vld [vmem:[%s165] sm:$0xff]
      %v237 = vld [vmem:[%s165 + $0x8] sm:$0xff]
      %v238 = vld [vmem:[%s165 + $0x10] sm:$0xff]
      %v239 = vld [vmem:[%s165 + $0x18] sm:$0xff]
      %v240 = vld [vmem:[%s165 + $0x20] sm:$0xff]
      %v241 = vld [vmem:[%s165 + $0x28] sm:$0xff]
      %v242 = vld [vmem:[%s165 + $0x30] sm:$0xff]
      %v243 = vld [vmem:[%s165 + $0x38] sm:$0xff]
      %v244 = vld [vmem:[%s165 + $0x40] sm:$0xff]
      %v245 = vld [vmem:[%s165 + $0x48] sm:$0xff]
      %v246 = vld [vmem:[%s165 + $0x50] sm:$0xff]
      %v247 = vld [vmem:[%s165 + $0x58] sm:$0xff]
      %v248 = vld [vmem:[%s165 + $0x60] sm:$0xff]
      %v249 = vld [vmem:[%s165 + $0x68] sm:$0xff]
      %v250 = vld [vmem:[%s165 + $0x70] sm:$0xff]
      %v251 = vld [vmem:[%s165 + $0x78] sm:$0xff]
      %v252 = vld [vmem:[%s165 + $0x80] sm:$0xff]
      %v253 = vld [vmem:[%s165 + $0x88] sm:$0xff]
      %v254 = vld [vmem:[%s165 + $0x90] sm:$0xff]
      %v255 = vld [vmem:[%s165 + $0x98] sm:$0xff]
      %v256 = vld [vmem:[%s165 + $0xa0] sm:$0xff]
      %v257 = vld [vmem:[%s165 + $0xa8] sm:$0xff]
      %v258 = vld [vmem:[%s165 + $0xb0] sm:$0xff]
      %v259 = vld [vmem:[%s165 + $0xb8] sm:$0xff]
      %v260 = vld [vmem:[%s165 + $0xc0] sm:$0xff]
      %v261 = vld [vmem:[%s165 + $0xc8] sm:$0xff]
      %v262 = vld [vmem:[%s165 + $0xd0] sm:$0xff]
      %v263 = vld [vmem:[%s165 + $0xd8] sm:$0xff]
      %v264 = vld [vmem:[%s165 + $0xe0] sm:$0xff]
      %v265 = vld [vmem:[%s165 + $0xe8] sm:$0xff]
      %v266 = vld [vmem:[%s165 + $0xf0] sm:$0xff]
      %v267 = vld [vmem:[%s165 + $0xf8] sm:$0xff]
      %v268 = vld [vmem:[%s165 + $0x100] sm:$0xff]
      %v269 = vld [vmem:[%s165 + $0x108] sm:$0xff]
      %v270 = vld [vmem:[%s165 + $0x110] sm:$0xff]
      %v271 = vld [vmem:[%s165 + $0x118] sm:$0xff]
      %v272 = vld [vmem:[%s165 + $0x120] sm:$0xff]
      %v273 = vld [vmem:[%s165 + $0x128] sm:$0xff]
      %v274 = vld [vmem:[%s165 + $0x130] sm:$0xff]
      %v275 = vld [vmem:[%s165 + $0x138] sm:$0xff]
      %v276 = vld [vmem:[%s165 + $0x140] sm:$0xff]
      %v277 = vld [vmem:[%s165 + $0x148] sm:$0xff]
      %v278 = vld [vmem:[%s165 + $0x150] sm:$0xff]
      %v279 = vld [vmem:[%s165 + $0x158] sm:$0xff]
      %v280 = vld [vmem:[%s165 + $0x160] sm:$0xff]
      %v281 = vld [vmem:[%s165 + $0x168] sm:$0xff]
      %v282 = vld [vmem:[%s165 + $0x170] sm:$0xff]
      %v283 = vld [vmem:[%s165 + $0x178] sm:$0xff]
      %v284 = vld [vmem:[%s165 + $0x180] sm:$0xff]
      %v285 = vld [vmem:[%s165 + $0x188] sm:$0xff]
      %v286 = vld [vmem:[%s165 + $0x190] sm:$0xff]
      %v287 = vld [vmem:[%s165 + $0x198] sm:$0xff]
      %v288 = vld [vmem:[%s165 + $0x1a0] sm:$0xff]
      %v289 = vld [vmem:[%s165 + $0x1a8] sm:$0xff]
      %v290 = vld [vmem:[%s165 + $0x1b0] sm:$0xff]
      %v291 = vld [vmem:[%s165 + $0x1b8] sm:$0xff]
      %v292 = vld [vmem:[%s165 + $0x1c0] sm:$0xff]
      %v293 = vld [vmem:[%s165 + $0x1c8] sm:$0xff]
      %v294 = vld [vmem:[%s165 + $0x1d0] sm:$0xff]
      %v295 = vld [vmem:[%s165 + $0x1d8] sm:$0xff]
      %v296 = vld [vmem:[%s165 + $0x1e0] sm:$0xff]
      %v297 = vld [vmem:[%s165 + $0x1e8] sm:$0xff]
      %v298 = vld [vmem:[%s165 + $0x1f0] sm:$0xff]
      %v299 = vld [vmem:[%s165 + $0x1f8] sm:$0xff]
      %v300 = vld [vmem:[%s165 + $0x200] sm:$0xff]
      %v301 = vld [vmem:[%s165 + $0x208] sm:$0xff]
      %v302 = vld [vmem:[%s165 + $0x210] sm:$0xff]
      %v303 = vld [vmem:[%s165 + $0x218] sm:$0xff]
      %v304 = vld [vmem:[%s165 + $0x220] sm:$0xff]
      %v305 = vld [vmem:[%s165 + $0x228] sm:$0xff]
      %v306 = vld [vmem:[%s165 + $0x230] sm:$0xff]
      %v307 = vld [vmem:[%s165 + $0x238] sm:$0xff]
      %v308 = vld [vmem:[%s165 + $0x240] sm:$0xff]
      %v309 = vld [vmem:[%s165 + $0x248] sm:$0xff]
      %v310 = vld [vmem:[%s165 + $0x250] sm:$0xff]
      %v311 = vld [vmem:[%s165 + $0x258] sm:$0xff]
      %v312 = vld [vmem:[%s165 + $0x260] sm:$0xff]
      %v313 = vld [vmem:[%s165 + $0x268] sm:$0xff]
      %v314 = vld [vmem:[%s165 + $0x270] sm:$0xff]
      %v315 = vld [vmem:[%s165 + $0x278] sm:$0xff]
      %v316 = vld [vmem:[%s165 + $0x280] sm:$0xff]
      %v317 = vld [vmem:[%s165 + $0x288] sm:$0xff]
      %v318 = vld [vmem:[%s165 + $0x290] sm:$0xff]
      %v319 = vld [vmem:[%s165 + $0x298] sm:$0xff]
      %v320 = vld [vmem:[%s165 + $0x2a0] sm:$0xff]
      %v321 = vld [vmem:[%s165 + $0x2a8] sm:$0xff]
      %v322 = vld [vmem:[%s165 + $0x2b0] sm:$0xff]
      %v323 = vld [vmem:[%s165 + $0x2b8] sm:$0xff]
      %v324 = vld [vmem:[%s165 + $0x2c0] sm:$0xff]
      %v325 = vld [vmem:[%s165 + $0x2c8] sm:$0xff]
      %v326 = vld [vmem:[%s165 + $0x2d0] sm:$0xff]
      %v327 = vld [vmem:[%s165 + $0x2d8] sm:$0xff]
      %v328 = vld [vmem:[%s165 + $0x2e0] sm:$0xff]
      %v329 = vld [vmem:[%s165 + $0x2e8] sm:$0xff]
      %v330 = vld [vmem:[%s165 + $0x2f0] sm:$0xff]
      %v331 = vld [vmem:[%s165 + $0x2f8] sm:$0xff]
      %v332 = vld [vmem:[%s165 + $0x300] sm:$0xff]
      %v333 = vld [vmem:[%s165 + $0x308] sm:$0xff]
      %v334 = vld [vmem:[%s165 + $0x310] sm:$0xff]
      %v335 = vld [vmem:[%s165 + $0x318] sm:$0xff]
      %v336 = vld [vmem:[%s165 + $0x320] sm:$0xff]
      %v337 = vld [vmem:[%s165 + $0x328] sm:$0xff]
      %v338 = vld [vmem:[%s165 + $0x330] sm:$0xff]
      %v339 = vld [vmem:[%s165 + $0x338] sm:$0xff]
      %v340 = vld [vmem:[%s165 + $0x340] sm:$0xff]
      %v341 = vld [vmem:[%s165 + $0x348] sm:$0xff]
      %v342 = vld [vmem:[%s165 + $0x350] sm:$0xff]
      %v343 = vld [vmem:[%s165 + $0x358] sm:$0xff]
      %v344 = vld [vmem:[%s165 + $0x360] sm:$0xff]
      %v345 = vld [vmem:[%s165 + $0x368] sm:$0xff]
      %v346 = vld [vmem:[%s165 + $0x370] sm:$0xff]
      %v347 = vld [vmem:[%s165 + $0x378] sm:$0xff]
      %v348 = vld [vmem:[%s165 + $0x380] sm:$0xff]
      %v349 = vld [vmem:[%s165 + $0x388] sm:$0xff]
      %v350 = vld [vmem:[%s165 + $0x390] sm:$0xff]
      %v351 = vld [vmem:[%s165 + $0x398] sm:$0xff]
      %v352 = vld [vmem:[%s165 + $0x3a0] sm:$0xff]
      %v353 = vld [vmem:[%s165 + $0x3a8] sm:$0xff]
      %v354 = vld [vmem:[%s165 + $0x3b0] sm:$0xff]
      %v355 = vld [vmem:[%s165 + $0x3b8] sm:$0xff]
      %v356 = vld [vmem:[%s165 + $0x3c0] sm:$0xff]
      %v357 = vld [vmem:[%s165 + $0x3c8] sm:$0xff]
      %v358 = vld [vmem:[%s165 + $0x3d0] sm:$0xff]
      %v359 = vld [vmem:[%s165 + $0x3d8] sm:$0xff]
      %v360 = vld [vmem:[%s165 + $0x3e0] sm:$0xff]
      %v361 = vld [vmem:[%s165 + $0x3e8] sm:$0xff]
      %v362 = vld [vmem:[%s165 + $0x3f0] sm:$0xff]
      %v363 = vld [vmem:[%s165 + $0x3f8] sm:$0xff]
      %v364 = vld [vmem:[%s165 + $0x400] sm:$0xff]
      %v365 = vld [vmem:[%s165 + $0x408] sm:$0xff]
      %v366 = vld [vmem:[%s165 + $0x410] sm:$0xff]
      %v367 = vld [vmem:[%s165 + $0x418] sm:$0xff]
      %v368 = vld [vmem:[%s165 + $0x420] sm:$0xff]
      %v369 = vld [vmem:[%s165 + $0x428] sm:$0xff]
      %v370 = vld [vmem:[%s165 + $0x430] sm:$0xff]
      %v371 = vld [vmem:[%s165 + $0x438] sm:$0xff]
      %v372 = vld [vmem:[%s165 + $0x440] sm:$0xff]
      %v373 = vld [vmem:[%s165 + $0x448] sm:$0xff]
      %v374 = vld [vmem:[%s165 + $0x450] sm:$0xff]
      %v375 = vld [vmem:[%s165 + $0x458] sm:$0xff]
      %v376 = vld [vmem:[%s165 + $0x460] sm:$0xff]
      %v377 = vld [vmem:[%s165 + $0x468] sm:$0xff]
      %v378 = vld [vmem:[%s165 + $0x470] sm:$0xff]
      %v379 = vld [vmem:[%s165 + $0x478] sm:$0xff]
      %v380 = vld [vmem:[%s165 + $0x480] sm:$0xff]
      %v381 = vld [vmem:[%s165 + $0x488] sm:$0xff]
      %v382 = vld [vmem:[%s165 + $0x490] sm:$0xff]
      %v383 = vld [vmem:[%s165 + $0x498] sm:$0xff]
      %v384 = vld [vmem:[%s165 + $0x4a0] sm:$0xff]
      %v385 = vld [vmem:[%s165 + $0x4a8] sm:$0xff]
      %v386 = vld [vmem:[%s165 + $0x4b0] sm:$0xff]
      %v387 = vld [vmem:[%s165 + $0x4b8] sm:$0xff]
      %v388 = vld [vmem:[%s165 + $0x4c0] sm:$0xff]
      %v389 = vld [vmem:[%s165 + $0x4c8] sm:$0xff]
      %v390 = vld [vmem:[%s165 + $0x4d0] sm:$0xff]
      %v391 = vld [vmem:[%s165 + $0x4d8] sm:$0xff]
      %v392 = vld [vmem:[%s165 + $0x4e0] sm:$0xff]
      %v393 = vld [vmem:[%s165 + $0x4e8] sm:$0xff]
      %v394 = vld [vmem:[%s165 + $0x4f0] sm:$0xff]
      %v395 = vld [vmem:[%s165 + $0x4f8] sm:$0xff]
      %396 = vmatpush.msra.mxu0 %v231
      %397 = vmatpush.msra.mxu0 %v227
      %398 = vmatpush.msra.mxu0 %v223
      %399 = vmatpush.msra.mxu0 %v219
      %400 = vmatpush.msra.mxu0 %v215
      %401 = vmatpush.msra.mxu0 %v211
      %402 = vmatpush.msra.mxu0 %v207
      %403 = vmatpush.msra.mxu0 %v203
      %404 = vmatpush.msra.mxu0 %v199
      %405 = vmatpush.msra.mxu0 %v195
      %406 = vmatpush.msra.mxu0 %v191
      %407 = vmatpush.msra.mxu0 %v187
      %408 = vmatpush.msra.mxu0 %v183
      %409 = vmatpush.msra.mxu0 %v179
      %410 = vmatpush.msra.mxu0 %v175
      %411 = vmatpush.msra.mxu0 %v171
      %412 = vmatmul.f32.gmra.mxu0 %v236
      %v413 = vpop.f32.mrf.mxu0
      %v414 = vadd.f32 0.0, %v413
      %415 = vmatmul.f32.gmra.mxu0 %v237
      %v416 = vpop.f32.mrf.mxu0
      %v417 = vadd.f32 0.0, %v416
      %418 = vmatmul.f32.gmra.mxu0 %v238
      %v419 = vpop.f32.mrf.mxu0
      %v420 = vadd.f32 0.0, %v419
      %421 = vmatmul.f32.gmra.mxu0 %v239
      %v422 = vpop.f32.mrf.mxu0
      %v423 = vadd.f32 0.0, %v422
      %424 = vmatmul.f32.gmra.mxu0 %v240
      %v425 = vpop.f32.mrf.mxu0
      %v426 = vadd.f32 0.0, %v425
      %427 = vmatmul.f32.gmra.mxu0 %v241
      %v428 = vpop.f32.mrf.mxu0
      %v429 = vadd.f32 0.0, %v428
      %430 = vmatmul.f32.gmra.mxu0 %v242
      %v431 = vpop.f32.mrf.mxu0
      %v432 = vadd.f32 0.0, %v431
      %433 = vmatmul.f32.gmra.mxu0 %v243
      %v434 = vpop.f32.mrf.mxu0
      %v435 = vadd.f32 0.0, %v434
      %436 = vmatmul.f32.gmra.mxu0 %v244
      %v437 = vpop.f32.mrf.mxu0
      %v438 = vadd.f32 0.0, %v437
      %439 = vmatmul.f32.gmra.mxu0 %v245
      %v440 = vpop.f32.mrf.mxu0
      %v441 = vadd.f32 0.0, %v440
      %442 = vmatmul.f32.gmra.mxu0 %v246
      %v443 = vpop.f32.mrf.mxu0
      %v444 = vadd.f32 0.0, %v443
      %445 = vmatmul.f32.gmra.mxu0 %v247
      %v446 = vpop.f32.mrf.mxu0
      %v447 = vadd.f32 0.0, %v446
      %448 = vmatmul.f32.gmra.mxu0 %v248
      %v449 = vpop.f32.mrf.mxu0
      %v450 = vadd.f32 0.0, %v449
      %451 = vmatmul.f32.gmra.mxu0 %v249
      %v452 = vpop.f32.mrf.mxu0
      %v453 = vadd.f32 0.0, %v452
      %454 = vmatmul.f32.gmra.mxu0 %v250
      %v455 = vpop.f32.mrf.mxu0
      %v456 = vadd.f32 0.0, %v455
      %457 = vmatmul.f32.gmra.mxu0 %v251
      %v458 = vpop.f32.mrf.mxu0
      %v459 = vadd.f32 0.0, %v458
      %460 = vmatmul.f32.gmra.mxu0 %v252
      %v461 = vpop.f32.mrf.mxu0
      %v462 = vadd.f32 0.0, %v461
      %463 = vmatmul.f32.gmra.mxu0 %v253
      %v464 = vpop.f32.mrf.mxu0
      %v465 = vadd.f32 0.0, %v464
      %466 = vmatmul.f32.gmra.mxu0 %v254
      %v467 = vpop.f32.mrf.mxu0
      %v468 = vadd.f32 0.0, %v467
      %469 = vmatmul.f32.gmra.mxu0 %v255
      %v470 = vpop.f32.mrf.mxu0
      %v471 = vadd.f32 0.0, %v470
      %472 = vmatmul.f32.gmra.mxu0 %v256
      %v473 = vpop.f32.mrf.mxu0
      %v474 = vadd.f32 0.0, %v473
      %475 = vmatmul.f32.gmra.mxu0 %v257
      %v476 = vpop.f32.mrf.mxu0
      %v477 = vadd.f32 0.0, %v476
      %478 = vmatmul.f32.gmra.mxu0 %v258
      %v479 = vpop.f32.mrf.mxu0
      %v480 = vadd.f32 0.0, %v479
      %481 = vmatmul.f32.gmra.mxu0 %v259
      %v482 = vpop.f32.mrf.mxu0
      %v483 = vadd.f32 0.0, %v482
      %484 = vmatmul.f32.gmra.mxu0 %v260
      %v485 = vpop.f32.mrf.mxu0
      %v486 = vadd.f32 0.0, %v485
      %487 = vmatmul.f32.gmra.mxu0 %v261
      %v488 = vpop.f32.mrf.mxu0
      %v489 = vadd.f32 0.0, %v488
      %490 = vmatmul.f32.gmra.mxu0 %v262
      %v491 = vpop.f32.mrf.mxu0
      %v492 = vadd.f32 0.0, %v491
      %493 = vmatmul.f32.gmra.mxu0 %v263
      %v494 = vpop.f32.mrf.mxu0
      %v495 = vadd.f32 0.0, %v494
      %496 = vmatmul.f32.gmra.mxu0 %v264
      %v497 = vpop.f32.mrf.mxu0
      %v498 = vadd.f32 0.0, %v497
      %499 = vmatmul.f32.gmra.mxu0 %v265
      %v500 = vpop.f32.mrf.mxu0
      %v501 = vadd.f32 0.0, %v500
      %502 = vmatmul.f32.gmra.mxu0 %v266
      %v503 = vpop.f32.mrf.mxu0
      %v504 = vadd.f32 0.0, %v503
      %505 = vmatmul.f32.gmra.mxu0 %v267
      %v506 = vpop.f32.mrf.mxu0
      %v507 = vadd.f32 0.0, %v506
      %508 = vmatmul.f32.gmra.mxu0 %v268
      %v509 = vpop.f32.mrf.mxu0
      %v510 = vadd.f32 0.0, %v509
      %511 = vmatmul.f32.gmra.mxu0 %v269
      %v512 = vpop.f32.mrf.mxu0
      %v513 = vadd.f32 0.0, %v512
      %514 = vmatmul.f32.gmra.mxu0 %v270
      %v515 = vpop.f32.mrf.mxu0
      %v516 = vadd.f32 0.0, %v515
      %517 = vmatmul.f32.gmra.mxu0 %v271
      %v518 = vpop.f32.mrf.mxu0
      %v519 = vadd.f32 0.0, %v518
      %520 = vmatmul.f32.gmra.mxu0 %v272
      %v521 = vpop.f32.mrf.mxu0
      %v522 = vadd.f32 0.0, %v521
      %523 = vmatmul.f32.gmra.mxu0 %v273
      %v524 = vpop.f32.mrf.mxu0
      %v525 = vadd.f32 0.0, %v524
      %526 = vmatmul.f32.gmra.mxu0 %v274
      %v527 = vpop.f32.mrf.mxu0
      %v528 = vadd.f32 0.0, %v527
      %529 = vmatmul.f32.gmra.mxu0 %v275
      %v530 = vpop.f32.mrf.mxu0
      %v531 = vadd.f32 0.0, %v530
      %532 = vmatmul.f32.gmra.mxu0 %v276
      %v533 = vpop.f32.mrf.mxu0
      %v534 = vadd.f32 0.0, %v533
      %535 = vmatmul.f32.gmra.mxu0 %v277
      %v536 = vpop.f32.mrf.mxu0
      %v537 = vadd.f32 0.0, %v536
      %538 = vmatmul.f32.gmra.mxu0 %v278
      %v539 = vpop.f32.mrf.mxu0
      %v540 = vadd.f32 0.0, %v539
      %541 = vmatmul.f32.gmra.mxu0 %v279
      %v542 = vpop.f32.mrf.mxu0
      %v543 = vadd.f32 0.0, %v542
      %544 = vmatmul.f32.gmra.mxu0 %v280
      %v545 = vpop.f32.mrf.mxu0
      %v546 = vadd.f32 0.0, %v545
      %547 = vmatmul.f32.gmra.mxu0 %v281
      %v548 = vpop.f32.mrf.mxu0
      %v549 = vadd.f32 0.0, %v548
      %550 = vmatmul.f32.gmra.mxu0 %v282
      %v551 = vpop.f32.mrf.mxu0
      %v552 = vadd.f32 0.0, %v551
      %553 = vmatmul.f32.gmra.mxu0 %v283
      %v554 = vpop.f32.mrf.mxu0
      %v555 = vadd.f32 0.0, %v554
      %556 = vmatmul.f32.gmra.mxu0 %v284
      %v557 = vpop.f32.mrf.mxu0
      %v558 = vadd.f32 0.0, %v557
      %559 = vmatmul.f32.gmra.mxu0 %v285
      %v560 = vpop.f32.mrf.mxu0
      %v561 = vadd.f32 0.0, %v560
      %562 = vmatmul.f32.gmra.mxu0 %v286
      %v563 = vpop.f32.mrf.mxu0
      %v564 = vadd.f32 0.0, %v563
      %565 = vmatmul.f32.gmra.mxu0 %v287
      %v566 = vpop.f32.mrf.mxu0
      %v567 = vadd.f32 0.0, %v566
      %568 = vmatmul.f32.gmra.mxu0 %v288
      %v569 = vpop.f32.mrf.mxu0
      %v570 = vadd.f32 0.0, %v569
      %571 = vmatmul.f32.gmra.mxu0 %v289
      %v572 = vpop.f32.mrf.mxu0
      %v573 = vadd.f32 0.0, %v572
      %574 = vmatmul.f32.gmra.mxu0 %v290
      %v575 = vpop.f32.mrf.mxu0
      %v576 = vadd.f32 0.0, %v575
      %577 = vmatmul.f32.gmra.mxu0 %v291
      %v578 = vpop.f32.mrf.mxu0
      %v579 = vadd.f32 0.0, %v578
      %580 = vmatmul.f32.gmra.mxu0 %v292
      %v581 = vpop.f32.mrf.mxu0
      %v582 = vadd.f32 0.0, %v581
      %583 = vmatmul.f32.gmra.mxu0 %v293
      %v584 = vpop.f32.mrf.mxu0
      %v585 = vadd.f32 0.0, %v584
      %586 = vmatmul.f32.gmra.mxu0 %v294
      %v587 = vpop.f32.mrf.mxu0
      %v588 = vadd.f32 0.0, %v587
      %589 = vmatmul.f32.gmra.mxu0 %v295
      %v590 = vpop.f32.mrf.mxu0
      %v591 = vadd.f32 0.0, %v590
      %592 = vmatmul.f32.gmra.mxu0 %v296
      %v593 = vpop.f32.mrf.mxu0
      %v594 = vadd.f32 0.0, %v593
      %595 = vmatmul.f32.gmra.mxu0 %v297
      %v596 = vpop.f32.mrf.mxu0
      %v597 = vadd.f32 0.0, %v596
      %598 = vmatmul.f32.gmra.mxu0 %v298
      %v599 = vpop.f32.mrf.mxu0
      %v600 = vadd.f32 0.0, %v599
      %601 = vmatmul.f32.gmra.mxu0 %v299
      %v602 = vpop.f32.mrf.mxu0
      %v603 = vadd.f32 0.0, %v602
      %604 = vmatmul.f32.gmra.mxu0 %v300
      %v605 = vpop.f32.mrf.mxu0
      %v606 = vadd.f32 0.0, %v605
      %607 = vmatmul.f32.gmra.mxu0 %v301
      %v608 = vpop.f32.mrf.mxu0
      %v609 = vadd.f32 0.0, %v608
      %610 = vmatmul.f32.gmra.mxu0 %v302
      %v611 = vpop.f32.mrf.mxu0
      %v612 = vadd.f32 0.0, %v611
      %613 = vmatmul.f32.gmra.mxu0 %v303
      %v614 = vpop.f32.mrf.mxu0
      %v615 = vadd.f32 0.0, %v614
      %616 = vmatmul.f32.gmra.mxu0 %v304
      %v617 = vpop.f32.mrf.mxu0
      %v618 = vadd.f32 0.0, %v617
      %619 = vmatmul.f32.gmra.mxu0 %v305
      %v620 = vpop.f32.mrf.mxu0
      %v621 = vadd.f32 0.0, %v620
      %622 = vmatmul.f32.gmra.mxu0 %v306
      %v623 = vpop.f32.mrf.mxu0
      %v624 = vadd.f32 0.0, %v623
      %625 = vmatmul.f32.gmra.mxu0 %v307
      %v626 = vpop.f32.mrf.mxu0
      %v627 = vadd.f32 0.0, %v626
      %628 = vmatmul.f32.gmra.mxu0 %v308
      %v629 = vpop.f32.mrf.mxu0
      %v630 = vadd.f32 0.0, %v629
      %631 = vmatmul.f32.gmra.mxu0 %v309
      %v632 = vpop.f32.mrf.mxu0
      %v633 = vadd.f32 0.0, %v632
      %634 = vmatmul.f32.gmra.mxu0 %v310
      %v635 = vpop.f32.mrf.mxu0
      %v636 = vadd.f32 0.0, %v635
      %637 = vmatmul.f32.gmra.mxu0 %v311
      %v638 = vpop.f32.mrf.mxu0
      %v639 = vadd.f32 0.0, %v638
      %640 = vmatmul.f32.gmra.mxu0 %v312
      %v641 = vpop.f32.mrf.mxu0
      %v642 = vadd.f32 0.0, %v641
      %643 = vmatmul.f32.gmra.mxu0 %v313
      %v644 = vpop.f32.mrf.mxu0
      %v645 = vadd.f32 0.0, %v644
      %646 = vmatmul.f32.gmra.mxu0 %v314
      %v647 = vpop.f32.mrf.mxu0
      %v648 = vadd.f32 0.0, %v647
      %649 = vmatmul.f32.gmra.mxu0 %v315
      %v650 = vpop.f32.mrf.mxu0
      %v651 = vadd.f32 0.0, %v650
      %652 = vmatmul.f32.gmra.mxu0 %v316
      %v653 = vpop.f32.mrf.mxu0
      %v654 = vadd.f32 0.0, %v653
      %655 = vmatmul.f32.gmra.mxu0 %v317
      %v656 = vpop.f32.mrf.mxu0
      %v657 = vadd.f32 0.0, %v656
      %658 = vmatmul.f32.gmra.mxu0 %v318
      %v659 = vpop.f32.mrf.mxu0
      %v660 = vadd.f32 0.0, %v659
      %661 = vmatmul.f32.gmra.mxu0 %v319
      %v662 = vpop.f32.mrf.mxu0
      %v663 = vadd.f32 0.0, %v662
      %664 = vmatmul.f32.gmra.mxu0 %v320
      %v665 = vpop.f32.mrf.mxu0
      %v666 = vadd.f32 0.0, %v665
      %667 = vmatmul.f32.gmra.mxu0 %v321
      %v668 = vpop.f32.mrf.mxu0
      %v669 = vadd.f32 0.0, %v668
      %670 = vmatmul.f32.gmra.mxu0 %v322
      %v671 = vpop.f32.mrf.mxu0
      %v672 = vadd.f32 0.0, %v671
      %673 = vmatmul.f32.gmra.mxu0 %v323
      %v674 = vpop.f32.mrf.mxu0
      %v675 = vadd.f32 0.0, %v674
      %676 = vmatmul.f32.gmra.mxu0 %v324
      %v677 = vpop.f32.mrf.mxu0
      %v678 = vadd.f32 0.0, %v677
      %679 = vmatmul.f32.gmra.mxu0 %v325
      %v680 = vpop.f32.mrf.mxu0
      %v681 = vadd.f32 0.0, %v680
      %682 = vmatmul.f32.gmra.mxu0 %v326
      %v683 = vpop.f32.mrf.mxu0
      %v684 = vadd.f32 0.0, %v683
      %685 = vmatmul.f32.gmra.mxu0 %v327
      %v686 = vpop.f32.mrf.mxu0
      %v687 = vadd.f32 0.0, %v686
      %688 = vmatmul.f32.gmra.mxu0 %v328
      %v689 = vpop.f32.mrf.mxu0
      %v690 = vadd.f32 0.0, %v689
      %691 = vmatmul.f32.gmra.mxu0 %v329
      %v692 = vpop.f32.mrf.mxu0
      %v693 = vadd.f32 0.0, %v692
      %694 = vmatmul.f32.gmra.mxu0 %v330
      %v695 = vpop.f32.mrf.mxu0
      %v696 = vadd.f32 0.0, %v695
      %697 = vmatmul.f32.gmra.mxu0 %v331
      %v698 = vpop.f32.mrf.mxu0
      %v699 = vadd.f32 0.0, %v698
      %700 = vmatmul.f32.gmra.mxu0 %v332
      %v701 = vpop.f32.mrf.mxu0
      %v702 = vadd.f32 0.0, %v701
      %703 = vmatmul.f32.gmra.mxu0 %v333
      %v704 = vpop.f32.mrf.mxu0
      %v705 = vadd.f32 0.0, %v704
      %706 = vmatmul.f32.gmra.mxu0 %v334
      %v707 = vpop.f32.mrf.mxu0
      %v708 = vadd.f32 0.0, %v707
      %709 = vmatmul.f32.gmra.mxu0 %v335
      %v710 = vpop.f32.mrf.mxu0
      %v711 = vadd.f32 0.0, %v710
      %712 = vmatmul.f32.gmra.mxu0 %v336
      %v713 = vpop.f32.mrf.mxu0
      %v714 = vadd.f32 0.0, %v713
      %715 = vmatmul.f32.gmra.mxu0 %v337
      %v716 = vpop.f32.mrf.mxu0
      %v717 = vadd.f32 0.0, %v716
      %718 = vmatmul.f32.gmra.mxu0 %v338
      %v719 = vpop.f32.mrf.mxu0
      %v720 = vadd.f32 0.0, %v719
      %721 = vmatmul.f32.gmra.mxu0 %v339
      %v722 = vpop.f32.mrf.mxu0
      %v723 = vadd.f32 0.0, %v722
      %724 = vmatmul.f32.gmra.mxu0 %v340
      %v725 = vpop.f32.mrf.mxu0
      %v726 = vadd.f32 0.0, %v725
      %727 = vmatmul.f32.gmra.mxu0 %v341
      %v728 = vpop.f32.mrf.mxu0
      %v729 = vadd.f32 0.0, %v728
      %730 = vmatmul.f32.gmra.mxu0 %v342
      %v731 = vpop.f32.mrf.mxu0
      %v732 = vadd.f32 0.0, %v731
      %733 = vmatmul.f32.gmra.mxu0 %v343
      %v734 = vpop.f32.mrf.mxu0
      %v735 = vadd.f32 0.0, %v734
      %736 = vmatmul.f32.gmra.mxu0 %v344
      %v737 = vpop.f32.mrf.mxu0
      %v738 = vadd.f32 0.0, %v737
      %739 = vmatmul.f32.gmra.mxu0 %v345
      %v740 = vpop.f32.mrf.mxu0
      %v741 = vadd.f32 0.0, %v740
      %742 = vmatmul.f32.gmra.mxu0 %v346
      %v743 = vpop.f32.mrf.mxu0
      %v744 = vadd.f32 0.0, %v743
      %745 = vmatmul.f32.gmra.mxu0 %v347
      %v746 = vpop.f32.mrf.mxu0
      %v747 = vadd.f32 0.0, %v746
      %748 = vmatmul.f32.gmra.mxu0 %v348
      %v749 = vpop.f32.mrf.mxu0
      %v750 = vadd.f32 0.0, %v749
      %751 = vmatmul.f32.gmra.mxu0 %v349
      %v752 = vpop.f32.mrf.mxu0
      %v753 = vadd.f32 0.0, %v752
      %754 = vmatmul.f32.gmra.mxu0 %v350
      %v755 = vpop.f32.mrf.mxu0
      %v756 = vadd.f32 0.0, %v755
      %757 = vmatmul.f32.gmra.mxu0 %v351
      %v758 = vpop.f32.mrf.mxu0
      %v759 = vadd.f32 0.0, %v758
      %760 = vmatmul.f32.gmra.mxu0 %v352
      %v761 = vpop.f32.mrf.mxu0
      %v762 = vadd.f32 0.0, %v761
      %763 = vmatmul.f32.gmra.mxu0 %v353
      %v764 = vpop.f32.mrf.mxu0
      %v765 = vadd.f32 0.0, %v764
      %766 = vmatmul.f32.gmra.mxu0 %v354
      %v767 = vpop.f32.mrf.mxu0
      %v768 = vadd.f32 0.0, %v767
      %769 = vmatmul.f32.gmra.mxu0 %v355
      %v770 = vpop.f32.mrf.mxu0
      %v771 = vadd.f32 0.0, %v770
      %772 = vmatmul.f32.gmra.mxu0 %v356
      %v773 = vpop.f32.mrf.mxu0
      %v774 = vadd.f32 0.0, %v773
      %775 = vmatmul.f32.gmra.mxu0 %v357
      %v776 = vpop.f32.mrf.mxu0
      %v777 = vadd.f32 0.0, %v776
      %778 = vmatmul.f32.gmra.mxu0 %v358
      %v779 = vpop.f32.mrf.mxu0
      %v780 = vadd.f32 0.0, %v779
      %781 = vmatmul.f32.gmra.mxu0 %v359
      %v782 = vpop.f32.mrf.mxu0
      %v783 = vadd.f32 0.0, %v782
      %784 = vmatmul.f32.gmra.mxu0 %v360
      %v785 = vpop.f32.mrf.mxu0
      %v786 = vadd.f32 0.0, %v785
      %787 = vmatmul.f32.gmra.mxu0 %v361
      %v788 = vpop.f32.mrf.mxu0
      %v789 = vadd.f32 0.0, %v788
      %790 = vmatmul.f32.gmra.mxu0 %v362
      %v791 = vpop.f32.mrf.mxu0
      %v792 = vadd.f32 0.0, %v791
      %793 = vmatmul.f32.gmra.mxu0 %v363
      %v794 = vpop.f32.mrf.mxu0
      %v795 = vadd.f32 0.0, %v794
      %796 = vmatmul.f32.gmra.mxu0 %v364
      %v797 = vpop.f32.mrf.mxu0
      %v798 = vadd.f32 0.0, %v797
      %799 = vmatmul.f32.gmra.mxu0 %v365
      %v800 = vpop.f32.mrf.mxu0
      %v801 = vadd.f32 0.0, %v800
      %802 = vmatmul.f32.gmra.mxu0 %v366
      %v803 = vpop.f32.mrf.mxu0
      %v804 = vadd.f32 0.0, %v803
      %805 = vmatmul.f32.gmra.mxu0 %v367
      %v806 = vpop.f32.mrf.mxu0
      %v807 = vadd.f32 0.0, %v806
      %808 = vmatmul.f32.gmra.mxu0 %v368
      %v809 = vpop.f32.mrf.mxu0
      %v810 = vadd.f32 0.0, %v809
      %811 = vmatmul.f32.gmra.mxu0 %v369
      %v812 = vpop.f32.mrf.mxu0
      %v813 = vadd.f32 0.0, %v812
      %814 = vmatmul.f32.gmra.mxu0 %v370
      %v815 = vpop.f32.mrf.mxu0
      %v816 = vadd.f32 0.0, %v815
      %817 = vmatmul.f32.gmra.mxu0 %v371
      %v818 = vpop.f32.mrf.mxu0
      %v819 = vadd.f32 0.0, %v818
      %820 = vmatmul.f32.gmra.mxu0 %v372
      %v821 = vpop.f32.mrf.mxu0
      %v822 = vadd.f32 0.0, %v821
      %823 = vmatmul.f32.gmra.mxu0 %v373
      %v824 = vpop.f32.mrf.mxu0
      %v825 = vadd.f32 0.0, %v824
      %826 = vmatmul.f32.gmra.mxu0 %v374
      %v827 = vpop.f32.mrf.mxu0
      %v828 = vadd.f32 0.0, %v827
      %829 = vmatmul.f32.gmra.mxu0 %v375
      %v830 = vpop.f32.mrf.mxu0
      %v831 = vadd.f32 0.0, %v830
      %832 = vmatmul.f32.gmra.mxu0 %v376
      %v833 = vpop.f32.mrf.mxu0
      %v834 = vadd.f32 0.0, %v833
      %835 = vmatmul.f32.gmra.mxu0 %v377
      %v836 = vpop.f32.mrf.mxu0
      %v837 = vadd.f32 0.0, %v836
      %838 = vmatmul.f32.gmra.mxu0 %v378
      %v839 = vpop.f32.mrf.mxu0
      %v840 = vadd.f32 0.0, %v839
      %841 = vmatmul.f32.gmra.mxu0 %v379
      %v842 = vpop.f32.mrf.mxu0
      %v843 = vadd.f32 0.0, %v842
      %844 = vmatmul.f32.gmra.mxu0 %v380
      %v845 = vpop.f32.mrf.mxu0
      %v846 = vadd.f32 0.0, %v845
      %847 = vmatmul.f32.gmra.mxu0 %v381
      %v848 = vpop.f32.mrf.mxu0
      %v849 = vadd.f32 0.0, %v848
      %850 = vmatmul.f32.gmra.mxu0 %v382
      %v851 = vpop.f32.mrf.mxu0
      %v852 = vadd.f32 0.0, %v851
      %853 = vmatmul.f32.gmra.mxu0 %v383
      %v854 = vpop.f32.mrf.mxu0
      %v855 = vadd.f32 0.0, %v854
      %856 = vmatmul.f32.gmra.mxu0 %v384
      %v857 = vpop.f32.mrf.mxu0
      %v858 = vadd.f32 0.0, %v857
      %859 = vmatmul.f32.gmra.mxu0 %v385
      %v860 = vpop.f32.mrf.mxu0
      %v861 = vadd.f32 0.0, %v860
      %862 = vmatmul.f32.gmra.mxu0 %v386
      %v863 = vpop.f32.mrf.mxu0
      %v864 = vadd.f32 0.0, %v863
      %865 = vmatmul.f32.gmra.mxu0 %v387
      %v866 = vpop.f32.mrf.mxu0
      %v867 = vadd.f32 0.0, %v866
      %868 = vmatmul.f32.gmra.mxu0 %v388
      %v869 = vpop.f32.mrf.mxu0
      %v870 = vadd.f32 0.0, %v869
      %871 = vmatmul.f32.gmra.mxu0 %v389
      %v872 = vpop.f32.mrf.mxu0
      %v873 = vadd.f32 0.0, %v872
      %874 = vmatmul.f32.gmra.mxu0 %v390
      %v875 = vpop.f32.mrf.mxu0
      %v876 = vadd.f32 0.0, %v875
      %877 = vmatmul.f32.gmra.mxu0 %v391
      %v878 = vpop.f32.mrf.mxu0
      %v879 = vadd.f32 0.0, %v878
      %880 = vmatmul.f32.gmra.mxu0 %v392
      %v881 = vpop.f32.mrf.mxu0
      %v882 = vadd.f32 0.0, %v881
      %883 = vmatmul.f32.gmra.mxu0 %v393
      %v884 = vpop.f32.mrf.mxu0
      %v885 = vadd.f32 0.0, %v884
      %886 = vmatmul.f32.gmra.mxu0 %v394
      %v887 = vpop.f32.mrf.mxu0
      %v888 = vadd.f32 0.0, %v887
      %889 = vmatmul.f32.gmra.mxu0 %v395
      %v890 = vpop.f32.mrf.mxu0
      %v891 = vadd.f32 0.0, %v890
      %892 = vdwg.mxu0
      %893 = vmatpush.msra.mxu0 %v232
      %894 = vmatpush.msra.mxu0 %v228
      %895 = vmatpush.msra.mxu0 %v224
      %896 = vmatpush.msra.mxu0 %v220
      %897 = vmatpush.msra.mxu0 %v216
      %898 = vmatpush.msra.mxu0 %v212
      %899 = vmatpush.msra.mxu0 %v208
      %900 = vmatpush.msra.mxu0 %v204
      %901 = vmatpush.msra.mxu0 %v200
      %902 = vmatpush.msra.mxu0 %v196
      %903 = vmatpush.msra.mxu0 %v192
      %904 = vmatpush.msra.mxu0 %v188
      %905 = vmatpush.msra.mxu0 %v184
      %906 = vmatpush.msra.mxu0 %v180
      %907 = vmatpush.msra.mxu0 %v176
      %908 = vmatpush.msra.mxu0 %v172
      %909 = vmatmul.f32.gmra.mxu0 %v236
      %v910 = vpop.f32.mrf.mxu0
      %v911 = vadd.f32 0.0, %v910
      %912 = vmatmul.f32.gmra.mxu0 %v237
      %v913 = vpop.f32.mrf.mxu0
      %v914 = vadd.f32 0.0, %v913
      %915 = vmatmul.f32.gmra.mxu0 %v238
      %v916 = vpop.f32.mrf.mxu0
      %v917 = vadd.f32 0.0, %v916
      %918 = vmatmul.f32.gmra.mxu0 %v239
      %v919 = vpop.f32.mrf.mxu0
      %v920 = vadd.f32 0.0, %v919
      %921 = vmatmul.f32.gmra.mxu0 %v240
      %v922 = vpop.f32.mrf.mxu0
      %v923 = vadd.f32 0.0, %v922
      %924 = vmatmul.f32.gmra.mxu0 %v241
      %v925 = vpop.f32.mrf.mxu0
      %v926 = vadd.f32 0.0, %v925
      %927 = vmatmul.f32.gmra.mxu0 %v242
      %v928 = vpop.f32.mrf.mxu0
      %v929 = vadd.f32 0.0, %v928
      %930 = vmatmul.f32.gmra.mxu0 %v243
      %v931 = vpop.f32.mrf.mxu0
      %v932 = vadd.f32 0.0, %v931
      %933 = vmatmul.f32.gmra.mxu0 %v244
      %v934 = vpop.f32.mrf.mxu0
      %v935 = vadd.f32 0.0, %v934
      %936 = vmatmul.f32.gmra.mxu0 %v245
      %v937 = vpop.f32.mrf.mxu0
      %v938 = vadd.f32 0.0, %v937
      %939 = vmatmul.f32.gmra.mxu0 %v246
      %v940 = vpop.f32.mrf.mxu0
      %v941 = vadd.f32 0.0, %v940
      %942 = vmatmul.f32.gmra.mxu0 %v247
      %v943 = vpop.f32.mrf.mxu0
      %v944 = vadd.f32 0.0, %v943
      %945 = vmatmul.f32.gmra.mxu0 %v248
      %v946 = vpop.f32.mrf.mxu0
      %v947 = vadd.f32 0.0, %v946
      %948 = vmatmul.f32.gmra.mxu0 %v249
      %v949 = vpop.f32.mrf.mxu0
      %v950 = vadd.f32 0.0, %v949
      %951 = vmatmul.f32.gmra.mxu0 %v250
      %v952 = vpop.f32.mrf.mxu0
      %v953 = vadd.f32 0.0, %v952
      %954 = vmatmul.f32.gmra.mxu0 %v251
      %v955 = vpop.f32.mrf.mxu0
      %v956 = vadd.f32 0.0, %v955
      %957 = vmatmul.f32.gmra.mxu0 %v252
      %v958 = vpop.f32.mrf.mxu0
      %v959 = vadd.f32 0.0, %v958
      %960 = vmatmul.f32.gmra.mxu0 %v253
      %v961 = vpop.f32.mrf.mxu0
      %v962 = vadd.f32 0.0, %v961
      %963 = vmatmul.f32.gmra.mxu0 %v254
      %v964 = vpop.f32.mrf.mxu0
      %v965 = vadd.f32 0.0, %v964
      %966 = vmatmul.f32.gmra.mxu0 %v255
      %v967 = vpop.f32.mrf.mxu0
      %v968 = vadd.f32 0.0, %v967
      %969 = vmatmul.f32.gmra.mxu0 %v256
      %v970 = vpop.f32.mrf.mxu0
      %v971 = vadd.f32 0.0, %v970
      %972 = vmatmul.f32.gmra.mxu0 %v257
      %v973 = vpop.f32.mrf.mxu0
      %v974 = vadd.f32 0.0, %v973
      %975 = vmatmul.f32.gmra.mxu0 %v258
      %v976 = vpop.f32.mrf.mxu0
      %v977 = vadd.f32 0.0, %v976
      %978 = vmatmul.f32.gmra.mxu0 %v259
      %v979 = vpop.f32.mrf.mxu0
      %v980 = vadd.f32 0.0, %v979
      %981 = vmatmul.f32.gmra.mxu0 %v260
      %v982 = vpop.f32.mrf.mxu0
      %v983 = vadd.f32 0.0, %v982
      %984 = vmatmul.f32.gmra.mxu0 %v261
      %v985 = vpop.f32.mrf.mxu0
      %v986 = vadd.f32 0.0, %v985
      %987 = vmatmul.f32.gmra.mxu0 %v262
      %v988 = vpop.f32.mrf.mxu0
      %v989 = vadd.f32 0.0, %v988
      %990 = vmatmul.f32.gmra.mxu0 %v263
      %v991 = vpop.f32.mrf.mxu0
      %v992 = vadd.f32 0.0, %v991
      %993 = vmatmul.f32.gmra.mxu0 %v264
      %v994 = vpop.f32.mrf.mxu0
      %v995 = vadd.f32 0.0, %v994
      %996 = vmatmul.f32.gmra.mxu0 %v265
      %v997 = vpop.f32.mrf.mxu0
      %v998 = vadd.f32 0.0, %v997
      %999 = vmatmul.f32.gmra.mxu0 %v266
      %v1000 = vpop.f32.mrf.mxu0
      %v1001 = vadd.f32 0.0, %v1000
      %1002 = vmatmul.f32.gmra.mxu0 %v267
      %v1003 = vpop.f32.mrf.mxu0
      %v1004 = vadd.f32 0.0, %v1003
      %1005 = vmatmul.f32.gmra.mxu0 %v268
      %v1006 = vpop.f32.mrf.mxu0
      %v1007 = vadd.f32 0.0, %v1006
      %1008 = vmatmul.f32.gmra.mxu0 %v269
      %v1009 = vpop.f32.mrf.mxu0
      %v1010 = vadd.f32 0.0, %v1009
      %1011 = vmatmul.f32.gmra.mxu0 %v270
      %v1012 = vpop.f32.mrf.mxu0
      %v1013 = vadd.f32 0.0, %v1012
      %1014 = vmatmul.f32.gmra.mxu0 %v271
      %v1015 = vpop.f32.mrf.mxu0
      %v1016 = vadd.f32 0.0, %v1015
      %1017 = vmatmul.f32.gmra.mxu0 %v272
      %v1018 = vpop.f32.mrf.mxu0
      %v1019 = vadd.f32 0.0, %v1018
      %1020 = vmatmul.f32.gmra.mxu0 %v273
      %v1021 = vpop.f32.mrf.mxu0
      %v1022 = vadd.f32 0.0, %v1021
      %1023 = vmatmul.f32.gmra.mxu0 %v274
      %v1024 = vpop.f32.mrf.mxu0
      %v1025 = vadd.f32 0.0, %v1024
      %1026 = vmatmul.f32.gmra.mxu0 %v275
      %v1027 = vpop.f32.mrf.mxu0
      %v1028 = vadd.f32 0.0, %v1027
      %1029 = vmatmul.f32.gmra.mxu0 %v276
      %v1030 = vpop.f32.mrf.mxu0
      %v1031 = vadd.f32 0.0, %v1030
      %1032 = vmatmul.f32.gmra.mxu0 %v277
      %v1033 = vpop.f32.mrf.mxu0
      %v1034 = vadd.f32 0.0, %v1033
      %1035 = vmatmul.f32.gmra.mxu0 %v278
      %v1036 = vpop.f32.mrf.mxu0
      %v1037 = vadd.f32 0.0, %v1036
      %1038 = vmatmul.f32.gmra.mxu0 %v279
      %v1039 = vpop.f32.mrf.mxu0
      %v1040 = vadd.f32 0.0, %v1039
      %1041 = vmatmul.f32.gmra.mxu0 %v280
      %v1042 = vpop.f32.mrf.mxu0
      %v1043 = vadd.f32 0.0, %v1042
      %1044 = vmatmul.f32.gmra.mxu0 %v281
      %v1045 = vpop.f32.mrf.mxu0
      %v1046 = vadd.f32 0.0, %v1045
      %1047 = vmatmul.f32.gmra.mxu0 %v282
      %v1048 = vpop.f32.mrf.mxu0
      %v1049 = vadd.f32 0.0, %v1048
      %1050 = vmatmul.f32.gmra.mxu0 %v283
      %v1051 = vpop.f32.mrf.mxu0
      %v1052 = vadd.f32 0.0, %v1051
      %1053 = vmatmul.f32.gmra.mxu0 %v284
      %v1054 = vpop.f32.mrf.mxu0
      %v1055 = vadd.f32 0.0, %v1054
      %1056 = vmatmul.f32.gmra.mxu0 %v285
      %v1057 = vpop.f32.mrf.mxu0
      %v1058 = vadd.f32 0.0, %v1057
      %1059 = vmatmul.f32.gmra.mxu0 %v286
      %v1060 = vpop.f32.mrf.mxu0
      %v1061 = vadd.f32 0.0, %v1060
      %1062 = vmatmul.f32.gmra.mxu0 %v287
      %v1063 = vpop.f32.mrf.mxu0
      %v1064 = vadd.f32 0.0, %v1063
      %1065 = vmatmul.f32.gmra.mxu0 %v288
      %v1066 = vpop.f32.mrf.mxu0
      %v1067 = vadd.f32 0.0, %v1066
      %1068 = vmatmul.f32.gmra.mxu0 %v289
      %v1069 = vpop.f32.mrf.mxu0
      %v1070 = vadd.f32 0.0, %v1069
      %1071 = vmatmul.f32.gmra.mxu0 %v290
      %v1072 = vpop.f32.mrf.mxu0
      %v1073 = vadd.f32 0.0, %v1072
      %1074 = vmatmul.f32.gmra.mxu0 %v291
      %v1075 = vpop.f32.mrf.mxu0
      %v1076 = vadd.f32 0.0, %v1075
      %1077 = vmatmul.f32.gmra.mxu0 %v292
      %v1078 = vpop.f32.mrf.mxu0
      %v1079 = vadd.f32 0.0, %v1078
      %1080 = vmatmul.f32.gmra.mxu0 %v293
      %v1081 = vpop.f32.mrf.mxu0
      %v1082 = vadd.f32 0.0, %v1081
      %1083 = vmatmul.f32.gmra.mxu0 %v294
      %v1084 = vpop.f32.mrf.mxu0
      %v1085 = vadd.f32 0.0, %v1084
      %1086 = vmatmul.f32.gmra.mxu0 %v295
      %v1087 = vpop.f32.mrf.mxu0
      %v1088 = vadd.f32 0.0, %v1087
      %1089 = vmatmul.f32.gmra.mxu0 %v296
      %v1090 = vpop.f32.mrf.mxu0
      %v1091 = vadd.f32 0.0, %v1090
      %1092 = vmatmul.f32.gmra.mxu0 %v297
      %v1093 = vpop.f32.mrf.mxu0
      %v1094 = vadd.f32 0.0, %v1093
      %1095 = vmatmul.f32.gmra.mxu0 %v298
      %v1096 = vpop.f32.mrf.mxu0
      %v1097 = vadd.f32 0.0, %v1096
      %1098 = vmatmul.f32.gmra.mxu0 %v299
      %v1099 = vpop.f32.mrf.mxu0
      %v1100 = vadd.f32 0.0, %v1099
      %1101 = vmatmul.f32.gmra.mxu0 %v300
      %v1102 = vpop.f32.mrf.mxu0
      %v1103 = vadd.f32 0.0, %v1102
      %1104 = vmatmul.f32.gmra.mxu0 %v301
      %v1105 = vpop.f32.mrf.mxu0
      %v1106 = vadd.f32 0.0, %v1105
      %1107 = vmatmul.f32.gmra.mxu0 %v302
      %v1108 = vpop.f32.mrf.mxu0
      %v1109 = vadd.f32 0.0, %v1108
      %1110 = vmatmul.f32.gmra.mxu0 %v303
      %v1111 = vpop.f32.mrf.mxu0
      %v1112 = vadd.f32 0.0, %v1111
      %1113 = vmatmul.f32.gmra.mxu0 %v304
      %v1114 = vpop.f32.mrf.mxu0
      %v1115 = vadd.f32 0.0, %v1114
      %1116 = vmatmul.f32.gmra.mxu0 %v305
      %v1117 = vpop.f32.mrf.mxu0
      %v1118 = vadd.f32 0.0, %v1117
      %1119 = vmatmul.f32.gmra.mxu0 %v306
      %v1120 = vpop.f32.mrf.mxu0
      %v1121 = vadd.f32 0.0, %v1120
      %1122 = vmatmul.f32.gmra.mxu0 %v307
      %v1123 = vpop.f32.mrf.mxu0
      %v1124 = vadd.f32 0.0, %v1123
      %1125 = vmatmul.f32.gmra.mxu0 %v308
      %v1126 = vpop.f32.mrf.mxu0
      %v1127 = vadd.f32 0.0, %v1126
      %1128 = vmatmul.f32.gmra.mxu0 %v309
      %v1129 = vpop.f32.mrf.mxu0
      %v1130 = vadd.f32 0.0, %v1129
      %1131 = vmatmul.f32.gmra.mxu0 %v310
      %v1132 = vpop.f32.mrf.mxu0
      %v1133 = vadd.f32 0.0, %v1132
      %1134 = vmatmul.f32.gmra.mxu0 %v311
      %v1135 = vpop.f32.mrf.mxu0
      %v1136 = vadd.f32 0.0, %v1135
      %1137 = vmatmul.f32.gmra.mxu0 %v312
      %v1138 = vpop.f32.mrf.mxu0
      %v1139 = vadd.f32 0.0, %v1138
      %1140 = vmatmul.f32.gmra.mxu0 %v313
      %v1141 = vpop.f32.mrf.mxu0
      %v1142 = vadd.f32 0.0, %v1141
      %1143 = vmatmul.f32.gmra.mxu0 %v314
      %v1144 = vpop.f32.mrf.mxu0
      %v1145 = vadd.f32 0.0, %v1144
      %1146 = vmatmul.f32.gmra.mxu0 %v315
      %v1147 = vpop.f32.mrf.mxu0
      %v1148 = vadd.f32 0.0, %v1147
      %1149 = vmatmul.f32.gmra.mxu0 %v316
      %v1150 = vpop.f32.mrf.mxu0
      %v1151 = vadd.f32 0.0, %v1150
      %1152 = vmatmul.f32.gmra.mxu0 %v317
      %v1153 = vpop.f32.mrf.mxu0
      %v1154 = vadd.f32 0.0, %v1153
      %1155 = vmatmul.f32.gmra.mxu0 %v318
      %v1156 = vpop.f32.mrf.mxu0
      %v1157 = vadd.f32 0.0, %v1156
      %1158 = vmatmul.f32.gmra.mxu0 %v319
      %v1159 = vpop.f32.mrf.mxu0
      %v1160 = vadd.f32 0.0, %v1159
      %1161 = vmatmul.f32.gmra.mxu0 %v320
      %v1162 = vpop.f32.mrf.mxu0
      %v1163 = vadd.f32 0.0, %v1162
      %1164 = vmatmul.f32.gmra.mxu0 %v321
      %v1165 = vpop.f32.mrf.mxu0
      %v1166 = vadd.f32 0.0, %v1165
      %1167 = vmatmul.f32.gmra.mxu0 %v322
      %v1168 = vpop.f32.mrf.mxu0
      %v1169 = vadd.f32 0.0, %v1168
      %1170 = vmatmul.f32.gmra.mxu0 %v323
      %v1171 = vpop.f32.mrf.mxu0
      %v1172 = vadd.f32 0.0, %v1171
      %1173 = vmatmul.f32.gmra.mxu0 %v324
      %v1174 = vpop.f32.mrf.mxu0
      %v1175 = vadd.f32 0.0, %v1174
      %1176 = vmatmul.f32.gmra.mxu0 %v325
      %v1177 = vpop.f32.mrf.mxu0
      %v1178 = vadd.f32 0.0, %v1177
      %1179 = vmatmul.f32.gmra.mxu0 %v326
      %v1180 = vpop.f32.mrf.mxu0
      %v1181 = vadd.f32 0.0, %v1180
      %1182 = vmatmul.f32.gmra.mxu0 %v327
      %v1183 = vpop.f32.mrf.mxu0
      %v1184 = vadd.f32 0.0, %v1183
      %1185 = vmatmul.f32.gmra.mxu0 %v328
      %v1186 = vpop.f32.mrf.mxu0
      %v1187 = vadd.f32 0.0, %v1186
      %1188 = vmatmul.f32.gmra.mxu0 %v329
      %v1189 = vpop.f32.mrf.mxu0
      %v1190 = vadd.f32 0.0, %v1189
      %1191 = vmatmul.f32.gmra.mxu0 %v330
      %v1192 = vpop.f32.mrf.mxu0
      %v1193 = vadd.f32 0.0, %v1192
      %1194 = vmatmul.f32.gmra.mxu0 %v331
      %v1195 = vpop.f32.mrf.mxu0
      %v1196 = vadd.f32 0.0, %v1195
      %1197 = vmatmul.f32.gmra.mxu0 %v332
      %v1198 = vpop.f32.mrf.mxu0
      %v1199 = vadd.f32 0.0, %v1198
      %1200 = vmatmul.f32.gmra.mxu0 %v333
      %v1201 = vpop.f32.mrf.mxu0
      %v1202 = vadd.f32 0.0, %v1201
      %1203 = vmatmul.f32.gmra.mxu0 %v334
      %v1204 = vpop.f32.mrf.mxu0
      %v1205 = vadd.f32 0.0, %v1204
      %1206 = vmatmul.f32.gmra.mxu0 %v335
      %v1207 = vpop.f32.mrf.mxu0
      %v1208 = vadd.f32 0.0, %v1207
      %1209 = vmatmul.f32.gmra.mxu0 %v336
      %v1210 = vpop.f32.mrf.mxu0
      %v1211 = vadd.f32 0.0, %v1210
      %1212 = vmatmul.f32.gmra.mxu0 %v337
      %v1213 = vpop.f32.mrf.mxu0
      %v1214 = vadd.f32 0.0, %v1213
      %1215 = vmatmul.f32.gmra.mxu0 %v338
      %v1216 = vpop.f32.mrf.mxu0
      %v1217 = vadd.f32 0.0, %v1216
      %1218 = vmatmul.f32.gmra.mxu0 %v339
      %v1219 = vpop.f32.mrf.mxu0
      %v1220 = vadd.f32 0.0, %v1219
      %1221 = vmatmul.f32.gmra.mxu0 %v340
      %v1222 = vpop.f32.mrf.mxu0
      %v1223 = vadd.f32 0.0, %v1222
      %1224 = vmatmul.f32.gmra.mxu0 %v341
      %v1225 = vpop.f32.mrf.mxu0
      %v1226 = vadd.f32 0.0, %v1225
      %1227 = vmatmul.f32.gmra.mxu0 %v342
      %v1228 = vpop.f32.mrf.mxu0
      %v1229 = vadd.f32 0.0, %v1228
      %1230 = vmatmul.f32.gmra.mxu0 %v343
      %v1231 = vpop.f32.mrf.mxu0
      %v1232 = vadd.f32 0.0, %v1231
      %1233 = vmatmul.f32.gmra.mxu0 %v344
      %v1234 = vpop.f32.mrf.mxu0
      %v1235 = vadd.f32 0.0, %v1234
      %1236 = vmatmul.f32.gmra.mxu0 %v345
      %v1237 = vpop.f32.mrf.mxu0
      %v1238 = vadd.f32 0.0, %v1237
      %1239 = vmatmul.f32.gmra.mxu0 %v346
      %v1240 = vpop.f32.mrf.mxu0
      %v1241 = vadd.f32 0.0, %v1240
      %1242 = vmatmul.f32.gmra.mxu0 %v347
      %v1243 = vpop.f32.mrf.mxu0
      %v1244 = vadd.f32 0.0, %v1243
      %1245 = vmatmul.f32.gmra.mxu0 %v348
      %v1246 = vpop.f32.mrf.mxu0
      %v1247 = vadd.f32 0.0, %v1246
      %1248 = vmatmul.f32.gmra.mxu0 %v349
      %v1249 = vpop.f32.mrf.mxu0
      %v1250 = vadd.f32 0.0, %v1249
      %1251 = vmatmul.f32.gmra.mxu0 %v350
      %v1252 = vpop.f32.mrf.mxu0
      %v1253 = vadd.f32 0.0, %v1252
      %1254 = vmatmul.f32.gmra.mxu0 %v351
      %v1255 = vpop.f32.mrf.mxu0
      %v1256 = vadd.f32 0.0, %v1255
      %1257 = vmatmul.f32.gmra.mxu0 %v352
      %v1258 = vpop.f32.mrf.mxu0
      %v1259 = vadd.f32 0.0, %v1258
      %1260 = vmatmul.f32.gmra.mxu0 %v353
      %v1261 = vpop.f32.mrf.mxu0
      %v1262 = vadd.f32 0.0, %v1261
      %1263 = vmatmul.f32.gmra.mxu0 %v354
      %v1264 = vpop.f32.mrf.mxu0
      %v1265 = vadd.f32 0.0, %v1264
      %1266 = vmatmul.f32.gmra.mxu0 %v355
      %v1267 = vpop.f32.mrf.mxu0
      %v1268 = vadd.f32 0.0, %v1267
      %1269 = vmatmul.f32.gmra.mxu0 %v356
      %v1270 = vpop.f32.mrf.mxu0
      %v1271 = vadd.f32 0.0, %v1270
      %1272 = vmatmul.f32.gmra.mxu0 %v357
      %v1273 = vpop.f32.mrf.mxu0
      %v1274 = vadd.f32 0.0, %v1273
      %1275 = vmatmul.f32.gmra.mxu0 %v358
      %v1276 = vpop.f32.mrf.mxu0
      %v1277 = vadd.f32 0.0, %v1276
      %1278 = vmatmul.f32.gmra.mxu0 %v359
      %v1279 = vpop.f32.mrf.mxu0
      %v1280 = vadd.f32 0.0, %v1279
      %1281 = vmatmul.f32.gmra.mxu0 %v360
      %v1282 = vpop.f32.mrf.mxu0
      %v1283 = vadd.f32 0.0, %v1282
      %1284 = vmatmul.f32.gmra.mxu0 %v361
      %v1285 = vpop.f32.mrf.mxu0
      %v1286 = vadd.f32 0.0, %v1285
      %1287 = vmatmul.f32.gmra.mxu0 %v362
      %v1288 = vpop.f32.mrf.mxu0
      %v1289 = vadd.f32 0.0, %v1288
      %1290 = vmatmul.f32.gmra.mxu0 %v363
      %v1291 = vpop.f32.mrf.mxu0
      %v1292 = vadd.f32 0.0, %v1291
      %1293 = vmatmul.f32.gmra.mxu0 %v364
      %v1294 = vpop.f32.mrf.mxu0
      %v1295 = vadd.f32 0.0, %v1294
      %1296 = vmatmul.f32.gmra.mxu0 %v365
      %v1297 = vpop.f32.mrf.mxu0
      %v1298 = vadd.f32 0.0, %v1297
      %1299 = vmatmul.f32.gmra.mxu0 %v366
      %v1300 = vpop.f32.mrf.mxu0
      %v1301 = vadd.f32 0.0, %v1300
      %1302 = vmatmul.f32.gmra.mxu0 %v367
      %v1303 = vpop.f32.mrf.mxu0
      %v1304 = vadd.f32 0.0, %v1303
      %1305 = vmatmul.f32.gmra.mxu0 %v368
      %v1306 = vpop.f32.mrf.mxu0
      %v1307 = vadd.f32 0.0, %v1306
      %1308 = vmatmul.f32.gmra.mxu0 %v369
      %v1309 = vpop.f32.mrf.mxu0
      %v1310 = vadd.f32 0.0, %v1309
      %1311 = vmatmul.f32.gmra.mxu0 %v370
      %v1312 = vpop.f32.mrf.mxu0
      %v1313 = vadd.f32 0.0, %v1312
      %1314 = vmatmul.f32.gmra.mxu0 %v371
      %v1315 = vpop.f32.mrf.mxu0
      %v1316 = vadd.f32 0.0, %v1315
      %1317 = vmatmul.f32.gmra.mxu0 %v372
      %v1318 = vpop.f32.mrf.mxu0
      %v1319 = vadd.f32 0.0, %v1318
      %1320 = vmatmul.f32.gmra.mxu0 %v373
      %v1321 = vpop.f32.mrf.mxu0
      %v1322 = vadd.f32 0.0, %v1321
      %1323 = vmatmul.f32.gmra.mxu0 %v374
      %v1324 = vpop.f32.mrf.mxu0
      %v1325 = vadd.f32 0.0, %v1324
      %1326 = vmatmul.f32.gmra.mxu0 %v375
      %v1327 = vpop.f32.mrf.mxu0
      %v1328 = vadd.f32 0.0, %v1327
      %1329 = vmatmul.f32.gmra.mxu0 %v376
      %v1330 = vpop.f32.mrf.mxu0
      %v1331 = vadd.f32 0.0, %v1330
      %1332 = vmatmul.f32.gmra.mxu0 %v377
      %v1333 = vpop.f32.mrf.mxu0
      %v1334 = vadd.f32 0.0, %v1333
      %1335 = vmatmul.f32.gmra.mxu0 %v378
      %v1336 = vpop.f32.mrf.mxu0
      %v1337 = vadd.f32 0.0, %v1336
      %1338 = vmatmul.f32.gmra.mxu0 %v379
      %v1339 = vpop.f32.mrf.mxu0
      %v1340 = vadd.f32 0.0, %v1339
      %1341 = vmatmul.f32.gmra.mxu0 %v380
      %v1342 = vpop.f32.mrf.mxu0
      %v1343 = vadd.f32 0.0, %v1342
      %1344 = vmatmul.f32.gmra.mxu0 %v381
      %v1345 = vpop.f32.mrf.mxu0
      %v1346 = vadd.f32 0.0, %v1345
      %1347 = vmatmul.f32.gmra.mxu0 %v382
      %v1348 = vpop.f32.mrf.mxu0
      %v1349 = vadd.f32 0.0, %v1348
      %1350 = vmatmul.f32.gmra.mxu0 %v383
      %v1351 = vpop.f32.mrf.mxu0
      %v1352 = vadd.f32 0.0, %v1351
      %1353 = vmatmul.f32.gmra.mxu0 %v384
      %v1354 = vpop.f32.mrf.mxu0
      %v1355 = vadd.f32 0.0, %v1354
      %1356 = vmatmul.f32.gmra.mxu0 %v385
      %v1357 = vpop.f32.mrf.mxu0
      %v1358 = vadd.f32 0.0, %v1357
      %1359 = vmatmul.f32.gmra.mxu0 %v386
      %v1360 = vpop.f32.mrf.mxu0
      %v1361 = vadd.f32 0.0, %v1360
      %1362 = vmatmul.f32.gmra.mxu0 %v387
      %v1363 = vpop.f32.mrf.mxu0
      %v1364 = vadd.f32 0.0, %v1363
      %1365 = vmatmul.f32.gmra.mxu0 %v388
      %v1366 = vpop.f32.mrf.mxu0
      %v1367 = vadd.f32 0.0, %v1366
      %1368 = vmatmul.f32.gmra.mxu0 %v389
      %v1369 = vpop.f32.mrf.mxu0
      %v1370 = vadd.f32 0.0, %v1369
      %1371 = vmatmul.f32.gmra.mxu0 %v390
      %v1372 = vpop.f32.mrf.mxu0
      %v1373 = vadd.f32 0.0, %v1372
      %1374 = vmatmul.f32.gmra.mxu0 %v391
      %v1375 = vpop.f32.mrf.mxu0
      %v1376 = vadd.f32 0.0, %v1375
      %1377 = vmatmul.f32.gmra.mxu0 %v392
      %v1378 = vpop.f32.mrf.mxu0
      %v1379 = vadd.f32 0.0, %v1378
      %1380 = vmatmul.f32.gmra.mxu0 %v393
      %v1381 = vpop.f32.mrf.mxu0
      %v1382 = vadd.f32 0.0, %v1381
      %1383 = vmatmul.f32.gmra.mxu0 %v394
      %v1384 = vpop.f32.mrf.mxu0
      %v1385 = vadd.f32 0.0, %v1384
      %1386 = vmatmul.f32.gmra.mxu0 %v395
      %v1387 = vpop.f32.mrf.mxu0
      %v1388 = vadd.f32 0.0, %v1387
      %1389 = vdwg.mxu0
      %1390 = vmatpush.msra.mxu0 %v233
      %1391 = vmatpush.msra.mxu0 %v229
      %1392 = vmatpush.msra.mxu0 %v225
      %1393 = vmatpush.msra.mxu0 %v221
      %1394 = vmatpush.msra.mxu0 %v217
      %1395 = vmatpush.msra.mxu0 %v213
      %1396 = vmatpush.msra.mxu0 %v209
      %1397 = vmatpush.msra.mxu0 %v205
      %1398 = vmatpush.msra.mxu0 %v201
      %1399 = vmatpush.msra.mxu0 %v197
      %1400 = vmatpush.msra.mxu0 %v193
      %1401 = vmatpush.msra.mxu0 %v189
      %1402 = vmatpush.msra.mxu0 %v185
      %1403 = vmatpush.msra.mxu0 %v181
      %1404 = vmatpush.msra.mxu0 %v177
      %1405 = vmatpush.msra.mxu0 %v173
      %1406 = vmatmul.f32.gmra.mxu0 %v236
      %v1407 = vpop.f32.mrf.mxu0
      %v1408 = vadd.f32 0.0, %v1407
      %1409 = vmatmul.f32.gmra.mxu0 %v237
      %v1410 = vpop.f32.mrf.mxu0
      %v1411 = vadd.f32 0.0, %v1410
      %1412 = vmatmul.f32.gmra.mxu0 %v238
      %v1413 = vpop.f32.mrf.mxu0
      %v1414 = vadd.f32 0.0, %v1413
      %1415 = vmatmul.f32.gmra.mxu0 %v239
      %v1416 = vpop.f32.mrf.mxu0
      %v1417 = vadd.f32 0.0, %v1416
      %1418 = vmatmul.f32.gmra.mxu0 %v240
      %v1419 = vpop.f32.mrf.mxu0
      %v1420 = vadd.f32 0.0, %v1419
      %1421 = vmatmul.f32.gmra.mxu0 %v241
      %v1422 = vpop.f32.mrf.mxu0
      %v1423 = vadd.f32 0.0, %v1422
      %1424 = vmatmul.f32.gmra.mxu0 %v242
      %v1425 = vpop.f32.mrf.mxu0
      %v1426 = vadd.f32 0.0, %v1425
      %1427 = vmatmul.f32.gmra.mxu0 %v243
      %v1428 = vpop.f32.mrf.mxu0
      %v1429 = vadd.f32 0.0, %v1428
      %1430 = vmatmul.f32.gmra.mxu0 %v244
      %v1431 = vpop.f32.mrf.mxu0
      %v1432 = vadd.f32 0.0, %v1431
      %1433 = vmatmul.f32.gmra.mxu0 %v245
      %v1434 = vpop.f32.mrf.mxu0
      %v1435 = vadd.f32 0.0, %v1434
      %1436 = vmatmul.f32.gmra.mxu0 %v246
      %v1437 = vpop.f32.mrf.mxu0
      %v1438 = vadd.f32 0.0, %v1437
      %1439 = vmatmul.f32.gmra.mxu0 %v247
      %v1440 = vpop.f32.mrf.mxu0
      %v1441 = vadd.f32 0.0, %v1440
      %1442 = vmatmul.f32.gmra.mxu0 %v248
      %v1443 = vpop.f32.mrf.mxu0
      %v1444 = vadd.f32 0.0, %v1443
      %1445 = vmatmul.f32.gmra.mxu0 %v249
      %v1446 = vpop.f32.mrf.mxu0
      %v1447 = vadd.f32 0.0, %v1446
      %1448 = vmatmul.f32.gmra.mxu0 %v250
      %v1449 = vpop.f32.mrf.mxu0
      %v1450 = vadd.f32 0.0, %v1449
      %1451 = vmatmul.f32.gmra.mxu0 %v251
      %v1452 = vpop.f32.mrf.mxu0
      %v1453 = vadd.f32 0.0, %v1452
      %1454 = vmatmul.f32.gmra.mxu0 %v252
      %v1455 = vpop.f32.mrf.mxu0
      %v1456 = vadd.f32 0.0, %v1455
      %1457 = vmatmul.f32.gmra.mxu0 %v253
      %v1458 = vpop.f32.mrf.mxu0
      %v1459 = vadd.f32 0.0, %v1458
      %1460 = vmatmul.f32.gmra.mxu0 %v254
      %v1461 = vpop.f32.mrf.mxu0
      %v1462 = vadd.f32 0.0, %v1461
      %1463 = vmatmul.f32.gmra.mxu0 %v255
      %v1464 = vpop.f32.mrf.mxu0
      %v1465 = vadd.f32 0.0, %v1464
      %1466 = vmatmul.f32.gmra.mxu0 %v256
      %v1467 = vpop.f32.mrf.mxu0
      %v1468 = vadd.f32 0.0, %v1467
      %1469 = vmatmul.f32.gmra.mxu0 %v257
      %v1470 = vpop.f32.mrf.mxu0
      %v1471 = vadd.f32 0.0, %v1470
      %1472 = vmatmul.f32.gmra.mxu0 %v258
      %v1473 = vpop.f32.mrf.mxu0
      %v1474 = vadd.f32 0.0, %v1473
      %1475 = vmatmul.f32.gmra.mxu0 %v259
      %v1476 = vpop.f32.mrf.mxu0
      %v1477 = vadd.f32 0.0, %v1476
      %1478 = vmatmul.f32.gmra.mxu0 %v260
      %v1479 = vpop.f32.mrf.mxu0
      %v1480 = vadd.f32 0.0, %v1479
      %1481 = vmatmul.f32.gmra.mxu0 %v261
      %v1482 = vpop.f32.mrf.mxu0
      %v1483 = vadd.f32 0.0, %v1482
      %1484 = vmatmul.f32.gmra.mxu0 %v262
      %v1485 = vpop.f32.mrf.mxu0
      %v1486 = vadd.f32 0.0, %v1485
      %1487 = vmatmul.f32.gmra.mxu0 %v263
      %v1488 = vpop.f32.mrf.mxu0
      %v1489 = vadd.f32 0.0, %v1488
      %1490 = vmatmul.f32.gmra.mxu0 %v264
      %v1491 = vpop.f32.mrf.mxu0
      %v1492 = vadd.f32 0.0, %v1491
      %1493 = vmatmul.f32.gmra.mxu0 %v265
      %v1494 = vpop.f32.mrf.mxu0
      %v1495 = vadd.f32 0.0, %v1494
      %1496 = vmatmul.f32.gmra.mxu0 %v266
      %v1497 = vpop.f32.mrf.mxu0
      %v1498 = vadd.f32 0.0, %v1497
      %1499 = vmatmul.f32.gmra.mxu0 %v267
      %v1500 = vpop.f32.mrf.mxu0
      %v1501 = vadd.f32 0.0, %v1500
      %1502 = vmatmul.f32.gmra.mxu0 %v268
      %v1503 = vpop.f32.mrf.mxu0
      %v1504 = vadd.f32 0.0, %v1503
      %1505 = vmatmul.f32.gmra.mxu0 %v269
      %v1506 = vpop.f32.mrf.mxu0
      %v1507 = vadd.f32 0.0, %v1506
      %1508 = vmatmul.f32.gmra.mxu0 %v270
      %v1509 = vpop.f32.mrf.mxu0
      %v1510 = vadd.f32 0.0, %v1509
      %1511 = vmatmul.f32.gmra.mxu0 %v271
      %v1512 = vpop.f32.mrf.mxu0
      %v1513 = vadd.f32 0.0, %v1512
      %1514 = vmatmul.f32.gmra.mxu0 %v272
      %v1515 = vpop.f32.mrf.mxu0
      %v1516 = vadd.f32 0.0, %v1515
      %1517 = vmatmul.f32.gmra.mxu0 %v273
      %v1518 = vpop.f32.mrf.mxu0
      %v1519 = vadd.f32 0.0, %v1518
      %1520 = vmatmul.f32.gmra.mxu0 %v274
      %v1521 = vpop.f32.mrf.mxu0
      %v1522 = vadd.f32 0.0, %v1521
      %1523 = vmatmul.f32.gmra.mxu0 %v275
      %v1524 = vpop.f32.mrf.mxu0
      %v1525 = vadd.f32 0.0, %v1524
      %1526 = vmatmul.f32.gmra.mxu0 %v276
      %v1527 = vpop.f32.mrf.mxu0
      %v1528 = vadd.f32 0.0, %v1527
      %1529 = vmatmul.f32.gmra.mxu0 %v277
      %v1530 = vpop.f32.mrf.mxu0
      %v1531 = vadd.f32 0.0, %v1530
      %1532 = vmatmul.f32.gmra.mxu0 %v278
      %v1533 = vpop.f32.mrf.mxu0
      %v1534 = vadd.f32 0.0, %v1533
      %1535 = vmatmul.f32.gmra.mxu0 %v279
      %v1536 = vpop.f32.mrf.mxu0
      %v1537 = vadd.f32 0.0, %v1536
      %1538 = vmatmul.f32.gmra.mxu0 %v280
      %v1539 = vpop.f32.mrf.mxu0
      %v1540 = vadd.f32 0.0, %v1539
      %1541 = vmatmul.f32.gmra.mxu0 %v281
      %v1542 = vpop.f32.mrf.mxu0
      %v1543 = vadd.f32 0.0, %v1542
      %1544 = vmatmul.f32.gmra.mxu0 %v282
      %v1545 = vpop.f32.mrf.mxu0
      %v1546 = vadd.f32 0.0, %v1545
      %1547 = vmatmul.f32.gmra.mxu0 %v283
      %v1548 = vpop.f32.mrf.mxu0
      %v1549 = vadd.f32 0.0, %v1548
      %1550 = vmatmul.f32.gmra.mxu0 %v284
      %v1551 = vpop.f32.mrf.mxu0
      %v1552 = vadd.f32 0.0, %v1551
      %1553 = vmatmul.f32.gmra.mxu0 %v285
      %v1554 = vpop.f32.mrf.mxu0
      %v1555 = vadd.f32 0.0, %v1554
      %1556 = vmatmul.f32.gmra.mxu0 %v286
      %v1557 = vpop.f32.mrf.mxu0
      %v1558 = vadd.f32 0.0, %v1557
      %1559 = vmatmul.f32.gmra.mxu0 %v287
      %v1560 = vpop.f32.mrf.mxu0
      %v1561 = vadd.f32 0.0, %v1560
      %1562 = vmatmul.f32.gmra.mxu0 %v288
      %v1563 = vpop.f32.mrf.mxu0
      %v1564 = vadd.f32 0.0, %v1563
      %1565 = vmatmul.f32.gmra.mxu0 %v289
      %v1566 = vpop.f32.mrf.mxu0
      %v1567 = vadd.f32 0.0, %v1566
      %1568 = vmatmul.f32.gmra.mxu0 %v290
      %v1569 = vpop.f32.mrf.mxu0
      %v1570 = vadd.f32 0.0, %v1569
      %1571 = vmatmul.f32.gmra.mxu0 %v291
      %v1572 = vpop.f32.mrf.mxu0
      %v1573 = vadd.f32 0.0, %v1572
      %1574 = vmatmul.f32.gmra.mxu0 %v292
      %v1575 = vpop.f32.mrf.mxu0
      %v1576 = vadd.f32 0.0, %v1575
      %1577 = vmatmul.f32.gmra.mxu0 %v293
      %v1578 = vpop.f32.mrf.mxu0
      %v1579 = vadd.f32 0.0, %v1578
      %1580 = vmatmul.f32.gmra.mxu0 %v294
      %v1581 = vpop.f32.mrf.mxu0
      %v1582 = vadd.f32 0.0, %v1581
      %1583 = vmatmul.f32.gmra.mxu0 %v295
      %v1584 = vpop.f32.mrf.mxu0
      %v1585 = vadd.f32 0.0, %v1584
      %1586 = vmatmul.f32.gmra.mxu0 %v296
      %v1587 = vpop.f32.mrf.mxu0
      %v1588 = vadd.f32 0.0, %v1587
      %1589 = vmatmul.f32.gmra.mxu0 %v297
      %v1590 = vpop.f32.mrf.mxu0
      %v1591 = vadd.f32 0.0, %v1590
      %1592 = vmatmul.f32.gmra.mxu0 %v298
      %v1593 = vpop.f32.mrf.mxu0
      %v1594 = vadd.f32 0.0, %v1593
      %1595 = vmatmul.f32.gmra.mxu0 %v299
      %v1596 = vpop.f32.mrf.mxu0
      %v1597 = vadd.f32 0.0, %v1596
      %1598 = vmatmul.f32.gmra.mxu0 %v300
      %v1599 = vpop.f32.mrf.mxu0
      %v1600 = vadd.f32 0.0, %v1599
      %1601 = vmatmul.f32.gmra.mxu0 %v301
      %v1602 = vpop.f32.mrf.mxu0
      %v1603 = vadd.f32 0.0, %v1602
      %1604 = vmatmul.f32.gmra.mxu0 %v302
      %v1605 = vpop.f32.mrf.mxu0
      %v1606 = vadd.f32 0.0, %v1605
      %1607 = vmatmul.f32.gmra.mxu0 %v303
      %v1608 = vpop.f32.mrf.mxu0
      %v1609 = vadd.f32 0.0, %v1608
      %1610 = vmatmul.f32.gmra.mxu0 %v304
      %v1611 = vpop.f32.mrf.mxu0
      %v1612 = vadd.f32 0.0, %v1611
      %1613 = vmatmul.f32.gmra.mxu0 %v305
      %v1614 = vpop.f32.mrf.mxu0
      %v1615 = vadd.f32 0.0, %v1614
      %1616 = vmatmul.f32.gmra.mxu0 %v306
      %v1617 = vpop.f32.mrf.mxu0
      %v1618 = vadd.f32 0.0, %v1617
      %1619 = vmatmul.f32.gmra.mxu0 %v307
      %v1620 = vpop.f32.mrf.mxu0
      %v1621 = vadd.f32 0.0, %v1620
      %1622 = vmatmul.f32.gmra.mxu0 %v308
      %v1623 = vpop.f32.mrf.mxu0
      %v1624 = vadd.f32 0.0, %v1623
      %1625 = vmatmul.f32.gmra.mxu0 %v309
      %v1626 = vpop.f32.mrf.mxu0
      %v1627 = vadd.f32 0.0, %v1626
      %1628 = vmatmul.f32.gmra.mxu0 %v310
      %v1629 = vpop.f32.mrf.mxu0
      %v1630 = vadd.f32 0.0, %v1629
      %1631 = vmatmul.f32.gmra.mxu0 %v311
      %v1632 = vpop.f32.mrf.mxu0
      %v1633 = vadd.f32 0.0, %v1632
      %1634 = vmatmul.f32.gmra.mxu0 %v312
      %v1635 = vpop.f32.mrf.mxu0
      %v1636 = vadd.f32 0.0, %v1635
      %1637 = vmatmul.f32.gmra.mxu0 %v313
      %v1638 = vpop.f32.mrf.mxu0
      %v1639 = vadd.f32 0.0, %v1638
      %1640 = vmatmul.f32.gmra.mxu0 %v314
      %v1641 = vpop.f32.mrf.mxu0
      %v1642 = vadd.f32 0.0, %v1641
      %1643 = vmatmul.f32.gmra.mxu0 %v315
      %v1644 = vpop.f32.mrf.mxu0
      %v1645 = vadd.f32 0.0, %v1644
      %1646 = vmatmul.f32.gmra.mxu0 %v316
      %v1647 = vpop.f32.mrf.mxu0
      %v1648 = vadd.f32 0.0, %v1647
      %1649 = vmatmul.f32.gmra.mxu0 %v317
      %v1650 = vpop.f32.mrf.mxu0
      %v1651 = vadd.f32 0.0, %v1650
      %1652 = vmatmul.f32.gmra.mxu0 %v318
      %v1653 = vpop.f32.mrf.mxu0
      %v1654 = vadd.f32 0.0, %v1653
      %1655 = vmatmul.f32.gmra.mxu0 %v319
      %v1656 = vpop.f32.mrf.mxu0
      %v1657 = vadd.f32 0.0, %v1656
      %1658 = vmatmul.f32.gmra.mxu0 %v320
      %v1659 = vpop.f32.mrf.mxu0
      %v1660 = vadd.f32 0.0, %v1659
      %1661 = vmatmul.f32.gmra.mxu0 %v321
      %v1662 = vpop.f32.mrf.mxu0
      %v1663 = vadd.f32 0.0, %v1662
      %1664 = vmatmul.f32.gmra.mxu0 %v322
      %v1665 = vpop.f32.mrf.mxu0
      %v1666 = vadd.f32 0.0, %v1665
      %1667 = vmatmul.f32.gmra.mxu0 %v323
      %v1668 = vpop.f32.mrf.mxu0
      %v1669 = vadd.f32 0.0, %v1668
      %1670 = vmatmul.f32.gmra.mxu0 %v324
      %v1671 = vpop.f32.mrf.mxu0
      %v1672 = vadd.f32 0.0, %v1671
      %1673 = vmatmul.f32.gmra.mxu0 %v325
      %v1674 = vpop.f32.mrf.mxu0
      %v1675 = vadd.f32 0.0, %v1674
      %1676 = vmatmul.f32.gmra.mxu0 %v326
      %v1677 = vpop.f32.mrf.mxu0
      %v1678 = vadd.f32 0.0, %v1677
      %1679 = vmatmul.f32.gmra.mxu0 %v327
      %v1680 = vpop.f32.mrf.mxu0
      %v1681 = vadd.f32 0.0, %v1680
      %1682 = vmatmul.f32.gmra.mxu0 %v328
      %v1683 = vpop.f32.mrf.mxu0
      %v1684 = vadd.f32 0.0, %v1683
      %1685 = vmatmul.f32.gmra.mxu0 %v329
      %v1686 = vpop.f32.mrf.mxu0
      %v1687 = vadd.f32 0.0, %v1686
      %1688 = vmatmul.f32.gmra.mxu0 %v330
      %v1689 = vpop.f32.mrf.mxu0
      %v1690 = vadd.f32 0.0, %v1689
      %1691 = vmatmul.f32.gmra.mxu0 %v331
      %v1692 = vpop.f32.mrf.mxu0
      %v1693 = vadd.f32 0.0, %v1692
      %1694 = vmatmul.f32.gmra.mxu0 %v332
      %v1695 = vpop.f32.mrf.mxu0
      %v1696 = vadd.f32 0.0, %v1695
      %1697 = vmatmul.f32.gmra.mxu0 %v333
      %v1698 = vpop.f32.mrf.mxu0
      %v1699 = vadd.f32 0.0, %v1698
      %1700 = vmatmul.f32.gmra.mxu0 %v334
      %v1701 = vpop.f32.mrf.mxu0
      %v1702 = vadd.f32 0.0, %v1701
      %1703 = vmatmul.f32.gmra.mxu0 %v335
      %v1704 = vpop.f32.mrf.mxu0
      %v1705 = vadd.f32 0.0, %v1704
      %1706 = vmatmul.f32.gmra.mxu0 %v336
      %v1707 = vpop.f32.mrf.mxu0
      %v1708 = vadd.f32 0.0, %v1707
      %1709 = vmatmul.f32.gmra.mxu0 %v337
      %v1710 = vpop.f32.mrf.mxu0
      %v1711 = vadd.f32 0.0, %v1710
      %1712 = vmatmul.f32.gmra.mxu0 %v338
      %v1713 = vpop.f32.mrf.mxu0
      %v1714 = vadd.f32 0.0, %v1713
      %1715 = vmatmul.f32.gmra.mxu0 %v339
      %v1716 = vpop.f32.mrf.mxu0
      %v1717 = vadd.f32 0.0, %v1716
      %1718 = vmatmul.f32.gmra.mxu0 %v340
      %v1719 = vpop.f32.mrf.mxu0
      %v1720 = vadd.f32 0.0, %v1719
      %1721 = vmatmul.f32.gmra.mxu0 %v341
      %v1722 = vpop.f32.mrf.mxu0
      %v1723 = vadd.f32 0.0, %v1722
      %1724 = vmatmul.f32.gmra.mxu0 %v342
      %v1725 = vpop.f32.mrf.mxu0
      %v1726 = vadd.f32 0.0, %v1725
      %1727 = vmatmul.f32.gmra.mxu0 %v343
      %v1728 = vpop.f32.mrf.mxu0
      %v1729 = vadd.f32 0.0, %v1728
      %1730 = vmatmul.f32.gmra.mxu0 %v344
      %v1731 = vpop.f32.mrf.mxu0
      %v1732 = vadd.f32 0.0, %v1731
      %1733 = vmatmul.f32.gmra.mxu0 %v345
      %v1734 = vpop.f32.mrf.mxu0
      %v1735 = vadd.f32 0.0, %v1734
      %1736 = vmatmul.f32.gmra.mxu0 %v346
      %v1737 = vpop.f32.mrf.mxu0
      %v1738 = vadd.f32 0.0, %v1737
      %1739 = vmatmul.f32.gmra.mxu0 %v347
      %v1740 = vpop.f32.mrf.mxu0
      %v1741 = vadd.f32 0.0, %v1740
      %1742 = vmatmul.f32.gmra.mxu0 %v348
      %v1743 = vpop.f32.mrf.mxu0
      %v1744 = vadd.f32 0.0, %v1743
      %1745 = vmatmul.f32.gmra.mxu0 %v349
      %v1746 = vpop.f32.mrf.mxu0
      %v1747 = vadd.f32 0.0, %v1746
      %1748 = vmatmul.f32.gmra.mxu0 %v350
      %v1749 = vpop.f32.mrf.mxu0
      %v1750 = vadd.f32 0.0, %v1749
      %1751 = vmatmul.f32.gmra.mxu0 %v351
      %v1752 = vpop.f32.mrf.mxu0
      %v1753 = vadd.f32 0.0, %v1752
      %1754 = vmatmul.f32.gmra.mxu0 %v352
      %v1755 = vpop.f32.mrf.mxu0
      %v1756 = vadd.f32 0.0, %v1755
      %1757 = vmatmul.f32.gmra.mxu0 %v353
      %v1758 = vpop.f32.mrf.mxu0
      %v1759 = vadd.f32 0.0, %v1758
      %1760 = vmatmul.f32.gmra.mxu0 %v354
      %v1761 = vpop.f32.mrf.mxu0
      %v1762 = vadd.f32 0.0, %v1761
      %1763 = vmatmul.f32.gmra.mxu0 %v355
      %v1764 = vpop.f32.mrf.mxu0
      %v1765 = vadd.f32 0.0, %v1764
      %1766 = vmatmul.f32.gmra.mxu0 %v356
      %v1767 = vpop.f32.mrf.mxu0
      %v1768 = vadd.f32 0.0, %v1767
      %1769 = vmatmul.f32.gmra.mxu0 %v357
      %v1770 = vpop.f32.mrf.mxu0
      %v1771 = vadd.f32 0.0, %v1770
      %1772 = vmatmul.f32.gmra.mxu0 %v358
      %v1773 = vpop.f32.mrf.mxu0
      %v1774 = vadd.f32 0.0, %v1773
      %1775 = vmatmul.f32.gmra.mxu0 %v359
      %v1776 = vpop.f32.mrf.mxu0
      %v1777 = vadd.f32 0.0, %v1776
      %1778 = vmatmul.f32.gmra.mxu0 %v360
      %v1779 = vpop.f32.mrf.mxu0
      %v1780 = vadd.f32 0.0, %v1779
      %1781 = vmatmul.f32.gmra.mxu0 %v361
      %v1782 = vpop.f32.mrf.mxu0
      %v1783 = vadd.f32 0.0, %v1782
      %1784 = vmatmul.f32.gmra.mxu0 %v362
      %v1785 = vpop.f32.mrf.mxu0
      %v1786 = vadd.f32 0.0, %v1785
      %1787 = vmatmul.f32.gmra.mxu0 %v363
      %v1788 = vpop.f32.mrf.mxu0
      %v1789 = vadd.f32 0.0, %v1788
      %1790 = vmatmul.f32.gmra.mxu0 %v364
      %v1791 = vpop.f32.mrf.mxu0
      %v1792 = vadd.f32 0.0, %v1791
      %1793 = vmatmul.f32.gmra.mxu0 %v365
      %v1794 = vpop.f32.mrf.mxu0
      %v1795 = vadd.f32 0.0, %v1794
      %1796 = vmatmul.f32.gmra.mxu0 %v366
      %v1797 = vpop.f32.mrf.mxu0
      %v1798 = vadd.f32 0.0, %v1797
      %1799 = vmatmul.f32.gmra.mxu0 %v367
      %v1800 = vpop.f32.mrf.mxu0
      %v1801 = vadd.f32 0.0, %v1800
      %1802 = vmatmul.f32.gmra.mxu0 %v368
      %v1803 = vpop.f32.mrf.mxu0
      %v1804 = vadd.f32 0.0, %v1803
      %1805 = vmatmul.f32.gmra.mxu0 %v369
      %v1806 = vpop.f32.mrf.mxu0
      %v1807 = vadd.f32 0.0, %v1806
      %1808 = vmatmul.f32.gmra.mxu0 %v370
      %v1809 = vpop.f32.mrf.mxu0
      %v1810 = vadd.f32 0.0, %v1809
      %1811 = vmatmul.f32.gmra.mxu0 %v371
      %v1812 = vpop.f32.mrf.mxu0
      %v1813 = vadd.f32 0.0, %v1812
      %1814 = vmatmul.f32.gmra.mxu0 %v372
      %v1815 = vpop.f32.mrf.mxu0
      %v1816 = vadd.f32 0.0, %v1815
      %1817 = vmatmul.f32.gmra.mxu0 %v373
      %v1818 = vpop.f32.mrf.mxu0
      %v1819 = vadd.f32 0.0, %v1818
      %1820 = vmatmul.f32.gmra.mxu0 %v374
      %v1821 = vpop.f32.mrf.mxu0
      %v1822 = vadd.f32 0.0, %v1821
      %1823 = vmatmul.f32.gmra.mxu0 %v375
      %v1824 = vpop.f32.mrf.mxu0
      %v1825 = vadd.f32 0.0, %v1824
      %1826 = vmatmul.f32.gmra.mxu0 %v376
      %v1827 = vpop.f32.mrf.mxu0
      %v1828 = vadd.f32 0.0, %v1827
      %1829 = vmatmul.f32.gmra.mxu0 %v377
      %v1830 = vpop.f32.mrf.mxu0
      %v1831 = vadd.f32 0.0, %v1830
      %1832 = vmatmul.f32.gmra.mxu0 %v378
      %v1833 = vpop.f32.mrf.mxu0
      %v1834 = vadd.f32 0.0, %v1833
      %1835 = vmatmul.f32.gmra.mxu0 %v379
      %v1836 = vpop.f32.mrf.mxu0
      %v1837 = vadd.f32 0.0, %v1836
      %1838 = vmatmul.f32.gmra.mxu0 %v380
      %v1839 = vpop.f32.mrf.mxu0
      %v1840 = vadd.f32 0.0, %v1839
      %1841 = vmatmul.f32.gmra.mxu0 %v381
      %v1842 = vpop.f32.mrf.mxu0
      %v1843 = vadd.f32 0.0, %v1842
      %1844 = vmatmul.f32.gmra.mxu0 %v382
      %v1845 = vpop.f32.mrf.mxu0
      %v1846 = vadd.f32 0.0, %v1845
      %1847 = vmatmul.f32.gmra.mxu0 %v383
      %v1848 = vpop.f32.mrf.mxu0
      %v1849 = vadd.f32 0.0, %v1848
      %1850 = vmatmul.f32.gmra.mxu0 %v384
      %v1851 = vpop.f32.mrf.mxu0
      %v1852 = vadd.f32 0.0, %v1851
      %1853 = vmatmul.f32.gmra.mxu0 %v385
      %v1854 = vpop.f32.mrf.mxu0
      %v1855 = vadd.f32 0.0, %v1854
      %1856 = vmatmul.f32.gmra.mxu0 %v386
      %v1857 = vpop.f32.mrf.mxu0
      %v1858 = vadd.f32 0.0, %v1857
      %1859 = vmatmul.f32.gmra.mxu0 %v387
      %v1860 = vpop.f32.mrf.mxu0
      %v1861 = vadd.f32 0.0, %v1860
      %1862 = vmatmul.f32.gmra.mxu0 %v388
      %v1863 = vpop.f32.mrf.mxu0
      %v1864 = vadd.f32 0.0, %v1863
      %1865 = vmatmul.f32.gmra.mxu0 %v389
      %v1866 = vpop.f32.mrf.mxu0
      %v1867 = vadd.f32 0.0, %v1866
      %1868 = vmatmul.f32.gmra.mxu0 %v390
      %v1869 = vpop.f32.mrf.mxu0
      %v1870 = vadd.f32 0.0, %v1869
      %1871 = vmatmul.f32.gmra.mxu0 %v391
      %v1872 = vpop.f32.mrf.mxu0
      %v1873 = vadd.f32 0.0, %v1872
      %1874 = vmatmul.f32.gmra.mxu0 %v392
      %v1875 = vpop.f32.mrf.mxu0
      %v1876 = vadd.f32 0.0, %v1875
      %1877 = vmatmul.f32.gmra.mxu0 %v393
      %v1878 = vpop.f32.mrf.mxu0
      %v1879 = vadd.f32 0.0, %v1878
      %1880 = vmatmul.f32.gmra.mxu0 %v394
      %v1881 = vpop.f32.mrf.mxu0
      %v1882 = vadd.f32 0.0, %v1881
      %1883 = vmatmul.f32.gmra.mxu0 %v395
      %v1884 = vpop.f32.mrf.mxu0
      %v1885 = vadd.f32 0.0, %v1884
      %1886 = vdwg.mxu0
      %1887 = vmatpush.msra.mxu0 %v234
      %1888 = vmatpush.msra.mxu0 %v230
      %1889 = vmatpush.msra.mxu0 %v226
      %1890 = vmatpush.msra.mxu0 %v222
      %1891 = vmatpush.msra.mxu0 %v218
      %1892 = vmatpush.msra.mxu0 %v214
      %1893 = vmatpush.msra.mxu0 %v210
      %1894 = vmatpush.msra.mxu0 %v206
      %1895 = vmatpush.msra.mxu0 %v202
      %1896 = vmatpush.msra.mxu0 %v198
      %1897 = vmatpush.msra.mxu0 %v194
      %1898 = vmatpush.msra.mxu0 %v190
      %1899 = vmatpush.msra.mxu0 %v186
      %1900 = vmatpush.msra.mxu0 %v182
      %1901 = vmatpush.msra.mxu0 %v178
      %1902 = vmatpush.msra.mxu0 %v174
      %1903 = vmatmul.f32.gmra.mxu0 %v236
      %v1904 = vpop.f32.mrf.mxu0
      %v1905 = vadd.f32 0.0, %v1904
      %1906 = vmatmul.f32.gmra.mxu0 %v237
      %v1907 = vpop.f32.mrf.mxu0
      %v1908 = vadd.f32 0.0, %v1907
      %1909 = vmatmul.f32.gmra.mxu0 %v238
      %v1910 = vpop.f32.mrf.mxu0
      %v1911 = vadd.f32 0.0, %v1910
      %1912 = vmatmul.f32.gmra.mxu0 %v239
      %v1913 = vpop.f32.mrf.mxu0
      %v1914 = vadd.f32 0.0, %v1913
      %1915 = vmatmul.f32.gmra.mxu0 %v240
      %v1916 = vpop.f32.mrf.mxu0
      %v1917 = vadd.f32 0.0, %v1916
      %1918 = vmatmul.f32.gmra.mxu0 %v241
      %v1919 = vpop.f32.mrf.mxu0
      %v1920 = vadd.f32 0.0, %v1919
      %1921 = vmatmul.f32.gmra.mxu0 %v242
      %v1922 = vpop.f32.mrf.mxu0
      %v1923 = vadd.f32 0.0, %v1922
      %1924 = vmatmul.f32.gmra.mxu0 %v243
      %v1925 = vpop.f32.mrf.mxu0
      %v1926 = vadd.f32 0.0, %v1925
      %1927 = vmatmul.f32.gmra.mxu0 %v244
      %v1928 = vpop.f32.mrf.mxu0
      %v1929 = vadd.f32 0.0, %v1928
      %1930 = vmatmul.f32.gmra.mxu0 %v245
      %v1931 = vpop.f32.mrf.mxu0
      %v1932 = vadd.f32 0.0, %v1931
      %1933 = vmatmul.f32.gmra.mxu0 %v246
      %v1934 = vpop.f32.mrf.mxu0
      %v1935 = vadd.f32 0.0, %v1934
      %1936 = vmatmul.f32.gmra.mxu0 %v247
      %v1937 = vpop.f32.mrf.mxu0
      %v1938 = vadd.f32 0.0, %v1937
      %1939 = vmatmul.f32.gmra.mxu0 %v248
      %v1940 = vpop.f32.mrf.mxu0
      %v1941 = vadd.f32 0.0, %v1940
      %1942 = vmatmul.f32.gmra.mxu0 %v249
      %v1943 = vpop.f32.mrf.mxu0
      %v1944 = vadd.f32 0.0, %v1943
      %1945 = vmatmul.f32.gmra.mxu0 %v250
      %v1946 = vpop.f32.mrf.mxu0
      %v1947 = vadd.f32 0.0, %v1946
      %1948 = vmatmul.f32.gmra.mxu0 %v251
      %v1949 = vpop.f32.mrf.mxu0
      %v1950 = vadd.f32 0.0, %v1949
      %1951 = vmatmul.f32.gmra.mxu0 %v252
      %v1952 = vpop.f32.mrf.mxu0
      %v1953 = vadd.f32 0.0, %v1952
      %1954 = vmatmul.f32.gmra.mxu0 %v253
      %v1955 = vpop.f32.mrf.mxu0
      %v1956 = vadd.f32 0.0, %v1955
      %1957 = vmatmul.f32.gmra.mxu0 %v254
      %v1958 = vpop.f32.mrf.mxu0
      %v1959 = vadd.f32 0.0, %v1958
      %1960 = vmatmul.f32.gmra.mxu0 %v255
      %v1961 = vpop.f32.mrf.mxu0
      %v1962 = vadd.f32 0.0, %v1961
      %1963 = vmatmul.f32.gmra.mxu0 %v256
      %v1964 = vpop.f32.mrf.mxu0
      %v1965 = vadd.f32 0.0, %v1964
      %1966 = vmatmul.f32.gmra.mxu0 %v257
      %v1967 = vpop.f32.mrf.mxu0
      %v1968 = vadd.f32 0.0, %v1967
      %1969 = vmatmul.f32.gmra.mxu0 %v258
      %v1970 = vpop.f32.mrf.mxu0
      %v1971 = vadd.f32 0.0, %v1970
      %1972 = vmatmul.f32.gmra.mxu0 %v259
      %v1973 = vpop.f32.mrf.mxu0
      %v1974 = vadd.f32 0.0, %v1973
      %1975 = vmatmul.f32.gmra.mxu0 %v260
      %v1976 = vpop.f32.mrf.mxu0
      %v1977 = vadd.f32 0.0, %v1976
      %1978 = vmatmul.f32.gmra.mxu0 %v261
      %v1979 = vpop.f32.mrf.mxu0
      %v1980 = vadd.f32 0.0, %v1979
      %1981 = vmatmul.f32.gmra.mxu0 %v262
      %v1982 = vpop.f32.mrf.mxu0
      %v1983 = vadd.f32 0.0, %v1982
      %1984 = vmatmul.f32.gmra.mxu0 %v263
      %v1985 = vpop.f32.mrf.mxu0
      %v1986 = vadd.f32 0.0, %v1985
      %1987 = vmatmul.f32.gmra.mxu0 %v264
      %v1988 = vpop.f32.mrf.mxu0
      %v1989 = vadd.f32 0.0, %v1988
      %1990 = vmatmul.f32.gmra.mxu0 %v265
      %v1991 = vpop.f32.mrf.mxu0
      %v1992 = vadd.f32 0.0, %v1991
      %1993 = vmatmul.f32.gmra.mxu0 %v266
      %v1994 = vpop.f32.mrf.mxu0
      %v1995 = vadd.f32 0.0, %v1994
      %1996 = vmatmul.f32.gmra.mxu0 %v267
      %v1997 = vpop.f32.mrf.mxu0
      %v1998 = vadd.f32 0.0, %v1997
      %1999 = vmatmul.f32.gmra.mxu0 %v268
      %v2000 = vpop.f32.mrf.mxu0
      %v2001 = vadd.f32 0.0, %v2000
      %2002 = vmatmul.f32.gmra.mxu0 %v269
      %v2003 = vpop.f32.mrf.mxu0
      %v2004 = vadd.f32 0.0, %v2003
      %2005 = vmatmul.f32.gmra.mxu0 %v270
      %v2006 = vpop.f32.mrf.mxu0
      %v2007 = vadd.f32 0.0, %v2006
      %2008 = vmatmul.f32.gmra.mxu0 %v271
      %v2009 = vpop.f32.mrf.mxu0
      %v2010 = vadd.f32 0.0, %v2009
      %2011 = vmatmul.f32.gmra.mxu0 %v272
      %v2012 = vpop.f32.mrf.mxu0
      %v2013 = vadd.f32 0.0, %v2012
      %2014 = vmatmul.f32.gmra.mxu0 %v273
      %v2015 = vpop.f32.mrf.mxu0
      %v2016 = vadd.f32 0.0, %v2015
      %2017 = vmatmul.f32.gmra.mxu0 %v274
      %v2018 = vpop.f32.mrf.mxu0
      %v2019 = vadd.f32 0.0, %v2018
      %2020 = vmatmul.f32.gmra.mxu0 %v275
      %v2021 = vpop.f32.mrf.mxu0
      %v2022 = vadd.f32 0.0, %v2021
      %2023 = vmatmul.f32.gmra.mxu0 %v276
      %v2024 = vpop.f32.mrf.mxu0
      %v2025 = vadd.f32 0.0, %v2024
      %2026 = vmatmul.f32.gmra.mxu0 %v277
      %v2027 = vpop.f32.mrf.mxu0
      %v2028 = vadd.f32 0.0, %v2027
      %2029 = vmatmul.f32.gmra.mxu0 %v278
      %v2030 = vpop.f32.mrf.mxu0
      %v2031 = vadd.f32 0.0, %v2030
      %2032 = vmatmul.f32.gmra.mxu0 %v279
      %v2033 = vpop.f32.mrf.mxu0
      %v2034 = vadd.f32 0.0, %v2033
      %2035 = vmatmul.f32.gmra.mxu0 %v280
      %v2036 = vpop.f32.mrf.mxu0
      %v2037 = vadd.f32 0.0, %v2036
      %2038 = vmatmul.f32.gmra.mxu0 %v281
      %v2039 = vpop.f32.mrf.mxu0
      %v2040 = vadd.f32 0.0, %v2039
      %2041 = vmatmul.f32.gmra.mxu0 %v282
      %v2042 = vpop.f32.mrf.mxu0
      %v2043 = vadd.f32 0.0, %v2042
      %2044 = vmatmul.f32.gmra.mxu0 %v283
      %v2045 = vpop.f32.mrf.mxu0
      %v2046 = vadd.f32 0.0, %v2045
      %2047 = vmatmul.f32.gmra.mxu0 %v284
      %v2048 = vpop.f32.mrf.mxu0
      %v2049 = vadd.f32 0.0, %v2048
      %2050 = vmatmul.f32.gmra.mxu0 %v285
      %v2051 = vpop.f32.mrf.mxu0
      %v2052 = vadd.f32 0.0, %v2051
      %2053 = vmatmul.f32.gmra.mxu0 %v286
      %v2054 = vpop.f32.mrf.mxu0
      %v2055 = vadd.f32 0.0, %v2054
      %2056 = vmatmul.f32.gmra.mxu0 %v287
      %v2057 = vpop.f32.mrf.mxu0
      %v2058 = vadd.f32 0.0, %v2057
      %2059 = vmatmul.f32.gmra.mxu0 %v288
      %v2060 = vpop.f32.mrf.mxu0
      %v2061 = vadd.f32 0.0, %v2060
      %2062 = vmatmul.f32.gmra.mxu0 %v289
      %v2063 = vpop.f32.mrf.mxu0
      %v2064 = vadd.f32 0.0, %v2063
      %2065 = vmatmul.f32.gmra.mxu0 %v290
      %v2066 = vpop.f32.mrf.mxu0
      %v2067 = vadd.f32 0.0, %v2066
      %2068 = vmatmul.f32.gmra.mxu0 %v291
      %v2069 = vpop.f32.mrf.mxu0
      %v2070 = vadd.f32 0.0, %v2069
      %2071 = vmatmul.f32.gmra.mxu0 %v292
      %v2072 = vpop.f32.mrf.mxu0
      %v2073 = vadd.f32 0.0, %v2072
      %2074 = vmatmul.f32.gmra.mxu0 %v293
      %v2075 = vpop.f32.mrf.mxu0
      %v2076 = vadd.f32 0.0, %v2075
      %2077 = vmatmul.f32.gmra.mxu0 %v294
      %v2078 = vpop.f32.mrf.mxu0
      %v2079 = vadd.f32 0.0, %v2078
      %2080 = vmatmul.f32.gmra.mxu0 %v295
      %v2081 = vpop.f32.mrf.mxu0
      %v2082 = vadd.f32 0.0, %v2081
      %2083 = vmatmul.f32.gmra.mxu0 %v296
      %v2084 = vpop.f32.mrf.mxu0
      %v2085 = vadd.f32 0.0, %v2084
      %2086 = vmatmul.f32.gmra.mxu0 %v297
      %v2087 = vpop.f32.mrf.mxu0
      %v2088 = vadd.f32 0.0, %v2087
      %2089 = vmatmul.f32.gmra.mxu0 %v298
      %v2090 = vpop.f32.mrf.mxu0
      %v2091 = vadd.f32 0.0, %v2090
      %2092 = vmatmul.f32.gmra.mxu0 %v299
      %v2093 = vpop.f32.mrf.mxu0
      %v2094 = vadd.f32 0.0, %v2093
      %2095 = vmatmul.f32.gmra.mxu0 %v300
      %v2096 = vpop.f32.mrf.mxu0
      %v2097 = vadd.f32 0.0, %v2096
      %2098 = vmatmul.f32.gmra.mxu0 %v301
      %v2099 = vpop.f32.mrf.mxu0
      %v2100 = vadd.f32 0.0, %v2099
      %2101 = vmatmul.f32.gmra.mxu0 %v302
      %v2102 = vpop.f32.mrf.mxu0
      %v2103 = vadd.f32 0.0, %v2102
      %2104 = vmatmul.f32.gmra.mxu0 %v303
      %v2105 = vpop.f32.mrf.mxu0
      %v2106 = vadd.f32 0.0, %v2105
      %2107 = vmatmul.f32.gmra.mxu0 %v304
      %v2108 = vpop.f32.mrf.mxu0
      %v2109 = vadd.f32 0.0, %v2108
      %2110 = vmatmul.f32.gmra.mxu0 %v305
      %v2111 = vpop.f32.mrf.mxu0
      %v2112 = vadd.f32 0.0, %v2111
      %2113 = vmatmul.f32.gmra.mxu0 %v306
      %v2114 = vpop.f32.mrf.mxu0
      %v2115 = vadd.f32 0.0, %v2114
      %2116 = vmatmul.f32.gmra.mxu0 %v307
      %v2117 = vpop.f32.mrf.mxu0
      %v2118 = vadd.f32 0.0, %v2117
      %2119 = vmatmul.f32.gmra.mxu0 %v308
      %v2120 = vpop.f32.mrf.mxu0
      %v2121 = vadd.f32 0.0, %v2120
      %2122 = vmatmul.f32.gmra.mxu0 %v309
      %v2123 = vpop.f32.mrf.mxu0
      %v2124 = vadd.f32 0.0, %v2123
      %2125 = vmatmul.f32.gmra.mxu0 %v310
      %v2126 = vpop.f32.mrf.mxu0
      %v2127 = vadd.f32 0.0, %v2126
      %2128 = vmatmul.f32.gmra.mxu0 %v311
      %v2129 = vpop.f32.mrf.mxu0
      %v2130 = vadd.f32 0.0, %v2129
      %2131 = vmatmul.f32.gmra.mxu0 %v312
      %v2132 = vpop.f32.mrf.mxu0
      %v2133 = vadd.f32 0.0, %v2132
      %2134 = vmatmul.f32.gmra.mxu0 %v313
      %v2135 = vpop.f32.mrf.mxu0
      %v2136 = vadd.f32 0.0, %v2135
      %2137 = vmatmul.f32.gmra.mxu0 %v314
      %v2138 = vpop.f32.mrf.mxu0
      %v2139 = vadd.f32 0.0, %v2138
      %2140 = vmatmul.f32.gmra.mxu0 %v315
      %v2141 = vpop.f32.mrf.mxu0
      %v2142 = vadd.f32 0.0, %v2141
      %2143 = vmatmul.f32.gmra.mxu0 %v316
      %v2144 = vpop.f32.mrf.mxu0
      %v2145 = vadd.f32 0.0, %v2144
      %2146 = vmatmul.f32.gmra.mxu0 %v317
      %v2147 = vpop.f32.mrf.mxu0
      %v2148 = vadd.f32 0.0, %v2147
      %2149 = vmatmul.f32.gmra.mxu0 %v318
      %v2150 = vpop.f32.mrf.mxu0
      %v2151 = vadd.f32 0.0, %v2150
      %2152 = vmatmul.f32.gmra.mxu0 %v319
      %v2153 = vpop.f32.mrf.mxu0
      %v2154 = vadd.f32 0.0, %v2153
      %2155 = vmatmul.f32.gmra.mxu0 %v320
      %v2156 = vpop.f32.mrf.mxu0
      %v2157 = vadd.f32 0.0, %v2156
      %2158 = vmatmul.f32.gmra.mxu0 %v321
      %v2159 = vpop.f32.mrf.mxu0
      %v2160 = vadd.f32 0.0, %v2159
      %2161 = vmatmul.f32.gmra.mxu0 %v322
      %v2162 = vpop.f32.mrf.mxu0
      %v2163 = vadd.f32 0.0, %v2162
      %2164 = vmatmul.f32.gmra.mxu0 %v323
      %v2165 = vpop.f32.mrf.mxu0
      %v2166 = vadd.f32 0.0, %v2165
      %2167 = vmatmul.f32.gmra.mxu0 %v324
      %v2168 = vpop.f32.mrf.mxu0
      %v2169 = vadd.f32 0.0, %v2168
      %2170 = vmatmul.f32.gmra.mxu0 %v325
      %v2171 = vpop.f32.mrf.mxu0
      %v2172 = vadd.f32 0.0, %v2171
      %2173 = vmatmul.f32.gmra.mxu0 %v326
      %v2174 = vpop.f32.mrf.mxu0
      %v2175 = vadd.f32 0.0, %v2174
      %2176 = vmatmul.f32.gmra.mxu0 %v327
      %v2177 = vpop.f32.mrf.mxu0
      %v2178 = vadd.f32 0.0, %v2177
      %2179 = vmatmul.f32.gmra.mxu0 %v328
      %v2180 = vpop.f32.mrf.mxu0
      %v2181 = vadd.f32 0.0, %v2180
      %2182 = vmatmul.f32.gmra.mxu0 %v329
      %v2183 = vpop.f32.mrf.mxu0
      %v2184 = vadd.f32 0.0, %v2183
      %2185 = vmatmul.f32.gmra.mxu0 %v330
      %v2186 = vpop.f32.mrf.mxu0
      %v2187 = vadd.f32 0.0, %v2186
      %2188 = vmatmul.f32.gmra.mxu0 %v331
      %v2189 = vpop.f32.mrf.mxu0
      %v2190 = vadd.f32 0.0, %v2189
      %2191 = vmatmul.f32.gmra.mxu0 %v332
      %v2192 = vpop.f32.mrf.mxu0
      %v2193 = vadd.f32 0.0, %v2192
      %2194 = vmatmul.f32.gmra.mxu0 %v333
      %v2195 = vpop.f32.mrf.mxu0
      %v2196 = vadd.f32 0.0, %v2195
      %2197 = vmatmul.f32.gmra.mxu0 %v334
      %v2198 = vpop.f32.mrf.mxu0
      %v2199 = vadd.f32 0.0, %v2198
      %2200 = vmatmul.f32.gmra.mxu0 %v335
      %v2201 = vpop.f32.mrf.mxu0
      %v2202 = vadd.f32 0.0, %v2201
      %2203 = vmatmul.f32.gmra.mxu0 %v336
      %v2204 = vpop.f32.mrf.mxu0
      %v2205 = vadd.f32 0.0, %v2204
      %2206 = vmatmul.f32.gmra.mxu0 %v337
      %v2207 = vpop.f32.mrf.mxu0
      %v2208 = vadd.f32 0.0, %v2207
      %2209 = vmatmul.f32.gmra.mxu0 %v338
      %v2210 = vpop.f32.mrf.mxu0
      %v2211 = vadd.f32 0.0, %v2210
      %2212 = vmatmul.f32.gmra.mxu0 %v339
      %v2213 = vpop.f32.mrf.mxu0
      %v2214 = vadd.f32 0.0, %v2213
      %2215 = vmatmul.f32.gmra.mxu0 %v340
      %v2216 = vpop.f32.mrf.mxu0
      %v2217 = vadd.f32 0.0, %v2216
      %2218 = vmatmul.f32.gmra.mxu0 %v341
      %v2219 = vpop.f32.mrf.mxu0
      %v2220 = vadd.f32 0.0, %v2219
      %2221 = vmatmul.f32.gmra.mxu0 %v342
      %v2222 = vpop.f32.mrf.mxu0
      %v2223 = vadd.f32 0.0, %v2222
      %2224 = vmatmul.f32.gmra.mxu0 %v343
      %v2225 = vpop.f32.mrf.mxu0
      %v2226 = vadd.f32 0.0, %v2225
      %2227 = vmatmul.f32.gmra.mxu0 %v344
      %v2228 = vpop.f32.mrf.mxu0
      %v2229 = vadd.f32 0.0, %v2228
      %2230 = vmatmul.f32.gmra.mxu0 %v345
      %v2231 = vpop.f32.mrf.mxu0
      %v2232 = vadd.f32 0.0, %v2231
      %2233 = vmatmul.f32.gmra.mxu0 %v346
      %v2234 = vpop.f32.mrf.mxu0
      %v2235 = vadd.f32 0.0, %v2234
      %2236 = vmatmul.f32.gmra.mxu0 %v347
      %v2237 = vpop.f32.mrf.mxu0
      %v2238 = vadd.f32 0.0, %v2237
      %2239 = vmatmul.f32.gmra.mxu0 %v348
      %v2240 = vpop.f32.mrf.mxu0
      %v2241 = vadd.f32 0.0, %v2240
      %2242 = vmatmul.f32.gmra.mxu0 %v349
      %v2243 = vpop.f32.mrf.mxu0
      %v2244 = vadd.f32 0.0, %v2243
      %2245 = vmatmul.f32.gmra.mxu0 %v350
      %v2246 = vpop.f32.mrf.mxu0
      %v2247 = vadd.f32 0.0, %v2246
      %2248 = vmatmul.f32.gmra.mxu0 %v351
      %v2249 = vpop.f32.mrf.mxu0
      %v2250 = vadd.f32 0.0, %v2249
      %2251 = vmatmul.f32.gmra.mxu0 %v352
      %v2252 = vpop.f32.mrf.mxu0
      %v2253 = vadd.f32 0.0, %v2252
      %2254 = vmatmul.f32.gmra.mxu0 %v353
      %v2255 = vpop.f32.mrf.mxu0
      %v2256 = vadd.f32 0.0, %v2255
      %2257 = vmatmul.f32.gmra.mxu0 %v354
      %v2258 = vpop.f32.mrf.mxu0
      %v2259 = vadd.f32 0.0, %v2258
      %2260 = vmatmul.f32.gmra.mxu0 %v355
      %v2261 = vpop.f32.mrf.mxu0
      %v2262 = vadd.f32 0.0, %v2261
      %2263 = vmatmul.f32.gmra.mxu0 %v356
      %v2264 = vpop.f32.mrf.mxu0
      %v2265 = vadd.f32 0.0, %v2264
      %2266 = vmatmul.f32.gmra.mxu0 %v357
      %v2267 = vpop.f32.mrf.mxu0
      %v2268 = vadd.f32 0.0, %v2267
      %2269 = vmatmul.f32.gmra.mxu0 %v358
      %v2270 = vpop.f32.mrf.mxu0
      %v2271 = vadd.f32 0.0, %v2270
      %2272 = vmatmul.f32.gmra.mxu0 %v359
      %v2273 = vpop.f32.mrf.mxu0
      %v2274 = vadd.f32 0.0, %v2273
      %2275 = vmatmul.f32.gmra.mxu0 %v360
      %v2276 = vpop.f32.mrf.mxu0
      %v2277 = vadd.f32 0.0, %v2276
      %2278 = vmatmul.f32.gmra.mxu0 %v361
      %v2279 = vpop.f32.mrf.mxu0
      %v2280 = vadd.f32 0.0, %v2279
      %2281 = vmatmul.f32.gmra.mxu0 %v362
      %v2282 = vpop.f32.mrf.mxu0
      %v2283 = vadd.f32 0.0, %v2282
      %2284 = vmatmul.f32.gmra.mxu0 %v363
      %v2285 = vpop.f32.mrf.mxu0
      %v2286 = vadd.f32 0.0, %v2285
      %2287 = vmatmul.f32.gmra.mxu0 %v364
      %v2288 = vpop.f32.mrf.mxu0
      %v2289 = vadd.f32 0.0, %v2288
      %2290 = vmatmul.f32.gmra.mxu0 %v365
      %v2291 = vpop.f32.mrf.mxu0
      %v2292 = vadd.f32 0.0, %v2291
      %2293 = vmatmul.f32.gmra.mxu0 %v366
      %v2294 = vpop.f32.mrf.mxu0
      %v2295 = vadd.f32 0.0, %v2294
      %2296 = vmatmul.f32.gmra.mxu0 %v367
      %v2297 = vpop.f32.mrf.mxu0
      %v2298 = vadd.f32 0.0, %v2297
      %2299 = vmatmul.f32.gmra.mxu0 %v368
      %v2300 = vpop.f32.mrf.mxu0
      %v2301 = vadd.f32 0.0, %v2300
      %2302 = vmatmul.f32.gmra.mxu0 %v369
      %v2303 = vpop.f32.mrf.mxu0
      %v2304 = vadd.f32 0.0, %v2303
      %2305 = vmatmul.f32.gmra.mxu0 %v370
      %v2306 = vpop.f32.mrf.mxu0
      %v2307 = vadd.f32 0.0, %v2306
      %2308 = vmatmul.f32.gmra.mxu0 %v371
      %v2309 = vpop.f32.mrf.mxu0
      %v2310 = vadd.f32 0.0, %v2309
      %2311 = vmatmul.f32.gmra.mxu0 %v372
      %v2312 = vpop.f32.mrf.mxu0
      %v2313 = vadd.f32 0.0, %v2312
      %2314 = vmatmul.f32.gmra.mxu0 %v373
      %v2315 = vpop.f32.mrf.mxu0
      %v2316 = vadd.f32 0.0, %v2315
      %2317 = vmatmul.f32.gmra.mxu0 %v374
      %v2318 = vpop.f32.mrf.mxu0
      %v2319 = vadd.f32 0.0, %v2318
      %2320 = vmatmul.f32.gmra.mxu0 %v375
      %v2321 = vpop.f32.mrf.mxu0
      %v2322 = vadd.f32 0.0, %v2321
      %2323 = vmatmul.f32.gmra.mxu0 %v376
      %v2324 = vpop.f32.mrf.mxu0
      %v2325 = vadd.f32 0.0, %v2324
      %2326 = vmatmul.f32.gmra.mxu0 %v377
      %v2327 = vpop.f32.mrf.mxu0
      %v2328 = vadd.f32 0.0, %v2327
      %2329 = vmatmul.f32.gmra.mxu0 %v378
      %v2330 = vpop.f32.mrf.mxu0
      %v2331 = vadd.f32 0.0, %v2330
      %2332 = vmatmul.f32.gmra.mxu0 %v379
      %v2333 = vpop.f32.mrf.mxu0
      %v2334 = vadd.f32 0.0, %v2333
      %2335 = vmatmul.f32.gmra.mxu0 %v380
      %v2336 = vpop.f32.mrf.mxu0
      %v2337 = vadd.f32 0.0, %v2336
      %2338 = vmatmul.f32.gmra.mxu0 %v381
      %v2339 = vpop.f32.mrf.mxu0
      %v2340 = vadd.f32 0.0, %v2339
      %2341 = vmatmul.f32.gmra.mxu0 %v382
      %v2342 = vpop.f32.mrf.mxu0
      %v2343 = vadd.f32 0.0, %v2342
      %2344 = vmatmul.f32.gmra.mxu0 %v383
      %v2345 = vpop.f32.mrf.mxu0
      %v2346 = vadd.f32 0.0, %v2345
      %2347 = vmatmul.f32.gmra.mxu0 %v384
      %v2348 = vpop.f32.mrf.mxu0
      %v2349 = vadd.f32 0.0, %v2348
      %2350 = vmatmul.f32.gmra.mxu0 %v385
      %v2351 = vpop.f32.mrf.mxu0
      %v2352 = vadd.f32 0.0, %v2351
      %2353 = vmatmul.f32.gmra.mxu0 %v386
      %v2354 = vpop.f32.mrf.mxu0
      %v2355 = vadd.f32 0.0, %v2354
      %2356 = vmatmul.f32.gmra.mxu0 %v387
      %v2357 = vpop.f32.mrf.mxu0
      %v2358 = vadd.f32 0.0, %v2357
      %2359 = vmatmul.f32.gmra.mxu0 %v388
      %v2360 = vpop.f32.mrf.mxu0
      %v2361 = vadd.f32 0.0, %v2360
      %2362 = vmatmul.f32.gmra.mxu0 %v389
      %v2363 = vpop.f32.mrf.mxu0
      %v2364 = vadd.f32 0.0, %v2363
      %2365 = vmatmul.f32.gmra.mxu0 %v390
      %v2366 = vpop.f32.mrf.mxu0
      %v2367 = vadd.f32 0.0, %v2366
      %2368 = vmatmul.f32.gmra.mxu0 %v391
      %v2369 = vpop.f32.mrf.mxu0
      %v2370 = vadd.f32 0.0, %v2369
      %2371 = vmatmul.f32.gmra.mxu0 %v392
      %v2372 = vpop.f32.mrf.mxu0
      %v2373 = vadd.f32 0.0, %v2372
      %2374 = vmatmul.f32.gmra.mxu0 %v393
      %v2375 = vpop.f32.mrf.mxu0
      %v2376 = vadd.f32 0.0, %v2375
      %2377 = vmatmul.f32.gmra.mxu0 %v394
      %v2378 = vpop.f32.mrf.mxu0
      %v2379 = vadd.f32 0.0, %v2378
      %2380 = vmatmul.f32.gmra.mxu0 %v395
      %v2381 = vpop.f32.mrf.mxu0
      %v2382 = vadd.f32 0.0, %v2381
      %2383 = vdwg.mxu0
      %v2384 = vmax.f32 %v414, %v911
      %v2385 = vmax.f32 %v417, %v914
      %v2386 = vmax.f32 %v420, %v917
      %v2387 = vmax.f32 %v423, %v920
      %v2388 = vmax.f32 %v426, %v923
      %v2389 = vmax.f32 %v429, %v926
      %v2390 = vmax.f32 %v432, %v929
      %v2391 = vmax.f32 %v435, %v932
      %v2392 = vmax.f32 %v438, %v935
      %v2393 = vmax.f32 %v441, %v938
      %v2394 = vmax.f32 %v444, %v941
      %v2395 = vmax.f32 %v447, %v944
      %v2396 = vmax.f32 %v450, %v947
      %v2397 = vmax.f32 %v453, %v950
      %v2398 = vmax.f32 %v456, %v953
      %v2399 = vmax.f32 %v459, %v956
      %v2400 = vmax.f32 %v462, %v959
      %v2401 = vmax.f32 %v465, %v962
      %v2402 = vmax.f32 %v468, %v965
      %v2403 = vmax.f32 %v471, %v968
      %v2404 = vmax.f32 %v474, %v971
      %v2405 = vmax.f32 %v477, %v974
      %v2406 = vmax.f32 %v480, %v977
      %v2407 = vmax.f32 %v483, %v980
      %v2408 = vmax.f32 %v486, %v983
      %v2409 = vmax.f32 %v489, %v986
      %v2410 = vmax.f32 %v492, %v989
      %v2411 = vmax.f32 %v495, %v992
      %v2412 = vmax.f32 %v498, %v995
      %v2413 = vmax.f32 %v501, %v998
      %v2414 = vmax.f32 %v504, %v1001
      %v2415 = vmax.f32 %v507, %v1004
      %v2416 = vmax.f32 %v510, %v1007
      %v2417 = vmax.f32 %v513, %v1010
      %v2418 = vmax.f32 %v516, %v1013
      %v2419 = vmax.f32 %v519, %v1016
      %v2420 = vmax.f32 %v522, %v1019
      %v2421 = vmax.f32 %v525, %v1022
      %v2422 = vmax.f32 %v528, %v1025
      %v2423 = vmax.f32 %v531, %v1028
      %v2424 = vmax.f32 %v534, %v1031
      %v2425 = vmax.f32 %v537, %v1034
      %v2426 = vmax.f32 %v540, %v1037
      %v2427 = vmax.f32 %v543, %v1040
      %v2428 = vmax.f32 %v546, %v1043
      %v2429 = vmax.f32 %v549, %v1046
      %v2430 = vmax.f32 %v552, %v1049
      %v2431 = vmax.f32 %v555, %v1052
      %v2432 = vmax.f32 %v558, %v1055
      %v2433 = vmax.f32 %v561, %v1058
      %v2434 = vmax.f32 %v564, %v1061
      %v2435 = vmax.f32 %v567, %v1064
      %v2436 = vmax.f32 %v570, %v1067
      %v2437 = vmax.f32 %v573, %v1070
      %v2438 = vmax.f32 %v576, %v1073
      %v2439 = vmax.f32 %v579, %v1076
      %v2440 = vmax.f32 %v582, %v1079
      %v2441 = vmax.f32 %v585, %v1082
      %v2442 = vmax.f32 %v588, %v1085
      %v2443 = vmax.f32 %v591, %v1088
      %v2444 = vmax.f32 %v594, %v1091
      %v2445 = vmax.f32 %v597, %v1094
      %v2446 = vmax.f32 %v600, %v1097
      %v2447 = vmax.f32 %v603, %v1100
      %v2448 = vmax.f32 %v606, %v1103
      %v2449 = vmax.f32 %v609, %v1106
      %v2450 = vmax.f32 %v612, %v1109
      %v2451 = vmax.f32 %v615, %v1112
      %v2452 = vmax.f32 %v618, %v1115
      %v2453 = vmax.f32 %v621, %v1118
      %v2454 = vmax.f32 %v624, %v1121
      %v2455 = vmax.f32 %v627, %v1124
      %v2456 = vmax.f32 %v630, %v1127
      %v2457 = vmax.f32 %v633, %v1130
      %v2458 = vmax.f32 %v636, %v1133
      %v2459 = vmax.f32 %v639, %v1136
      %v2460 = vmax.f32 %v642, %v1139
      %v2461 = vmax.f32 %v645, %v1142
      %v2462 = vmax.f32 %v648, %v1145
      %v2463 = vmax.f32 %v651, %v1148
      %v2464 = vmax.f32 %v654, %v1151
      %v2465 = vmax.f32 %v657, %v1154
      %v2466 = vmax.f32 %v660, %v1157
      %v2467 = vmax.f32 %v663, %v1160
      %v2468 = vmax.f32 %v666, %v1163
      %v2469 = vmax.f32 %v669, %v1166
      %v2470 = vmax.f32 %v672, %v1169
      %v2471 = vmax.f32 %v675, %v1172
      %v2472 = vmax.f32 %v678, %v1175
      %v2473 = vmax.f32 %v681, %v1178
      %v2474 = vmax.f32 %v684, %v1181
      %v2475 = vmax.f32 %v687, %v1184
      %v2476 = vmax.f32 %v690, %v1187
      %v2477 = vmax.f32 %v693, %v1190
      %v2478 = vmax.f32 %v696, %v1193
      %v2479 = vmax.f32 %v699, %v1196
      %v2480 = vmax.f32 %v702, %v1199
      %v2481 = vmax.f32 %v705, %v1202
      %v2482 = vmax.f32 %v708, %v1205
      %v2483 = vmax.f32 %v711, %v1208
      %v2484 = vmax.f32 %v714, %v1211
      %v2485 = vmax.f32 %v717, %v1214
      %v2486 = vmax.f32 %v720, %v1217
      %v2487 = vmax.f32 %v723, %v1220
      %v2488 = vmax.f32 %v726, %v1223
      %v2489 = vmax.f32 %v729, %v1226
      %v2490 = vmax.f32 %v732, %v1229
      %v2491 = vmax.f32 %v735, %v1232
      %v2492 = vmax.f32 %v738, %v1235
      %v2493 = vmax.f32 %v741, %v1238
      %v2494 = vmax.f32 %v744, %v1241
      %v2495 = vmax.f32 %v747, %v1244
      %v2496 = vmax.f32 %v750, %v1247
      %v2497 = vmax.f32 %v753, %v1250
      %v2498 = vmax.f32 %v756, %v1253
      %v2499 = vmax.f32 %v759, %v1256
      %v2500 = vmax.f32 %v762, %v1259
      %v2501 = vmax.f32 %v765, %v1262
      %v2502 = vmax.f32 %v768, %v1265
      %v2503 = vmax.f32 %v771, %v1268
      %v2504 = vmax.f32 %v774, %v1271
      %v2505 = vmax.f32 %v777, %v1274
      %v2506 = vmax.f32 %v780, %v1277
      %v2507 = vmax.f32 %v783, %v1280
      %v2508 = vmax.f32 %v786, %v1283
      %v2509 = vmax.f32 %v789, %v1286
      %v2510 = vmax.f32 %v792, %v1289
      %v2511 = vmax.f32 %v795, %v1292
      %v2512 = vmax.f32 %v798, %v1295
      %v2513 = vmax.f32 %v801, %v1298
      %v2514 = vmax.f32 %v804, %v1301
      %v2515 = vmax.f32 %v807, %v1304
      %v2516 = vmax.f32 %v810, %v1307
      %v2517 = vmax.f32 %v813, %v1310
      %v2518 = vmax.f32 %v816, %v1313
      %v2519 = vmax.f32 %v819, %v1316
      %v2520 = vmax.f32 %v822, %v1319
      %v2521 = vmax.f32 %v825, %v1322
      %v2522 = vmax.f32 %v828, %v1325
      %v2523 = vmax.f32 %v831, %v1328
      %v2524 = vmax.f32 %v834, %v1331
      %v2525 = vmax.f32 %v837, %v1334
      %v2526 = vmax.f32 %v840, %v1337
      %v2527 = vmax.f32 %v843, %v1340
      %v2528 = vmax.f32 %v846, %v1343
      %v2529 = vmax.f32 %v849, %v1346
      %v2530 = vmax.f32 %v852, %v1349
      %v2531 = vmax.f32 %v855, %v1352
      %v2532 = vmax.f32 %v858, %v1355
      %v2533 = vmax.f32 %v861, %v1358
      %v2534 = vmax.f32 %v864, %v1361
      %v2535 = vmax.f32 %v867, %v1364
      %v2536 = vmax.f32 %v870, %v1367
      %v2537 = vmax.f32 %v873, %v1370
      %v2538 = vmax.f32 %v876, %v1373
      %v2539 = vmax.f32 %v879, %v1376
      %v2540 = vmax.f32 %v882, %v1379
      %v2541 = vmax.f32 %v885, %v1382
      %v2542 = vmax.f32 %v888, %v1385
      %v2543 = vmax.f32 %v891, %v1388
      %v2544 = vmax.f32 %v1408, %v1905
      %v2545 = vmax.f32 %v1411, %v1908
      %v2546 = vmax.f32 %v1414, %v1911
      %v2547 = vmax.f32 %v1417, %v1914
      %v2548 = vmax.f32 %v1420, %v1917
      %v2549 = vmax.f32 %v1423, %v1920
      %v2550 = vmax.f32 %v1426, %v1923
      %v2551 = vmax.f32 %v1429, %v1926
      %v2552 = vmax.f32 %v1432, %v1929
      %v2553 = vmax.f32 %v1435, %v1932
      %v2554 = vmax.f32 %v1438, %v1935
      %v2555 = vmax.f32 %v1441, %v1938
      %v2556 = vmax.f32 %v1444, %v1941
      %v2557 = vmax.f32 %v1447, %v1944
      %v2558 = vmax.f32 %v1450, %v1947
      %v2559 = vmax.f32 %v1453, %v1950
      %v2560 = vmax.f32 %v1456, %v1953
      %v2561 = vmax.f32 %v1459, %v1956
      %v2562 = vmax.f32 %v1462, %v1959
      %v2563 = vmax.f32 %v1465, %v1962
      %v2564 = vmax.f32 %v1468, %v1965
      %v2565 = vmax.f32 %v1471, %v1968
      %v2566 = vmax.f32 %v1474, %v1971
      %v2567 = vmax.f32 %v1477, %v1974
      %v2568 = vmax.f32 %v1480, %v1977
      %v2569 = vmax.f32 %v1483, %v1980
      %v2570 = vmax.f32 %v1486, %v1983
      %v2571 = vmax.f32 %v1489, %v1986
      %v2572 = vmax.f32 %v1492, %v1989
      %v2573 = vmax.f32 %v1495, %v1992
      %v2574 = vmax.f32 %v1498, %v1995
      %v2575 = vmax.f32 %v1501, %v1998
      %v2576 = vmax.f32 %v1504, %v2001
      %v2577 = vmax.f32 %v1507, %v2004
      %v2578 = vmax.f32 %v1510, %v2007
      %v2579 = vmax.f32 %v1513, %v2010
      %v2580 = vmax.f32 %v1516, %v2013
      %v2581 = vmax.f32 %v1519, %v2016
      %v2582 = vmax.f32 %v1522, %v2019
      %v2583 = vmax.f32 %v1525, %v2022
      %v2584 = vmax.f32 %v1528, %v2025
      %v2585 = vmax.f32 %v1531, %v2028
      %v2586 = vmax.f32 %v1534, %v2031
      %v2587 = vmax.f32 %v1537, %v2034
      %v2588 = vmax.f32 %v1540, %v2037
      %v2589 = vmax.f32 %v1543, %v2040
      %v2590 = vmax.f32 %v1546, %v2043
      %v2591 = vmax.f32 %v1549, %v2046
      %v2592 = vmax.f32 %v1552, %v2049
      %v2593 = vmax.f32 %v1555, %v2052
      %v2594 = vmax.f32 %v1558, %v2055
      %v2595 = vmax.f32 %v1561, %v2058
      %v2596 = vmax.f32 %v1564, %v2061
      %v2597 = vmax.f32 %v1567, %v2064
      %v2598 = vmax.f32 %v1570, %v2067
      %v2599 = vmax.f32 %v1573, %v2070
      %v2600 = vmax.f32 %v1576, %v2073
      %v2601 = vmax.f32 %v1579, %v2076
      %v2602 = vmax.f32 %v1582, %v2079
      %v2603 = vmax.f32 %v1585, %v2082
      %v2604 = vmax.f32 %v1588, %v2085
      %v2605 = vmax.f32 %v1591, %v2088
      %v2606 = vmax.f32 %v1594, %v2091
      %v2607 = vmax.f32 %v1597, %v2094
      %v2608 = vmax.f32 %v1600, %v2097
      %v2609 = vmax.f32 %v1603, %v2100
      %v2610 = vmax.f32 %v1606, %v2103
      %v2611 = vmax.f32 %v1609, %v2106
      %v2612 = vmax.f32 %v1612, %v2109
      %v2613 = vmax.f32 %v1615, %v2112
      %v2614 = vmax.f32 %v1618, %v2115
      %v2615 = vmax.f32 %v1621, %v2118
      %v2616 = vmax.f32 %v1624, %v2121
      %v2617 = vmax.f32 %v1627, %v2124
      %v2618 = vmax.f32 %v1630, %v2127
      %v2619 = vmax.f32 %v1633, %v2130
      %v2620 = vmax.f32 %v1636, %v2133
      %v2621 = vmax.f32 %v1639, %v2136
      %v2622 = vmax.f32 %v1642, %v2139
      %v2623 = vmax.f32 %v1645, %v2142
      %v2624 = vmax.f32 %v1648, %v2145
      %v2625 = vmax.f32 %v1651, %v2148
      %v2626 = vmax.f32 %v1654, %v2151
      %v2627 = vmax.f32 %v1657, %v2154
      %v2628 = vmax.f32 %v1660, %v2157
      %v2629 = vmax.f32 %v1663, %v2160
      %v2630 = vmax.f32 %v1666, %v2163
      %v2631 = vmax.f32 %v1669, %v2166
      %v2632 = vmax.f32 %v1672, %v2169
      %v2633 = vmax.f32 %v1675, %v2172
      %v2634 = vmax.f32 %v1678, %v2175
      %v2635 = vmax.f32 %v1681, %v2178
      %v2636 = vmax.f32 %v1684, %v2181
      %v2637 = vmax.f32 %v1687, %v2184
      %v2638 = vmax.f32 %v1690, %v2187
      %v2639 = vmax.f32 %v1693, %v2190
      %v2640 = vmax.f32 %v1696, %v2193
      %v2641 = vmax.f32 %v1699, %v2196
      %v2642 = vmax.f32 %v1702, %v2199
      %v2643 = vmax.f32 %v1705, %v2202
      %v2644 = vmax.f32 %v1708, %v2205
      %v2645 = vmax.f32 %v1711, %v2208
      %v2646 = vmax.f32 %v1714, %v2211
      %v2647 = vmax.f32 %v1717, %v2214
      %v2648 = vmax.f32 %v1720, %v2217
      %v2649 = vmax.f32 %v1723, %v2220
      %v2650 = vmax.f32 %v1726, %v2223
      %v2651 = vmax.f32 %v1729, %v2226
      %v2652 = vmax.f32 %v1732, %v2229
      %v2653 = vmax.f32 %v1735, %v2232
      %v2654 = vmax.f32 %v1738, %v2235
      %v2655 = vmax.f32 %v1741, %v2238
      %v2656 = vmax.f32 %v1744, %v2241
      %v2657 = vmax.f32 %v1747, %v2244
      %v2658 = vmax.f32 %v1750, %v2247
      %v2659 = vmax.f32 %v1753, %v2250
      %v2660 = vmax.f32 %v1756, %v2253
      %v2661 = vmax.f32 %v1759, %v2256
      %v2662 = vmax.f32 %v1762, %v2259
      %v2663 = vmax.f32 %v1765, %v2262
      %v2664 = vmax.f32 %v1768, %v2265
      %v2665 = vmax.f32 %v1771, %v2268
      %v2666 = vmax.f32 %v1774, %v2271
      %v2667 = vmax.f32 %v1777, %v2274
      %v2668 = vmax.f32 %v1780, %v2277
      %v2669 = vmax.f32 %v1783, %v2280
      %v2670 = vmax.f32 %v1786, %v2283
      %v2671 = vmax.f32 %v1789, %v2286
      %v2672 = vmax.f32 %v1792, %v2289
      %v2673 = vmax.f32 %v1795, %v2292
      %v2674 = vmax.f32 %v1798, %v2295
      %v2675 = vmax.f32 %v1801, %v2298
      %v2676 = vmax.f32 %v1804, %v2301
      %v2677 = vmax.f32 %v1807, %v2304
      %v2678 = vmax.f32 %v1810, %v2307
      %v2679 = vmax.f32 %v1813, %v2310
      %v2680 = vmax.f32 %v1816, %v2313
      %v2681 = vmax.f32 %v1819, %v2316
      %v2682 = vmax.f32 %v1822, %v2319
      %v2683 = vmax.f32 %v1825, %v2322
      %v2684 = vmax.f32 %v1828, %v2325
      %v2685 = vmax.f32 %v1831, %v2328
      %v2686 = vmax.f32 %v1834, %v2331
      %v2687 = vmax.f32 %v1837, %v2334
      %v2688 = vmax.f32 %v1840, %v2337
      %v2689 = vmax.f32 %v1843, %v2340
      %v2690 = vmax.f32 %v1846, %v2343
      %v2691 = vmax.f32 %v1849, %v2346
      %v2692 = vmax.f32 %v1852, %v2349
      %v2693 = vmax.f32 %v1855, %v2352
      %v2694 = vmax.f32 %v1858, %v2355
      %v2695 = vmax.f32 %v1861, %v2358
      %v2696 = vmax.f32 %v1864, %v2361
      %v2697 = vmax.f32 %v1867, %v2364
      %v2698 = vmax.f32 %v1870, %v2367
      %v2699 = vmax.f32 %v1873, %v2370
      %v2700 = vmax.f32 %v1876, %v2373
      %v2701 = vmax.f32 %v1879, %v2376
      %v2702 = vmax.f32 %v1882, %v2379
      %v2703 = vmax.f32 %v1885, %v2382
      %v2704 = vmax.f32 %v2384, %v2544
      %v2705 = vmax.f32 %v2385, %v2545
      %v2706 = vmax.f32 %v2386, %v2546
      %v2707 = vmax.f32 %v2387, %v2547
      %v2708 = vmax.f32 %v2388, %v2548
      %v2709 = vmax.f32 %v2389, %v2549
      %v2710 = vmax.f32 %v2390, %v2550
      %v2711 = vmax.f32 %v2391, %v2551
      %v2712 = vmax.f32 %v2392, %v2552
      %v2713 = vmax.f32 %v2393, %v2553
      %v2714 = vmax.f32 %v2394, %v2554
      %v2715 = vmax.f32 %v2395, %v2555
      %v2716 = vmax.f32 %v2396, %v2556
      %v2717 = vmax.f32 %v2397, %v2557
      %v2718 = vmax.f32 %v2398, %v2558
      %v2719 = vmax.f32 %v2399, %v2559
      %v2720 = vmax.f32 %v2400, %v2560
      %v2721 = vmax.f32 %v2401, %v2561
      %v2722 = vmax.f32 %v2402, %v2562
      %v2723 = vmax.f32 %v2403, %v2563
      %v2724 = vmax.f32 %v2404, %v2564
      %v2725 = vmax.f32 %v2405, %v2565
      %v2726 = vmax.f32 %v2406, %v2566
      %v2727 = vmax.f32 %v2407, %v2567
      %v2728 = vmax.f32 %v2408, %v2568
      %v2729 = vmax.f32 %v2409, %v2569
      %v2730 = vmax.f32 %v2410, %v2570
      %v2731 = vmax.f32 %v2411, %v2571
      %v2732 = vmax.f32 %v2412, %v2572
      %v2733 = vmax.f32 %v2413, %v2573
      %v2734 = vmax.f32 %v2414, %v2574
      %v2735 = vmax.f32 %v2415, %v2575
      %v2736 = vmax.f32 %v2416, %v2576
      %v2737 = vmax.f32 %v2417, %v2577
      %v2738 = vmax.f32 %v2418, %v2578
      %v2739 = vmax.f32 %v2419, %v2579
      %v2740 = vmax.f32 %v2420, %v2580
      %v2741 = vmax.f32 %v2421, %v2581
      %v2742 = vmax.f32 %v2422, %v2582
      %v2743 = vmax.f32 %v2423, %v2583
      %v2744 = vmax.f32 %v2424, %v2584
      %v2745 = vmax.f32 %v2425, %v2585
      %v2746 = vmax.f32 %v2426, %v2586
      %v2747 = vmax.f32 %v2427, %v2587
      %v2748 = vmax.f32 %v2428, %v2588
      %v2749 = vmax.f32 %v2429, %v2589
      %v2750 = vmax.f32 %v2430, %v2590
      %v2751 = vmax.f32 %v2431, %v2591
      %v2752 = vmax.f32 %v2432, %v2592
      %v2753 = vmax.f32 %v2433, %v2593
      %v2754 = vmax.f32 %v2434, %v2594
      %v2755 = vmax.f32 %v2435, %v2595
      %v2756 = vmax.f32 %v2436, %v2596
      %v2757 = vmax.f32 %v2437, %v2597
      %v2758 = vmax.f32 %v2438, %v2598
      %v2759 = vmax.f32 %v2439, %v2599
      %v2760 = vmax.f32 %v2440, %v2600
      %v2761 = vmax.f32 %v2441, %v2601
      %v2762 = vmax.f32 %v2442, %v2602
      %v2763 = vmax.f32 %v2443, %v2603
      %v2764 = vmax.f32 %v2444, %v2604
      %v2765 = vmax.f32 %v2445, %v2605
      %v2766 = vmax.f32 %v2446, %v2606
      %v2767 = vmax.f32 %v2447, %v2607
      %v2768 = vmax.f32 %v2448, %v2608
      %v2769 = vmax.f32 %v2449, %v2609
      %v2770 = vmax.f32 %v2450, %v2610
      %v2771 = vmax.f32 %v2451, %v2611
      %v2772 = vmax.f32 %v2452, %v2612
      %v2773 = vmax.f32 %v2453, %v2613
      %v2774 = vmax.f32 %v2454, %v2614
      %v2775 = vmax.f32 %v2455, %v2615
      %v2776 = vmax.f32 %v2456, %v2616
      %v2777 = vmax.f32 %v2457, %v2617
      %v2778 = vmax.f32 %v2458, %v2618
      %v2779 = vmax.f32 %v2459, %v2619
      %v2780 = vmax.f32 %v2460, %v2620
      %v2781 = vmax.f32 %v2461, %v2621
      %v2782 = vmax.f32 %v2462, %v2622
      %v2783 = vmax.f32 %v2463, %v2623
      %v2784 = vmax.f32 %v2464, %v2624
      %v2785 = vmax.f32 %v2465, %v2625
      %v2786 = vmax.f32 %v2466, %v2626
      %v2787 = vmax.f32 %v2467, %v2627
      %v2788 = vmax.f32 %v2468, %v2628
      %v2789 = vmax.f32 %v2469, %v2629
      %v2790 = vmax.f32 %v2470, %v2630
      %v2791 = vmax.f32 %v2471, %v2631
      %v2792 = vmax.f32 %v2472, %v2632
      %v2793 = vmax.f32 %v2473, %v2633
      %v2794 = vmax.f32 %v2474, %v2634
      %v2795 = vmax.f32 %v2475, %v2635
      %v2796 = vmax.f32 %v2476, %v2636
      %v2797 = vmax.f32 %v2477, %v2637
      %v2798 = vmax.f32 %v2478, %v2638
      %v2799 = vmax.f32 %v2479, %v2639
      %v2800 = vmax.f32 %v2480, %v2640
      %v2801 = vmax.f32 %v2481, %v2641
      %v2802 = vmax.f32 %v2482, %v2642
      %v2803 = vmax.f32 %v2483, %v2643
      %v2804 = vmax.f32 %v2484, %v2644
      %v2805 = vmax.f32 %v2485, %v2645
      %v2806 = vmax.f32 %v2486, %v2646
      %v2807 = vmax.f32 %v2487, %v2647
      %v2808 = vmax.f32 %v2488, %v2648
      %v2809 = vmax.f32 %v2489, %v2649
      %v2810 = vmax.f32 %v2490, %v2650
      %v2811 = vmax.f32 %v2491, %v2651
      %v2812 = vmax.f32 %v2492, %v2652
      %v2813 = vmax.f32 %v2493, %v2653
      %v2814 = vmax.f32 %v2494, %v2654
      %v2815 = vmax.f32 %v2495, %v2655
      %v2816 = vmax.f32 %v2496, %v2656
      %v2817 = vmax.f32 %v2497, %v2657
      %v2818 = vmax.f32 %v2498, %v2658
      %v2819 = vmax.f32 %v2499, %v2659
      %v2820 = vmax.f32 %v2500, %v2660
      %v2821 = vmax.f32 %v2501, %v2661
      %v2822 = vmax.f32 %v2502, %v2662
      %v2823 = vmax.f32 %v2503, %v2663
      %v2824 = vmax.f32 %v2504, %v2664
      %v2825 = vmax.f32 %v2505, %v2665
      %v2826 = vmax.f32 %v2506, %v2666
      %v2827 = vmax.f32 %v2507, %v2667
      %v2828 = vmax.f32 %v2508, %v2668
      %v2829 = vmax.f32 %v2509, %v2669
      %v2830 = vmax.f32 %v2510, %v2670
      %v2831 = vmax.f32 %v2511, %v2671
      %v2832 = vmax.f32 %v2512, %v2672
      %v2833 = vmax.f32 %v2513, %v2673
      %v2834 = vmax.f32 %v2514, %v2674
      %v2835 = vmax.f32 %v2515, %v2675
      %v2836 = vmax.f32 %v2516, %v2676
      %v2837 = vmax.f32 %v2517, %v2677
      %v2838 = vmax.f32 %v2518, %v2678
      %v2839 = vmax.f32 %v2519, %v2679
      %v2840 = vmax.f32 %v2520, %v2680
      %v2841 = vmax.f32 %v2521, %v2681
      %v2842 = vmax.f32 %v2522, %v2682
      %v2843 = vmax.f32 %v2523, %v2683
      %v2844 = vmax.f32 %v2524, %v2684
      %v2845 = vmax.f32 %v2525, %v2685
      %v2846 = vmax.f32 %v2526, %v2686
      %v2847 = vmax.f32 %v2527, %v2687
      %v2848 = vmax.f32 %v2528, %v2688
      %v2849 = vmax.f32 %v2529, %v2689
      %v2850 = vmax.f32 %v2530, %v2690
      %v2851 = vmax.f32 %v2531, %v2691
      %v2852 = vmax.f32 %v2532, %v2692
      %v2853 = vmax.f32 %v2533, %v2693
      %v2854 = vmax.f32 %v2534, %v2694
      %v2855 = vmax.f32 %v2535, %v2695
      %v2856 = vmax.f32 %v2536, %v2696
      %v2857 = vmax.f32 %v2537, %v2697
      %v2858 = vmax.f32 %v2538, %v2698
      %v2859 = vmax.f32 %v2539, %v2699
      %v2860 = vmax.f32 %v2540, %v2700
      %v2861 = vmax.f32 %v2541, %v2701
      %v2862 = vmax.f32 %v2542, %v2702
      %v2863 = vmax.f32 %v2543, %v2703
      %v2865 = vperm.slane %v235, 0
      %v2867 = vadd.f32 %v2704, %v2865
      %v2868 = vadd.f32 %v2705, %v2865
      %v2869 = vadd.f32 %v2706, %v2865
      %v2870 = vadd.f32 %v2707, %v2865
      %v2871 = vadd.f32 %v2708, %v2865
      %v2872 = vadd.f32 %v2709, %v2865
      %v2873 = vadd.f32 %v2710, %v2865
      %v2874 = vadd.f32 %v2711, %v2865
      %v2875 = vadd.f32 %v2712, %v2865
      %v2876 = vadd.f32 %v2713, %v2865
      %v2877 = vadd.f32 %v2714, %v2865
      %v2878 = vadd.f32 %v2715, %v2865
      %v2879 = vadd.f32 %v2716, %v2865
      %v2880 = vadd.f32 %v2717, %v2865
      %v2881 = vadd.f32 %v2718, %v2865
      %v2882 = vadd.f32 %v2719, %v2865
      %v2883 = vadd.f32 %v2720, %v2865
      %v2884 = vadd.f32 %v2721, %v2865
      %v2885 = vadd.f32 %v2722, %v2865
      %v2886 = vadd.f32 %v2723, %v2865
      %v2887 = vadd.f32 %v2724, %v2865
      %v2888 = vadd.f32 %v2725, %v2865
      %v2889 = vadd.f32 %v2726, %v2865
      %v2890 = vadd.f32 %v2727, %v2865
      %v2891 = vadd.f32 %v2728, %v2865
      %v2892 = vadd.f32 %v2729, %v2865
      %v2893 = vadd.f32 %v2730, %v2865
      %v2894 = vadd.f32 %v2731, %v2865
      %v2895 = vadd.f32 %v2732, %v2865
      %v2896 = vadd.f32 %v2733, %v2865
      %v2897 = vadd.f32 %v2734, %v2865
      %v2898 = vadd.f32 %v2735, %v2865
      %v2899 = vadd.f32 %v2736, %v2865
      %v2900 = vadd.f32 %v2737, %v2865
      %v2901 = vadd.f32 %v2738, %v2865
      %v2902 = vadd.f32 %v2739, %v2865
      %v2903 = vadd.f32 %v2740, %v2865
      %v2904 = vadd.f32 %v2741, %v2865
      %v2905 = vadd.f32 %v2742, %v2865
      %v2906 = vadd.f32 %v2743, %v2865
      %v2907 = vadd.f32 %v2744, %v2865
      %v2908 = vadd.f32 %v2745, %v2865
      %v2909 = vadd.f32 %v2746, %v2865
      %v2910 = vadd.f32 %v2747, %v2865
      %v2911 = vadd.f32 %v2748, %v2865
      %v2912 = vadd.f32 %v2749, %v2865
      %v2913 = vadd.f32 %v2750, %v2865
      %v2914 = vadd.f32 %v2751, %v2865
      %v2915 = vadd.f32 %v2752, %v2865
      %v2916 = vadd.f32 %v2753, %v2865
      %v2917 = vadd.f32 %v2754, %v2865
      %v2918 = vadd.f32 %v2755, %v2865
      %v2919 = vadd.f32 %v2756, %v2865
      %v2920 = vadd.f32 %v2757, %v2865
      %v2921 = vadd.f32 %v2758, %v2865
      %v2922 = vadd.f32 %v2759, %v2865
      %v2923 = vadd.f32 %v2760, %v2865
      %v2924 = vadd.f32 %v2761, %v2865
      %v2925 = vadd.f32 %v2762, %v2865
      %v2926 = vadd.f32 %v2763, %v2865
      %v2927 = vadd.f32 %v2764, %v2865
      %v2928 = vadd.f32 %v2765, %v2865
      %v2929 = vadd.f32 %v2766, %v2865
      %v2930 = vadd.f32 %v2767, %v2865
      %v2931 = vadd.f32 %v2768, %v2865
      %v2932 = vadd.f32 %v2769, %v2865
      %v2933 = vadd.f32 %v2770, %v2865
      %v2934 = vadd.f32 %v2771, %v2865
      %v2935 = vadd.f32 %v2772, %v2865
      %v2936 = vadd.f32 %v2773, %v2865
      %v2937 = vadd.f32 %v2774, %v2865
      %v2938 = vadd.f32 %v2775, %v2865
      %v2939 = vadd.f32 %v2776, %v2865
      %v2940 = vadd.f32 %v2777, %v2865
      %v2941 = vadd.f32 %v2778, %v2865
      %v2942 = vadd.f32 %v2779, %v2865
      %v2943 = vadd.f32 %v2780, %v2865
      %v2944 = vadd.f32 %v2781, %v2865
      %v2945 = vadd.f32 %v2782, %v2865
      %v2946 = vadd.f32 %v2783, %v2865
      %v2947 = vadd.f32 %v2784, %v2865
      %v2948 = vadd.f32 %v2785, %v2865
      %v2949 = vadd.f32 %v2786, %v2865
      %v2950 = vadd.f32 %v2787, %v2865
      %v2951 = vadd.f32 %v2788, %v2865
      %v2952 = vadd.f32 %v2789, %v2865
      %v2953 = vadd.f32 %v2790, %v2865
      %v2954 = vadd.f32 %v2791, %v2865
      %v2955 = vadd.f32 %v2792, %v2865
      %v2956 = vadd.f32 %v2793, %v2865
      %v2957 = vadd.f32 %v2794, %v2865
      %v2958 = vadd.f32 %v2795, %v2865
      %v2959 = vadd.f32 %v2796, %v2865
      %v2960 = vadd.f32 %v2797, %v2865
      %v2961 = vadd.f32 %v2798, %v2865
      %v2962 = vadd.f32 %v2799, %v2865
      %v2963 = vadd.f32 %v2800, %v2865
      %v2964 = vadd.f32 %v2801, %v2865
      %v2965 = vadd.f32 %v2802, %v2865
      %v2966 = vadd.f32 %v2803, %v2865
      %v2967 = vadd.f32 %v2804, %v2865
      %v2968 = vadd.f32 %v2805, %v2865
      %v2969 = vadd.f32 %v2806, %v2865
      %v2970 = vadd.f32 %v2807, %v2865
      %v2971 = vadd.f32 %v2808, %v2865
      %v2972 = vadd.f32 %v2809, %v2865
      %v2973 = vadd.f32 %v2810, %v2865
      %v2974 = vadd.f32 %v2811, %v2865
      %v2975 = vadd.f32 %v2812, %v2865
      %v2976 = vadd.f32 %v2813, %v2865
      %v2977 = vadd.f32 %v2814, %v2865
      %v2978 = vadd.f32 %v2815, %v2865
      %v2979 = vadd.f32 %v2816, %v2865
      %v2980 = vadd.f32 %v2817, %v2865
      %v2981 = vadd.f32 %v2818, %v2865
      %v2982 = vadd.f32 %v2819, %v2865
      %v2983 = vadd.f32 %v2820, %v2865
      %v2984 = vadd.f32 %v2821, %v2865
      %v2985 = vadd.f32 %v2822, %v2865
      %v2986 = vadd.f32 %v2823, %v2865
      %v2987 = vadd.f32 %v2824, %v2865
      %v2988 = vadd.f32 %v2825, %v2865
      %v2989 = vadd.f32 %v2826, %v2865
      %v2990 = vadd.f32 %v2827, %v2865
      %v2991 = vadd.f32 %v2828, %v2865
      %v2992 = vadd.f32 %v2829, %v2865
      %v2993 = vadd.f32 %v2830, %v2865
      %v2994 = vadd.f32 %v2831, %v2865
      %v2995 = vadd.f32 %v2832, %v2865
      %v2996 = vadd.f32 %v2833, %v2865
      %v2997 = vadd.f32 %v2834, %v2865
      %v2998 = vadd.f32 %v2835, %v2865
      %v2999 = vadd.f32 %v2836, %v2865
      %v3000 = vadd.f32 %v2837, %v2865
      %v3001 = vadd.f32 %v2838, %v2865
      %v3002 = vadd.f32 %v2839, %v2865
      %v3003 = vadd.f32 %v2840, %v2865
      %v3004 = vadd.f32 %v2841, %v2865
      %v3005 = vadd.f32 %v2842, %v2865
      %v3006 = vadd.f32 %v2843, %v2865
      %v3007 = vadd.f32 %v2844, %v2865
      %v3008 = vadd.f32 %v2845, %v2865
      %v3009 = vadd.f32 %v2846, %v2865
      %v3010 = vadd.f32 %v2847, %v2865
      %v3011 = vadd.f32 %v2848, %v2865
      %v3012 = vadd.f32 %v2849, %v2865
      %v3013 = vadd.f32 %v2850, %v2865
      %v3014 = vadd.f32 %v2851, %v2865
      %v3015 = vadd.f32 %v2852, %v2865
      %v3016 = vadd.f32 %v2853, %v2865
      %v3017 = vadd.f32 %v2854, %v2865
      %v3018 = vadd.f32 %v2855, %v2865
      %v3019 = vadd.f32 %v2856, %v2865
      %v3020 = vadd.f32 %v2857, %v2865
      %v3021 = vadd.f32 %v2858, %v2865
      %v3022 = vadd.f32 %v2859, %v2865
      %v3023 = vadd.f32 %v2860, %v2865
      %v3024 = vadd.f32 %v2861, %v2865
      %v3025 = vadd.f32 %v2862, %v2865
      %v3026 = vadd.f32 %v2863, %v2865
      %v3027 = vmax.f32 %v2867, 0.0
      %v3028 = vmax.f32 %v2868, 0.0
      %v3029 = vmax.f32 %v2869, 0.0
      %v3030 = vmax.f32 %v2870, 0.0
      %v3031 = vmax.f32 %v2871, 0.0
      %v3032 = vmax.f32 %v2872, 0.0
      %v3033 = vmax.f32 %v2873, 0.0
      %v3034 = vmax.f32 %v2874, 0.0
      %v3035 = vmax.f32 %v2875, 0.0
      %v3036 = vmax.f32 %v2876, 0.0
      %v3037 = vmax.f32 %v2877, 0.0
      %v3038 = vmax.f32 %v2878, 0.0
      %v3039 = vmax.f32 %v2879, 0.0
      %v3040 = vmax.f32 %v2880, 0.0
      %v3041 = vmax.f32 %v2881, 0.0
      %v3042 = vmax.f32 %v2882, 0.0
      %v3043 = vmax.f32 %v2883, 0.0
      %v3044 = vmax.f32 %v2884, 0.0
      %v3045 = vmax.f32 %v2885, 0.0
      %v3046 = vmax.f32 %v2886, 0.0
      %v3047 = vmax.f32 %v2887, 0.0
      %v3048 = vmax.f32 %v2888, 0.0
      %v3049 = vmax.f32 %v2889, 0.0
      %v3050 = vmax.f32 %v2890, 0.0
      %v3051 = vmax.f32 %v2891, 0.0
      %v3052 = vmax.f32 %v2892, 0.0
      %v3053 = vmax.f32 %v2893, 0.0
      %v3054 = vmax.f32 %v2894, 0.0
      %v3055 = vmax.f32 %v2895, 0.0
      %v3056 = vmax.f32 %v2896, 0.0
      %v3057 = vmax.f32 %v2897, 0.0
      %v3058 = vmax.f32 %v2898, 0.0
      %v3059 = vmax.f32 %v2899, 0.0
      %v3060 = vmax.f32 %v2900, 0.0
      %v3061 = vmax.f32 %v2901, 0.0
      %v3062 = vmax.f32 %v2902, 0.0
      %v3063 = vmax.f32 %v2903, 0.0
      %v3064 = vmax.f32 %v2904, 0.0
      %v3065 = vmax.f32 %v2905, 0.0
      %v3066 = vmax.f32 %v2906, 0.0
      %v3067 = vmax.f32 %v2907, 0.0
      %v3068 = vmax.f32 %v2908, 0.0
      %v3069 = vmax.f32 %v2909, 0.0
      %v3070 = vmax.f32 %v2910, 0.0
      %v3071 = vmax.f32 %v2911, 0.0
      %v3072 = vmax.f32 %v2912, 0.0
      %v3073 = vmax.f32 %v2913, 0.0
      %v3074 = vmax.f32 %v2914, 0.0
      %v3075 = vmax.f32 %v2915, 0.0
      %v3076 = vmax.f32 %v2916, 0.0
      %v3077 = vmax.f32 %v2917, 0.0
      %v3078 = vmax.f32 %v2918, 0.0
      %v3079 = vmax.f32 %v2919, 0.0
      %v3080 = vmax.f32 %v2920, 0.0
      %v3081 = vmax.f32 %v2921, 0.0
      %v3082 = vmax.f32 %v2922, 0.0
      %v3083 = vmax.f32 %v2923, 0.0
      %v3084 = vmax.f32 %v2924, 0.0
      %v3085 = vmax.f32 %v2925, 0.0
      %v3086 = vmax.f32 %v2926, 0.0
      %v3087 = vmax.f32 %v2927, 0.0
      %v3088 = vmax.f32 %v2928, 0.0
      %v3089 = vmax.f32 %v2929, 0.0
      %v3090 = vmax.f32 %v2930, 0.0
      %v3091 = vmax.f32 %v2931, 0.0
      %v3092 = vmax.f32 %v2932, 0.0
      %v3093 = vmax.f32 %v2933, 0.0
      %v3094 = vmax.f32 %v2934, 0.0
      %v3095 = vmax.f32 %v2935, 0.0
      %v3096 = vmax.f32 %v2936, 0.0
      %v3097 = vmax.f32 %v2937, 0.0
      %v3098 = vmax.f32 %v2938, 0.0
      %v3099 = vmax.f32 %v2939, 0.0
      %v3100 = vmax.f32 %v2940, 0.0
      %v3101 = vmax.f32 %v2941, 0.0
      %v3102 = vmax.f32 %v2942, 0.0
      %v3103 = vmax.f32 %v2943, 0.0
      %v3104 = vmax.f32 %v2944, 0.0
      %v3105 = vmax.f32 %v2945, 0.0
      %v3106 = vmax.f32 %v2946, 0.0
      %v3107 = vmax.f32 %v2947, 0.0
      %v3108 = vmax.f32 %v2948, 0.0
      %v3109 = vmax.f32 %v2949, 0.0
      %v3110 = vmax.f32 %v2950, 0.0
      %v3111 = vmax.f32 %v2951, 0.0
      %v3112 = vmax.f32 %v2952, 0.0
      %v3113 = vmax.f32 %v2953, 0.0
      %v3114 = vmax.f32 %v2954, 0.0
      %v3115 = vmax.f32 %v2955, 0.0
      %v3116 = vmax.f32 %v2956, 0.0
      %v3117 = vmax.f32 %v2957, 0.0
      %v3118 = vmax.f32 %v2958, 0.0
      %v3119 = vmax.f32 %v2959, 0.0
      %v3120 = vmax.f32 %v2960, 0.0
      %v3121 = vmax.f32 %v2961, 0.0
      %v3122 = vmax.f32 %v2962, 0.0
      %v3123 = vmax.f32 %v2963, 0.0
      %v3124 = vmax.f32 %v2964, 0.0
      %v3125 = vmax.f32 %v2965, 0.0
      %v3126 = vmax.f32 %v2966, 0.0
      %v3127 = vmax.f32 %v2967, 0.0
      %v3128 = vmax.f32 %v2968, 0.0
      %v3129 = vmax.f32 %v2969, 0.0
      %v3130 = vmax.f32 %v2970, 0.0
      %v3131 = vmax.f32 %v2971, 0.0
      %v3132 = vmax.f32 %v2972, 0.0
      %v3133 = vmax.f32 %v2973, 0.0
      %v3134 = vmax.f32 %v2974, 0.0
      %v3135 = vmax.f32 %v2975, 0.0
      %v3136 = vmax.f32 %v2976, 0.0
      %v3137 = vmax.f32 %v2977, 0.0
      %v3138 = vmax.f32 %v2978, 0.0
      %v3139 = vmax.f32 %v2979, 0.0
      %v3140 = vmax.f32 %v2980, 0.0
      %v3141 = vmax.f32 %v2981, 0.0
      %v3142 = vmax.f32 %v2982, 0.0
      %v3143 = vmax.f32 %v2983, 0.0
      %v3144 = vmax.f32 %v2984, 0.0
      %v3145 = vmax.f32 %v2985, 0.0
      %v3146 = vmax.f32 %v2986, 0.0
      %v3147 = vmax.f32 %v2987, 0.0
      %v3148 = vmax.f32 %v2988, 0.0
      %v3149 = vmax.f32 %v2989, 0.0
      %v3150 = vmax.f32 %v2990, 0.0
      %v3151 = vmax.f32 %v2991, 0.0
      %v3152 = vmax.f32 %v2992, 0.0
      %v3153 = vmax.f32 %v2993, 0.0
      %v3154 = vmax.f32 %v2994, 0.0
      %v3155 = vmax.f32 %v2995, 0.0
      %v3156 = vmax.f32 %v2996, 0.0
      %v3157 = vmax.f32 %v2997, 0.0
      %v3158 = vmax.f32 %v2998, 0.0
      %v3159 = vmax.f32 %v2999, 0.0
      %v3160 = vmax.f32 %v3000, 0.0
      %v3161 = vmax.f32 %v3001, 0.0
      %v3162 = vmax.f32 %v3002, 0.0
      %v3163 = vmax.f32 %v3003, 0.0
      %v3164 = vmax.f32 %v3004, 0.0
      %v3165 = vmax.f32 %v3005, 0.0
      %v3166 = vmax.f32 %v3006, 0.0
      %v3167 = vmax.f32 %v3007, 0.0
      %v3168 = vmax.f32 %v3008, 0.0
      %v3169 = vmax.f32 %v3009, 0.0
      %v3170 = vmax.f32 %v3010, 0.0
      %v3171 = vmax.f32 %v3011, 0.0
      %v3172 = vmax.f32 %v3012, 0.0
      %v3173 = vmax.f32 %v3013, 0.0
      %v3174 = vmax.f32 %v3014, 0.0
      %v3175 = vmax.f32 %v3015, 0.0
      %v3176 = vmax.f32 %v3016, 0.0
      %v3177 = vmax.f32 %v3017, 0.0
      %v3178 = vmax.f32 %v3018, 0.0
      %v3179 = vmax.f32 %v3019, 0.0
      %v3180 = vmax.f32 %v3020, 0.0
      %v3181 = vmax.f32 %v3021, 0.0
      %v3182 = vmax.f32 %v3022, 0.0
      %v3183 = vmax.f32 %v3023, 0.0
      %v3184 = vmax.f32 %v3024, 0.0
      %v3185 = vmax.f32 %v3025, 0.0
      %v3186 = vmax.f32 %v3026, 0.0
      %3187 = vst [vmem:[%s170] sm:$0xff] %v3027
      %3188 = vst [vmem:[%s170 + $0x8] sm:$0xff] %v3028
      %3189 = vst [vmem:[%s170 + $0x10] sm:$0xff] %v3029
      %3190 = vst [vmem:[%s170 + $0x18] sm:$0xff] %v3030
      %3191 = vst [vmem:[%s170 + $0x20] sm:$0xff] %v3031
      %3192 = vst [vmem:[%s170 + $0x28] sm:$0xff] %v3032
      %3193 = vst [vmem:[%s170 + $0x30] sm:$0xff] %v3033
      %3194 = vst [vmem:[%s170 + $0x38] sm:$0xff] %v3034
      %3195 = vst [vmem:[%s170 + $0x40] sm:$0xff] %v3035
      %3196 = vst [vmem:[%s170 + $0x48] sm:$0xff] %v3036
      %3197 = vst [vmem:[%s170 + $0x50] sm:$0xff] %v3037
      %3198 = vst [vmem:[%s170 + $0x58] sm:$0xff] %v3038
      %3199 = vst [vmem:[%s170 + $0x60] sm:$0xff] %v3039
      %3200 = vst [vmem:[%s170 + $0x68] sm:$0xff] %v3040
      %3201 = vst [vmem:[%s170 + $0x70] sm:$0xff] %v3041
      %3202 = vst [vmem:[%s170 + $0x78] sm:$0xff] %v3042
      %3203 = vst [vmem:[%s170 + $0x80] sm:$0xff] %v3043
      %3204 = vst [vmem:[%s170 + $0x88] sm:$0xff] %v3044
      %3205 = vst [vmem:[%s170 + $0x90] sm:$0xff] %v3045
      %3206 = vst [vmem:[%s170 + $0x98] sm:$0xff] %v3046
      %3207 = vst [vmem:[%s170 + $0xa0] sm:$0xff] %v3047
      %3208 = vst [vmem:[%s170 + $0xa8] sm:$0xff] %v3048
      %3209 = vst [vmem:[%s170 + $0xb0] sm:$0xff] %v3049
      %3210 = vst [vmem:[%s170 + $0xb8] sm:$0xff] %v3050
      %3211 = vst [vmem:[%s170 + $0xc0] sm:$0xff] %v3051
      %3212 = vst [vmem:[%s170 + $0xc8] sm:$0xff] %v3052
      %3213 = vst [vmem:[%s170 + $0xd0] sm:$0xff] %v3053
      %3214 = vst [vmem:[%s170 + $0xd8] sm:$0xff] %v3054
      %3215 = vst [vmem:[%s170 + $0xe0] sm:$0xff] %v3055
      %3216 = vst [vmem:[%s170 + $0xe8] sm:$0xff] %v3056
      %3217 = vst [vmem:[%s170 + $0xf0] sm:$0xff] %v3057
      %3218 = vst [vmem:[%s170 + $0xf8] sm:$0xff] %v3058
      %3219 = vst [vmem:[%s170 + $0x100] sm:$0xff] %v3059
      %3220 = vst [vmem:[%s170 + $0x108] sm:$0xff] %v3060
      %3221 = vst [vmem:[%s170 + $0x110] sm:$0xff] %v3061
      %3222 = vst [vmem:[%s170 + $0x118] sm:$0xff] %v3062
      %3223 = vst [vmem:[%s170 + $0x120] sm:$0xff] %v3063
      %3224 = vst [vmem:[%s170 + $0x128] sm:$0xff] %v3064
      %3225 = vst [vmem:[%s170 + $0x130] sm:$0xff] %v3065
      %3226 = vst [vmem:[%s170 + $0x138] sm:$0xff] %v3066
      %3227 = vst [vmem:[%s170 + $0x140] sm:$0xff] %v3067
      %3228 = vst [vmem:[%s170 + $0x148] sm:$0xff] %v3068
      %3229 = vst [vmem:[%s170 + $0x150] sm:$0xff] %v3069
      %3230 = vst [vmem:[%s170 + $0x158] sm:$0xff] %v3070
      %3231 = vst [vmem:[%s170 + $0x160] sm:$0xff] %v3071
      %3232 = vst [vmem:[%s170 + $0x168] sm:$0xff] %v3072
      %3233 = vst [vmem:[%s170 + $0x170] sm:$0xff] %v3073
      %3234 = vst [vmem:[%s170 + $0x178] sm:$0xff] %v3074
      %3235 = vst [vmem:[%s170 + $0x180] sm:$0xff] %v3075
      %3236 = vst [vmem:[%s170 + $0x188] sm:$0xff] %v3076
      %3237 = vst [vmem:[%s170 + $0x190] sm:$0xff] %v3077
      %3238 = vst [vmem:[%s170 + $0x198] sm:$0xff] %v3078
      %3239 = vst [vmem:[%s170 + $0x1a0] sm:$0xff] %v3079
      %3240 = vst [vmem:[%s170 + $0x1a8] sm:$0xff] %v3080
      %3241 = vst [vmem:[%s170 + $0x1b0] sm:$0xff] %v3081
      %3242 = vst [vmem:[%s170 + $0x1b8] sm:$0xff] %v3082
      %3243 = vst [vmem:[%s170 + $0x1c0] sm:$0xff] %v3083
      %3244 = vst [vmem:[%s170 + $0x1c8] sm:$0xff] %v3084
      %3245 = vst [vmem:[%s170 + $0x1d0] sm:$0xff] %v3085
      %3246 = vst [vmem:[%s170 + $0x1d8] sm:$0xff] %v3086
      %3247 = vst [vmem:[%s170 + $0x1e0] sm:$0xff] %v3087
      %3248 = vst [vmem:[%s170 + $0x1e8] sm:$0xff] %v3088
      %3249 = vst [vmem:[%s170 + $0x1f0] sm:$0xff] %v3089
      %3250 = vst [vmem:[%s170 + $0x1f8] sm:$0xff] %v3090
      %3251 = vst [vmem:[%s170 + $0x200] sm:$0xff] %v3091
      %3252 = vst [vmem:[%s170 + $0x208] sm:$0xff] %v3092
      %3253 = vst [vmem:[%s170 + $0x210] sm:$0xff] %v3093
      %3254 = vst [vmem:[%s170 + $0x218] sm:$0xff] %v3094
      %3255 = vst [vmem:[%s170 + $0x220] sm:$0xff] %v3095
      %3256 = vst [vmem:[%s170 + $0x228] sm:$0xff] %v3096
      %3257 = vst [vmem:[%s170 + $0x230] sm:$0xff] %v3097
      %3258 = vst [vmem:[%s170 + $0x238] sm:$0xff] %v3098
      %3259 = vst [vmem:[%s170 + $0x240] sm:$0xff] %v3099
      %3260 = vst [vmem:[%s170 + $0x248] sm:$0xff] %v3100
      %3261 = vst [vmem:[%s170 + $0x250] sm:$0xff] %v3101
      %3262 = vst [vmem:[%s170 + $0x258] sm:$0xff] %v3102
      %3263 = vst [vmem:[%s170 + $0x260] sm:$0xff] %v3103
      %3264 = vst [vmem:[%s170 + $0x268] sm:$0xff] %v3104
      %3265 = vst [vmem:[%s170 + $0x270] sm:$0xff] %v3105
      %3266 = vst [vmem:[%s170 + $0x278] sm:$0xff] %v3106
      %3267 = vst [vmem:[%s170 + $0x280] sm:$0xff] %v3107
      %3268 = vst [vmem:[%s170 + $0x288] sm:$0xff] %v3108
      %3269 = vst [vmem:[%s170 + $0x290] sm:$0xff] %v3109
      %3270 = vst [vmem:[%s170 + $0x298] sm:$0xff] %v3110
      %3271 = vst [vmem:[%s170 + $0x2a0] sm:$0xff] %v3111
      %3272 = vst [vmem:[%s170 + $0x2a8] sm:$0xff] %v3112
      %3273 = vst [vmem:[%s170 + $0x2b0] sm:$0xff] %v3113
      %3274 = vst [vmem:[%s170 + $0x2b8] sm:$0xff] %v3114
      %3275 = vst [vmem:[%s170 + $0x2c0] sm:$0xff] %v3115
      %3276 = vst [vmem:[%s170 + $0x2c8] sm:$0xff] %v3116
      %3277 = vst [vmem:[%s170 + $0x2d0] sm:$0xff] %v3117
      %3278 = vst [vmem:[%s170 + $0x2d8] sm:$0xff] %v3118
      %3279 = vst [vmem:[%s170 + $0x2e0] sm:$0xff] %v3119
      %3280 = vst [vmem:[%s170 + $0x2e8] sm:$0xff] %v3120
      %3281 = vst [vmem:[%s170 + $0x2f0] sm:$0xff] %v3121
      %3282 = vst [vmem:[%s170 + $0x2f8] sm:$0xff] %v3122
      %3283 = vst [vmem:[%s170 + $0x300] sm:$0xff] %v3123
      %3284 = vst [vmem:[%s170 + $0x308] sm:$0xff] %v3124
      %3285 = vst [vmem:[%s170 + $0x310] sm:$0xff] %v3125
      %3286 = vst [vmem:[%s170 + $0x318] sm:$0xff] %v3126
      %3287 = vst [vmem:[%s170 + $0x320] sm:$0xff] %v3127
      %3288 = vst [vmem:[%s170 + $0x328] sm:$0xff] %v3128
      %3289 = vst [vmem:[%s170 + $0x330] sm:$0xff] %v3129
      %3290 = vst [vmem:[%s170 + $0x338] sm:$0xff] %v3130
      %3291 = vst [vmem:[%s170 + $0x340] sm:$0xff] %v3131
      %3292 = vst [vmem:[%s170 + $0x348] sm:$0xff] %v3132
      %3293 = vst [vmem:[%s170 + $0x350] sm:$0xff] %v3133
      %3294 = vst [vmem:[%s170 + $0x358] sm:$0xff] %v3134
      %3295 = vst [vmem:[%s170 + $0x360] sm:$0xff] %v3135
      %3296 = vst [vmem:[%s170 + $0x368] sm:$0xff] %v3136
      %3297 = vst [vmem:[%s170 + $0x370] sm:$0xff] %v3137
      %3298 = vst [vmem:[%s170 + $0x378] sm:$0xff] %v3138
      %3299 = vst [vmem:[%s170 + $0x380] sm:$0xff] %v3139
      %3300 = vst [vmem:[%s170 + $0x388] sm:$0xff] %v3140
      %3301 = vst [vmem:[%s170 + $0x390] sm:$0xff] %v3141
      %3302 = vst [vmem:[%s170 + $0x398] sm:$0xff] %v3142
      %3303 = vst [vmem:[%s170 + $0x3a0] sm:$0xff] %v3143
      %3304 = vst [vmem:[%s170 + $0x3a8] sm:$0xff] %v3144
      %3305 = vst [vmem:[%s170 + $0x3b0] sm:$0xff] %v3145
      %3306 = vst [vmem:[%s170 + $0x3b8] sm:$0xff] %v3146
      %3307 = vst [vmem:[%s170 + $0x3c0] sm:$0xff] %v3147
      %3308 = vst [vmem:[%s170 + $0x3c8] sm:$0xff] %v3148
      %3309 = vst [vmem:[%s170 + $0x3d0] sm:$0xff] %v3149
      %3310 = vst [vmem:[%s170 + $0x3d8] sm:$0xff] %v3150
      %3311 = vst [vmem:[%s170 + $0x3e0] sm:$0xff] %v3151
      %3312 = vst [vmem:[%s170 + $0x3e8] sm:$0xff] %v3152
      %3313 = vst [vmem:[%s170 + $0x3f0] sm:$0xff] %v3153
      %3314 = vst [vmem:[%s170 + $0x3f8] sm:$0xff] %v3154
      %3315 = vst [vmem:[%s170 + $0x400] sm:$0xff] %v3155
      %3316 = vst [vmem:[%s170 + $0x408] sm:$0xff] %v3156
      %3317 = vst [vmem:[%s170 + $0x410] sm:$0xff] %v3157
      %3318 = vst [vmem:[%s170 + $0x418] sm:$0xff] %v3158
      %3319 = vst [vmem:[%s170 + $0x420] sm:$0xff] %v3159
      %3320 = vst [vmem:[%s170 + $0x428] sm:$0xff] %v3160
      %3321 = vst [vmem:[%s170 + $0x430] sm:$0xff] %v3161
      %3322 = vst [vmem:[%s170 + $0x438] sm:$0xff] %v3162
      %3323 = vst [vmem:[%s170 + $0x440] sm:$0xff] %v3163
      %3324 = vst [vmem:[%s170 + $0x448] sm:$0xff] %v3164
      %3325 = vst [vmem:[%s170 + $0x450] sm:$0xff] %v3165
      %3326 = vst [vmem:[%s170 + $0x458] sm:$0xff] %v3166
      %3327 = vst [vmem:[%s170 + $0x460] sm:$0xff] %v3167
      %3328 = vst [vmem:[%s170 + $0x468] sm:$0xff] %v3168
      %3329 = vst [vmem:[%s170 + $0x470] sm:$0xff] %v3169
      %3330 = vst [vmem:[%s170 + $0x478] sm:$0xff] %v3170
      %3331 = vst [vmem:[%s170 + $0x480] sm:$0xff] %v3171
      %3332 = vst [vmem:[%s170 + $0x488] sm:$0xff] %v3172
      %3333 = vst [vmem:[%s170 + $0x490] sm:$0xff] %v3173
      %3334 = vst [vmem:[%s170 + $0x498] sm:$0xff] %v3174
      %3335 = vst [vmem:[%s170 + $0x4a0] sm:$0xff] %v3175
      %3336 = vst [vmem:[%s170 + $0x4a8] sm:$0xff] %v3176
      %3337 = vst [vmem:[%s170 + $0x4b0] sm:$0xff] %v3177
      %3338 = vst [vmem:[%s170 + $0x4b8] sm:$0xff] %v3178
      %3339 = vst [vmem:[%s170 + $0x4c0] sm:$0xff] %v3179
      %3340 = vst [vmem:[%s170 + $0x4c8] sm:$0xff] %v3180
      %3341 = vst [vmem:[%s170 + $0x4d0] sm:$0xff] %v3181
      %3342 = vst [vmem:[%s170 + $0x4d8] sm:$0xff] %v3182
      %3343 = vst [vmem:[%s170 + $0x4e0] sm:$0xff] %v3183
      %3344 = vst [vmem:[%s170 + $0x4e8] sm:$0xff] %v3184
      %3345 = vst [vmem:[%s170 + $0x4f0] sm:$0xff] %v3185
      %3346 = vst [vmem:[%s170 + $0x4f8] sm:$0xff] %v3186
      %p3347 = scmp.lt.s32.totalorder %s14, 1
      %s3348 = scalar_select %p3347, %s14, 1
      %s3349 = smul.addr %s3348, 160
      %s3350 = smul.addr %s3349, 8
      %s3351 = scalar_lea.vmem %s3, %s3350
      // Predicated region
      $region33: #{forward.2} parent=31 // pred_check
        %p3352 = pneg %p100
      $region34: #{forward.2} parent=31 // pred_check_branch
        %3354 = sbr.rel (%p3352) target = $region36
      $region35: #{forward.2} parent=31 // pred_region
        _
      $region36: #{forward.2} parent=31 // pred_fallthru
        _
    $region32: #{forward.2} parent=5 // pred_fallthru
      _
    %p3355 = scmp.le.s32.totalorder 2, %s9
    // Predicated region
    $region37: #{forward.2} parent=5 // pred_check
      %p3356 = pneg %p3355
    $region38: #{forward.2} parent=5 // pred_check_branch
      %3358 = sbr.rel (%p3356) target = $region40
    $region39: #{forward.2} parent=5 // pred_region
      %s3359 = ssub.s32 %s9, 2
      // Predicated region
      $region41: #{forward.2} parent=39 // pred_check
        %p3360 = pneg %p106
      $region42: #{forward.2} parent=39 // pred_check_branch
        %3362 = sbr.rel (%p3360) target = $region44
      $region43: #{forward.2} parent=39 // pred_region
        %p3363 = scmp.lt.s32.totalorder %s15, 1
        %s3364 = scalar_select %p3363, %s15, 1
        %s3365 = smul.addr %s3364, 160
        %s3366 = smul.addr %s3365, 8
        %s3367 = scalar_lea.vmem %s3, %s3366
      $region44: #{forward.2} parent=39 // pred_fallthru
        _
    $region40: #{forward.2} parent=5 // pred_fallthru
      _
  $region6: #{forward.2} parent=0 // loop_footer
    %s13 = sadd.s32 1, %s9
  $region7: #{forward.2} parent=0 // loop_footer_branch
    %8 = sbr.rel target = $region3
  $region8: #{forward.2} parent=0 // loop_exit
    _

// kernel: forward.3
$region0: #{forward.3}
  #allocation0 [shape = 'u32[]', space=smem, size = 0x4, offset = 0x4, fixed_abs, tag = 'smem constant byte address 0x4 - core index']
  #allocation1 [shape = 'u32[72,128]{1,0:T(1,128)}', space=vmem, size = 0x9000, scoped, tag = 'internal scratch']
  #allocation2 [shape = 'f32[2,128]{1,0:T(2,128)}', space=vmem, size = 0x400, scoped, tag = 'scratch operand']
  #allocation3 [shape = 'f32[1,1]{1,0:T(1,128)S(1)}', space=vmem, size = 0x200, scoped, tag = 'scoped memory for forward.3']
  %s0 = inlined_call_operand.vmem [shape: f32[2,163840], index: 0, kind: input, shape index: {}]
  %s1 = inlined_call_operand.hbm [shape: f32[163840,128], index: 1, kind: input, shape index: {}]
  %s2 = inlined_call_operand.vmem [shape: f32[1,128], index: 2, kind: input, shape index: {}]
  %s3 = inlined_call_operand.vmem [shape: f32[1,128], index: 3, kind: input, shape index: {}]
  %s4 = inlined_call_operand.<no memory space> [shape: f32[1,1], index: 4, kind: input, shape index: {}]
  %s5 = inlined_call_operand.vmem [shape: f32[2,1], index: 5, kind: output, shape index: {}]
  %s6 = sld [smem:[#allocation0]]
  $region65: #{forward.3} parent=0
    _
  %s8 = ssub.s32 1, %s6
  %s9 = scalar_select 0, %s8, %s6
  %v10 = vstv %s4
  %11 = vst [vmem:[#allocation3] sm:$0x1] %v10
  $region1: #{forward.3} parent=0
    #allocation4 [shape = 'u8[16777216]{0}', space=vmem, size = 0x1000000, scoped, tag = 'input window, operand 1']
    #allocation5 [shape = 's32[2]{0}', space=sflag, size = 0x8, scoped, tag = 'scoped memory for forward.3']
    %12 = vsyncpa [#allocation5], 0
    %s13 = scalar_lea.sflag [#allocation5], 1
    %14 = vsyncpa %s13, 0
    loop: start=0, step=1, limit=12
    $region2: #{forward.3} parent=1 // loop_pre_header
      _
    $region3: #{forward.3} parent=1 // loop_header
      %s16 = sphi 0, %s20
      %p17 = scmp.ge.s32.totalorder %s16, 12
      %s26 = sphi 0, %s28
      %s29 = sphi 0, %s26
      %s30 = sphi 0, %s29
      %s46 = sphi 0, %s30
      %s52 = sphi 0, %s54
      %s55 = sphi 0, %s52
      %s56 = sphi 0, %s55
      %s72 = sphi 0, %s56
      %s76 = sphi 0, %s76
      %s78 = sphi 0, %s76
      %s79 = sphi 0, %s78
      %s93 = sphi 0, %s79
      %s97 = sphi 0, %s97
      %s99 = sphi 0, %s97
      %s100 = sphi 0, %s99
      %s114 = sphi 0, %s100
      %s118 = sphi 0, %s118
      %s120 = sphi 0, %s118
      %s121 = sphi 0, %s120
      %s135 = sphi 0, %s121
      %s139 = sphi 0, %s139
      %s141 = sphi 0, %s139
      %s142 = sphi 0, %s141
      %s156 = sphi 0, %s142
    $region4: #{forward.3} parent=1 // loop_header_branch
      %19 = sbr.rel (%p17) target = $region8
    $region5: #{forward.3} parent=1 // loop_body
      %s21 = ssub.s32 %s16, 1
      %s22 = ssub.s32 %s16, 2
      %s23 = sadd.s32 %s16, 1
      %s24 = ssub.s32 %s16, %s23
      %p25 = scmp.eq.s32.totalorder %s24, 0
      %s27 = sadd.s32 %s26, 1
      %s28 = scalar_select %p25, %s26, %s27
      %p31 = pneg %p25
      %p32 = scmp.eq.s32.totalorder %s16, 9
      %p33 = por %p31, %p32
      %p34 = scmp.ne.s32.totalorder %s26, %s29
      %p35 = scmp.eq.s32.totalorder %s16, 0
      %p36 = por %p34, %p35
      %p37 = scmp.ne.s32.totalorder %s26, %s29
      %p38 = scmp.eq.s32.totalorder %s21, 9
      %p39 = por %p37, %p38
      %p40 = scmp.ne.s32.totalorder %s29, %s30
      %p41 = scmp.eq.s32.totalorder %s21, 0
      %p42 = por %p40, %p41
      %p43 = scmp.ne.s32.totalorder %s29, %s30
      %p44 = scmp.eq.s32.totalorder %s22, 9
      %p45 = por %p43, %p44
      %p47 = scmp.ne.s32.totalorder %s30, %s46
      %p48 = scmp.eq.s32.totalorder %s22, 0
      %p49 = por %p47, %p48
      %s50 = ssub.s32 %s16, %s23
      %p51 = scmp.eq.s32.totalorder %s50, 0
      %s53 = sadd.s32 %s52, 1
      %s54 = scalar_select %p51, %s52, %s53
      %p57 = pneg %p51
      %p58 = scmp.eq.s32.totalorder %s16, 9
      %p59 = por %p57, %p58
      %p60 = scmp.ne.s32.totalorder %s52, %s55
      %p61 = scmp.eq.s32.totalorder %s16, 0
      %p62 = por %p60, %p61
      %p63 = scmp.ne.s32.totalorder %s52, %s55
      %p64 = scmp.eq.s32.totalorder %s21, 9
      %p65 = por %p63, %p64
      %p66 = scmp.ne.s32.totalorder %s55, %s56
      %p67 = scmp.eq.s32.totalorder %s21, 0
      %p68 = por %p66, %p67
      %p69 = scmp.ne.s32.totalorder %s55, %s56
      %p70 = scmp.eq.s32.totalorder %s22, 9
      %p71 = por %p69, %p70
      %p73 = scmp.ne.s32.totalorder %s56, %s72
      %p74 = scmp.eq.s32.totalorder %s22, 0
      %p75 = por %p73, %p74
      %s77 = sadd.s32 %s76, 1
      %p80 = scmp.eq.s32.totalorder %s16, 9
      %p81 = scmp.ne.s32.totalorder %s76, %s78
      %p82 = scmp.eq.s32.totalorder %s16, 0
      %p83 = por %p81, %p82
      %p84 = scmp.ne.s32.totalorder %s76, %s78
      %p85 = scmp.eq.s32.totalorder %s21, 9
      %p86 = por %p84, %p85
      %p87 = scmp.ne.s32.totalorder %s78, %s79
      %p88 = scmp.eq.s32.totalorder %s21, 0
      %p89 = por %p87, %p88
      %p90 = scmp.ne.s32.totalorder %s78, %s79
      %p91 = scmp.eq.s32.totalorder %s22, 9
      %p92 = por %p90, %p91
      %p94 = scmp.ne.s32.totalorder %s79, %s93
      %p95 = scmp.eq.s32.totalorder %s22, 0
      %p96 = por %p94, %p95
      %s98 = sadd.s32 %s97, 1
      %p101 = scmp.eq.s32.totalorder %s16, 9
      %p102 = scmp.ne.s32.totalorder %s97, %s99
      %p103 = scmp.eq.s32.totalorder %s16, 0
      %p104 = por %p102, %p103
      %p105 = scmp.ne.s32.totalorder %s97, %s99
      %p106 = scmp.eq.s32.totalorder %s21, 9
      %p107 = por %p105, %p106
      %p108 = scmp.ne.s32.totalorder %s99, %s100
      %p109 = scmp.eq.s32.totalorder %s21, 0
      %p110 = por %p108, %p109
      %p111 = scmp.ne.s32.totalorder %s99, %s100
      %p112 = scmp.eq.s32.totalorder %s22, 9
      %p113 = por %p111, %p112
      %p115 = scmp.ne.s32.totalorder %s100, %s114
      %p116 = scmp.eq.s32.totalorder %s22, 0
      %p117 = por %p115, %p116
      %s119 = sadd.s32 %s118, 1
      %p122 = scmp.eq.s32.totalorder %s16, 9
      %p123 = scmp.ne.s32.totalorder %s118, %s120
      %p124 = scmp.eq.s32.totalorder %s16, 0
      %p125 = por %p123, %p124
      %p126 = scmp.ne.s32.totalorder %s118, %s120
      %p127 = scmp.eq.s32.totalorder %s21, 9
      %p128 = por %p126, %p127
      %p129 = scmp.ne.s32.totalorder %s120, %s121
      %p130 = scmp.eq.s32.totalorder %s21, 0
      %p131 = por %p129, %p130
      %p132 = scmp.ne.s32.totalorder %s120, %s121
      %p133 = scmp.eq.s32.totalorder %s22, 9
      %p134 = por %p132, %p133
      %p136 = scmp.ne.s32.totalorder %s121, %s135
      %p137 = scmp.eq.s32.totalorder %s22, 0
      %p138 = por %p136, %p137
      %s140 = sadd.s32 %s139, 1
      %p143 = scmp.eq.s32.totalorder %s16, 9
      %p144 = scmp.ne.s32.totalorder %s139, %s141
      %p145 = scmp.eq.s32.totalorder %s16, 0
      %p146 = por %p144, %p145
      %p147 = scmp.ne.s32.totalorder %s139, %s141
      %p148 = scmp.eq.s32.totalorder %s21, 9
      %p149 = por %p147, %p148
      %p150 = scmp.ne.s32.totalorder %s141, %s142
      %p151 = scmp.eq.s32.totalorder %s21, 0
      %p152 = por %p150, %p151
      %p153 = scmp.ne.s32.totalorder %s141, %s142
      %p154 = scmp.eq.s32.totalorder %s22, 9
      %p155 = por %p153, %p154
      %p157 = scmp.ne.s32.totalorder %s142, %s156
      %p158 = scmp.eq.s32.totalorder %s22, 0
      %p159 = por %p157, %p158
      %p160 = scmp.le.s32.totalorder 1, %s16
      %p161 = scmp.lt.s32.totalorder %s16, 11
      %p162 = pnand %p160, %p161
      %p163 = pneg %p162
      // Predicated region
      $region9: #{forward.3} parent=5 // pred_check
        _
      $region10: #{forward.3} parent=5 // pred_check_branch
        %165 = sbr.rel (%p162) target = $region12
      $region11: #{forward.3} parent=5 // pred_region
        %s166 = ssub.s32 %s16, 1
        // Predicated region
        $region13: #{forward.3} parent=11 // pred_check
          %p167 = pneg %p89
        $region14: #{forward.3} parent=11 // pred_check_branch
          %169 = sbr.rel (%p167) target = $region16
        $region15: #{forward.3} parent=11 // pred_region
          _
        $region16: #{forward.3} parent=11 // pred_fallthru
          _
        // Predicated region
        $region17: #{forward.3} parent=11 // pred_check
          %p170 = pneg %p110
        $region18: #{forward.3} parent=11 // pred_check_branch
          %172 = sbr.rel (%p170) target = $region20
        $region19: #{forward.3} parent=11 // pred_region
          _
        $region20: #{forward.3} parent=11 // pred_fallthru
          _
        // Predicated region
        $region21: #{forward.3} parent=11 // pred_check
          %p173 = pneg %p131
        $region22: #{forward.3} parent=11 // pred_check_branch
          %175 = sbr.rel (%p173) target = $region24
        $region23: #{forward.3} parent=11 // pred_region
          _
        $region24: #{forward.3} parent=11 // pred_fallthru
          _
      $region12: #{forward.3} parent=5 // pred_fallthru
        _
      %p176 = scmp.lt.s32.totalorder %s16, 10
      // Predicated region
      $region25: #{forward.3} parent=5 // pred_check
        %p177 = pneg %p176
      $region26: #{forward.3} parent=5 // pred_check_branch
        %179 = sbr.rel (%p177) target = $region28
      $region27: #{forward.3} parent=5 // pred_region
        // Predicated region
        $region29: #{forward.3} parent=27 // pred_check
          %p180 = pneg %p36
        $region30: #{forward.3} parent=27 // pred_check_branch
          %182 = sbr.rel (%p180) target = $region32
        $region31: #{forward.3} parent=27 // pred_region
          %s183 = smul.u32 128, %s16
          %p184 = scmp.lt.s32.totalorder %s183, 1279
          %s185 = scalar_select %p184, %s183, 1279
          %s186 = smul.addr %s185, 2
          %s187 = scalar_lea.vmem %s0, %s186
          %s188 = smul.u32 128, %s16
        $region32: #{forward.3} parent=27 // pred_fallthru
          _
        // Predicated region
        $region33: #{forward.3} parent=27 // pred_check
          %p189 = pneg %p62
        $region34: #{forward.3} parent=27 // pred_check_branch
          %191 = sbr.rel (%p189) target = $region36
        $region35: #{forward.3} parent=27 // pred_region
          %s192 = sand.u32 %s52, 1
          %s193 = scalar_lea.sflag [#allocation5], %s192
          %s194 = sand.u32 %s52, 1
          %s195 = smul.addr %s194, 16384
          %s196 = scalar_lea.vmem [#allocation4], %s195
          %s197 = smul.u32 2048, %s16
          %199 = vsyncadd %s193, 0
          %s200 = smul.addr %s197, 8
          %s201 = scalar_lea.hbm %s1, %s200
          %s202 = sshll.u32 %s201, 4
          %s203 = int_to_ptr.hbm [resolvable:$true] %s202
          %s204 = sshll.u32 %s196, 4
          %s205 = int_to_ptr.vmem [resolvable:$true] %s204
          %210 = dma.hbm_to_vmem [thread:$0]  %s203, 262144, %s205, %s193, 128, 128, 8
        $region36: #{forward.3} parent=27 // pred_fallthru
          _
      $region28: #{forward.3} parent=5 // pred_fallthru
        _
      %p211 = scmp.le.s32.totalorder 1, %s16
      %p212 = scmp.lt.s32.totalorder %s16, 11
      %p213 = pnand %p211, %p212
      %p214 = pneg %p213
      // Predicated region
      $region37: #{forward.3} parent=5 // pred_check
        _
      $region38: #{forward.3} parent=5 // pred_check_branch
        %216 = sbr.rel (%p213) target = $region40
      $region39: #{forward.3} parent=5 // pred_region
        %s217 = ssub.s32 %s16, 1
        %s218 = sand.u32 %s55, 1
        %s219 = scalar_lea.sflag [#allocation5], %s218
        %s220 = sand.u32 %s55, 1
        %s221 = smul.addr %s220, 16384
        %s222 = scalar_lea.vmem [#allocation4], %s221
        // Predicated region
        $region41: #{forward.3} parent=39 // pred_check
          %p223 = pneg %p68
        $region42: #{forward.3} parent=39 // pred_check_branch
          %225 = sbr.rel (%p223) target = $region44
        $region43: #{forward.3} parent=39 // pred_region
          %227 = dma.done %s219, 262144
        $region44: #{forward.3} parent=39 // pred_fallthru
          _
        %s228 = smul.u32 128, %s21
        %p229 = scmp.lt.s32.totalorder %s228, 1279
        %s230 = scalar_select %p229, %s228, 1279
        %s231 = smul.addr %s230, 2
        %s232 = scalar_lea.vmem %s0, %s231
        %p233 = pneg %p42
        %p234 = pneg %p39
        %s235 = sand.u32 %s55, 1
        %s236 = scalar_lea.sflag [#allocation5], %s235
        %s237 = sand.u32 %s55, 1
        %s238 = smul.addr %s237, 16384
        %s239 = scalar_lea.vmem [#allocation4], %s238
        %p240 = pneg %p68
        %p241 = pneg %p65
        %p242 = pneg %p89
        %p243 = pneg %p86
        %p244 = pneg %p110
        %p245 = pneg %p107
        %p246 = pneg %p131
        %p247 = pneg %p128
        %p248 = pneg %p152
        %p249 = pneg %p149
        %s250 = smul.u32 128, %s21
        %p251 = scmp.lt.s32.totalorder %s250, 1279
        %s252 = scalar_select %p251, %s250, 1279
        %s253 = smul.addr %s252, 2
        %s254 = scalar_lea.vmem %s0, %s253
        %s255 = smul.u32 128, %s21
        %s256 = smul.u32 2048, %s21
        %p257 = scmp.eq.s32.totalorder %s21, 0
        // Predicated region
        $region45: #{forward.3} parent=39 // pred_check
          %p258 = pneg %p257
        $region46: #{forward.3} parent=39 // pred_check_branch
          %260 = sbr.rel (%p258) target = $region48
        $region47: #{forward.3} parent=39 // pred_region
          %261 = vst [vmem:[#allocation2] sm:$0x3] 0.0
        $region48: #{forward.3} parent=39 // pred_fallthru
          _
        %v262 = vld [vmem:[#allocation2] sm:$0x3]
        %v263 = vld [vmem:[%s254] sm:$0xff]
        %v264 = vld [vmem:[%s254 + $0x8] sm:$0xff]
        %v265 = vld [vmem:[%s254 + $0x10] sm:$0xff]
        %v266 = vld [vmem:[%s254 + $0x18] sm:$0xff]
        %v267 = vld [vmem:[%s254 + $0x20] sm:$0xff]
        %v268 = vld [vmem:[%s254 + $0x28] sm:$0xff]
        %v269 = vld [vmem:[%s254 + $0x30] sm:$0xff]
        %v270 = vld [vmem:[%s254 + $0x38] sm:$0xff]
        %v271 = vld [vmem:[%s254 + $0x40] sm:$0xff]
        %v272 = vld [vmem:[%s254 + $0x48] sm:$0xff]
        %v273 = vld [vmem:[%s254 + $0x50] sm:$0xff]
        %v274 = vld [vmem:[%s254 + $0x58] sm:$0xff]
        %v275 = vld [vmem:[%s254 + $0x60] sm:$0xff]
        %v276 = vld [vmem:[%s254 + $0x68] sm:$0xff]
        %v277 = vld [vmem:[%s254 + $0x70] sm:$0xff]
        %v278 = vld [vmem:[%s254 + $0x78] sm:$0xff]
        %v279 = vld [vmem:[%s254 + $0x80] sm:$0xff]
        %v280 = vld [vmem:[%s254 + $0x88] sm:$0xff]
        %v281 = vld [vmem:[%s254 + $0x90] sm:$0xff]
        %v282 = vld [vmem:[%s254 + $0x98] sm:$0xff]
        %v283 = vld [vmem:[%s254 + $0xa0] sm:$0xff]
        %v284 = vld [vmem:[%s254 + $0xa8] sm:$0xff]
        %v285 = vld [vmem:[%s254 + $0xb0] sm:$0xff]
        %v286 = vld [vmem:[%s254 + $0xb8] sm:$0xff]
        %v287 = vld [vmem:[%s254 + $0xc0] sm:$0xff]
        %v288 = vld [vmem:[%s254 + $0xc8] sm:$0xff]
        %v289 = vld [vmem:[%s254 + $0xd0] sm:$0xff]
        %v290 = vld [vmem:[%s254 + $0xd8] sm:$0xff]
        %v291 = vld [vmem:[%s254 + $0xe0] sm:$0xff]
        %v292 = vld [vmem:[%s254 + $0xe8] sm:$0xff]
        %v293 = vld [vmem:[%s254 + $0xf0] sm:$0xff]
        %v294 = vld [vmem:[%s254 + $0xf8] sm:$0xff]
        %v295 = vld [vmem:[%s222] sm:$0xff]
        %v296 = vld [vmem:[%s222 + $0x8] sm:$0xff]
        %v297 = vld [vmem:[%s222 + $0x10] sm:$0xff]
        %v298 = vld [vmem:[%s222 + $0x18] sm:$0xff]
        %v299 = vld [vmem:[%s222 + $0x20] sm:$0xff]
        %v300 = vld [vmem:[%s222 + $0x28] sm:$0xff]
        %v301 = vld [vmem:[%s222 + $0x30] sm:$0xff]
        %v302 = vld [vmem:[%s222 + $0x38] sm:$0xff]
        %v303 = vld [vmem:[%s222 + $0x40] sm:$0xff]
        %v304 = vld [vmem:[%s222 + $0x48] sm:$0xff]
        %v305 = vld [vmem:[%s222 + $0x50] sm:$0xff]
        %v306 = vld [vmem:[%s222 + $0x58] sm:$0xff]
        %v307 = vld [vmem:[%s222 + $0x60] sm:$0xff]
        %v308 = vld [vmem:[%s222 + $0x68] sm:$0xff]
        %v309 = vld [vmem:[%s222 + $0x70] sm:$0xff]
        %v310 = vld [vmem:[%s222 + $0x78] sm:$0xff]
        %v311 = vld [vmem:[%s222 + $0x80] sm:$0xff]
        %v312 = vld [vmem:[%s222 + $0x88] sm:$0xff]
        %v313 = vld [vmem:[%s222 + $0x90] sm:$0xff]
        %v314 = vld [vmem:[%s222 + $0x98] sm:$0xff]
        %v315 = vld [vmem:[%s222 + $0xa0] sm:$0xff]
        %v316 = vld [vmem:[%s222 + $0xa8] sm:$0xff]
        %v317 = vld [vmem:[%s222 + $0xb0] sm:$0xff]
        %v318 = vld [vmem:[%s222 + $0xb8] sm:$0xff]
        %v319 = vld [vmem:[%s222 + $0xc0] sm:$0xff]
        %v320 = vld [vmem:[%s222 + $0xc8] sm:$0xff]
        %v321 = vld [vmem:[%s222 + $0xd0] sm:$0xff]
        %v322 = vld [vmem:[%s222 + $0xd8] sm:$0xff]
        %v323 = vld [vmem:[%s222 + $0xe0] sm:$0xff]
        %v324 = vld [vmem:[%s222 + $0xe8] sm:$0xff]
        %v325 = vld [vmem:[%s222 + $0xf0] sm:$0xff]
        %v326 = vld [vmem:[%s222 + $0xf8] sm:$0xff]
        %v327 = vld [vmem:[%s222 + $0x100] sm:$0xff]
        %v328 = vld [vmem:[%s222 + $0x108] sm:$0xff]
        %v329 = vld [vmem:[%s222 + $0x110] sm:$0xff]
        %v330 = vld [vmem:[%s222 + $0x118] sm:$0xff]
        %v331 = vld [vmem:[%s222 + $0x120] sm:$0xff]
        %v332 = vld [vmem:[%s222 + $0x128] sm:$0xff]
        %v333 = vld [vmem:[%s222 + $0x130] sm:$0xff]
        %v334 = vld [vmem:[%s222 + $0x138] sm:$0xff]
        %v335 = vld [vmem:[%s222 + $0x140] sm:$0xff]
        %v336 = vld [vmem:[%s222 + $0x148] sm:$0xff]
        %v337 = vld [vmem:[%s222 + $0x150] sm:$0xff]
        %v338 = vld [vmem:[%s222 + $0x158] sm:$0xff]
        %v339 = vld [vmem:[%s222 + $0x160] sm:$0xff]
        %v340 = vld [vmem:[%s222 + $0x168] sm:$0xff]
        %v341 = vld [vmem:[%s222 + $0x170] sm:$0xff]
        %v342 = vld [vmem:[%s222 + $0x178] sm:$0xff]
        %v343 = vld [vmem:[%s222 + $0x180] sm:$0xff]
        %v344 = vld [vmem:[%s222 + $0x188] sm:$0xff]
        %v345 = vld [vmem:[%s222 + $0x190] sm:$0xff]
        %v346 = vld [vmem:[%s222 + $0x198] sm:$0xff]
        %v347 = vld [vmem:[%s222 + $0x1a0] sm:$0xff]
        %v348 = vld [vmem:[%s222 + $0x1a8] sm:$0xff]
        %v349 = vld [vmem:[%s222 + $0x1b0] sm:$0xff]
        %v350 = vld [vmem:[%s222 + $0x1b8] sm:$0xff]
        %v351 = vld [vmem:[%s222 + $0x1c0] sm:$0xff]
        %v352 = vld [vmem:[%s222 + $0x1c8] sm:$0xff]
        %v353 = vld [vmem:[%s222 + $0x1d0] sm:$0xff]
        %v354 = vld [vmem:[%s222 + $0x1d8] sm:$0xff]
        %v355 = vld [vmem:[%s222 + $0x1e0] sm:$0xff]
        %v356 = vld [vmem:[%s222 + $0x1e8] sm:$0xff]
        %v357 = vld [vmem:[%s222 + $0x1f0] sm:$0xff]
        %v358 = vld [vmem:[%s222 + $0x1f8] sm:$0xff]
        %v359 = vld [vmem:[%s222 + $0x200] sm:$0xff]
        %v360 = vld [vmem:[%s222 + $0x208] sm:$0xff]
        %v361 = vld [vmem:[%s222 + $0x210] sm:$0xff]
        %v362 = vld [vmem:[%s222 + $0x218] sm:$0xff]
        %v363 = vld [vmem:[%s222 + $0x220] sm:$0xff]
        %v364 = vld [vmem:[%s222 + $0x228] sm:$0xff]
        %v365 = vld [vmem:[%s222 + $0x230] sm:$0xff]
        %v366 = vld [vmem:[%s222 + $0x238] sm:$0xff]
        %v367 = vld [vmem:[%s222 + $0x240] sm:$0xff]
        %v368 = vld [vmem:[%s222 + $0x248] sm:$0xff]
        %v369 = vld [vmem:[%s222 + $0x250] sm:$0xff]
        %v370 = vld [vmem:[%s222 + $0x258] sm:$0xff]
        %v371 = vld [vmem:[%s222 + $0x260] sm:$0xff]
        %v372 = vld [vmem:[%s222 + $0x268] sm:$0xff]
        %v373 = vld [vmem:[%s222 + $0x270] sm:$0xff]
        %v374 = vld [vmem:[%s222 + $0x278] sm:$0xff]
        %v375 = vld [vmem:[%s222 + $0x280] sm:$0xff]
        %v376 = vld [vmem:[%s222 + $0x288] sm:$0xff]
        %v377 = vld [vmem:[%s222 + $0x290] sm:$0xff]
        %v378 = vld [vmem:[%s222 + $0x298] sm:$0xff]
        %v379 = vld [vmem:[%s222 + $0x2a0] sm:$0xff]
        %v380 = vld [vmem:[%s222 + $0x2a8] sm:$0xff]
        %v381 = vld [vmem:[%s222 + $0x2b0] sm:$0xff]
        %v382 = vld [vmem:[%s222 + $0x2b8] sm:$0xff]
        %v383 = vld [vmem:[%s222 + $0x2c0] sm:$0xff]
        %v384 = vld [vmem:[%s222 + $0x2c8] sm:$0xff]
        %v385 = vld [vmem:[%s222 + $0x2d0] sm:$0xff]
        %v386 = vld [vmem:[%s222 + $0x2d8] sm:$0xff]
        %v387 = vld [vmem:[%s222 + $0x2e0] sm:$0xff]
        %v388 = vld [vmem:[%s222 + $0x2e8] sm:$0xff]
        %v389 = vld [vmem:[%s222 + $0x2f0] sm:$0xff]
        %v390 = vld [vmem:[%s222 + $0x2f8] sm:$0xff]
        %v391 = vld [vmem:[%s222 + $0x300] sm:$0xff]
        %v392 = vld [vmem:[%s222 + $0x308] sm:$0xff]
        %v393 = vld [vmem:[%s222 + $0x310] sm:$0xff]
        %v394 = vld [vmem:[%s222 + $0x318] sm:$0xff]
        %v395 = vld [vmem:[%s222 + $0x320] sm:$0xff]
        %v396 = vld [vmem:[%s222 + $0x328] sm:$0xff]
        %v397 = vld [vmem:[%s222 + $0x330] sm:$0xff]
        %v398 = vld [vmem:[%s222 + $0x338] sm:$0xff]
        %v399 = vld [vmem:[%s222 + $0x340] sm:$0xff]
        %v400 = vld [vmem:[%s222 + $0x348] sm:$0xff]
        %v401 = vld [vmem:[%s222 + $0x350] sm:$0xff]
        %v402 = vld [vmem:[%s222 + $0x358] sm:$0xff]
        %v403 = vld [vmem:[%s222 + $0x360] sm:$0xff]
        %v404 = vld [vmem:[%s222 + $0x368] sm:$0xff]
        %v405 = vld [vmem:[%s222 + $0x370] sm:$0xff]
        %v406 = vld [vmem:[%s222 + $0x378] sm:$0xff]
        %v407 = vld [vmem:[%s222 + $0x380] sm:$0xff]
        %v408 = vld [vmem:[%s222 + $0x388] sm:$0xff]
        %v409 = vld [vmem:[%s222 + $0x390] sm:$0xff]
        %v410 = vld [vmem:[%s222 + $0x398] sm:$0xff]
        %v411 = vld [vmem:[%s222 + $0x3a0] sm:$0xff]
        %v412 = vld [vmem:[%s222 + $0x3a8] sm:$0xff]
        %v413 = vld [vmem:[%s222 + $0x3b0] sm:$0xff]
        %v414 = vld [vmem:[%s222 + $0x3b8] sm:$0xff]
        %v415 = vld [vmem:[%s222 + $0x3c0] sm:$0xff]
        %v416 = vld [vmem:[%s222 + $0x3c8] sm:$0xff]
        %v417 = vld [vmem:[%s222 + $0x3d0] sm:$0xff]
        %v418 = vld [vmem:[%s222 + $0x3d8] sm:$0xff]
        %v419 = vld [vmem:[%s222 + $0x3e0] sm:$0xff]
        %v420 = vld [vmem:[%s222 + $0x3e8] sm:$0xff]
        %v421 = vld [vmem:[%s222 + $0x3f0] sm:$0xff]
        %v422 = vld [vmem:[%s222 + $0x3f8] sm:$0xff]
        %v423 = vld [vmem:[%s222 + $0x400] sm:$0xff]
        %v424 = vld [vmem:[%s222 + $0x408] sm:$0xff]
        %v425 = vld [vmem:[%s222 + $0x410] sm:$0xff]
        %v426 = vld [vmem:[%s222 + $0x418] sm:$0xff]
        %v427 = vld [vmem:[%s222 + $0x420] sm:$0xff]
        %v428 = vld [vmem:[%s222 + $0x428] sm:$0xff]
        %v429 = vld [vmem:[%s222 + $0x430] sm:$0xff]
        %v430 = vld [vmem:[%s222 + $0x438] sm:$0xff]
        %v431 = vld [vmem:[%s222 + $0x440] sm:$0xff]
        %v432 = vld [vmem:[%s222 + $0x448] sm:$0xff]
        %v433 = vld [vmem:[%s222 + $0x450] sm:$0xff]
        %v434 = vld [vmem:[%s222 + $0x458] sm:$0xff]
        %v435 = vld [vmem:[%s222 + $0x460] sm:$0xff]
        %v436 = vld [vmem:[%s222 + $0x468] sm:$0xff]
        %v437 = vld [vmem:[%s222 + $0x470] sm:$0xff]
        %v438 = vld [vmem:[%s222 + $0x478] sm:$0xff]
        %v439 = vld [vmem:[%s222 + $0x480] sm:$0xff]
        %v440 = vld [vmem:[%s222 + $0x488] sm:$0xff]
        %v441 = vld [vmem:[%s222 + $0x490] sm:$0xff]
        %v442 = vld [vmem:[%s222 + $0x498] sm:$0xff]
        %v443 = vld [vmem:[%s222 + $0x4a0] sm:$0xff]
        %v444 = vld [vmem:[%s222 + $0x4a8] sm:$0xff]
        %v445 = vld [vmem:[%s222 + $0x4b0] sm:$0xff]
        %v446 = vld [vmem:[%s222 + $0x4b8] sm:$0xff]
        %v447 = vld [vmem:[%s222 + $0x4c0] sm:$0xff]
        %v448 = vld [vmem:[%s222 + $0x4c8] sm:$0xff]
        %v449 = vld [vmem:[%s222 + $0x4d0] sm:$0xff]
        %v450 = vld [vmem:[%s222 + $0x4d8] sm:$0xff]
        %v451 = vld [vmem:[%s222 + $0x4e0] sm:$0xff]
        %v452 = vld [vmem:[%s222 + $0x4e8] sm:$0xff]
        %v453 = vld [vmem:[%s222 + $0x4f0] sm:$0xff]
        %v454 = vld [vmem:[%s222 + $0x4f8] sm:$0xff]
        %v455 = vld [vmem:[%s222 + $0x500] sm:$0xff]
        %v456 = vld [vmem:[%s222 + $0x508] sm:$0xff]
        %v457 = vld [vmem:[%s222 + $0x510] sm:$0xff]
        %v458 = vld [vmem:[%s222 + $0x518] sm:$0xff]
        %v459 = vld [vmem:[%s222 + $0x520] sm:$0xff]
        %v460 = vld [vmem:[%s222 + $0x528] sm:$0xff]
        %v461 = vld [vmem:[%s222 + $0x530] sm:$0xff]
        %v462 = vld [vmem:[%s222 + $0x538] sm:$0xff]
        %v463 = vld [vmem:[%s222 + $0x540] sm:$0xff]
        %v464 = vld [vmem:[%s222 + $0x548] sm:$0xff]
        %v465 = vld [vmem:[%s222 + $0x550] sm:$0xff]
        %v466 = vld [vmem:[%s222 + $0x558] sm:$0xff]
        %v467 = vld [vmem:[%s222 + $0x560] sm:$0xff]
        %v468 = vld [vmem:[%s222 + $0x568] sm:$0xff]
        %v469 = vld [vmem:[%s222 + $0x570] sm:$0xff]
        %v470 = vld [vmem:[%s222 + $0x578] sm:$0xff]
        %v471 = vld [vmem:[%s222 + $0x580] sm:$0xff]
        %v472 = vld [vmem:[%s222 + $0x588] sm:$0xff]
        %v473 = vld [vmem:[%s222 + $0x590] sm:$0xff]
        %v474 = vld [vmem:[%s222 + $0x598] sm:$0xff]
        %v475 = vld [vmem:[%s222 + $0x5a0] sm:$0xff]
        %v476 = vld [vmem:[%s222 + $0x5a8] sm:$0xff]
        %v477 = vld [vmem:[%s222 + $0x5b0] sm:$0xff]
        %v478 = vld [vmem:[%s222 + $0x5b8] sm:$0xff]
        %v479 = vld [vmem:[%s222 + $0x5c0] sm:$0xff]
        %v480 = vld [vmem:[%s222 + $0x5c8] sm:$0xff]
        %v481 = vld [vmem:[%s222 + $0x5d0] sm:$0xff]
        %v482 = vld [vmem:[%s222 + $0x5d8] sm:$0xff]
        %v483 = vld [vmem:[%s222 + $0x5e0] sm:$0xff]
        %v484 = vld [vmem:[%s222 + $0x5e8] sm:$0xff]
        %v485 = vld [vmem:[%s222 + $0x5f0] sm:$0xff]
        %v486 = vld [vmem:[%s222 + $0x5f8] sm:$0xff]
        %v487 = vld [vmem:[%s222 + $0x600] sm:$0xff]
        %v488 = vld [vmem:[%s222 + $0x608] sm:$0xff]
        %v489 = vld [vmem:[%s222 + $0x610] sm:$0xff]
        %v490 = vld [vmem:[%s222 + $0x618] sm:$0xff]
        %v491 = vld [vmem:[%s222 + $0x620] sm:$0xff]
        %v492 = vld [vmem:[%s222 + $0x628] sm:$0xff]
        %v493 = vld [vmem:[%s222 + $0x630] sm:$0xff]
        %v494 = vld [vmem:[%s222 + $0x638] sm:$0xff]
        %v495 = vld [vmem:[%s222 + $0x640] sm:$0xff]
        %v496 = vld [vmem:[%s222 + $0x648] sm:$0xff]
        %v497 = vld [vmem:[%s222 + $0x650] sm:$0xff]
        %v498 = vld [vmem:[%s222 + $0x658] sm:$0xff]
        %v499 = vld [vmem:[%s222 + $0x660] sm:$0xff]
        %v500 = vld [vmem:[%s222 + $0x668] sm:$0xff]
        %v501 = vld [vmem:[%s222 + $0x670] sm:$0xff]
        %v502 = vld [vmem:[%s222 + $0x678] sm:$0xff]
        %v503 = vld [vmem:[%s222 + $0x680] sm:$0xff]
        %v504 = vld [vmem:[%s222 + $0x688] sm:$0xff]
        %v505 = vld [vmem:[%s222 + $0x690] sm:$0xff]
        %v506 = vld [vmem:[%s222 + $0x698] sm:$0xff]
        %v507 = vld [vmem:[%s222 + $0x6a0] sm:$0xff]
        %v508 = vld [vmem:[%s222 + $0x6a8] sm:$0xff]
        %v509 = vld [vmem:[%s222 + $0x6b0] sm:$0xff]
        %v510 = vld [vmem:[%s222 + $0x6b8] sm:$0xff]
        %v511 = vld [vmem:[%s222 + $0x6c0] sm:$0xff]
        %v512 = vld [vmem:[%s222 + $0x6c8] sm:$0xff]
        %v513 = vld [vmem:[%s222 + $0x6d0] sm:$0xff]
        %v514 = vld [vmem:[%s222 + $0x6d8] sm:$0xff]
        %v515 = vld [vmem:[%s222 + $0x6e0] sm:$0xff]
        %v516 = vld [vmem:[%s222 + $0x6e8] sm:$0xff]
        %v517 = vld [vmem:[%s222 + $0x6f0] sm:$0xff]
        %v518 = vld [vmem:[%s222 + $0x6f8] sm:$0xff]
        %v519 = vld [vmem:[%s222 + $0x700] sm:$0xff]
        %v520 = vld [vmem:[%s222 + $0x708] sm:$0xff]
        %v521 = vld [vmem:[%s222 + $0x710] sm:$0xff]
        %v522 = vld [vmem:[%s222 + $0x718] sm:$0xff]
        %v523 = vld [vmem:[%s222 + $0x720] sm:$0xff]
        %v524 = vld [vmem:[%s222 + $0x728] sm:$0xff]
        %v525 = vld [vmem:[%s222 + $0x730] sm:$0xff]
        %v526 = vld [vmem:[%s222 + $0x738] sm:$0xff]
        %v527 = vld [vmem:[%s222 + $0x740] sm:$0xff]
        %v528 = vld [vmem:[%s222 + $0x748] sm:$0xff]
        %v529 = vld [vmem:[%s222 + $0x750] sm:$0xff]
        %v530 = vld [vmem:[%s222 + $0x758] sm:$0xff]
        %v531 = vld [vmem:[%s222 + $0x760] sm:$0xff]
        %v532 = vld [vmem:[%s222 + $0x768] sm:$0xff]
        %v533 = vld [vmem:[%s222 + $0x770] sm:$0xff]
        %v534 = vld [vmem:[%s222 + $0x778] sm:$0xff]
        %v535 = vld [vmem:[%s222 + $0x780] sm:$0xff]
        %v536 = vld [vmem:[%s222 + $0x788] sm:$0xff]
        %v537 = vld [vmem:[%s222 + $0x790] sm:$0xff]
        %v538 = vld [vmem:[%s222 + $0x798] sm:$0xff]
        %v539 = vld [vmem:[%s222 + $0x7a0] sm:$0xff]
        %v540 = vld [vmem:[%s222 + $0x7a8] sm:$0xff]
        %v541 = vld [vmem:[%s222 + $0x7b0] sm:$0xff]
        %v542 = vld [vmem:[%s222 + $0x7b8] sm:$0xff]
        %v543 = vld [vmem:[%s222 + $0x7c0] sm:$0xff]
        %v544 = vld [vmem:[%s222 + $0x7c8] sm:$0xff]
        %v545 = vld [vmem:[%s222 + $0x7d0] sm:$0xff]
        %v546 = vld [vmem:[%s222 + $0x7d8] sm:$0xff]
        %v547 = vld [vmem:[%s222 + $0x7e0] sm:$0xff]
        %v548 = vld [vmem:[%s222 + $0x7e8] sm:$0xff]
        %v549 = vld [vmem:[%s222 + $0x7f0] sm:$0xff]
        %v550 = vld [vmem:[%s222 + $0x7f8] sm:$0xff]
        %v551 = vld [vmem:[%s222 + $0x800] sm:$0xff]
        %v552 = vld [vmem:[%s222 + $0x808] sm:$0xff]
        %v553 = vld [vmem:[%s222 + $0x810] sm:$0xff]
        %v554 = vld [vmem:[%s222 + $0x818] sm:$0xff]
        %v555 = vld [vmem:[%s222 + $0x820] sm:$0xff]
        %v556 = vld [vmem:[%s222 + $0x828] sm:$0xff]
        %v557 = vld [vmem:[%s222 + $0x830] sm:$0xff]
        %v558 = vld [vmem:[%s222 + $0x838] sm:$0xff]
        %v559 = vld [vmem:[%s222 + $0x840] sm:$0xff]
        %v560 = vld [vmem:[%s222 + $0x848] sm:$0xff]
        %v561 = vld [vmem:[%s222 + $0x850] sm:$0xff]
        %v562 = vld [vmem:[%s222 + $0x858] sm:$0xff]
        %v563 = vld [vmem:[%s222 + $0x860] sm:$0xff]
        %v564 = vld [vmem:[%s222 + $0x868] sm:$0xff]
        %v565 = vld [vmem:[%s222 + $0x870] sm:$0xff]
        %v566 = vld [vmem:[%s222 + $0x878] sm:$0xff]
        %v567 = vld [vmem:[%s222 + $0x880] sm:$0xff]
        %v568 = vld [vmem:[%s222 + $0x888] sm:$0xff]
        %v569 = vld [vmem:[%s222 + $0x890] sm:$0xff]
        %v570 = vld [vmem:[%s222 + $0x898] sm:$0xff]
        %v571 = vld [vmem:[%s222 + $0x8a0] sm:$0xff]
        %v572 = vld [vmem:[%s222 + $0x8a8] sm:$0xff]
        %v573 = vld [vmem:[%s222 + $0x8b0] sm:$0xff]
        %v574 = vld [vmem:[%s222 + $0x8b8] sm:$0xff]
        %v575 = vld [vmem:[%s222 + $0x8c0] sm:$0xff]
        %v576 = vld [vmem:[%s222 + $0x8c8] sm:$0xff]
        %v577 = vld [vmem:[%s222 + $0x8d0] sm:$0xff]
        %v578 = vld [vmem:[%s222 + $0x8d8] sm:$0xff]
        %v579 = vld [vmem:[%s222 + $0x8e0] sm:$0xff]
        %v580 = vld [vmem:[%s222 + $0x8e8] sm:$0xff]
        %v581 = vld [vmem:[%s222 + $0x8f0] sm:$0xff]
        %v582 = vld [vmem:[%s222 + $0x8f8] sm:$0xff]
        %v583 = vld [vmem:[%s222 + $0x900] sm:$0xff]
        %v584 = vld [vmem:[%s222 + $0x908] sm:$0xff]
        %v585 = vld [vmem:[%s222 + $0x910] sm:$0xff]
        %v586 = vld [vmem:[%s222 + $0x918] sm:$0xff]
        %v587 = vld [vmem:[%s222 + $0x920] sm:$0xff]
        %v588 = vld [vmem:[%s222 + $0x928] sm:$0xff]
        %v589 = vld [vmem:[%s222 + $0x930] sm:$0xff]
        %v590 = vld [vmem:[%s222 + $0x938] sm:$0xff]
        %v591 = vld [vmem:[%s222 + $0x940] sm:$0xff]
        %v592 = vld [vmem:[%s222 + $0x948] sm:$0xff]
        %v593 = vld [vmem:[%s222 + $0x950] sm:$0xff]
        %v594 = vld [vmem:[%s222 + $0x958] sm:$0xff]
        %v595 = vld [vmem:[%s222 + $0x960] sm:$0xff]
        %v596 = vld [vmem:[%s222 + $0x968] sm:$0xff]
        %v597 = vld [vmem:[%s222 + $0x970] sm:$0xff]
        %v598 = vld [vmem:[%s222 + $0x978] sm:$0xff]
        %v599 = vld [vmem:[%s222 + $0x980] sm:$0xff]
        %v600 = vld [vmem:[%s222 + $0x988] sm:$0xff]
        %v601 = vld [vmem:[%s222 + $0x990] sm:$0xff]
        %v602 = vld [vmem:[%s222 + $0x998] sm:$0xff]
        %v603 = vld [vmem:[%s222 + $0x9a0] sm:$0xff]
        %v604 = vld [vmem:[%s222 + $0x9a8] sm:$0xff]
        %v605 = vld [vmem:[%s222 + $0x9b0] sm:$0xff]
        %v606 = vld [vmem:[%s222 + $0x9b8] sm:$0xff]
        %v607 = vld [vmem:[%s222 + $0x9c0] sm:$0xff]
        %v608 = vld [vmem:[%s222 + $0x9c8] sm:$0xff]
        %v609 = vld [vmem:[%s222 + $0x9d0] sm:$0xff]
        %v610 = vld [vmem:[%s222 + $0x9d8] sm:$0xff]
        %v611 = vld [vmem:[%s222 + $0x9e0] sm:$0xff]
        %v612 = vld [vmem:[%s222 + $0x9e8] sm:$0xff]
        %v613 = vld [vmem:[%s222 + $0x9f0] sm:$0xff]
        %v614 = vld [vmem:[%s222 + $0x9f8] sm:$0xff]
        %v615 = vld [vmem:[%s222 + $0xa00] sm:$0xff]
        %v616 = vld [vmem:[%s222 + $0xa08] sm:$0xff]
        %v617 = vld [vmem:[%s222 + $0xa10] sm:$0xff]
        %v618 = vld [vmem:[%s222 + $0xa18] sm:$0xff]
        %v619 = vld [vmem:[%s222 + $0xa20] sm:$0xff]
        %v620 = vld [vmem:[%s222 + $0xa28] sm:$0xff]
        %v621 = vld [vmem:[%s222 + $0xa30] sm:$0xff]
        %v622 = vld [vmem:[%s222 + $0xa38] sm:$0xff]
        %v623 = vld [vmem:[%s222 + $0xa40] sm:$0xff]
        %v624 = vld [vmem:[%s222 + $0xa48] sm:$0xff]
        %v625 = vld [vmem:[%s222 + $0xa50] sm:$0xff]
        %v626 = vld [vmem:[%s222 + $0xa58] sm:$0xff]
        %v627 = vld [vmem:[%s222 + $0xa60] sm:$0xff]
        %v628 = vld [vmem:[%s222 + $0xa68] sm:$0xff]
        %v629 = vld [vmem:[%s222 + $0xa70] sm:$0xff]
        %v630 = vld [vmem:[%s222 + $0xa78] sm:$0xff]
        %v631 = vld [vmem:[%s222 + $0xa80] sm:$0xff]
        %v632 = vld [vmem:[%s222 + $0xa88] sm:$0xff]
        %v633 = vld [vmem:[%s222 + $0xa90] sm:$0xff]
        %v634 = vld [vmem:[%s222 + $0xa98] sm:$0xff]
        %v635 = vld [vmem:[%s222 + $0xaa0] sm:$0xff]
        %v636 = vld [vmem:[%s222 + $0xaa8] sm:$0xff]
        %v637 = vld [vmem:[%s222 + $0xab0] sm:$0xff]
        %v638 = vld [vmem:[%s222 + $0xab8] sm:$0xff]
        %v639 = vld [vmem:[%s222 + $0xac0] sm:$0xff]
        %v640 = vld [vmem:[%s222 + $0xac8] sm:$0xff]
        %v641 = vld [vmem:[%s222 + $0xad0] sm:$0xff]
        %v642 = vld [vmem:[%s222 + $0xad8] sm:$0xff]
        %v643 = vld [vmem:[%s222 + $0xae0] sm:$0xff]
        %v644 = vld [vmem:[%s222 + $0xae8] sm:$0xff]
        %v645 = vld [vmem:[%s222 + $0xaf0] sm:$0xff]
        %v646 = vld [vmem:[%s222 + $0xaf8] sm:$0xff]
        %v647 = vld [vmem:[%s222 + $0xb00] sm:$0xff]
        %v648 = vld [vmem:[%s222 + $0xb08] sm:$0xff]
        %v649 = vld [vmem:[%s222 + $0xb10] sm:$0xff]
        %v650 = vld [vmem:[%s222 + $0xb18] sm:$0xff]
        %v651 = vld [vmem:[%s222 + $0xb20] sm:$0xff]
        %v652 = vld [vmem:[%s222 + $0xb28] sm:$0xff]
        %v653 = vld [vmem:[%s222 + $0xb30] sm:$0xff]
        %v654 = vld [vmem:[%s222 + $0xb38] sm:$0xff]
        %v655 = vld [vmem:[%s222 + $0xb40] sm:$0xff]
        %v656 = vld [vmem:[%s222 + $0xb48] sm:$0xff]
        %v657 = vld [vmem:[%s222 + $0xb50] sm:$0xff]
        %v658 = vld [vmem:[%s222 + $0xb58] sm:$0xff]
        %v659 = vld [vmem:[%s222 + $0xb60] sm:$0xff]
        %v660 = vld [vmem:[%s222 + $0xb68] sm:$0xff]
        %v661 = vld [vmem:[%s222 + $0xb70] sm:$0xff]
        %v662 = vld [vmem:[%s222 + $0xb78] sm:$0xff]
        %v663 = vld [vmem:[%s222 + $0xb80] sm:$0xff]
        %v664 = vld [vmem:[%s222 + $0xb88] sm:$0xff]
        %v665 = vld [vmem:[%s222 + $0xb90] sm:$0xff]
        %v666 = vld [vmem:[%s222 + $0xb98] sm:$0xff]
        %v667 = vld [vmem:[%s222 + $0xba0] sm:$0xff]
        %v668 = vld [vmem:[%s222 + $0xba8] sm:$0xff]
        %v669 = vld [vmem:[%s222 + $0xbb0] sm:$0xff]
        %v670 = vld [vmem:[%s222 + $0xbb8] sm:$0xff]
        %v671 = vld [vmem:[%s222 + $0xbc0] sm:$0xff]
        %v672 = vld [vmem:[%s222 + $0xbc8] sm:$0xff]
        %v673 = vld [vmem:[%s222 + $0xbd0] sm:$0xff]
        %v674 = vld [vmem:[%s222 + $0xbd8] sm:$0xff]
        %v675 = vld [vmem:[%s222 + $0xbe0] sm:$0xff]
        %v676 = vld [vmem:[%s222 + $0xbe8] sm:$0xff]
        %v677 = vld [vmem:[%s222 + $0xbf0] sm:$0xff]
        %v678 = vld [vmem:[%s222 + $0xbf8] sm:$0xff]
        %v679 = vld [vmem:[%s222 + $0xc00] sm:$0xff]
        %v680 = vld [vmem:[%s222 + $0xc08] sm:$0xff]
        %v681 = vld [vmem:[%s222 + $0xc10] sm:$0xff]
        %v682 = vld [vmem:[%s222 + $0xc18] sm:$0xff]
        %v683 = vld [vmem:[%s222 + $0xc20] sm:$0xff]
        %v684 = vld [vmem:[%s222 + $0xc28] sm:$0xff]
        %v685 = vld [vmem:[%s222 + $0xc30] sm:$0xff]
        %v686 = vld [vmem:[%s222 + $0xc38] sm:$0xff]
        %v687 = vld [vmem:[%s222 + $0xc40] sm:$0xff]
        %v688 = vld [vmem:[%s222 + $0xc48] sm:$0xff]
        %v689 = vld [vmem:[%s222 + $0xc50] sm:$0xff]
        %v690 = vld [vmem:[%s222 + $0xc58] sm:$0xff]
        %v691 = vld [vmem:[%s222 + $0xc60] sm:$0xff]
        %v692 = vld [vmem:[%s222 + $0xc68] sm:$0xff]
        %v693 = vld [vmem:[%s222 + $0xc70] sm:$0xff]
        %v694 = vld [vmem:[%s222 + $0xc78] sm:$0xff]
        %v695 = vld [vmem:[%s222 + $0xc80] sm:$0xff]
        %v696 = vld [vmem:[%s222 + $0xc88] sm:$0xff]
        %v697 = vld [vmem:[%s222 + $0xc90] sm:$0xff]
        %v698 = vld [vmem:[%s222 + $0xc98] sm:$0xff]
        %v699 = vld [vmem:[%s222 + $0xca0] sm:$0xff]
        %v700 = vld [vmem:[%s222 + $0xca8] sm:$0xff]
        %v701 = vld [vmem:[%s222 + $0xcb0] sm:$0xff]
        %v702 = vld [vmem:[%s222 + $0xcb8] sm:$0xff]
        %v703 = vld [vmem:[%s222 + $0xcc0] sm:$0xff]
        %v704 = vld [vmem:[%s222 + $0xcc8] sm:$0xff]
        %v705 = vld [vmem:[%s222 + $0xcd0] sm:$0xff]
        %v706 = vld [vmem:[%s222 + $0xcd8] sm:$0xff]
        %v707 = vld [vmem:[%s222 + $0xce0] sm:$0xff]
        %v708 = vld [vmem:[%s222 + $0xce8] sm:$0xff]
        %v709 = vld [vmem:[%s222 + $0xcf0] sm:$0xff]
        %v710 = vld [vmem:[%s222 + $0xcf8] sm:$0xff]
        %v711 = vld [vmem:[%s222 + $0xd00] sm:$0xff]
        %v712 = vld [vmem:[%s222 + $0xd08] sm:$0xff]
        %v713 = vld [vmem:[%s222 + $0xd10] sm:$0xff]
        %v714 = vld [vmem:[%s222 + $0xd18] sm:$0xff]
        %v715 = vld [vmem:[%s222 + $0xd20] sm:$0xff]
        %v716 = vld [vmem:[%s222 + $0xd28] sm:$0xff]
        %v717 = vld [vmem:[%s222 + $0xd30] sm:$0xff]
        %v718 = vld [vmem:[%s222 + $0xd38] sm:$0xff]
        %v719 = vld [vmem:[%s222 + $0xd40] sm:$0xff]
        %v720 = vld [vmem:[%s222 + $0xd48] sm:$0xff]
        %v721 = vld [vmem:[%s222 + $0xd50] sm:$0xff]
        %v722 = vld [vmem:[%s222 + $0xd58] sm:$0xff]
        %v723 = vld [vmem:[%s222 + $0xd60] sm:$0xff]
        %v724 = vld [vmem:[%s222 + $0xd68] sm:$0xff]
        %v725 = vld [vmem:[%s222 + $0xd70] sm:$0xff]
        %v726 = vld [vmem:[%s222 + $0xd78] sm:$0xff]
        %v727 = vld [vmem:[%s222 + $0xd80] sm:$0xff]
        %v728 = vld [vmem:[%s222 + $0xd88] sm:$0xff]
        %v729 = vld [vmem:[%s222 + $0xd90] sm:$0xff]
        %v730 = vld [vmem:[%s222 + $0xd98] sm:$0xff]
        %v731 = vld [vmem:[%s222 + $0xda0] sm:$0xff]
        %v732 = vld [vmem:[%s222 + $0xda8] sm:$0xff]
        %v733 = vld [vmem:[%s222 + $0xdb0] sm:$0xff]
        %v734 = vld [vmem:[%s222 + $0xdb8] sm:$0xff]
        %v735 = vld [vmem:[%s222 + $0xdc0] sm:$0xff]
        %v736 = vld [vmem:[%s222 + $0xdc8] sm:$0xff]
        %v737 = vld [vmem:[%s222 + $0xdd0] sm:$0xff]
        %v738 = vld [vmem:[%s222 + $0xdd8] sm:$0xff]
        %v739 = vld [vmem:[%s222 + $0xde0] sm:$0xff]
        %v740 = vld [vmem:[%s222 + $0xde8] sm:$0xff]
        %v741 = vld [vmem:[%s222 + $0xdf0] sm:$0xff]
        %v742 = vld [vmem:[%s222 + $0xdf8] sm:$0xff]
        %v743 = vld [vmem:[%s222 + $0xe00] sm:$0xff]
        %v744 = vld [vmem:[%s222 + $0xe08] sm:$0xff]
        %v745 = vld [vmem:[%s222 + $0xe10] sm:$0xff]
        %v746 = vld [vmem:[%s222 + $0xe18] sm:$0xff]
        %v747 = vld [vmem:[%s222 + $0xe20] sm:$0xff]
        %v748 = vld [vmem:[%s222 + $0xe28] sm:$0xff]
        %v749 = vld [vmem:[%s222 + $0xe30] sm:$0xff]
        %v750 = vld [vmem:[%s222 + $0xe38] sm:$0xff]
        %v751 = vld [vmem:[%s222 + $0xe40] sm:$0xff]
        %v752 = vld [vmem:[%s222 + $0xe48] sm:$0xff]
        %v753 = vld [vmem:[%s222 + $0xe50] sm:$0xff]
        %v754 = vld [vmem:[%s222 + $0xe58] sm:$0xff]
        %v755 = vld [vmem:[%s222 + $0xe60] sm:$0xff]
        %v756 = vld [vmem:[%s222 + $0xe68] sm:$0xff]
        %v757 = vld [vmem:[%s222 + $0xe70] sm:$0xff]
        %v758 = vld [vmem:[%s222 + $0xe78] sm:$0xff]
        %v759 = vld [vmem:[%s222 + $0xe80] sm:$0xff]
        %v760 = vld [vmem:[%s222 + $0xe88] sm:$0xff]
        %v761 = vld [vmem:[%s222 + $0xe90] sm:$0xff]
        %v762 = vld [vmem:[%s222 + $0xe98] sm:$0xff]
        %v763 = vld [vmem:[%s222 + $0xea0] sm:$0xff]
        %v764 = vld [vmem:[%s222 + $0xea8] sm:$0xff]
        %v765 = vld [vmem:[%s222 + $0xeb0] sm:$0xff]
        %v766 = vld [vmem:[%s222 + $0xeb8] sm:$0xff]
        %v767 = vld [vmem:[%s222 + $0xec0] sm:$0xff]
        %v768 = vld [vmem:[%s222 + $0xec8] sm:$0xff]
        %v769 = vld [vmem:[%s222 + $0xed0] sm:$0xff]
        %v770 = vld [vmem:[%s222 + $0xed8] sm:$0xff]
        %v771 = vld [vmem:[%s222 + $0xee0] sm:$0xff]
        %v772 = vld [vmem:[%s222 + $0xee8] sm:$0xff]
        %v773 = vld [vmem:[%s222 + $0xef0] sm:$0xff]
        %v774 = vld [vmem:[%s222 + $0xef8] sm:$0xff]
        %v775 = vld [vmem:[%s222 + $0xf00] sm:$0xff]
        %v776 = vld [vmem:[%s222 + $0xf08] sm:$0xff]
        %v777 = vld [vmem:[%s222 + $0xf10] sm:$0xff]
        %v778 = vld [vmem:[%s222 + $0xf18] sm:$0xff]
        %v779 = vld [vmem:[%s222 + $0xf20] sm:$0xff]
        %v780 = vld [vmem:[%s222 + $0xf28] sm:$0xff]
        %v781 = vld [vmem:[%s222 + $0xf30] sm:$0xff]
        %v782 = vld [vmem:[%s222 + $0xf38] sm:$0xff]
        %v783 = vld [vmem:[%s222 + $0xf40] sm:$0xff]
        %v784 = vld [vmem:[%s222 + $0xf48] sm:$0xff]
        %v785 = vld [vmem:[%s222 + $0xf50] sm:$0xff]
        %v786 = vld [vmem:[%s222 + $0xf58] sm:$0xff]
        %v787 = vld [vmem:[%s222 + $0xf60] sm:$0xff]
        %v788 = vld [vmem:[%s222 + $0xf68] sm:$0xff]
        %v789 = vld [vmem:[%s222 + $0xf70] sm:$0xff]
        %v790 = vld [vmem:[%s222 + $0xf78] sm:$0xff]
        %v791 = vld [vmem:[%s222 + $0xf80] sm:$0xff]
        %v792 = vld [vmem:[%s222 + $0xf88] sm:$0xff]
        %v793 = vld [vmem:[%s222 + $0xf90] sm:$0xff]
        %v794 = vld [vmem:[%s222 + $0xf98] sm:$0xff]
        %v795 = vld [vmem:[%s222 + $0xfa0] sm:$0xff]
        %v796 = vld [vmem:[%s222 + $0xfa8] sm:$0xff]
        %v797 = vld [vmem:[%s222 + $0xfb0] sm:$0xff]
        %v798 = vld [vmem:[%s222 + $0xfb8] sm:$0xff]
        %v799 = vld [vmem:[%s222 + $0xfc0] sm:$0xff]
        %v800 = vld [vmem:[%s222 + $0xfc8] sm:$0xff]
        %v801 = vld [vmem:[%s222 + $0xfd0] sm:$0xff]
        %v802 = vld [vmem:[%s222 + $0xfd8] sm:$0xff]
        %v803 = vld [vmem:[%s222 + $0xfe0] sm:$0xff]
        %v804 = vld [vmem:[%s222 + $0xfe8] sm:$0xff]
        %v805 = vld [vmem:[%s222 + $0xff0] sm:$0xff]
        %v806 = vld [vmem:[%s222 + $0xff8] sm:$0xff]
        %v807 = vld [vmem:[%s222 + $0x1000] sm:$0xff]
        %v808 = vld [vmem:[%s222 + $0x1008] sm:$0xff]
        %v809 = vld [vmem:[%s222 + $0x1010] sm:$0xff]
        %v810 = vld [vmem:[%s222 + $0x1018] sm:$0xff]
        %v811 = vld [vmem:[%s222 + $0x1020] sm:$0xff]
        %v812 = vld [vmem:[%s222 + $0x1028] sm:$0xff]
        %v813 = vld [vmem:[%s222 + $0x1030] sm:$0xff]
        %v814 = vld [vmem:[%s222 + $0x1038] sm:$0xff]
        %v815 = vld [vmem:[%s222 + $0x1040] sm:$0xff]
        %v816 = vld [vmem:[%s222 + $0x1048] sm:$0xff]
        %v817 = vld [vmem:[%s222 + $0x1050] sm:$0xff]
        %v818 = vld [vmem:[%s222 + $0x1058] sm:$0xff]
        %v819 = vld [vmem:[%s222 + $0x1060] sm:$0xff]
        %v820 = vld [vmem:[%s222 + $0x1068] sm:$0xff]
        %v821 = vld [vmem:[%s222 + $0x1070] sm:$0xff]
        %v822 = vld [vmem:[%s222 + $0x1078] sm:$0xff]
        %v823 = vld [vmem:[%s222 + $0x1080] sm:$0xff]
        %v824 = vld [vmem:[%s222 + $0x1088] sm:$0xff]
        %v825 = vld [vmem:[%s222 + $0x1090] sm:$0xff]
        %v826 = vld [vmem:[%s222 + $0x1098] sm:$0xff]
        %v827 = vld [vmem:[%s222 + $0x10a0] sm:$0xff]
        %v828 = vld [vmem:[%s222 + $0x10a8] sm:$0xff]
        %v829 = vld [vmem:[%s222 + $0x10b0] sm:$0xff]
        %v830 = vld [vmem:[%s222 + $0x10b8] sm:$0xff]
        %v831 = vld [vmem:[%s222 + $0x10c0] sm:$0xff]
        %v832 = vld [vmem:[%s222 + $0x10c8] sm:$0xff]
        %v833 = vld [vmem:[%s222 + $0x10d0] sm:$0xff]
        %v834 = vld [vmem:[%s222 + $0x10d8] sm:$0xff]
        %v835 = vld [vmem:[%s222 + $0x10e0] sm:$0xff]
        %v836 = vld [vmem:[%s222 + $0x10e8] sm:$0xff]
        %v837 = vld [vmem:[%s222 + $0x10f0] sm:$0xff]
        %v838 = vld [vmem:[%s222 + $0x10f8] sm:$0xff]
        %v839 = vld [vmem:[%s222 + $0x1100] sm:$0xff]
        %v840 = vld [vmem:[%s222 + $0x1108] sm:$0xff]
        %v841 = vld [vmem:[%s222 + $0x1110] sm:$0xff]
        %v842 = vld [vmem:[%s222 + $0x1118] sm:$0xff]
        %v843 = vld [vmem:[%s222 + $0x1120] sm:$0xff]
        %v844 = vld [vmem:[%s222 + $0x1128] sm:$0xff]
        %v845 = vld [vmem:[%s222 + $0x1130] sm:$0xff]
        %v846 = vld [vmem:[%s222 + $0x1138] sm:$0xff]
        %v847 = vld [vmem:[%s222 + $0x1140] sm:$0xff]
        %v848 = vld [vmem:[%s222 + $0x1148] sm:$0xff]
        %v849 = vld [vmem:[%s222 + $0x1150] sm:$0xff]
        %v850 = vld [vmem:[%s222 + $0x1158] sm:$0xff]
        %v851 = vld [vmem:[%s222 + $0x1160] sm:$0xff]
        %v852 = vld [vmem:[%s222 + $0x1168] sm:$0xff]
        %v853 = vld [vmem:[%s222 + $0x1170] sm:$0xff]
        %v854 = vld [vmem:[%s222 + $0x1178] sm:$0xff]
        %v855 = vld [vmem:[%s222 + $0x1180] sm:$0xff]
        %v856 = vld [vmem:[%s222 + $0x1188] sm:$0xff]
        %v857 = vld [vmem:[%s222 + $0x1190] sm:$0xff]
        %v858 = vld [vmem:[%s222 + $0x1198] sm:$0xff]
        %v859 = vld [vmem:[%s222 + $0x11a0] sm:$0xff]
        %v860 = vld [vmem:[%s222 + $0x11a8] sm:$0xff]
        %v861 = vld [vmem:[%s222 + $0x11b0] sm:$0xff]
        %v862 = vld [vmem:[%s222 + $0x11b8] sm:$0xff]
        %v863 = vld [vmem:[%s222 + $0x11c0] sm:$0xff]
        %v864 = vld [vmem:[%s222 + $0x11c8] sm:$0xff]
        %v865 = vld [vmem:[%s222 + $0x11d0] sm:$0xff]
        %v866 = vld [vmem:[%s222 + $0x11d8] sm:$0xff]
        %v867 = vld [vmem:[%s222 + $0x11e0] sm:$0xff]
        %v868 = vld [vmem:[%s222 + $0x11e8] sm:$0xff]
        %v869 = vld [vmem:[%s222 + $0x11f0] sm:$0xff]
        %v870 = vld [vmem:[%s222 + $0x11f8] sm:$0xff]
        %v871 = vld [vmem:[%s222 + $0x1200] sm:$0xff]
        %v872 = vld [vmem:[%s222 + $0x1208] sm:$0xff]
        %v873 = vld [vmem:[%s222 + $0x1210] sm:$0xff]
        %v874 = vld [vmem:[%s222 + $0x1218] sm:$0xff]
        %v875 = vld [vmem:[%s222 + $0x1220] sm:$0xff]
        %v876 = vld [vmem:[%s222 + $0x1228] sm:$0xff]
        %v877 = vld [vmem:[%s222 + $0x1230] sm:$0xff]
        %v878 = vld [vmem:[%s222 + $0x1238] sm:$0xff]
        %v879 = vld [vmem:[%s222 + $0x1240] sm:$0xff]
        %v880 = vld [vmem:[%s222 + $0x1248] sm:$0xff]
        %v881 = vld [vmem:[%s222 + $0x1250] sm:$0xff]
        %v882 = vld [vmem:[%s222 + $0x1258] sm:$0xff]
        %v883 = vld [vmem:[%s222 + $0x1260] sm:$0xff]
        %v884 = vld [vmem:[%s222 + $0x1268] sm:$0xff]
        %v885 = vld [vmem:[%s222 + $0x1270] sm:$0xff]
        %v886 = vld [vmem:[%s222 + $0x1278] sm:$0xff]
        %v887 = vld [vmem:[%s222 + $0x1280] sm:$0xff]
        %v888 = vld [vmem:[%s222 + $0x1288] sm:$0xff]
        %v889 = vld [vmem:[%s222 + $0x1290] sm:$0xff]
        %v890 = vld [vmem:[%s222 + $0x1298] sm:$0xff]
        %v891 = vld [vmem:[%s222 + $0x12a0] sm:$0xff]
        %v892 = vld [vmem:[%s222 + $0x12a8] sm:$0xff]
        %v893 = vld [vmem:[%s222 + $0x12b0] sm:$0xff]
        %v894 = vld [vmem:[%s222 + $0x12b8] sm:$0xff]
        %v895 = vld [vmem:[%s222 + $0x12c0] sm:$0xff]
        %v896 = vld [vmem:[%s222 + $0x12c8] sm:$0xff]
        %v897 = vld [vmem:[%s222 + $0x12d0] sm:$0xff]
        %v898 = vld [vmem:[%s222 + $0x12d8] sm:$0xff]
        %v899 = vld [vmem:[%s222 + $0x12e0] sm:$0xff]
        %v900 = vld [vmem:[%s222 + $0x12e8] sm:$0xff]
        %v901 = vld [vmem:[%s222 + $0x12f0] sm:$0xff]
        %v902 = vld [vmem:[%s222 + $0x12f8] sm:$0xff]
        %v903 = vld [vmem:[%s222 + $0x1300] sm:$0xff]
        %v904 = vld [vmem:[%s222 + $0x1308] sm:$0xff]
        %v905 = vld [vmem:[%s222 + $0x1310] sm:$0xff]
        %v906 = vld [vmem:[%s222 + $0x1318] sm:$0xff]
        %v907 = vld [vmem:[%s222 + $0x1320] sm:$0xff]
        %v908 = vld [vmem:[%s222 + $0x1328] sm:$0xff]
        %v909 = vld [vmem:[%s222 + $0x1330] sm:$0xff]
        %v910 = vld [vmem:[%s222 + $0x1338] sm:$0xff]
        %v911 = vld [vmem:[%s222 + $0x1340] sm:$0xff]
        %v912 = vld [vmem:[%s222 + $0x1348] sm:$0xff]
        %v913 = vld [vmem:[%s222 + $0x1350] sm:$0xff]
        %v914 = vld [vmem:[%s222 + $0x1358] sm:$0xff]
        %v915 = vld [vmem:[%s222 + $0x1360] sm:$0xff]
        %v916 = vld [vmem:[%s222 + $0x1368] sm:$0xff]
        %v917 = vld [vmem:[%s222 + $0x1370] sm:$0xff]
        %v918 = vld [vmem:[%s222 + $0x1378] sm:$0xff]
        %v919 = vld [vmem:[%s222 + $0x1380] sm:$0xff]
        %v920 = vld [vmem:[%s222 + $0x1388] sm:$0xff]
        %v921 = vld [vmem:[%s222 + $0x1390] sm:$0xff]
        %v922 = vld [vmem:[%s222 + $0x1398] sm:$0xff]
        %v923 = vld [vmem:[%s222 + $0x13a0] sm:$0xff]
        %v924 = vld [vmem:[%s222 + $0x13a8] sm:$0xff]
        %v925 = vld [vmem:[%s222 + $0x13b0] sm:$0xff]
        %v926 = vld [vmem:[%s222 + $0x13b8] sm:$0xff]
        %v927 = vld [vmem:[%s222 + $0x13c0] sm:$0xff]
        %v928 = vld [vmem:[%s222 + $0x13c8] sm:$0xff]
        %v929 = vld [vmem:[%s222 + $0x13d0] sm:$0xff]
        %v930 = vld [vmem:[%s222 + $0x13d8] sm:$0xff]
        %v931 = vld [vmem:[%s222 + $0x13e0] sm:$0xff]
        %v932 = vld [vmem:[%s222 + $0x13e8] sm:$0xff]
        %v933 = vld [vmem:[%s222 + $0x13f0] sm:$0xff]
        %v934 = vld [vmem:[%s222 + $0x13f8] sm:$0xff]
        %v935 = vld [vmem:[%s222 + $0x1400] sm:$0xff]
        %v936 = vld [vmem:[%s222 + $0x1408] sm:$0xff]
        %v937 = vld [vmem:[%s222 + $0x1410] sm:$0xff]
        %v938 = vld [vmem:[%s222 + $0x1418] sm:$0xff]
        %v939 = vld [vmem:[%s222 + $0x1420] sm:$0xff]
        %v940 = vld [vmem:[%s222 + $0x1428] sm:$0xff]
        %v941 = vld [vmem:[%s222 + $0x1430] sm:$0xff]
        %v942 = vld [vmem:[%s222 + $0x1438] sm:$0xff]
        %v943 = vld [vmem:[%s222 + $0x1440] sm:$0xff]
        %v944 = vld [vmem:[%s222 + $0x1448] sm:$0xff]
        %v945 = vld [vmem:[%s222 + $0x1450] sm:$0xff]
        %v946 = vld [vmem:[%s222 + $0x1458] sm:$0xff]
        %v947 = vld [vmem:[%s222 + $0x1460] sm:$0xff]
        %v948 = vld [vmem:[%s222 + $0x1468] sm:$0xff]
        %v949 = vld [vmem:[%s222 + $0x1470] sm:$0xff]
        %v950 = vld [vmem:[%s222 + $0x1478] sm:$0xff]
        %v951 = vld [vmem:[%s222 + $0x1480] sm:$0xff]
        %v952 = vld [vmem:[%s222 + $0x1488] sm:$0xff]
        %v953 = vld [vmem:[%s222 + $0x1490] sm:$0xff]
        %v954 = vld [vmem:[%s222 + $0x1498] sm:$0xff]
        %v955 = vld [vmem:[%s222 + $0x14a0] sm:$0xff]
        %v956 = vld [vmem:[%s222 + $0x14a8] sm:$0xff]
        %v957 = vld [vmem:[%s222 + $0x14b0] sm:$0xff]
        %v958 = vld [vmem:[%s222 + $0x14b8] sm:$0xff]
        %v959 = vld [vmem:[%s222 + $0x14c0] sm:$0xff]
        %v960 = vld [vmem:[%s222 + $0x14c8] sm:$0xff]
        %v961 = vld [vmem:[%s222 + $0x14d0] sm:$0xff]
        %v962 = vld [vmem:[%s222 + $0x14d8] sm:$0xff]
        %v963 = vld [vmem:[%s222 + $0x14e0] sm:$0xff]
        %v964 = vld [vmem:[%s222 + $0x14e8] sm:$0xff]
        %v965 = vld [vmem:[%s222 + $0x14f0] sm:$0xff]
        %v966 = vld [vmem:[%s222 + $0x14f8] sm:$0xff]
        %v967 = vld [vmem:[%s222 + $0x1500] sm:$0xff]
        %v968 = vld [vmem:[%s222 + $0x1508] sm:$0xff]
        %v969 = vld [vmem:[%s222 + $0x1510] sm:$0xff]
        %v970 = vld [vmem:[%s222 + $0x1518] sm:$0xff]
        %v971 = vld [vmem:[%s222 + $0x1520] sm:$0xff]
        %v972 = vld [vmem:[%s222 + $0x1528] sm:$0xff]
        %v973 = vld [vmem:[%s222 + $0x1530] sm:$0xff]
        %v974 = vld [vmem:[%s222 + $0x1538] sm:$0xff]
        %v975 = vld [vmem:[%s222 + $0x1540] sm:$0xff]
        %v976 = vld [vmem:[%s222 + $0x1548] sm:$0xff]
        %v977 = vld [vmem:[%s222 + $0x1550] sm:$0xff]
        %v978 = vld [vmem:[%s222 + $0x1558] sm:$0xff]
        %v979 = vld [vmem:[%s222 + $0x1560] sm:$0xff]
        %v980 = vld [vmem:[%s222 + $0x1568] sm:$0xff]
        %v981 = vld [vmem:[%s222 + $0x1570] sm:$0xff]
        %v982 = vld [vmem:[%s222 + $0x1578] sm:$0xff]
        %v983 = vld [vmem:[%s222 + $0x1580] sm:$0xff]
        %v984 = vld [vmem:[%s222 + $0x1588] sm:$0xff]
        %v985 = vld [vmem:[%s222 + $0x1590] sm:$0xff]
        %v986 = vld [vmem:[%s222 + $0x1598] sm:$0xff]
        %v987 = vld [vmem:[%s222 + $0x15a0] sm:$0xff]
        %v988 = vld [vmem:[%s222 + $0x15a8] sm:$0xff]
        %v989 = vld [vmem:[%s222 + $0x15b0] sm:$0xff]
        %v990 = vld [vmem:[%s222 + $0x15b8] sm:$0xff]
        %v991 = vld [vmem:[%s222 + $0x15c0] sm:$0xff]
        %v992 = vld [vmem:[%s222 + $0x15c8] sm:$0xff]
        %v993 = vld [vmem:[%s222 + $0x15d0] sm:$0xff]
        %v994 = vld [vmem:[%s222 + $0x15d8] sm:$0xff]
        %v995 = vld [vmem:[%s222 + $0x15e0] sm:$0xff]
        %v996 = vld [vmem:[%s222 + $0x15e8] sm:$0xff]
        %v997 = vld [vmem:[%s222 + $0x15f0] sm:$0xff]
        %v998 = vld [vmem:[%s222 + $0x15f8] sm:$0xff]
        %v999 = vld [vmem:[%s222 + $0x1600] sm:$0xff]
        %v1000 = vld [vmem:[%s222 + $0x1608] sm:$0xff]
        %v1001 = vld [vmem:[%s222 + $0x1610] sm:$0xff]
        %v1002 = vld [vmem:[%s222 + $0x1618] sm:$0xff]
        %v1003 = vld [vmem:[%s222 + $0x1620] sm:$0xff]
        %v1004 = vld [vmem:[%s222 + $0x1628] sm:$0xff]
        %v1005 = vld [vmem:[%s222 + $0x1630] sm:$0xff]
        %v1006 = vld [vmem:[%s222 + $0x1638] sm:$0xff]
        %v1007 = vld [vmem:[%s222 + $0x1640] sm:$0xff]
        %v1008 = vld [vmem:[%s222 + $0x1648] sm:$0xff]
        %v1009 = vld [vmem:[%s222 + $0x1650] sm:$0xff]
        %v1010 = vld [vmem:[%s222 + $0x1658] sm:$0xff]
        %v1011 = vld [vmem:[%s222 + $0x1660] sm:$0xff]
        %v1012 = vld [vmem:[%s222 + $0x1668] sm:$0xff]
        %v1013 = vld [vmem:[%s222 + $0x1670] sm:$0xff]
        %v1014 = vld [vmem:[%s222 + $0x1678] sm:$0xff]
        %v1015 = vld [vmem:[%s222 + $0x1680] sm:$0xff]
        %v1016 = vld [vmem:[%s222 + $0x1688] sm:$0xff]
        %v1017 = vld [vmem:[%s222 + $0x1690] sm:$0xff]
        %v1018 = vld [vmem:[%s222 + $0x1698] sm:$0xff]
        %v1019 = vld [vmem:[%s222 + $0x16a0] sm:$0xff]
        %v1020 = vld [vmem:[%s222 + $0x16a8] sm:$0xff]
        %v1021 = vld [vmem:[%s222 + $0x16b0] sm:$0xff]
        %v1022 = vld [vmem:[%s222 + $0x16b8] sm:$0xff]
        %v1023 = vld [vmem:[%s222 + $0x16c0] sm:$0xff]
        %v1024 = vld [vmem:[%s222 + $0x16c8] sm:$0xff]
        %v1025 = vld [vmem:[%s222 + $0x16d0] sm:$0xff]
        %v1026 = vld [vmem:[%s222 + $0x16d8] sm:$0xff]
        %v1027 = vld [vmem:[%s222 + $0x16e0] sm:$0xff]
        %v1028 = vld [vmem:[%s222 + $0x16e8] sm:$0xff]
        %v1029 = vld [vmem:[%s222 + $0x16f0] sm:$0xff]
        %v1030 = vld [vmem:[%s222 + $0x16f8] sm:$0xff]
        %v1031 = vld [vmem:[%s222 + $0x1700] sm:$0xff]
        %v1032 = vld [vmem:[%s222 + $0x1708] sm:$0xff]
        %v1033 = vld [vmem:[%s222 + $0x1710] sm:$0xff]
        %v1034 = vld [vmem:[%s222 + $0x1718] sm:$0xff]
        %v1035 = vld [vmem:[%s222 + $0x1720] sm:$0xff]
        %v1036 = vld [vmem:[%s222 + $0x1728] sm:$0xff]
        %v1037 = vld [vmem:[%s222 + $0x1730] sm:$0xff]
        %v1038 = vld [vmem:[%s222 + $0x1738] sm:$0xff]
        %v1039 = vld [vmem:[%s222 + $0x1740] sm:$0xff]
        %v1040 = vld [vmem:[%s222 + $0x1748] sm:$0xff]
        %v1041 = vld [vmem:[%s222 + $0x1750] sm:$0xff]
        %v1042 = vld [vmem:[%s222 + $0x1758] sm:$0xff]
        %v1043 = vld [vmem:[%s222 + $0x1760] sm:$0xff]
        %v1044 = vld [vmem:[%s222 + $0x1768] sm:$0xff]
        %v1045 = vld [vmem:[%s222 + $0x1770] sm:$0xff]
        %v1046 = vld [vmem:[%s222 + $0x1778] sm:$0xff]
        %v1047 = vld [vmem:[%s222 + $0x1780] sm:$0xff]
        %v1048 = vld [vmem:[%s222 + $0x1788] sm:$0xff]
        %v1049 = vld [vmem:[%s222 + $0x1790] sm:$0xff]
        %v1050 = vld [vmem:[%s222 + $0x1798] sm:$0xff]
        %v1051 = vld [vmem:[%s222 + $0x17a0] sm:$0xff]
        %v1052 = vld [vmem:[%s222 + $0x17a8] sm:$0xff]
        %v1053 = vld [vmem:[%s222 + $0x17b0] sm:$0xff]
        %v1054 = vld [vmem:[%s222 + $0x17b8] sm:$0xff]
        %v1055 = vld [vmem:[%s222 + $0x17c0] sm:$0xff]
        %v1056 = vld [vmem:[%s222 + $0x17c8] sm:$0xff]
        %v1057 = vld [vmem:[%s222 + $0x17d0] sm:$0xff]
        %v1058 = vld [vmem:[%s222 + $0x17d8] sm:$0xff]
        %v1059 = vld [vmem:[%s222 + $0x17e0] sm:$0xff]
        %v1060 = vld [vmem:[%s222 + $0x17e8] sm:$0xff]
        %v1061 = vld [vmem:[%s222 + $0x17f0] sm:$0xff]
        %v1062 = vld [vmem:[%s222 + $0x17f8] sm:$0xff]
        %v1063 = vld [vmem:[%s222 + $0x1800] sm:$0xff]
        %v1064 = vld [vmem:[%s222 + $0x1808] sm:$0xff]
        %v1065 = vld [vmem:[%s222 + $0x1810] sm:$0xff]
        %v1066 = vld [vmem:[%s222 + $0x1818] sm:$0xff]
        %v1067 = vld [vmem:[%s222 + $0x1820] sm:$0xff]
        %v1068 = vld [vmem:[%s222 + $0x1828] sm:$0xff]
        %v1069 = vld [vmem:[%s222 + $0x1830] sm:$0xff]
        %v1070 = vld [vmem:[%s222 + $0x1838] sm:$0xff]
        %v1071 = vld [vmem:[%s222 + $0x1840] sm:$0xff]
        %v1072 = vld [vmem:[%s222 + $0x1848] sm:$0xff]
        %v1073 = vld [vmem:[%s222 + $0x1850] sm:$0xff]
        %v1074 = vld [vmem:[%s222 + $0x1858] sm:$0xff]
        %v1075 = vld [vmem:[%s222 + $0x1860] sm:$0xff]
        %v1076 = vld [vmem:[%s222 + $0x1868] sm:$0xff]
        %v1077 = vld [vmem:[%s222 + $0x1870] sm:$0xff]
        %v1078 = vld [vmem:[%s222 + $0x1878] sm:$0xff]
        %v1079 = vld [vmem:[%s222 + $0x1880] sm:$0xff]
        %v1080 = vld [vmem:[%s222 + $0x1888] sm:$0xff]
        %v1081 = vld [vmem:[%s222 + $0x1890] sm:$0xff]
        %v1082 = vld [vmem:[%s222 + $0x1898] sm:$0xff]
        %v1083 = vld [vmem:[%s222 + $0x18a0] sm:$0xff]
        %v1084 = vld [vmem:[%s222 + $0x18a8] sm:$0xff]
        %v1085 = vld [vmem:[%s222 + $0x18b0] sm:$0xff]
        %v1086 = vld [vmem:[%s222 + $0x18b8] sm:$0xff]
        %v1087 = vld [vmem:[%s222 + $0x18c0] sm:$0xff]
        %v1088 = vld [vmem:[%s222 + $0x18c8] sm:$0xff]
        %v1089 = vld [vmem:[%s222 + $0x18d0] sm:$0xff]
        %v1090 = vld [vmem:[%s222 + $0x18d8] sm:$0xff]
        %v1091 = vld [vmem:[%s222 + $0x18e0] sm:$0xff]
        %v1092 = vld [vmem:[%s222 + $0x18e8] sm:$0xff]
        %v1093 = vld [vmem:[%s222 + $0x18f0] sm:$0xff]
        %v1094 = vld [vmem:[%s222 + $0x18f8] sm:$0xff]
        %v1095 = vld [vmem:[%s222 + $0x1900] sm:$0xff]
        %v1096 = vld [vmem:[%s222 + $0x1908] sm:$0xff]
        %v1097 = vld [vmem:[%s222 + $0x1910] sm:$0xff]
        %v1098 = vld [vmem:[%s222 + $0x1918] sm:$0xff]
        %v1099 = vld [vmem:[%s222 + $0x1920] sm:$0xff]
        %v1100 = vld [vmem:[%s222 + $0x1928] sm:$0xff]
        %v1101 = vld [vmem:[%s222 + $0x1930] sm:$0xff]
        %v1102 = vld [vmem:[%s222 + $0x1938] sm:$0xff]
        %v1103 = vld [vmem:[%s222 + $0x1940] sm:$0xff]
        %v1104 = vld [vmem:[%s222 + $0x1948] sm:$0xff]
        %v1105 = vld [vmem:[%s222 + $0x1950] sm:$0xff]
        %v1106 = vld [vmem:[%s222 + $0x1958] sm:$0xff]
        %v1107 = vld [vmem:[%s222 + $0x1960] sm:$0xff]
        %v1108 = vld [vmem:[%s222 + $0x1968] sm:$0xff]
        %v1109 = vld [vmem:[%s222 + $0x1970] sm:$0xff]
        %v1110 = vld [vmem:[%s222 + $0x1978] sm:$0xff]
        %v1111 = vld [vmem:[%s222 + $0x1980] sm:$0xff]
        %v1112 = vld [vmem:[%s222 + $0x1988] sm:$0xff]
        %v1113 = vld [vmem:[%s222 + $0x1990] sm:$0xff]
        %v1114 = vld [vmem:[%s222 + $0x1998] sm:$0xff]
        %v1115 = vld [vmem:[%s222 + $0x19a0] sm:$0xff]
        %v1116 = vld [vmem:[%s222 + $0x19a8] sm:$0xff]
        %v1117 = vld [vmem:[%s222 + $0x19b0] sm:$0xff]
        %v1118 = vld [vmem:[%s222 + $0x19b8] sm:$0xff]
        %v1119 = vld [vmem:[%s222 + $0x19c0] sm:$0xff]
        %v1120 = vld [vmem:[%s222 + $0x19c8] sm:$0xff]
        %v1121 = vld [vmem:[%s222 + $0x19d0] sm:$0xff]
        %v1122 = vld [vmem:[%s222 + $0x19d8] sm:$0xff]
        %v1123 = vld [vmem:[%s222 + $0x19e0] sm:$0xff]
        %v1124 = vld [vmem:[%s222 + $0x19e8] sm:$0xff]
        %v1125 = vld [vmem:[%s222 + $0x19f0] sm:$0xff]
        %v1126 = vld [vmem:[%s222 + $0x19f8] sm:$0xff]
        %v1127 = vld [vmem:[%s222 + $0x1a00] sm:$0xff]
        %v1128 = vld [vmem:[%s222 + $0x1a08] sm:$0xff]
        %v1129 = vld [vmem:[%s222 + $0x1a10] sm:$0xff]
        %v1130 = vld [vmem:[%s222 + $0x1a18] sm:$0xff]
        %v1131 = vld [vmem:[%s222 + $0x1a20] sm:$0xff]
        %v1132 = vld [vmem:[%s222 + $0x1a28] sm:$0xff]
        %v1133 = vld [vmem:[%s222 + $0x1a30] sm:$0xff]
        %v1134 = vld [vmem:[%s222 + $0x1a38] sm:$0xff]
        %v1135 = vld [vmem:[%s222 + $0x1a40] sm:$0xff]
        %v1136 = vld [vmem:[%s222 + $0x1a48] sm:$0xff]
        %v1137 = vld [vmem:[%s222 + $0x1a50] sm:$0xff]
        %v1138 = vld [vmem:[%s222 + $0x1a58] sm:$0xff]
        %v1139 = vld [vmem:[%s222 + $0x1a60] sm:$0xff]
        %v1140 = vld [vmem:[%s222 + $0x1a68] sm:$0xff]
        %v1141 = vld [vmem:[%s222 + $0x1a70] sm:$0xff]
        %v1142 = vld [vmem:[%s222 + $0x1a78] sm:$0xff]
        %v1143 = vld [vmem:[%s222 + $0x1a80] sm:$0xff]
        %v1144 = vld [vmem:[%s222 + $0x1a88] sm:$0xff]
        %v1145 = vld [vmem:[%s222 + $0x1a90] sm:$0xff]
        %v1146 = vld [vmem:[%s222 + $0x1a98] sm:$0xff]
        %v1147 = vld [vmem:[%s222 + $0x1aa0] sm:$0xff]
        %v1148 = vld [vmem:[%s222 + $0x1aa8] sm:$0xff]
        %v1149 = vld [vmem:[%s222 + $0x1ab0] sm:$0xff]
        %v1150 = vld [vmem:[%s222 + $0x1ab8] sm:$0xff]
        %v1151 = vld [vmem:[%s222 + $0x1ac0] sm:$0xff]
        %v1152 = vld [vmem:[%s222 + $0x1ac8] sm:$0xff]
        %v1153 = vld [vmem:[%s222 + $0x1ad0] sm:$0xff]
        %v1154 = vld [vmem:[%s222 + $0x1ad8] sm:$0xff]
        %v1155 = vld [vmem:[%s222 + $0x1ae0] sm:$0xff]
        %v1156 = vld [vmem:[%s222 + $0x1ae8] sm:$0xff]
        %v1157 = vld [vmem:[%s222 + $0x1af0] sm:$0xff]
        %v1158 = vld [vmem:[%s222 + $0x1af8] sm:$0xff]
        %v1159 = vld [vmem:[%s222 + $0x1b00] sm:$0xff]
        %v1160 = vld [vmem:[%s222 + $0x1b08] sm:$0xff]
        %v1161 = vld [vmem:[%s222 + $0x1b10] sm:$0xff]
        %v1162 = vld [vmem:[%s222 + $0x1b18] sm:$0xff]
        %v1163 = vld [vmem:[%s222 + $0x1b20] sm:$0xff]
        %v1164 = vld [vmem:[%s222 + $0x1b28] sm:$0xff]
        %v1165 = vld [vmem:[%s222 + $0x1b30] sm:$0xff]
        %v1166 = vld [vmem:[%s222 + $0x1b38] sm:$0xff]
        %v1167 = vld [vmem:[%s222 + $0x1b40] sm:$0xff]
        %v1168 = vld [vmem:[%s222 + $0x1b48] sm:$0xff]
        %v1169 = vld [vmem:[%s222 + $0x1b50] sm:$0xff]
        %v1170 = vld [vmem:[%s222 + $0x1b58] sm:$0xff]
        %v1171 = vld [vmem:[%s222 + $0x1b60] sm:$0xff]
        %v1172 = vld [vmem:[%s222 + $0x1b68] sm:$0xff]
        %v1173 = vld [vmem:[%s222 + $0x1b70] sm:$0xff]
        %v1174 = vld [vmem:[%s222 + $0x1b78] sm:$0xff]
        %v1175 = vld [vmem:[%s222 + $0x1b80] sm:$0xff]
        %v1176 = vld [vmem:[%s222 + $0x1b88] sm:$0xff]
        %v1177 = vld [vmem:[%s222 + $0x1b90] sm:$0xff]
        %v1178 = vld [vmem:[%s222 + $0x1b98] sm:$0xff]
        %v1179 = vld [vmem:[%s222 + $0x1ba0] sm:$0xff]
        %v1180 = vld [vmem:[%s222 + $0x1ba8] sm:$0xff]
        %v1181 = vld [vmem:[%s222 + $0x1bb0] sm:$0xff]
        %v1182 = vld [vmem:[%s222 + $0x1bb8] sm:$0xff]
        %v1183 = vld [vmem:[%s222 + $0x1bc0] sm:$0xff]
        %v1184 = vld [vmem:[%s222 + $0x1bc8] sm:$0xff]
        %v1185 = vld [vmem:[%s222 + $0x1bd0] sm:$0xff]
        %v1186 = vld [vmem:[%s222 + $0x1bd8] sm:$0xff]
        %v1187 = vld [vmem:[%s222 + $0x1be0] sm:$0xff]
        %v1188 = vld [vmem:[%s222 + $0x1be8] sm:$0xff]
        %v1189 = vld [vmem:[%s222 + $0x1bf0] sm:$0xff]
        %v1190 = vld [vmem:[%s222 + $0x1bf8] sm:$0xff]
        %v1191 = vld [vmem:[%s222 + $0x1c00] sm:$0xff]
        %v1192 = vld [vmem:[%s222 + $0x1c08] sm:$0xff]
        %v1193 = vld [vmem:[%s222 + $0x1c10] sm:$0xff]
        %v1194 = vld [vmem:[%s222 + $0x1c18] sm:$0xff]
        %v1195 = vld [vmem:[%s222 + $0x1c20] sm:$0xff]
        %v1196 = vld [vmem:[%s222 + $0x1c28] sm:$0xff]
        %v1197 = vld [vmem:[%s222 + $0x1c30] sm:$0xff]
        %v1198 = vld [vmem:[%s222 + $0x1c38] sm:$0xff]
        %v1199 = vld [vmem:[%s222 + $0x1c40] sm:$0xff]
        %v1200 = vld [vmem:[%s222 + $0x1c48] sm:$0xff]
        %v1201 = vld [vmem:[%s222 + $0x1c50] sm:$0xff]
        %v1202 = vld [vmem:[%s222 + $0x1c58] sm:$0xff]
        %v1203 = vld [vmem:[%s222 + $0x1c60] sm:$0xff]
        %v1204 = vld [vmem:[%s222 + $0x1c68] sm:$0xff]
        %v1205 = vld [vmem:[%s222 + $0x1c70] sm:$0xff]
        %v1206 = vld [vmem:[%s222 + $0x1c78] sm:$0xff]
        %v1207 = vld [vmem:[%s222 + $0x1c80] sm:$0xff]
        %v1208 = vld [vmem:[%s222 + $0x1c88] sm:$0xff]
        %v1209 = vld [vmem:[%s222 + $0x1c90] sm:$0xff]
        %v1210 = vld [vmem:[%s222 + $0x1c98] sm:$0xff]
        %v1211 = vld [vmem:[%s222 + $0x1ca0] sm:$0xff]
        %v1212 = vld [vmem:[%s222 + $0x1ca8] sm:$0xff]
        %v1213 = vld [vmem:[%s222 + $0x1cb0] sm:$0xff]
        %v1214 = vld [vmem:[%s222 + $0x1cb8] sm:$0xff]
        %v1215 = vld [vmem:[%s222 + $0x1cc0] sm:$0xff]
        %v1216 = vld [vmem:[%s222 + $0x1cc8] sm:$0xff]
        %v1217 = vld [vmem:[%s222 + $0x1cd0] sm:$0xff]
        %v1218 = vld [vmem:[%s222 + $0x1cd8] sm:$0xff]
        %v1219 = vld [vmem:[%s222 + $0x1ce0] sm:$0xff]
        %v1220 = vld [vmem:[%s222 + $0x1ce8] sm:$0xff]
        %v1221 = vld [vmem:[%s222 + $0x1cf0] sm:$0xff]
        %v1222 = vld [vmem:[%s222 + $0x1cf8] sm:$0xff]
        %v1223 = vld [vmem:[%s222 + $0x1d00] sm:$0xff]
        %v1224 = vld [vmem:[%s222 + $0x1d08] sm:$0xff]
        %v1225 = vld [vmem:[%s222 + $0x1d10] sm:$0xff]
        %v1226 = vld [vmem:[%s222 + $0x1d18] sm:$0xff]
        %v1227 = vld [vmem:[%s222 + $0x1d20] sm:$0xff]
        %v1228 = vld [vmem:[%s222 + $0x1d28] sm:$0xff]
        %v1229 = vld [vmem:[%s222 + $0x1d30] sm:$0xff]
        %v1230 = vld [vmem:[%s222 + $0x1d38] sm:$0xff]
        %v1231 = vld [vmem:[%s222 + $0x1d40] sm:$0xff]
        %v1232 = vld [vmem:[%s222 + $0x1d48] sm:$0xff]
        %v1233 = vld [vmem:[%s222 + $0x1d50] sm:$0xff]
        %v1234 = vld [vmem:[%s222 + $0x1d58] sm:$0xff]
        %v1235 = vld [vmem:[%s222 + $0x1d60] sm:$0xff]
        %v1236 = vld [vmem:[%s222 + $0x1d68] sm:$0xff]
        %v1237 = vld [vmem:[%s222 + $0x1d70] sm:$0xff]
        %v1238 = vld [vmem:[%s222 + $0x1d78] sm:$0xff]
        %v1239 = vld [vmem:[%s222 + $0x1d80] sm:$0xff]
        %v1240 = vld [vmem:[%s222 + $0x1d88] sm:$0xff]
        %v1241 = vld [vmem:[%s222 + $0x1d90] sm:$0xff]
        %v1242 = vld [vmem:[%s222 + $0x1d98] sm:$0xff]
        %v1243 = vld [vmem:[%s222 + $0x1da0] sm:$0xff]
        %v1244 = vld [vmem:[%s222 + $0x1da8] sm:$0xff]
        %v1245 = vld [vmem:[%s222 + $0x1db0] sm:$0xff]
        %v1246 = vld [vmem:[%s222 + $0x1db8] sm:$0xff]
        %v1247 = vld [vmem:[%s222 + $0x1dc0] sm:$0xff]
        %v1248 = vld [vmem:[%s222 + $0x1dc8] sm:$0xff]
        %v1249 = vld [vmem:[%s222 + $0x1dd0] sm:$0xff]
        %v1250 = vld [vmem:[%s222 + $0x1dd8] sm:$0xff]
        %v1251 = vld [vmem:[%s222 + $0x1de0] sm:$0xff]
        %v1252 = vld [vmem:[%s222 + $0x1de8] sm:$0xff]
        %v1253 = vld [vmem:[%s222 + $0x1df0] sm:$0xff]
        %v1254 = vld [vmem:[%s222 + $0x1df8] sm:$0xff]
        %v1255 = vld [vmem:[%s222 + $0x1e00] sm:$0xff]
        %v1256 = vld [vmem:[%s222 + $0x1e08] sm:$0xff]
        %v1257 = vld [vmem:[%s222 + $0x1e10] sm:$0xff]
        %v1258 = vld [vmem:[%s222 + $0x1e18] sm:$0xff]
        %v1259 = vld [vmem:[%s222 + $0x1e20] sm:$0xff]
        %v1260 = vld [vmem:[%s222 + $0x1e28] sm:$0xff]
        %v1261 = vld [vmem:[%s222 + $0x1e30] sm:$0xff]
        %v1262 = vld [vmem:[%s222 + $0x1e38] sm:$0xff]
        %v1263 = vld [vmem:[%s222 + $0x1e40] sm:$0xff]
        %v1264 = vld [vmem:[%s222 + $0x1e48] sm:$0xff]
        %v1265 = vld [vmem:[%s222 + $0x1e50] sm:$0xff]
        %v1266 = vld [vmem:[%s222 + $0x1e58] sm:$0xff]
        %v1267 = vld [vmem:[%s222 + $0x1e60] sm:$0xff]
        %v1268 = vld [vmem:[%s222 + $0x1e68] sm:$0xff]
        %v1269 = vld [vmem:[%s222 + $0x1e70] sm:$0xff]
        %v1270 = vld [vmem:[%s222 + $0x1e78] sm:$0xff]
        %v1271 = vld [vmem:[%s222 + $0x1e80] sm:$0xff]
        %v1272 = vld [vmem:[%s222 + $0x1e88] sm:$0xff]
        %v1273 = vld [vmem:[%s222 + $0x1e90] sm:$0xff]
        %v1274 = vld [vmem:[%s222 + $0x1e98] sm:$0xff]
        %v1275 = vld [vmem:[%s222 + $0x1ea0] sm:$0xff]
        %v1276 = vld [vmem:[%s222 + $0x1ea8] sm:$0xff]
        %v1277 = vld [vmem:[%s222 + $0x1eb0] sm:$0xff]
        %v1278 = vld [vmem:[%s222 + $0x1eb8] sm:$0xff]
        %v1279 = vld [vmem:[%s222 + $0x1ec0] sm:$0xff]
        %v1280 = vld [vmem:[%s222 + $0x1ec8] sm:$0xff]
        %v1281 = vld [vmem:[%s222 + $0x1ed0] sm:$0xff]
        %v1282 = vld [vmem:[%s222 + $0x1ed8] sm:$0xff]
        %v1283 = vld [vmem:[%s222 + $0x1ee0] sm:$0xff]
        %v1284 = vld [vmem:[%s222 + $0x1ee8] sm:$0xff]
        %v1285 = vld [vmem:[%s222 + $0x1ef0] sm:$0xff]
        %v1286 = vld [vmem:[%s222 + $0x1ef8] sm:$0xff]
        %v1287 = vld [vmem:[%s222 + $0x1f00] sm:$0xff]
        %v1288 = vld [vmem:[%s222 + $0x1f08] sm:$0xff]
        %v1289 = vld [vmem:[%s222 + $0x1f10] sm:$0xff]
        %v1290 = vld [vmem:[%s222 + $0x1f18] sm:$0xff]
        %v1291 = vld [vmem:[%s222 + $0x1f20] sm:$0xff]
        %v1292 = vld [vmem:[%s222 + $0x1f28] sm:$0xff]
        %v1293 = vld [vmem:[%s222 + $0x1f30] sm:$0xff]
        %v1294 = vld [vmem:[%s222 + $0x1f38] sm:$0xff]
        %v1295 = vld [vmem:[%s222 + $0x1f40] sm:$0xff]
        %v1296 = vld [vmem:[%s222 + $0x1f48] sm:$0xff]
        %v1297 = vld [vmem:[%s222 + $0x1f50] sm:$0xff]
        %v1298 = vld [vmem:[%s222 + $0x1f58] sm:$0xff]
        %v1299 = vld [vmem:[%s222 + $0x1f60] sm:$0xff]
        %v1300 = vld [vmem:[%s222 + $0x1f68] sm:$0xff]
        %v1301 = vld [vmem:[%s222 + $0x1f70] sm:$0xff]
        %v1302 = vld [vmem:[%s222 + $0x1f78] sm:$0xff]
        %v1303 = vld [vmem:[%s222 + $0x1f80] sm:$0xff]
        %v1304 = vld [vmem:[%s222 + $0x1f88] sm:$0xff]
        %v1305 = vld [vmem:[%s222 + $0x1f90] sm:$0xff]
        %v1306 = vld [vmem:[%s222 + $0x1f98] sm:$0xff]
        %v1307 = vld [vmem:[%s222 + $0x1fa0] sm:$0xff]
        %v1308 = vld [vmem:[%s222 + $0x1fa8] sm:$0xff]
        %v1309 = vld [vmem:[%s222 + $0x1fb0] sm:$0xff]
        %v1310 = vld [vmem:[%s222 + $0x1fb8] sm:$0xff]
        %v1311 = vld [vmem:[%s222 + $0x1fc0] sm:$0xff]
        %v1312 = vld [vmem:[%s222 + $0x1fc8] sm:$0xff]
        %v1313 = vld [vmem:[%s222 + $0x1fd0] sm:$0xff]
        %v1314 = vld [vmem:[%s222 + $0x1fd8] sm:$0xff]
        %v1315 = vld [vmem:[%s222 + $0x1fe0] sm:$0xff]
        %v1316 = vld [vmem:[%s222 + $0x1fe8] sm:$0xff]
        %v1317 = vld [vmem:[%s222 + $0x1ff0] sm:$0xff]
        %v1318 = vld [vmem:[%s222 + $0x1ff8] sm:$0xff]
        %v1319 = vld [vmem:[%s222 + $0x2000] sm:$0xff]
        %v1320 = vld [vmem:[%s222 + $0x2008] sm:$0xff]
        %v1321 = vld [vmem:[%s222 + $0x2010] sm:$0xff]
        %v1322 = vld [vmem:[%s222 + $0x2018] sm:$0xff]
        %v1323 = vld [vmem:[%s222 + $0x2020] sm:$0xff]
        %v1324 = vld [vmem:[%s222 + $0x2028] sm:$0xff]
        %v1325 = vld [vmem:[%s222 + $0x2030] sm:$0xff]
        %v1326 = vld [vmem:[%s222 + $0x2038] sm:$0xff]
        %v1327 = vld [vmem:[%s222 + $0x2040] sm:$0xff]
        %v1328 = vld [vmem:[%s222 + $0x2048] sm:$0xff]
        %v1329 = vld [vmem:[%s222 + $0x2050] sm:$0xff]
        %v1330 = vld [vmem:[%s222 + $0x2058] sm:$0xff]
        %v1331 = vld [vmem:[%s222 + $0x2060] sm:$0xff]
        %v1332 = vld [vmem:[%s222 + $0x2068] sm:$0xff]
        %v1333 = vld [vmem:[%s222 + $0x2070] sm:$0xff]
        %v1334 = vld [vmem:[%s222 + $0x2078] sm:$0xff]
        %v1335 = vld [vmem:[%s222 + $0x2080] sm:$0xff]
        %v1336 = vld [vmem:[%s222 + $0x2088] sm:$0xff]
        %v1337 = vld [vmem:[%s222 + $0x2090] sm:$0xff]
        %v1338 = vld [vmem:[%s222 + $0x2098] sm:$0xff]
        %v1339 = vld [vmem:[%s222 + $0x20a0] sm:$0xff]
        %v1340 = vld [vmem:[%s222 + $0x20a8] sm:$0xff]
        %v1341 = vld [vmem:[%s222 + $0x20b0] sm:$0xff]
        %v1342 = vld [vmem:[%s222 + $0x20b8] sm:$0xff]
        %v1343 = vld [vmem:[%s222 + $0x20c0] sm:$0xff]
        %v1344 = vld [vmem:[%s222 + $0x20c8] sm:$0xff]
        %v1345 = vld [vmem:[%s222 + $0x20d0] sm:$0xff]
        %v1346 = vld [vmem:[%s222 + $0x20d8] sm:$0xff]
        %v1347 = vld [vmem:[%s222 + $0x20e0] sm:$0xff]
        %v1348 = vld [vmem:[%s222 + $0x20e8] sm:$0xff]
        %v1349 = vld [vmem:[%s222 + $0x20f0] sm:$0xff]
        %v1350 = vld [vmem:[%s222 + $0x20f8] sm:$0xff]
        %v1351 = vld [vmem:[%s222 + $0x2100] sm:$0xff]
        %v1352 = vld [vmem:[%s222 + $0x2108] sm:$0xff]
        %v1353 = vld [vmem:[%s222 + $0x2110] sm:$0xff]
        %v1354 = vld [vmem:[%s222 + $0x2118] sm:$0xff]
        %v1355 = vld [vmem:[%s222 + $0x2120] sm:$0xff]
        %v1356 = vld [vmem:[%s222 + $0x2128] sm:$0xff]
        %v1357 = vld [vmem:[%s222 + $0x2130] sm:$0xff]
        %v1358 = vld [vmem:[%s222 + $0x2138] sm:$0xff]
        %v1359 = vld [vmem:[%s222 + $0x2140] sm:$0xff]
        %v1360 = vld [vmem:[%s222 + $0x2148] sm:$0xff]
        %v1361 = vld [vmem:[%s222 + $0x2150] sm:$0xff]
        %v1362 = vld [vmem:[%s222 + $0x2158] sm:$0xff]
        %v1363 = vld [vmem:[%s222 + $0x2160] sm:$0xff]
        %v1364 = vld [vmem:[%s222 + $0x2168] sm:$0xff]
        %v1365 = vld [vmem:[%s222 + $0x2170] sm:$0xff]
        %v1366 = vld [vmem:[%s222 + $0x2178] sm:$0xff]
        %v1367 = vld [vmem:[%s222 + $0x2180] sm:$0xff]
        %v1368 = vld [vmem:[%s222 + $0x2188] sm:$0xff]
        %v1369 = vld [vmem:[%s222 + $0x2190] sm:$0xff]
        %v1370 = vld [vmem:[%s222 + $0x2198] sm:$0xff]
        %v1371 = vld [vmem:[%s222 + $0x21a0] sm:$0xff]
        %v1372 = vld [vmem:[%s222 + $0x21a8] sm:$0xff]
        %v1373 = vld [vmem:[%s222 + $0x21b0] sm:$0xff]
        %v1374 = vld [vmem:[%s222 + $0x21b8] sm:$0xff]
        %v1375 = vld [vmem:[%s222 + $0x21c0] sm:$0xff]
        %v1376 = vld [vmem:[%s222 + $0x21c8] sm:$0xff]
        %v1377 = vld [vmem:[%s222 + $0x21d0] sm:$0xff]
        %v1378 = vld [vmem:[%s222 + $0x21d8] sm:$0xff]
        %v1379 = vld [vmem:[%s222 + $0x21e0] sm:$0xff]
        %v1380 = vld [vmem:[%s222 + $0x21e8] sm:$0xff]
        %v1381 = vld [vmem:[%s222 + $0x21f0] sm:$0xff]
        %v1382 = vld [vmem:[%s222 + $0x21f8] sm:$0xff]
        %v1383 = vld [vmem:[%s222 + $0x2200] sm:$0xff]
        %v1384 = vld [vmem:[%s222 + $0x2208] sm:$0xff]
        %v1385 = vld [vmem:[%s222 + $0x2210] sm:$0xff]
        %v1386 = vld [vmem:[%s222 + $0x2218] sm:$0xff]
        %v1387 = vld [vmem:[%s222 + $0x2220] sm:$0xff]
        %v1388 = vld [vmem:[%s222 + $0x2228] sm:$0xff]
        %v1389 = vld [vmem:[%s222 + $0x2230] sm:$0xff]
        %v1390 = vld [vmem:[%s222 + $0x2238] sm:$0xff]
        %v1391 = vld [vmem:[%s222 + $0x2240] sm:$0xff]
        %v1392 = vld [vmem:[%s222 + $0x2248] sm:$0xff]
        %v1393 = vld [vmem:[%s222 + $0x2250] sm:$0xff]
        %v1394 = vld [vmem:[%s222 + $0x2258] sm:$0xff]
        %v1395 = vld [vmem:[%s222 + $0x2260] sm:$0xff]
        %v1396 = vld [vmem:[%s222 + $0x2268] sm:$0xff]
        %v1397 = vld [vmem:[%s222 + $0x2270] sm:$0xff]
        %v1398 = vld [vmem:[%s222 + $0x2278] sm:$0xff]
        %v1399 = vld [vmem:[%s222 + $0x2280] sm:$0xff]
        %v1400 = vld [vmem:[%s222 + $0x2288] sm:$0xff]
        %v1401 = vld [vmem:[%s222 + $0x2290] sm:$0xff]
        %v1402 = vld [vmem:[%s222 + $0x2298] sm:$0xff]
        %v1403 = vld [vmem:[%s222 + $0x22a0] sm:$0xff]
        %v1404 = vld [vmem:[%s222 + $0x22a8] sm:$0xff]
        %v1405 = vld [vmem:[%s222 + $0x22b0] sm:$0xff]
        %v1406 = vld [vmem:[%s222 + $0x22b8] sm:$0xff]
        %v1407 = vld [vmem:[%s222 + $0x22c0] sm:$0xff]
        %v1408 = vld [vmem:[%s222 + $0x22c8] sm:$0xff]
        %v1409 = vld [vmem:[%s222 + $0x22d0] sm:$0xff]
        %v1410 = vld [vmem:[%s222 + $0x22d8] sm:$0xff]
        %v1411 = vld [vmem:[%s222 + $0x22e0] sm:$0xff]
        %v1412 = vld [vmem:[%s222 + $0x22e8] sm:$0xff]
        %v1413 = vld [vmem:[%s222 + $0x22f0] sm:$0xff]
        %v1414 = vld [vmem:[%s222 + $0x22f8] sm:$0xff]
        %v1415 = vld [vmem:[%s222 + $0x2300] sm:$0xff]
        %v1416 = vld [vmem:[%s222 + $0x2308] sm:$0xff]
        %v1417 = vld [vmem:[%s222 + $0x2310] sm:$0xff]
        %v1418 = vld [vmem:[%s222 + $0x2318] sm:$0xff]
        %v1419 = vld [vmem:[%s222 + $0x2320] sm:$0xff]
        %v1420 = vld [vmem:[%s222 + $0x2328] sm:$0xff]
        %v1421 = vld [vmem:[%s222 + $0x2330] sm:$0xff]
        %v1422 = vld [vmem:[%s222 + $0x2338] sm:$0xff]
        %v1423 = vld [vmem:[%s222 + $0x2340] sm:$0xff]
        %v1424 = vld [vmem:[%s222 + $0x2348] sm:$0xff]
        %v1425 = vld [vmem:[%s222 + $0x2350] sm:$0xff]
        %v1426 = vld [vmem:[%s222 + $0x2358] sm:$0xff]
        %v1427 = vld [vmem:[%s222 + $0x2360] sm:$0xff]
        %v1428 = vld [vmem:[%s222 + $0x2368] sm:$0xff]
        %v1429 = vld [vmem:[%s222 + $0x2370] sm:$0xff]
        %v1430 = vld [vmem:[%s222 + $0x2378] sm:$0xff]
        %v1431 = vld [vmem:[%s222 + $0x2380] sm:$0xff]
        %v1432 = vld [vmem:[%s222 + $0x2388] sm:$0xff]
        %v1433 = vld [vmem:[%s222 + $0x2390] sm:$0xff]
        %v1434 = vld [vmem:[%s222 + $0x2398] sm:$0xff]
        %v1435 = vld [vmem:[%s222 + $0x23a0] sm:$0xff]
        %v1436 = vld [vmem:[%s222 + $0x23a8] sm:$0xff]
        %v1437 = vld [vmem:[%s222 + $0x23b0] sm:$0xff]
        %v1438 = vld [vmem:[%s222 + $0x23b8] sm:$0xff]
        %v1439 = vld [vmem:[%s222 + $0x23c0] sm:$0xff]
        %v1440 = vld [vmem:[%s222 + $0x23c8] sm:$0xff]
        %v1441 = vld [vmem:[%s222 + $0x23d0] sm:$0xff]
        %v1442 = vld [vmem:[%s222 + $0x23d8] sm:$0xff]
        %v1443 = vld [vmem:[%s222 + $0x23e0] sm:$0xff]
        %v1444 = vld [vmem:[%s222 + $0x23e8] sm:$0xff]
        %v1445 = vld [vmem:[%s222 + $0x23f0] sm:$0xff]
        %v1446 = vld [vmem:[%s222 + $0x23f8] sm:$0xff]
        %v1447 = vld [vmem:[%s222 + $0x2400] sm:$0xff]
        %v1448 = vld [vmem:[%s222 + $0x2408] sm:$0xff]
        %v1449 = vld [vmem:[%s222 + $0x2410] sm:$0xff]
        %v1450 = vld [vmem:[%s222 + $0x2418] sm:$0xff]
        %v1451 = vld [vmem:[%s222 + $0x2420] sm:$0xff]
        %v1452 = vld [vmem:[%s222 + $0x2428] sm:$0xff]
        %v1453 = vld [vmem:[%s222 + $0x2430] sm:$0xff]
        %v1454 = vld [vmem:[%s222 + $0x2438] sm:$0xff]
        %v1455 = vld [vmem:[%s222 + $0x2440] sm:$0xff]
        %v1456 = vld [vmem:[%s222 + $0x2448] sm:$0xff]
        %v1457 = vld [vmem:[%s222 + $0x2450] sm:$0xff]
        %v1458 = vld [vmem:[%s222 + $0x2458] sm:$0xff]
        %v1459 = vld [vmem:[%s222 + $0x2460] sm:$0xff]
        %v1460 = vld [vmem:[%s222 + $0x2468] sm:$0xff]
        %v1461 = vld [vmem:[%s222 + $0x2470] sm:$0xff]
        %v1462 = vld [vmem:[%s222 + $0x2478] sm:$0xff]
        %v1463 = vld [vmem:[%s222 + $0x2480] sm:$0xff]
        %v1464 = vld [vmem:[%s222 + $0x2488] sm:$0xff]
        %v1465 = vld [vmem:[%s222 + $0x2490] sm:$0xff]
        %v1466 = vld [vmem:[%s222 + $0x2498] sm:$0xff]
        %v1467 = vld [vmem:[%s222 + $0x24a0] sm:$0xff]
        %v1468 = vld [vmem:[%s222 + $0x24a8] sm:$0xff]
        %v1469 = vld [vmem:[%s222 + $0x24b0] sm:$0xff]
        %v1470 = vld [vmem:[%s222 + $0x24b8] sm:$0xff]
        %v1471 = vld [vmem:[%s222 + $0x24c0] sm:$0xff]
        %v1472 = vld [vmem:[%s222 + $0x24c8] sm:$0xff]
        %v1473 = vld [vmem:[%s222 + $0x24d0] sm:$0xff]
        %v1474 = vld [vmem:[%s222 + $0x24d8] sm:$0xff]
        %v1475 = vld [vmem:[%s222 + $0x24e0] sm:$0xff]
        %v1476 = vld [vmem:[%s222 + $0x24e8] sm:$0xff]
        %v1477 = vld [vmem:[%s222 + $0x24f0] sm:$0xff]
        %v1478 = vld [vmem:[%s222 + $0x24f8] sm:$0xff]
        %v1479 = vld [vmem:[%s222 + $0x2500] sm:$0xff]
        %v1480 = vld [vmem:[%s222 + $0x2508] sm:$0xff]
        %v1481 = vld [vmem:[%s222 + $0x2510] sm:$0xff]
        %v1482 = vld [vmem:[%s222 + $0x2518] sm:$0xff]
        %v1483 = vld [vmem:[%s222 + $0x2520] sm:$0xff]
        %v1484 = vld [vmem:[%s222 + $0x2528] sm:$0xff]
        %v1485 = vld [vmem:[%s222 + $0x2530] sm:$0xff]
        %v1486 = vld [vmem:[%s222 + $0x2538] sm:$0xff]
        %v1487 = vld [vmem:[%s222 + $0x2540] sm:$0xff]
        %v1488 = vld [vmem:[%s222 + $0x2548] sm:$0xff]
        %v1489 = vld [vmem:[%s222 + $0x2550] sm:$0xff]
        %v1490 = vld [vmem:[%s222 + $0x2558] sm:$0xff]
        %v1491 = vld [vmem:[%s222 + $0x2560] sm:$0xff]
        %v1492 = vld [vmem:[%s222 + $0x2568] sm:$0xff]
        %v1493 = vld [vmem:[%s222 + $0x2570] sm:$0xff]
        %v1494 = vld [vmem:[%s222 + $0x2578] sm:$0xff]
        %v1495 = vld [vmem:[%s222 + $0x2580] sm:$0xff]
        %v1496 = vld [vmem:[%s222 + $0x2588] sm:$0xff]
        %v1497 = vld [vmem:[%s222 + $0x2590] sm:$0xff]
        %v1498 = vld [vmem:[%s222 + $0x2598] sm:$0xff]
        %v1499 = vld [vmem:[%s222 + $0x25a0] sm:$0xff]
        %v1500 = vld [vmem:[%s222 + $0x25a8] sm:$0xff]
        %v1501 = vld [vmem:[%s222 + $0x25b0] sm:$0xff]
        %v1502 = vld [vmem:[%s222 + $0x25b8] sm:$0xff]
        %v1503 = vld [vmem:[%s222 + $0x25c0] sm:$0xff]
        %v1504 = vld [vmem:[%s222 + $0x25c8] sm:$0xff]
        %v1505 = vld [vmem:[%s222 + $0x25d0] sm:$0xff]
        %v1506 = vld [vmem:[%s222 + $0x25d8] sm:$0xff]
        %v1507 = vld [vmem:[%s222 + $0x25e0] sm:$0xff]
        %v1508 = vld [vmem:[%s222 + $0x25e8] sm:$0xff]
        %v1509 = vld [vmem:[%s222 + $0x25f0] sm:$0xff]
        %v1510 = vld [vmem:[%s222 + $0x25f8] sm:$0xff]
        %v1511 = vld [vmem:[%s222 + $0x2600] sm:$0xff]
        %v1512 = vld [vmem:[%s222 + $0x2608] sm:$0xff]
        %v1513 = vld [vmem:[%s222 + $0x2610] sm:$0xff]
        %v1514 = vld [vmem:[%s222 + $0x2618] sm:$0xff]
        %v1515 = vld [vmem:[%s222 + $0x2620] sm:$0xff]
        %v1516 = vld [vmem:[%s222 + $0x2628] sm:$0xff]
        %v1517 = vld [vmem:[%s222 + $0x2630] sm:$0xff]
        %v1518 = vld [vmem:[%s222 + $0x2638] sm:$0xff]
        %v1519 = vld [vmem:[%s222 + $0x2640] sm:$0xff]
        %v1520 = vld [vmem:[%s222 + $0x2648] sm:$0xff]
        %v1521 = vld [vmem:[%s222 + $0x2650] sm:$0xff]
        %v1522 = vld [vmem:[%s222 + $0x2658] sm:$0xff]
        %v1523 = vld [vmem:[%s222 + $0x2660] sm:$0xff]
        %v1524 = vld [vmem:[%s222 + $0x2668] sm:$0xff]
        %v1525 = vld [vmem:[%s222 + $0x2670] sm:$0xff]
        %v1526 = vld [vmem:[%s222 + $0x2678] sm:$0xff]
        %v1527 = vld [vmem:[%s222 + $0x2680] sm:$0xff]
        %v1528 = vld [vmem:[%s222 + $0x2688] sm:$0xff]
        %v1529 = vld [vmem:[%s222 + $0x2690] sm:$0xff]
        %v1530 = vld [vmem:[%s222 + $0x2698] sm:$0xff]
        %v1531 = vld [vmem:[%s222 + $0x26a0] sm:$0xff]
        %v1532 = vld [vmem:[%s222 + $0x26a8] sm:$0xff]
        %v1533 = vld [vmem:[%s222 + $0x26b0] sm:$0xff]
        %v1534 = vld [vmem:[%s222 + $0x26b8] sm:$0xff]
        %v1535 = vld [vmem:[%s222 + $0x26c0] sm:$0xff]
        %v1536 = vld [vmem:[%s222 + $0x26c8] sm:$0xff]
        %v1537 = vld [vmem:[%s222 + $0x26d0] sm:$0xff]
        %v1538 = vld [vmem:[%s222 + $0x26d8] sm:$0xff]
        %v1539 = vld [vmem:[%s222 + $0x26e0] sm:$0xff]
        %v1540 = vld [vmem:[%s222 + $0x26e8] sm:$0xff]
        %v1541 = vld [vmem:[%s222 + $0x26f0] sm:$0xff]
        %v1542 = vld [vmem:[%s222 + $0x26f8] sm:$0xff]
        %v1543 = vld [vmem:[%s222 + $0x2700] sm:$0xff]
        %v1544 = vld [vmem:[%s222 + $0x2708] sm:$0xff]
        %v1545 = vld [vmem:[%s222 + $0x2710] sm:$0xff]
        %v1546 = vld [vmem:[%s222 + $0x2718] sm:$0xff]
        %v1547 = vld [vmem:[%s222 + $0x2720] sm:$0xff]
        %v1548 = vld [vmem:[%s222 + $0x2728] sm:$0xff]
        %v1549 = vld [vmem:[%s222 + $0x2730] sm:$0xff]
        %v1550 = vld [vmem:[%s222 + $0x2738] sm:$0xff]
        %v1551 = vld [vmem:[%s222 + $0x2740] sm:$0xff]
        %v1552 = vld [vmem:[%s222 + $0x2748] sm:$0xff]
        %v1553 = vld [vmem:[%s222 + $0x2750] sm:$0xff]
        %v1554 = vld [vmem:[%s222 + $0x2758] sm:$0xff]
        %v1555 = vld [vmem:[%s222 + $0x2760] sm:$0xff]
        %v1556 = vld [vmem:[%s222 + $0x2768] sm:$0xff]
        %v1557 = vld [vmem:[%s222 + $0x2770] sm:$0xff]
        %v1558 = vld [vmem:[%s222 + $0x2778] sm:$0xff]
        %v1559 = vld [vmem:[%s222 + $0x2780] sm:$0xff]
        %v1560 = vld [vmem:[%s222 + $0x2788] sm:$0xff]
        %v1561 = vld [vmem:[%s222 + $0x2790] sm:$0xff]
        %v1562 = vld [vmem:[%s222 + $0x2798] sm:$0xff]
        %v1563 = vld [vmem:[%s222 + $0x27a0] sm:$0xff]
        %v1564 = vld [vmem:[%s222 + $0x27a8] sm:$0xff]
        %v1565 = vld [vmem:[%s222 + $0x27b0] sm:$0xff]
        %v1566 = vld [vmem:[%s222 + $0x27b8] sm:$0xff]
        %v1567 = vld [vmem:[%s222 + $0x27c0] sm:$0xff]
        %v1568 = vld [vmem:[%s222 + $0x27c8] sm:$0xff]
        %v1569 = vld [vmem:[%s222 + $0x27d0] sm:$0xff]
        %v1570 = vld [vmem:[%s222 + $0x27d8] sm:$0xff]
        %v1571 = vld [vmem:[%s222 + $0x27e0] sm:$0xff]
        %v1572 = vld [vmem:[%s222 + $0x27e8] sm:$0xff]
        %v1573 = vld [vmem:[%s222 + $0x27f0] sm:$0xff]
        %v1574 = vld [vmem:[%s222 + $0x27f8] sm:$0xff]
        %v1575 = vld [vmem:[%s222 + $0x2800] sm:$0xff]
        %v1576 = vld [vmem:[%s222 + $0x2808] sm:$0xff]
        %v1577 = vld [vmem:[%s222 + $0x2810] sm:$0xff]
        %v1578 = vld [vmem:[%s222 + $0x2818] sm:$0xff]
        %v1579 = vld [vmem:[%s222 + $0x2820] sm:$0xff]
        %v1580 = vld [vmem:[%s222 + $0x2828] sm:$0xff]
        %v1581 = vld [vmem:[%s222 + $0x2830] sm:$0xff]
        %v1582 = vld [vmem:[%s222 + $0x2838] sm:$0xff]
        %v1583 = vld [vmem:[%s222 + $0x2840] sm:$0xff]
        %v1584 = vld [vmem:[%s222 + $0x2848] sm:$0xff]
        %v1585 = vld [vmem:[%s222 + $0x2850] sm:$0xff]
        %v1586 = vld [vmem:[%s222 + $0x2858] sm:$0xff]
        %v1587 = vld [vmem:[%s222 + $0x2860] sm:$0xff]
        %v1588 = vld [vmem:[%s222 + $0x2868] sm:$0xff]
        %v1589 = vld [vmem:[%s222 + $0x2870] sm:$0xff]
        %v1590 = vld [vmem:[%s222 + $0x2878] sm:$0xff]
        %v1591 = vld [vmem:[%s222 + $0x2880] sm:$0xff]
        %v1592 = vld [vmem:[%s222 + $0x2888] sm:$0xff]
        %v1593 = vld [vmem:[%s222 + $0x2890] sm:$0xff]
        %v1594 = vld [vmem:[%s222 + $0x2898] sm:$0xff]
        %v1595 = vld [vmem:[%s222 + $0x28a0] sm:$0xff]
        %v1596 = vld [vmem:[%s222 + $0x28a8] sm:$0xff]
        %v1597 = vld [vmem:[%s222 + $0x28b0] sm:$0xff]
        %v1598 = vld [vmem:[%s222 + $0x28b8] sm:$0xff]
        %v1599 = vld [vmem:[%s222 + $0x28c0] sm:$0xff]
        %v1600 = vld [vmem:[%s222 + $0x28c8] sm:$0xff]
        %v1601 = vld [vmem:[%s222 + $0x28d0] sm:$0xff]
        %v1602 = vld [vmem:[%s222 + $0x28d8] sm:$0xff]
        %v1603 = vld [vmem:[%s222 + $0x28e0] sm:$0xff]
        %v1604 = vld [vmem:[%s222 + $0x28e8] sm:$0xff]
        %v1605 = vld [vmem:[%s222 + $0x28f0] sm:$0xff]
        %v1606 = vld [vmem:[%s222 + $0x28f8] sm:$0xff]
        %v1607 = vld [vmem:[%s222 + $0x2900] sm:$0xff]
        %v1608 = vld [vmem:[%s222 + $0x2908] sm:$0xff]
        %v1609 = vld [vmem:[%s222 + $0x2910] sm:$0xff]
        %v1610 = vld [vmem:[%s222 + $0x2918] sm:$0xff]
        %v1611 = vld [vmem:[%s222 + $0x2920] sm:$0xff]
        %v1612 = vld [vmem:[%s222 + $0x2928] sm:$0xff]
        %v1613 = vld [vmem:[%s222 + $0x2930] sm:$0xff]
        %v1614 = vld [vmem:[%s222 + $0x2938] sm:$0xff]
        %v1615 = vld [vmem:[%s222 + $0x2940] sm:$0xff]
        %v1616 = vld [vmem:[%s222 + $0x2948] sm:$0xff]
        %v1617 = vld [vmem:[%s222 + $0x2950] sm:$0xff]
        %v1618 = vld [vmem:[%s222 + $0x2958] sm:$0xff]
        %v1619 = vld [vmem:[%s222 + $0x2960] sm:$0xff]
        %v1620 = vld [vmem:[%s222 + $0x2968] sm:$0xff]
        %v1621 = vld [vmem:[%s222 + $0x2970] sm:$0xff]
        %v1622 = vld [vmem:[%s222 + $0x2978] sm:$0xff]
        %v1623 = vld [vmem:[%s222 + $0x2980] sm:$0xff]
        %v1624 = vld [vmem:[%s222 + $0x2988] sm:$0xff]
        %v1625 = vld [vmem:[%s222 + $0x2990] sm:$0xff]
        %v1626 = vld [vmem:[%s222 + $0x2998] sm:$0xff]
        %v1627 = vld [vmem:[%s222 + $0x29a0] sm:$0xff]
        %v1628 = vld [vmem:[%s222 + $0x29a8] sm:$0xff]
        %v1629 = vld [vmem:[%s222 + $0x29b0] sm:$0xff]
        %v1630 = vld [vmem:[%s222 + $0x29b8] sm:$0xff]
        %v1631 = vld [vmem:[%s222 + $0x29c0] sm:$0xff]
        %v1632 = vld [vmem:[%s222 + $0x29c8] sm:$0xff]
        %v1633 = vld [vmem:[%s222 + $0x29d0] sm:$0xff]
        %v1634 = vld [vmem:[%s222 + $0x29d8] sm:$0xff]
        %v1635 = vld [vmem:[%s222 + $0x29e0] sm:$0xff]
        %v1636 = vld [vmem:[%s222 + $0x29e8] sm:$0xff]
        %v1637 = vld [vmem:[%s222 + $0x29f0] sm:$0xff]
        %v1638 = vld [vmem:[%s222 + $0x29f8] sm:$0xff]
        %v1639 = vld [vmem:[%s222 + $0x2a00] sm:$0xff]
        %v1640 = vld [vmem:[%s222 + $0x2a08] sm:$0xff]
        %v1641 = vld [vmem:[%s222 + $0x2a10] sm:$0xff]
        %v1642 = vld [vmem:[%s222 + $0x2a18] sm:$0xff]
        %v1643 = vld [vmem:[%s222 + $0x2a20] sm:$0xff]
        %v1644 = vld [vmem:[%s222 + $0x2a28] sm:$0xff]
        %v1645 = vld [vmem:[%s222 + $0x2a30] sm:$0xff]
        %v1646 = vld [vmem:[%s222 + $0x2a38] sm:$0xff]
        %v1647 = vld [vmem:[%s222 + $0x2a40] sm:$0xff]
        %v1648 = vld [vmem:[%s222 + $0x2a48] sm:$0xff]
        %v1649 = vld [vmem:[%s222 + $0x2a50] sm:$0xff]
        %v1650 = vld [vmem:[%s222 + $0x2a58] sm:$0xff]
        %v1651 = vld [vmem:[%s222 + $0x2a60] sm:$0xff]
        %v1652 = vld [vmem:[%s222 + $0x2a68] sm:$0xff]
        %v1653 = vld [vmem:[%s222 + $0x2a70] sm:$0xff]
        %v1654 = vld [vmem:[%s222 + $0x2a78] sm:$0xff]
        %v1655 = vld [vmem:[%s222 + $0x2a80] sm:$0xff]
        %v1656 = vld [vmem:[%s222 + $0x2a88] sm:$0xff]
        %v1657 = vld [vmem:[%s222 + $0x2a90] sm:$0xff]
        %v1658 = vld [vmem:[%s222 + $0x2a98] sm:$0xff]
        %v1659 = vld [vmem:[%s222 + $0x2aa0] sm:$0xff]
        %v1660 = vld [vmem:[%s222 + $0x2aa8] sm:$0xff]
        %v1661 = vld [vmem:[%s222 + $0x2ab0] sm:$0xff]
        %v1662 = vld [vmem:[%s222 + $0x2ab8] sm:$0xff]
        %v1663 = vld [vmem:[%s222 + $0x2ac0] sm:$0xff]
        %v1664 = vld [vmem:[%s222 + $0x2ac8] sm:$0xff]
        %v1665 = vld [vmem:[%s222 + $0x2ad0] sm:$0xff]
        %v1666 = vld [vmem:[%s222 + $0x2ad8] sm:$0xff]
        %v1667 = vld [vmem:[%s222 + $0x2ae0] sm:$0xff]
        %v1668 = vld [vmem:[%s222 + $0x2ae8] sm:$0xff]
        %v1669 = vld [vmem:[%s222 + $0x2af0] sm:$0xff]
        %v1670 = vld [vmem:[%s222 + $0x2af8] sm:$0xff]
        %v1671 = vld [vmem:[%s222 + $0x2b00] sm:$0xff]
        %v1672 = vld [vmem:[%s222 + $0x2b08] sm:$0xff]
        %v1673 = vld [vmem:[%s222 + $0x2b10] sm:$0xff]
        %v1674 = vld [vmem:[%s222 + $0x2b18] sm:$0xff]
        %v1675 = vld [vmem:[%s222 + $0x2b20] sm:$0xff]
        %v1676 = vld [vmem:[%s222 + $0x2b28] sm:$0xff]
        %v1677 = vld [vmem:[%s222 + $0x2b30] sm:$0xff]
        %v1678 = vld [vmem:[%s222 + $0x2b38] sm:$0xff]
        %v1679 = vld [vmem:[%s222 + $0x2b40] sm:$0xff]
        %v1680 = vld [vmem:[%s222 + $0x2b48] sm:$0xff]
        %v1681 = vld [vmem:[%s222 + $0x2b50] sm:$0xff]
        %v1682 = vld [vmem:[%s222 + $0x2b58] sm:$0xff]
        %v1683 = vld [vmem:[%s222 + $0x2b60] sm:$0xff]
        %v1684 = vld [vmem:[%s222 + $0x2b68] sm:$0xff]
        %v1685 = vld [vmem:[%s222 + $0x2b70] sm:$0xff]
        %v1686 = vld [vmem:[%s222 + $0x2b78] sm:$0xff]
        %v1687 = vld [vmem:[%s222 + $0x2b80] sm:$0xff]
        %v1688 = vld [vmem:[%s222 + $0x2b88] sm:$0xff]
        %v1689 = vld [vmem:[%s222 + $0x2b90] sm:$0xff]
        %v1690 = vld [vmem:[%s222 + $0x2b98] sm:$0xff]
        %v1691 = vld [vmem:[%s222 + $0x2ba0] sm:$0xff]
        %v1692 = vld [vmem:[%s222 + $0x2ba8] sm:$0xff]
        %v1693 = vld [vmem:[%s222 + $0x2bb0] sm:$0xff]
        %v1694 = vld [vmem:[%s222 + $0x2bb8] sm:$0xff]
        %v1695 = vld [vmem:[%s222 + $0x2bc0] sm:$0xff]
        %v1696 = vld [vmem:[%s222 + $0x2bc8] sm:$0xff]
        %v1697 = vld [vmem:[%s222 + $0x2bd0] sm:$0xff]
        %v1698 = vld [vmem:[%s222 + $0x2bd8] sm:$0xff]
        %v1699 = vld [vmem:[%s222 + $0x2be0] sm:$0xff]
        %v1700 = vld [vmem:[%s222 + $0x2be8] sm:$0xff]
        %v1701 = vld [vmem:[%s222 + $0x2bf0] sm:$0xff]
        %v1702 = vld [vmem:[%s222 + $0x2bf8] sm:$0xff]
        %v1703 = vld [vmem:[%s222 + $0x2c00] sm:$0xff]
        %v1704 = vld [vmem:[%s222 + $0x2c08] sm:$0xff]
        %v1705 = vld [vmem:[%s222 + $0x2c10] sm:$0xff]
        %v1706 = vld [vmem:[%s222 + $0x2c18] sm:$0xff]
        %v1707 = vld [vmem:[%s222 + $0x2c20] sm:$0xff]
        %v1708 = vld [vmem:[%s222 + $0x2c28] sm:$0xff]
        %v1709 = vld [vmem:[%s222 + $0x2c30] sm:$0xff]
        %v1710 = vld [vmem:[%s222 + $0x2c38] sm:$0xff]
        %v1711 = vld [vmem:[%s222 + $0x2c40] sm:$0xff]
        %v1712 = vld [vmem:[%s222 + $0x2c48] sm:$0xff]
        %v1713 = vld [vmem:[%s222 + $0x2c50] sm:$0xff]
        %v1714 = vld [vmem:[%s222 + $0x2c58] sm:$0xff]
        %v1715 = vld [vmem:[%s222 + $0x2c60] sm:$0xff]
        %v1716 = vld [vmem:[%s222 + $0x2c68] sm:$0xff]
        %v1717 = vld [vmem:[%s222 + $0x2c70] sm:$0xff]
        %v1718 = vld [vmem:[%s222 + $0x2c78] sm:$0xff]
        %v1719 = vld [vmem:[%s222 + $0x2c80] sm:$0xff]
        %v1720 = vld [vmem:[%s222 + $0x2c88] sm:$0xff]
        %v1721 = vld [vmem:[%s222 + $0x2c90] sm:$0xff]
        %v1722 = vld [vmem:[%s222 + $0x2c98] sm:$0xff]
        %v1723 = vld [vmem:[%s222 + $0x2ca0] sm:$0xff]
        %v1724 = vld [vmem:[%s222 + $0x2ca8] sm:$0xff]
        %v1725 = vld [vmem:[%s222 + $0x2cb0] sm:$0xff]
        %v1726 = vld [vmem:[%s222 + $0x2cb8] sm:$0xff]
        %v1727 = vld [vmem:[%s222 + $0x2cc0] sm:$0xff]
        %v1728 = vld [vmem:[%s222 + $0x2cc8] sm:$0xff]
        %v1729 = vld [vmem:[%s222 + $0x2cd0] sm:$0xff]
        %v1730 = vld [vmem:[%s222 + $0x2cd8] sm:$0xff]
        %v1731 = vld [vmem:[%s222 + $0x2ce0] sm:$0xff]
        %v1732 = vld [vmem:[%s222 + $0x2ce8] sm:$0xff]
        %v1733 = vld [vmem:[%s222 + $0x2cf0] sm:$0xff]
        %v1734 = vld [vmem:[%s222 + $0x2cf8] sm:$0xff]
        %v1735 = vld [vmem:[%s222 + $0x2d00] sm:$0xff]
        %v1736 = vld [vmem:[%s222 + $0x2d08] sm:$0xff]
        %v1737 = vld [vmem:[%s222 + $0x2d10] sm:$0xff]
        %v1738 = vld [vmem:[%s222 + $0x2d18] sm:$0xff]
        %v1739 = vld [vmem:[%s222 + $0x2d20] sm:$0xff]
        %v1740 = vld [vmem:[%s222 + $0x2d28] sm:$0xff]
        %v1741 = vld [vmem:[%s222 + $0x2d30] sm:$0xff]
        %v1742 = vld [vmem:[%s222 + $0x2d38] sm:$0xff]
        %v1743 = vld [vmem:[%s222 + $0x2d40] sm:$0xff]
        %v1744 = vld [vmem:[%s222 + $0x2d48] sm:$0xff]
        %v1745 = vld [vmem:[%s222 + $0x2d50] sm:$0xff]
        %v1746 = vld [vmem:[%s222 + $0x2d58] sm:$0xff]
        %v1747 = vld [vmem:[%s222 + $0x2d60] sm:$0xff]
        %v1748 = vld [vmem:[%s222 + $0x2d68] sm:$0xff]
        %v1749 = vld [vmem:[%s222 + $0x2d70] sm:$0xff]
        %v1750 = vld [vmem:[%s222 + $0x2d78] sm:$0xff]
        %v1751 = vld [vmem:[%s222 + $0x2d80] sm:$0xff]
        %v1752 = vld [vmem:[%s222 + $0x2d88] sm:$0xff]
        %v1753 = vld [vmem:[%s222 + $0x2d90] sm:$0xff]
        %v1754 = vld [vmem:[%s222 + $0x2d98] sm:$0xff]
        %v1755 = vld [vmem:[%s222 + $0x2da0] sm:$0xff]
        %v1756 = vld [vmem:[%s222 + $0x2da8] sm:$0xff]
        %v1757 = vld [vmem:[%s222 + $0x2db0] sm:$0xff]
        %v1758 = vld [vmem:[%s222 + $0x2db8] sm:$0xff]
        %v1759 = vld [vmem:[%s222 + $0x2dc0] sm:$0xff]
        %v1760 = vld [vmem:[%s222 + $0x2dc8] sm:$0xff]
        %v1761 = vld [vmem:[%s222 + $0x2dd0] sm:$0xff]
        %v1762 = vld [vmem:[%s222 + $0x2dd8] sm:$0xff]
        %v1763 = vld [vmem:[%s222 + $0x2de0] sm:$0xff]
        %v1764 = vld [vmem:[%s222 + $0x2de8] sm:$0xff]
        %v1765 = vld [vmem:[%s222 + $0x2df0] sm:$0xff]
        %v1766 = vld [vmem:[%s222 + $0x2df8] sm:$0xff]
        %v1767 = vld [vmem:[%s222 + $0x2e00] sm:$0xff]
        %v1768 = vld [vmem:[%s222 + $0x2e08] sm:$0xff]
        %v1769 = vld [vmem:[%s222 + $0x2e10] sm:$0xff]
        %v1770 = vld [vmem:[%s222 + $0x2e18] sm:$0xff]
        %v1771 = vld [vmem:[%s222 + $0x2e20] sm:$0xff]
        %v1772 = vld [vmem:[%s222 + $0x2e28] sm:$0xff]
        %v1773 = vld [vmem:[%s222 + $0x2e30] sm:$0xff]
        %v1774 = vld [vmem:[%s222 + $0x2e38] sm:$0xff]
        %v1775 = vld [vmem:[%s222 + $0x2e40] sm:$0xff]
        %v1776 = vld [vmem:[%s222 + $0x2e48] sm:$0xff]
        %v1777 = vld [vmem:[%s222 + $0x2e50] sm:$0xff]
        %v1778 = vld [vmem:[%s222 + $0x2e58] sm:$0xff]
        %v1779 = vld [vmem:[%s222 + $0x2e60] sm:$0xff]
        %v1780 = vld [vmem:[%s222 + $0x2e68] sm:$0xff]
        %v1781 = vld [vmem:[%s222 + $0x2e70] sm:$0xff]
        %v1782 = vld [vmem:[%s222 + $0x2e78] sm:$0xff]
        %v1783 = vld [vmem:[%s222 + $0x2e80] sm:$0xff]
        %v1784 = vld [vmem:[%s222 + $0x2e88] sm:$0xff]
        %v1785 = vld [vmem:[%s222 + $0x2e90] sm:$0xff]
        %v1786 = vld [vmem:[%s222 + $0x2e98] sm:$0xff]
        %v1787 = vld [vmem:[%s222 + $0x2ea0] sm:$0xff]
        %v1788 = vld [vmem:[%s222 + $0x2ea8] sm:$0xff]
        %v1789 = vld [vmem:[%s222 + $0x2eb0] sm:$0xff]
        %v1790 = vld [vmem:[%s222 + $0x2eb8] sm:$0xff]
        %v1791 = vld [vmem:[%s222 + $0x2ec0] sm:$0xff]
        %v1792 = vld [vmem:[%s222 + $0x2ec8] sm:$0xff]
        %v1793 = vld [vmem:[%s222 + $0x2ed0] sm:$0xff]
        %v1794 = vld [vmem:[%s222 + $0x2ed8] sm:$0xff]
        %v1795 = vld [vmem:[%s222 + $0x2ee0] sm:$0xff]
        %v1796 = vld [vmem:[%s222 + $0x2ee8] sm:$0xff]
        %v1797 = vld [vmem:[%s222 + $0x2ef0] sm:$0xff]
        %v1798 = vld [vmem:[%s222 + $0x2ef8] sm:$0xff]
        %v1799 = vld [vmem:[%s222 + $0x2f00] sm:$0xff]
        %v1800 = vld [vmem:[%s222 + $0x2f08] sm:$0xff]
        %v1801 = vld [vmem:[%s222 + $0x2f10] sm:$0xff]
        %v1802 = vld [vmem:[%s222 + $0x2f18] sm:$0xff]
        %v1803 = vld [vmem:[%s222 + $0x2f20] sm:$0xff]
        %v1804 = vld [vmem:[%s222 + $0x2f28] sm:$0xff]
        %v1805 = vld [vmem:[%s222 + $0x2f30] sm:$0xff]
        %v1806 = vld [vmem:[%s222 + $0x2f38] sm:$0xff]
        %v1807 = vld [vmem:[%s222 + $0x2f40] sm:$0xff]
        %v1808 = vld [vmem:[%s222 + $0x2f48] sm:$0xff]
        %v1809 = vld [vmem:[%s222 + $0x2f50] sm:$0xff]
        %v1810 = vld [vmem:[%s222 + $0x2f58] sm:$0xff]
        %v1811 = vld [vmem:[%s222 + $0x2f60] sm:$0xff]
        %v1812 = vld [vmem:[%s222 + $0x2f68] sm:$0xff]
        %v1813 = vld [vmem:[%s222 + $0x2f70] sm:$0xff]
        %v1814 = vld [vmem:[%s222 + $0x2f78] sm:$0xff]
        %v1815 = vld [vmem:[%s222 + $0x2f80] sm:$0xff]
        %v1816 = vld [vmem:[%s222 + $0x2f88] sm:$0xff]
        %v1817 = vld [vmem:[%s222 + $0x2f90] sm:$0xff]
        %v1818 = vld [vmem:[%s222 + $0x2f98] sm:$0xff]
        %v1819 = vld [vmem:[%s222 + $0x2fa0] sm:$0xff]
        %v1820 = vld [vmem:[%s222 + $0x2fa8] sm:$0xff]
        %v1821 = vld [vmem:[%s222 + $0x2fb0] sm:$0xff]
        %v1822 = vld [vmem:[%s222 + $0x2fb8] sm:$0xff]
        %v1823 = vld [vmem:[%s222 + $0x2fc0] sm:$0xff]
        %v1824 = vld [vmem:[%s222 + $0x2fc8] sm:$0xff]
        %v1825 = vld [vmem:[%s222 + $0x2fd0] sm:$0xff]
        %v1826 = vld [vmem:[%s222 + $0x2fd8] sm:$0xff]
        %v1827 = vld [vmem:[%s222 + $0x2fe0] sm:$0xff]
        %v1828 = vld [vmem:[%s222 + $0x2fe8] sm:$0xff]
        %v1829 = vld [vmem:[%s222 + $0x2ff0] sm:$0xff]
        %v1830 = vld [vmem:[%s222 + $0x2ff8] sm:$0xff]
        %v1831 = vld [vmem:[%s222 + $0x3000] sm:$0xff]
        %v1832 = vld [vmem:[%s222 + $0x3008] sm:$0xff]
        %v1833 = vld [vmem:[%s222 + $0x3010] sm:$0xff]
        %v1834 = vld [vmem:[%s222 + $0x3018] sm:$0xff]
        %v1835 = vld [vmem:[%s222 + $0x3020] sm:$0xff]
        %v1836 = vld [vmem:[%s222 + $0x3028] sm:$0xff]
        %v1837 = vld [vmem:[%s222 + $0x3030] sm:$0xff]
        %v1838 = vld [vmem:[%s222 + $0x3038] sm:$0xff]
        %v1839 = vld [vmem:[%s222 + $0x3040] sm:$0xff]
        %v1840 = vld [vmem:[%s222 + $0x3048] sm:$0xff]
        %v1841 = vld [vmem:[%s222 + $0x3050] sm:$0xff]
        %v1842 = vld [vmem:[%s222 + $0x3058] sm:$0xff]
        %v1843 = vld [vmem:[%s222 + $0x3060] sm:$0xff]
        %v1844 = vld [vmem:[%s222 + $0x3068] sm:$0xff]
        %v1845 = vld [vmem:[%s222 + $0x3070] sm:$0xff]
        %v1846 = vld [vmem:[%s222 + $0x3078] sm:$0xff]
        %v1847 = vld [vmem:[%s222 + $0x3080] sm:$0xff]
        %v1848 = vld [vmem:[%s222 + $0x3088] sm:$0xff]
        %v1849 = vld [vmem:[%s222 + $0x3090] sm:$0xff]
        %v1850 = vld [vmem:[%s222 + $0x3098] sm:$0xff]
        %v1851 = vld [vmem:[%s222 + $0x30a0] sm:$0xff]
        %v1852 = vld [vmem:[%s222 + $0x30a8] sm:$0xff]
        %v1853 = vld [vmem:[%s222 + $0x30b0] sm:$0xff]
        %v1854 = vld [vmem:[%s222 + $0x30b8] sm:$0xff]
        %v1855 = vld [vmem:[%s222 + $0x30c0] sm:$0xff]
        %v1856 = vld [vmem:[%s222 + $0x30c8] sm:$0xff]
        %v1857 = vld [vmem:[%s222 + $0x30d0] sm:$0xff]
        %v1858 = vld [vmem:[%s222 + $0x30d8] sm:$0xff]
        %v1859 = vld [vmem:[%s222 + $0x30e0] sm:$0xff]
        %v1860 = vld [vmem:[%s222 + $0x30e8] sm:$0xff]
        %v1861 = vld [vmem:[%s222 + $0x30f0] sm:$0xff]
        %v1862 = vld [vmem:[%s222 + $0x30f8] sm:$0xff]
        %v1863 = vld [vmem:[%s222 + $0x3100] sm:$0xff]
        %v1864 = vld [vmem:[%s222 + $0x3108] sm:$0xff]
        %v1865 = vld [vmem:[%s222 + $0x3110] sm:$0xff]
        %v1866 = vld [vmem:[%s222 + $0x3118] sm:$0xff]
        %v1867 = vld [vmem:[%s222 + $0x3120] sm:$0xff]
        %v1868 = vld [vmem:[%s222 + $0x3128] sm:$0xff]
        %v1869 = vld [vmem:[%s222 + $0x3130] sm:$0xff]
        %v1870 = vld [vmem:[%s222 + $0x3138] sm:$0xff]
        %v1871 = vld [vmem:[%s222 + $0x3140] sm:$0xff]
        %v1872 = vld [vmem:[%s222 + $0x3148] sm:$0xff]
        %v1873 = vld [vmem:[%s222 + $0x3150] sm:$0xff]
        %v1874 = vld [vmem:[%s222 + $0x3158] sm:$0xff]
        %v1875 = vld [vmem:[%s222 + $0x3160] sm:$0xff]
        %v1876 = vld [vmem:[%s222 + $0x3168] sm:$0xff]
        %v1877 = vld [vmem:[%s222 + $0x3170] sm:$0xff]
        %v1878 = vld [vmem:[%s222 + $0x3178] sm:$0xff]
        %v1879 = vld [vmem:[%s222 + $0x3180] sm:$0xff]
        %v1880 = vld [vmem:[%s222 + $0x3188] sm:$0xff]
        %v1881 = vld [vmem:[%s222 + $0x3190] sm:$0xff]
        %v1882 = vld [vmem:[%s222 + $0x3198] sm:$0xff]
        %v1883 = vld [vmem:[%s222 + $0x31a0] sm:$0xff]
        %v1884 = vld [vmem:[%s222 + $0x31a8] sm:$0xff]
        %v1885 = vld [vmem:[%s222 + $0x31b0] sm:$0xff]
        %v1886 = vld [vmem:[%s222 + $0x31b8] sm:$0xff]
        %v1887 = vld [vmem:[%s222 + $0x31c0] sm:$0xff]
        %v1888 = vld [vmem:[%s222 + $0x31c8] sm:$0xff]
        %v1889 = vld [vmem:[%s222 + $0x31d0] sm:$0xff]
        %v1890 = vld [vmem:[%s222 + $0x31d8] sm:$0xff]
        %v1891 = vld [vmem:[%s222 + $0x31e0] sm:$0xff]
        %v1892 = vld [vmem:[%s222 + $0x31e8] sm:$0xff]
        %v1893 = vld [vmem:[%s222 + $0x31f0] sm:$0xff]
        %v1894 = vld [vmem:[%s222 + $0x31f8] sm:$0xff]
        %v1895 = vld [vmem:[%s222 + $0x3200] sm:$0xff]
        %v1896 = vld [vmem:[%s222 + $0x3208] sm:$0xff]
        %v1897 = vld [vmem:[%s222 + $0x3210] sm:$0xff]
        %v1898 = vld [vmem:[%s222 + $0x3218] sm:$0xff]
        %v1899 = vld [vmem:[%s222 + $0x3220] sm:$0xff]
        %v1900 = vld [vmem:[%s222 + $0x3228] sm:$0xff]
        %v1901 = vld [vmem:[%s222 + $0x3230] sm:$0xff]
        %v1902 = vld [vmem:[%s222 + $0x3238] sm:$0xff]
        %v1903 = vld [vmem:[%s222 + $0x3240] sm:$0xff]
        %v1904 = vld [vmem:[%s222 + $0x3248] sm:$0xff]
        %v1905 = vld [vmem:[%s222 + $0x3250] sm:$0xff]
        %v1906 = vld [vmem:[%s222 + $0x3258] sm:$0xff]
        %v1907 = vld [vmem:[%s222 + $0x3260] sm:$0xff]
        %v1908 = vld [vmem:[%s222 + $0x3268] sm:$0xff]
        %v1909 = vld [vmem:[%s222 + $0x3270] sm:$0xff]
        %v1910 = vld [vmem:[%s222 + $0x3278] sm:$0xff]
        %v1911 = vld [vmem:[%s222 + $0x3280] sm:$0xff]
        %v1912 = vld [vmem:[%s222 + $0x3288] sm:$0xff]
        %v1913 = vld [vmem:[%s222 + $0x3290] sm:$0xff]
        %v1914 = vld [vmem:[%s222 + $0x3298] sm:$0xff]
        %v1915 = vld [vmem:[%s222 + $0x32a0] sm:$0xff]
        %v1916 = vld [vmem:[%s222 + $0x32a8] sm:$0xff]
        %v1917 = vld [vmem:[%s222 + $0x32b0] sm:$0xff]
        %v1918 = vld [vmem:[%s222 + $0x32b8] sm:$0xff]
        %v1919 = vld [vmem:[%s222 + $0x32c0] sm:$0xff]
        %v1920 = vld [vmem:[%s222 + $0x32c8] sm:$0xff]
        %v1921 = vld [vmem:[%s222 + $0x32d0] sm:$0xff]
        %v1922 = vld [vmem:[%s222 + $0x32d8] sm:$0xff]
        %v1923 = vld [vmem:[%s222 + $0x32e0] sm:$0xff]
        %v1924 = vld [vmem:[%s222 + $0x32e8] sm:$0xff]
        %v1925 = vld [vmem:[%s222 + $0x32f0] sm:$0xff]
        %v1926 = vld [vmem:[%s222 + $0x32f8] sm:$0xff]
        %v1927 = vld [vmem:[%s222 + $0x3300] sm:$0xff]
        %v1928 = vld [vmem:[%s222 + $0x3308] sm:$0xff]
        %v1929 = vld [vmem:[%s222 + $0x3310] sm:$0xff]
        %v1930 = vld [vmem:[%s222 + $0x3318] sm:$0xff]
        %v1931 = vld [vmem:[%s222 + $0x3320] sm:$0xff]
        %v1932 = vld [vmem:[%s222 + $0x3328] sm:$0xff]
        %v1933 = vld [vmem:[%s222 + $0x3330] sm:$0xff]
        %v1934 = vld [vmem:[%s222 + $0x3338] sm:$0xff]
        %v1935 = vld [vmem:[%s222 + $0x3340] sm:$0xff]
        %v1936 = vld [vmem:[%s222 + $0x3348] sm:$0xff]
        %v1937 = vld [vmem:[%s222 + $0x3350] sm:$0xff]
        %v1938 = vld [vmem:[%s222 + $0x3358] sm:$0xff]
        %v1939 = vld [vmem:[%s222 + $0x3360] sm:$0xff]
        %v1940 = vld [vmem:[%s222 + $0x3368] sm:$0xff]
        %v1941 = vld [vmem:[%s222 + $0x3370] sm:$0xff]
        %v1942 = vld [vmem:[%s222 + $0x3378] sm:$0xff]
        %v1943 = vld [vmem:[%s222 + $0x3380] sm:$0xff]
        %v1944 = vld [vmem:[%s222 + $0x3388] sm:$0xff]
        %v1945 = vld [vmem:[%s222 + $0x3390] sm:$0xff]
        %v1946 = vld [vmem:[%s222 + $0x3398] sm:$0xff]
        %v1947 = vld [vmem:[%s222 + $0x33a0] sm:$0xff]
        %v1948 = vld [vmem:[%s222 + $0x33a8] sm:$0xff]
        %v1949 = vld [vmem:[%s222 + $0x33b0] sm:$0xff]
        %v1950 = vld [vmem:[%s222 + $0x33b8] sm:$0xff]
        %v1951 = vld [vmem:[%s222 + $0x33c0] sm:$0xff]
        %v1952 = vld [vmem:[%s222 + $0x33c8] sm:$0xff]
        %v1953 = vld [vmem:[%s222 + $0x33d0] sm:$0xff]
        %v1954 = vld [vmem:[%s222 + $0x33d8] sm:$0xff]
        %v1955 = vld [vmem:[%s222 + $0x33e0] sm:$0xff]
        %v1956 = vld [vmem:[%s222 + $0x33e8] sm:$0xff]
        %v1957 = vld [vmem:[%s222 + $0x33f0] sm:$0xff]
        %v1958 = vld [vmem:[%s222 + $0x33f8] sm:$0xff]
        %v1959 = vld [vmem:[%s222 + $0x3400] sm:$0xff]
        %v1960 = vld [vmem:[%s222 + $0x3408] sm:$0xff]
        %v1961 = vld [vmem:[%s222 + $0x3410] sm:$0xff]
        %v1962 = vld [vmem:[%s222 + $0x3418] sm:$0xff]
        %v1963 = vld [vmem:[%s222 + $0x3420] sm:$0xff]
        %v1964 = vld [vmem:[%s222 + $0x3428] sm:$0xff]
        %v1965 = vld [vmem:[%s222 + $0x3430] sm:$0xff]
        %v1966 = vld [vmem:[%s222 + $0x3438] sm:$0xff]
        %v1967 = vld [vmem:[%s222 + $0x3440] sm:$0xff]
        %v1968 = vld [vmem:[%s222 + $0x3448] sm:$0xff]
        %v1969 = vld [vmem:[%s222 + $0x3450] sm:$0xff]
        %v1970 = vld [vmem:[%s222 + $0x3458] sm:$0xff]
        %v1971 = vld [vmem:[%s222 + $0x3460] sm:$0xff]
        %v1972 = vld [vmem:[%s222 + $0x3468] sm:$0xff]
        %v1973 = vld [vmem:[%s222 + $0x3470] sm:$0xff]
        %v1974 = vld [vmem:[%s222 + $0x3478] sm:$0xff]
        %v1975 = vld [vmem:[%s222 + $0x3480] sm:$0xff]
        %v1976 = vld [vmem:[%s222 + $0x3488] sm:$0xff]
        %v1977 = vld [vmem:[%s222 + $0x3490] sm:$0xff]
        %v1978 = vld [vmem:[%s222 + $0x3498] sm:$0xff]
        %v1979 = vld [vmem:[%s222 + $0x34a0] sm:$0xff]
        %v1980 = vld [vmem:[%s222 + $0x34a8] sm:$0xff]
        %v1981 = vld [vmem:[%s222 + $0x34b0] sm:$0xff]
        %v1982 = vld [vmem:[%s222 + $0x34b8] sm:$0xff]
        %v1983 = vld [vmem:[%s222 + $0x34c0] sm:$0xff]
        %v1984 = vld [vmem:[%s222 + $0x34c8] sm:$0xff]
        %v1985 = vld [vmem:[%s222 + $0x34d0] sm:$0xff]
        %v1986 = vld [vmem:[%s222 + $0x34d8] sm:$0xff]
        %v1987 = vld [vmem:[%s222 + $0x34e0] sm:$0xff]
        %v1988 = vld [vmem:[%s222 + $0x34e8] sm:$0xff]
        %v1989 = vld [vmem:[%s222 + $0x34f0] sm:$0xff]
        %v1990 = vld [vmem:[%s222 + $0x34f8] sm:$0xff]
        %v1991 = vld [vmem:[%s222 + $0x3500] sm:$0xff]
        %v1992 = vld [vmem:[%s222 + $0x3508] sm:$0xff]
        %v1993 = vld [vmem:[%s222 + $0x3510] sm:$0xff]
        %v1994 = vld [vmem:[%s222 + $0x3518] sm:$0xff]
        %v1995 = vld [vmem:[%s222 + $0x3520] sm:$0xff]
        %v1996 = vld [vmem:[%s222 + $0x3528] sm:$0xff]
        %v1997 = vld [vmem:[%s222 + $0x3530] sm:$0xff]
        %v1998 = vld [vmem:[%s222 + $0x3538] sm:$0xff]
        %v1999 = vld [vmem:[%s222 + $0x3540] sm:$0xff]
        %v2000 = vld [vmem:[%s222 + $0x3548] sm:$0xff]
        %v2001 = vld [vmem:[%s222 + $0x3550] sm:$0xff]
        %v2002 = vld [vmem:[%s222 + $0x3558] sm:$0xff]
        %v2003 = vld [vmem:[%s222 + $0x3560] sm:$0xff]
        %v2004 = vld [vmem:[%s222 + $0x3568] sm:$0xff]
        %v2005 = vld [vmem:[%s222 + $0x3570] sm:$0xff]
        %v2006 = vld [vmem:[%s222 + $0x3578] sm:$0xff]
        %v2007 = vld [vmem:[%s222 + $0x3580] sm:$0xff]
        %v2008 = vld [vmem:[%s222 + $0x3588] sm:$0xff]
        %v2009 = vld [vmem:[%s222 + $0x3590] sm:$0xff]
        %v2010 = vld [vmem:[%s222 + $0x3598] sm:$0xff]
        %v2011 = vld [vmem:[%s222 + $0x35a0] sm:$0xff]
        %v2012 = vld [vmem:[%s222 + $0x35a8] sm:$0xff]
        %v2013 = vld [vmem:[%s222 + $0x35b0] sm:$0xff]
        %v2014 = vld [vmem:[%s222 + $0x35b8] sm:$0xff]
        %v2015 = vld [vmem:[%s222 + $0x35c0] sm:$0xff]
        %v2016 = vld [vmem:[%s222 + $0x35c8] sm:$0xff]
        %v2017 = vld [vmem:[%s222 + $0x35d0] sm:$0xff]
        %v2018 = vld [vmem:[%s222 + $0x35d8] sm:$0xff]
        %v2019 = vld [vmem:[%s222 + $0x35e0] sm:$0xff]
        %v2020 = vld [vmem:[%s222 + $0x35e8] sm:$0xff]
        %v2021 = vld [vmem:[%s222 + $0x35f0] sm:$0xff]
        %v2022 = vld [vmem:[%s222 + $0x35f8] sm:$0xff]
        %v2023 = vld [vmem:[%s222 + $0x3600] sm:$0xff]
        %v2024 = vld [vmem:[%s222 + $0x3608] sm:$0xff]
        %v2025 = vld [vmem:[%s222 + $0x3610] sm:$0xff]
        %v2026 = vld [vmem:[%s222 + $0x3618] sm:$0xff]
        %v2027 = vld [vmem:[%s222 + $0x3620] sm:$0xff]
        %v2028 = vld [vmem:[%s222 + $0x3628] sm:$0xff]
        %v2029 = vld [vmem:[%s222 + $0x3630] sm:$0xff]
        %v2030 = vld [vmem:[%s222 + $0x3638] sm:$0xff]
        %v2031 = vld [vmem:[%s222 + $0x3640] sm:$0xff]
        %v2032 = vld [vmem:[%s222 + $0x3648] sm:$0xff]
        %v2033 = vld [vmem:[%s222 + $0x3650] sm:$0xff]
        %v2034 = vld [vmem:[%s222 + $0x3658] sm:$0xff]
        %v2035 = vld [vmem:[%s222 + $0x3660] sm:$0xff]
        %v2036 = vld [vmem:[%s222 + $0x3668] sm:$0xff]
        %v2037 = vld [vmem:[%s222 + $0x3670] sm:$0xff]
        %v2038 = vld [vmem:[%s222 + $0x3678] sm:$0xff]
        %v2039 = vld [vmem:[%s222 + $0x3680] sm:$0xff]
        %v2040 = vld [vmem:[%s222 + $0x3688] sm:$0xff]
        %v2041 = vld [vmem:[%s222 + $0x3690] sm:$0xff]
        %v2042 = vld [vmem:[%s222 + $0x3698] sm:$0xff]
        %v2043 = vld [vmem:[%s222 + $0x36a0] sm:$0xff]
        %v2044 = vld [vmem:[%s222 + $0x36a8] sm:$0xff]
        %v2045 = vld [vmem:[%s222 + $0x36b0] sm:$0xff]
        %v2046 = vld [vmem:[%s222 + $0x36b8] sm:$0xff]
        %v2047 = vld [vmem:[%s222 + $0x36c0] sm:$0xff]
        %v2048 = vld [vmem:[%s222 + $0x36c8] sm:$0xff]
        %v2049 = vld [vmem:[%s222 + $0x36d0] sm:$0xff]
        %v2050 = vld [vmem:[%s222 + $0x36d8] sm:$0xff]
        %v2051 = vld [vmem:[%s222 + $0x36e0] sm:$0xff]
        %v2052 = vld [vmem:[%s222 + $0x36e8] sm:$0xff]
        %v2053 = vld [vmem:[%s222 + $0x36f0] sm:$0xff]
        %v2054 = vld [vmem:[%s222 + $0x36f8] sm:$0xff]
        %v2055 = vld [vmem:[%s222 + $0x3700] sm:$0xff]
        %v2056 = vld [vmem:[%s222 + $0x3708] sm:$0xff]
        %v2057 = vld [vmem:[%s222 + $0x3710] sm:$0xff]
        %v2058 = vld [vmem:[%s222 + $0x3718] sm:$0xff]
        %v2059 = vld [vmem:[%s222 + $0x3720] sm:$0xff]
        %v2060 = vld [vmem:[%s222 + $0x3728] sm:$0xff]
        %v2061 = vld [vmem:[%s222 + $0x3730] sm:$0xff]
        %v2062 = vld [vmem:[%s222 + $0x3738] sm:$0xff]
        %v2063 = vld [vmem:[%s222 + $0x3740] sm:$0xff]
        %v2064 = vld [vmem:[%s222 + $0x3748] sm:$0xff]
        %v2065 = vld [vmem:[%s222 + $0x3750] sm:$0xff]
        %v2066 = vld [vmem:[%s222 + $0x3758] sm:$0xff]
        %v2067 = vld [vmem:[%s222 + $0x3760] sm:$0xff]
        %v2068 = vld [vmem:[%s222 + $0x3768] sm:$0xff]
        %v2069 = vld [vmem:[%s222 + $0x3770] sm:$0xff]
        %v2070 = vld [vmem:[%s222 + $0x3778] sm:$0xff]
        %v2071 = vld [vmem:[%s222 + $0x3780] sm:$0xff]
        %v2072 = vld [vmem:[%s222 + $0x3788] sm:$0xff]
        %v2073 = vld [vmem:[%s222 + $0x3790] sm:$0xff]
        %v2074 = vld [vmem:[%s222 + $0x3798] sm:$0xff]
        %v2075 = vld [vmem:[%s222 + $0x37a0] sm:$0xff]
        %v2076 = vld [vmem:[%s222 + $0x37a8] sm:$0xff]
        %v2077 = vld [vmem:[%s222 + $0x37b0] sm:$0xff]
        %v2078 = vld [vmem:[%s222 + $0x37b8] sm:$0xff]
        %v2079 = vld [vmem:[%s222 + $0x37c0] sm:$0xff]
        %v2080 = vld [vmem:[%s222 + $0x37c8] sm:$0xff]
        %v2081 = vld [vmem:[%s222 + $0x37d0] sm:$0xff]
        %v2082 = vld [vmem:[%s222 + $0x37d8] sm:$0xff]
        %v2083 = vld [vmem:[%s222 + $0x37e0] sm:$0xff]
        %v2084 = vld [vmem:[%s222 + $0x37e8] sm:$0xff]
        %v2085 = vld [vmem:[%s222 + $0x37f0] sm:$0xff]
        %v2086 = vld [vmem:[%s222 + $0x37f8] sm:$0xff]
        %v2087 = vld [vmem:[%s222 + $0x3800] sm:$0xff]
        %v2088 = vld [vmem:[%s222 + $0x3808] sm:$0xff]
        %v2089 = vld [vmem:[%s222 + $0x3810] sm:$0xff]
        %v2090 = vld [vmem:[%s222 + $0x3818] sm:$0xff]
        %v2091 = vld [vmem:[%s222 + $0x3820] sm:$0xff]
        %v2092 = vld [vmem:[%s222 + $0x3828] sm:$0xff]
        %v2093 = vld [vmem:[%s222 + $0x3830] sm:$0xff]
        %v2094 = vld [vmem:[%s222 + $0x3838] sm:$0xff]
        %v2095 = vld [vmem:[%s222 + $0x3840] sm:$0xff]
        %v2096 = vld [vmem:[%s222 + $0x3848] sm:$0xff]
        %v2097 = vld [vmem:[%s222 + $0x3850] sm:$0xff]
        %v2098 = vld [vmem:[%s222 + $0x3858] sm:$0xff]
        %v2099 = vld [vmem:[%s222 + $0x3860] sm:$0xff]
        %v2100 = vld [vmem:[%s222 + $0x3868] sm:$0xff]
        %v2101 = vld [vmem:[%s222 + $0x3870] sm:$0xff]
        %v2102 = vld [vmem:[%s222 + $0x3878] sm:$0xff]
        %v2103 = vld [vmem:[%s222 + $0x3880] sm:$0xff]
        %v2104 = vld [vmem:[%s222 + $0x3888] sm:$0xff]
        %v2105 = vld [vmem:[%s222 + $0x3890] sm:$0xff]
        %v2106 = vld [vmem:[%s222 + $0x3898] sm:$0xff]
        %v2107 = vld [vmem:[%s222 + $0x38a0] sm:$0xff]
        %v2108 = vld [vmem:[%s222 + $0x38a8] sm:$0xff]
        %v2109 = vld [vmem:[%s222 + $0x38b0] sm:$0xff]
        %v2110 = vld [vmem:[%s222 + $0x38b8] sm:$0xff]
        %v2111 = vld [vmem:[%s222 + $0x38c0] sm:$0xff]
        %v2112 = vld [vmem:[%s222 + $0x38c8] sm:$0xff]
        %v2113 = vld [vmem:[%s222 + $0x38d0] sm:$0xff]
        %v2114 = vld [vmem:[%s222 + $0x38d8] sm:$0xff]
        %v2115 = vld [vmem:[%s222 + $0x38e0] sm:$0xff]
        %v2116 = vld [vmem:[%s222 + $0x38e8] sm:$0xff]
        %v2117 = vld [vmem:[%s222 + $0x38f0] sm:$0xff]
        %v2118 = vld [vmem:[%s222 + $0x38f8] sm:$0xff]
        %v2119 = vld [vmem:[%s222 + $0x3900] sm:$0xff]
        %v2120 = vld [vmem:[%s222 + $0x3908] sm:$0xff]
        %v2121 = vld [vmem:[%s222 + $0x3910] sm:$0xff]
        %v2122 = vld [vmem:[%s222 + $0x3918] sm:$0xff]
        %v2123 = vld [vmem:[%s222 + $0x3920] sm:$0xff]
        %v2124 = vld [vmem:[%s222 + $0x3928] sm:$0xff]
        %v2125 = vld [vmem:[%s222 + $0x3930] sm:$0xff]
        %v2126 = vld [vmem:[%s222 + $0x3938] sm:$0xff]
        %v2127 = vld [vmem:[%s222 + $0x3940] sm:$0xff]
        %v2128 = vld [vmem:[%s222 + $0x3948] sm:$0xff]
        %v2129 = vld [vmem:[%s222 + $0x3950] sm:$0xff]
        %v2130 = vld [vmem:[%s222 + $0x3958] sm:$0xff]
        %v2131 = vld [vmem:[%s222 + $0x3960] sm:$0xff]
        %v2132 = vld [vmem:[%s222 + $0x3968] sm:$0xff]
        %v2133 = vld [vmem:[%s222 + $0x3970] sm:$0xff]
        %v2134 = vld [vmem:[%s222 + $0x3978] sm:$0xff]
        %v2135 = vld [vmem:[%s222 + $0x3980] sm:$0xff]
        %v2136 = vld [vmem:[%s222 + $0x3988] sm:$0xff]
        %v2137 = vld [vmem:[%s222 + $0x3990] sm:$0xff]
        %v2138 = vld [vmem:[%s222 + $0x3998] sm:$0xff]
        %v2139 = vld [vmem:[%s222 + $0x39a0] sm:$0xff]
        %v2140 = vld [vmem:[%s222 + $0x39a8] sm:$0xff]
        %v2141 = vld [vmem:[%s222 + $0x39b0] sm:$0xff]
        %v2142 = vld [vmem:[%s222 + $0x39b8] sm:$0xff]
        %v2143 = vld [vmem:[%s222 + $0x39c0] sm:$0xff]
        %v2144 = vld [vmem:[%s222 + $0x39c8] sm:$0xff]
        %v2145 = vld [vmem:[%s222 + $0x39d0] sm:$0xff]
        %v2146 = vld [vmem:[%s222 + $0x39d8] sm:$0xff]
        %v2147 = vld [vmem:[%s222 + $0x39e0] sm:$0xff]
        %v2148 = vld [vmem:[%s222 + $0x39e8] sm:$0xff]
        %v2149 = vld [vmem:[%s222 + $0x39f0] sm:$0xff]
        %v2150 = vld [vmem:[%s222 + $0x39f8] sm:$0xff]
        %v2151 = vld [vmem:[%s222 + $0x3a00] sm:$0xff]
        %v2152 = vld [vmem:[%s222 + $0x3a08] sm:$0xff]
        %v2153 = vld [vmem:[%s222 + $0x3a10] sm:$0xff]
        %v2154 = vld [vmem:[%s222 + $0x3a18] sm:$0xff]
        %v2155 = vld [vmem:[%s222 + $0x3a20] sm:$0xff]
        %v2156 = vld [vmem:[%s222 + $0x3a28] sm:$0xff]
        %v2157 = vld [vmem:[%s222 + $0x3a30] sm:$0xff]
        %v2158 = vld [vmem:[%s222 + $0x3a38] sm:$0xff]
        %v2159 = vld [vmem:[%s222 + $0x3a40] sm:$0xff]
        %v2160 = vld [vmem:[%s222 + $0x3a48] sm:$0xff]
        %v2161 = vld [vmem:[%s222 + $0x3a50] sm:$0xff]
        %v2162 = vld [vmem:[%s222 + $0x3a58] sm:$0xff]
        %v2163 = vld [vmem:[%s222 + $0x3a60] sm:$0xff]
        %v2164 = vld [vmem:[%s222 + $0x3a68] sm:$0xff]
        %v2165 = vld [vmem:[%s222 + $0x3a70] sm:$0xff]
        %v2166 = vld [vmem:[%s222 + $0x3a78] sm:$0xff]
        %v2167 = vld [vmem:[%s222 + $0x3a80] sm:$0xff]
        %v2168 = vld [vmem:[%s222 + $0x3a88] sm:$0xff]
        %v2169 = vld [vmem:[%s222 + $0x3a90] sm:$0xff]
        %v2170 = vld [vmem:[%s222 + $0x3a98] sm:$0xff]
        %v2171 = vld [vmem:[%s222 + $0x3aa0] sm:$0xff]
        %v2172 = vld [vmem:[%s222 + $0x3aa8] sm:$0xff]
        %v2173 = vld [vmem:[%s222 + $0x3ab0] sm:$0xff]
        %v2174 = vld [vmem:[%s222 + $0x3ab8] sm:$0xff]
        %v2175 = vld [vmem:[%s222 + $0x3ac0] sm:$0xff]
        %v2176 = vld [vmem:[%s222 + $0x3ac8] sm:$0xff]
        %v2177 = vld [vmem:[%s222 + $0x3ad0] sm:$0xff]
        %v2178 = vld [vmem:[%s222 + $0x3ad8] sm:$0xff]
        %v2179 = vld [vmem:[%s222 + $0x3ae0] sm:$0xff]
        %v2180 = vld [vmem:[%s222 + $0x3ae8] sm:$0xff]
        %v2181 = vld [vmem:[%s222 + $0x3af0] sm:$0xff]
        %v2182 = vld [vmem:[%s222 + $0x3af8] sm:$0xff]
        %v2183 = vld [vmem:[%s222 + $0x3b00] sm:$0xff]
        %v2184 = vld [vmem:[%s222 + $0x3b08] sm:$0xff]
        %v2185 = vld [vmem:[%s222 + $0x3b10] sm:$0xff]
        %v2186 = vld [vmem:[%s222 + $0x3b18] sm:$0xff]
        %v2187 = vld [vmem:[%s222 + $0x3b20] sm:$0xff]
        %v2188 = vld [vmem:[%s222 + $0x3b28] sm:$0xff]
        %v2189 = vld [vmem:[%s222 + $0x3b30] sm:$0xff]
        %v2190 = vld [vmem:[%s222 + $0x3b38] sm:$0xff]
        %v2191 = vld [vmem:[%s222 + $0x3b40] sm:$0xff]
        %v2192 = vld [vmem:[%s222 + $0x3b48] sm:$0xff]
        %v2193 = vld [vmem:[%s222 + $0x3b50] sm:$0xff]
        %v2194 = vld [vmem:[%s222 + $0x3b58] sm:$0xff]
        %v2195 = vld [vmem:[%s222 + $0x3b60] sm:$0xff]
        %v2196 = vld [vmem:[%s222 + $0x3b68] sm:$0xff]
        %v2197 = vld [vmem:[%s222 + $0x3b70] sm:$0xff]
        %v2198 = vld [vmem:[%s222 + $0x3b78] sm:$0xff]
        %v2199 = vld [vmem:[%s222 + $0x3b80] sm:$0xff]
        %v2200 = vld [vmem:[%s222 + $0x3b88] sm:$0xff]
        %v2201 = vld [vmem:[%s222 + $0x3b90] sm:$0xff]
        %v2202 = vld [vmem:[%s222 + $0x3b98] sm:$0xff]
        %v2203 = vld [vmem:[%s222 + $0x3ba0] sm:$0xff]
        %v2204 = vld [vmem:[%s222 + $0x3ba8] sm:$0xff]
        %v2205 = vld [vmem:[%s222 + $0x3bb0] sm:$0xff]
        %v2206 = vld [vmem:[%s222 + $0x3bb8] sm:$0xff]
        %v2207 = vld [vmem:[%s222 + $0x3bc0] sm:$0xff]
        %v2208 = vld [vmem:[%s222 + $0x3bc8] sm:$0xff]
        %v2209 = vld [vmem:[%s222 + $0x3bd0] sm:$0xff]
        %v2210 = vld [vmem:[%s222 + $0x3bd8] sm:$0xff]
        %v2211 = vld [vmem:[%s222 + $0x3be0] sm:$0xff]
        %v2212 = vld [vmem:[%s222 + $0x3be8] sm:$0xff]
        %v2213 = vld [vmem:[%s222 + $0x3bf0] sm:$0xff]
        %v2214 = vld [vmem:[%s222 + $0x3bf8] sm:$0xff]
        %v2215 = vld [vmem:[%s222 + $0x3c00] sm:$0xff]
        %v2216 = vld [vmem:[%s222 + $0x3c08] sm:$0xff]
        %v2217 = vld [vmem:[%s222 + $0x3c10] sm:$0xff]
        %v2218 = vld [vmem:[%s222 + $0x3c18] sm:$0xff]
        %v2219 = vld [vmem:[%s222 + $0x3c20] sm:$0xff]
        %v2220 = vld [vmem:[%s222 + $0x3c28] sm:$0xff]
        %v2221 = vld [vmem:[%s222 + $0x3c30] sm:$0xff]
        %v2222 = vld [vmem:[%s222 + $0x3c38] sm:$0xff]
        %v2223 = vld [vmem:[%s222 + $0x3c40] sm:$0xff]
        %v2224 = vld [vmem:[%s222 + $0x3c48] sm:$0xff]
        %v2225 = vld [vmem:[%s222 + $0x3c50] sm:$0xff]
        %v2226 = vld [vmem:[%s222 + $0x3c58] sm:$0xff]
        %v2227 = vld [vmem:[%s222 + $0x3c60] sm:$0xff]
        %v2228 = vld [vmem:[%s222 + $0x3c68] sm:$0xff]
        %v2229 = vld [vmem:[%s222 + $0x3c70] sm:$0xff]
        %v2230 = vld [vmem:[%s222 + $0x3c78] sm:$0xff]
        %v2231 = vld [vmem:[%s222 + $0x3c80] sm:$0xff]
        %v2232 = vld [vmem:[%s222 + $0x3c88] sm:$0xff]
        %v2233 = vld [vmem:[%s222 + $0x3c90] sm:$0xff]
        %v2234 = vld [vmem:[%s222 + $0x3c98] sm:$0xff]
        %v2235 = vld [vmem:[%s222 + $0x3ca0] sm:$0xff]
        %v2236 = vld [vmem:[%s222 + $0x3ca8] sm:$0xff]
        %v2237 = vld [vmem:[%s222 + $0x3cb0] sm:$0xff]
        %v2238 = vld [vmem:[%s222 + $0x3cb8] sm:$0xff]
        %v2239 = vld [vmem:[%s222 + $0x3cc0] sm:$0xff]
        %v2240 = vld [vmem:[%s222 + $0x3cc8] sm:$0xff]
        %v2241 = vld [vmem:[%s222 + $0x3cd0] sm:$0xff]
        %v2242 = vld [vmem:[%s222 + $0x3cd8] sm:$0xff]
        %v2243 = vld [vmem:[%s222 + $0x3ce0] sm:$0xff]
        %v2244 = vld [vmem:[%s222 + $0x3ce8] sm:$0xff]
        %v2245 = vld [vmem:[%s222 + $0x3cf0] sm:$0xff]
        %v2246 = vld [vmem:[%s222 + $0x3cf8] sm:$0xff]
        %v2247 = vld [vmem:[%s222 + $0x3d00] sm:$0xff]
        %v2248 = vld [vmem:[%s222 + $0x3d08] sm:$0xff]
        %v2249 = vld [vmem:[%s222 + $0x3d10] sm:$0xff]
        %v2250 = vld [vmem:[%s222 + $0x3d18] sm:$0xff]
        %v2251 = vld [vmem:[%s222 + $0x3d20] sm:$0xff]
        %v2252 = vld [vmem:[%s222 + $0x3d28] sm:$0xff]
        %v2253 = vld [vmem:[%s222 + $0x3d30] sm:$0xff]
        %v2254 = vld [vmem:[%s222 + $0x3d38] sm:$0xff]
        %v2255 = vld [vmem:[%s222 + $0x3d40] sm:$0xff]
        %v2256 = vld [vmem:[%s222 + $0x3d48] sm:$0xff]
        %v2257 = vld [vmem:[%s222 + $0x3d50] sm:$0xff]
        %v2258 = vld [vmem:[%s222 + $0x3d58] sm:$0xff]
        %v2259 = vld [vmem:[%s222 + $0x3d60] sm:$0xff]
        %v2260 = vld [vmem:[%s222 + $0x3d68] sm:$0xff]
        %v2261 = vld [vmem:[%s222 + $0x3d70] sm:$0xff]
        %v2262 = vld [vmem:[%s222 + $0x3d78] sm:$0xff]
        %v2263 = vld [vmem:[%s222 + $0x3d80] sm:$0xff]
        %v2264 = vld [vmem:[%s222 + $0x3d88] sm:$0xff]
        %v2265 = vld [vmem:[%s222 + $0x3d90] sm:$0xff]
        %v2266 = vld [vmem:[%s222 + $0x3d98] sm:$0xff]
        %v2267 = vld [vmem:[%s222 + $0x3da0] sm:$0xff]
        %v2268 = vld [vmem:[%s222 + $0x3da8] sm:$0xff]
        %v2269 = vld [vmem:[%s222 + $0x3db0] sm:$0xff]
        %v2270 = vld [vmem:[%s222 + $0x3db8] sm:$0xff]
        %v2271 = vld [vmem:[%s222 + $0x3dc0] sm:$0xff]
        %v2272 = vld [vmem:[%s222 + $0x3dc8] sm:$0xff]
        %v2273 = vld [vmem:[%s222 + $0x3dd0] sm:$0xff]
        %v2274 = vld [vmem:[%s222 + $0x3dd8] sm:$0xff]
        %v2275 = vld [vmem:[%s222 + $0x3de0] sm:$0xff]
        %v2276 = vld [vmem:[%s222 + $0x3de8] sm:$0xff]
        %v2277 = vld [vmem:[%s222 + $0x3df0] sm:$0xff]
        %v2278 = vld [vmem:[%s222 + $0x3df8] sm:$0xff]
        %v2279 = vld [vmem:[%s222 + $0x3e00] sm:$0xff]
        %v2280 = vld [vmem:[%s222 + $0x3e08] sm:$0xff]
        %v2281 = vld [vmem:[%s222 + $0x3e10] sm:$0xff]
        %v2282 = vld [vmem:[%s222 + $0x3e18] sm:$0xff]
        %v2283 = vld [vmem:[%s222 + $0x3e20] sm:$0xff]
        %v2284 = vld [vmem:[%s222 + $0x3e28] sm:$0xff]
        %v2285 = vld [vmem:[%s222 + $0x3e30] sm:$0xff]
        %v2286 = vld [vmem:[%s222 + $0x3e38] sm:$0xff]
        %v2287 = vld [vmem:[%s222 + $0x3e40] sm:$0xff]
        %v2288 = vld [vmem:[%s222 + $0x3e48] sm:$0xff]
        %v2289 = vld [vmem:[%s222 + $0x3e50] sm:$0xff]
        %v2290 = vld [vmem:[%s222 + $0x3e58] sm:$0xff]
        %v2291 = vld [vmem:[%s222 + $0x3e60] sm:$0xff]
        %v2292 = vld [vmem:[%s222 + $0x3e68] sm:$0xff]
        %v2293 = vld [vmem:[%s222 + $0x3e70] sm:$0xff]
        %v2294 = vld [vmem:[%s222 + $0x3e78] sm:$0xff]
        %v2295 = vld [vmem:[%s222 + $0x3e80] sm:$0xff]
        %v2296 = vld [vmem:[%s222 + $0x3e88] sm:$0xff]
        %v2297 = vld [vmem:[%s222 + $0x3e90] sm:$0xff]
        %v2298 = vld [vmem:[%s222 + $0x3e98] sm:$0xff]
        %v2299 = vld [vmem:[%s222 + $0x3ea0] sm:$0xff]
        %v2300 = vld [vmem:[%s222 + $0x3ea8] sm:$0xff]
        %v2301 = vld [vmem:[%s222 + $0x3eb0] sm:$0xff]
        %v2302 = vld [vmem:[%s222 + $0x3eb8] sm:$0xff]
        %v2303 = vld [vmem:[%s222 + $0x3ec0] sm:$0xff]
        %v2304 = vld [vmem:[%s222 + $0x3ec8] sm:$0xff]
        %v2305 = vld [vmem:[%s222 + $0x3ed0] sm:$0xff]
        %v2306 = vld [vmem:[%s222 + $0x3ed8] sm:$0xff]
        %v2307 = vld [vmem:[%s222 + $0x3ee0] sm:$0xff]
        %v2308 = vld [vmem:[%s222 + $0x3ee8] sm:$0xff]
        %v2309 = vld [vmem:[%s222 + $0x3ef0] sm:$0xff]
        %v2310 = vld [vmem:[%s222 + $0x3ef8] sm:$0xff]
        %v2311 = vld [vmem:[%s222 + $0x3f00] sm:$0xff]
        %v2312 = vld [vmem:[%s222 + $0x3f08] sm:$0xff]
        %v2313 = vld [vmem:[%s222 + $0x3f10] sm:$0xff]
        %v2314 = vld [vmem:[%s222 + $0x3f18] sm:$0xff]
        %v2315 = vld [vmem:[%s222 + $0x3f20] sm:$0xff]
        %v2316 = vld [vmem:[%s222 + $0x3f28] sm:$0xff]
        %v2317 = vld [vmem:[%s222 + $0x3f30] sm:$0xff]
        %v2318 = vld [vmem:[%s222 + $0x3f38] sm:$0xff]
        %v2319 = vld [vmem:[%s222 + $0x3f40] sm:$0xff]
        %v2320 = vld [vmem:[%s222 + $0x3f48] sm:$0xff]
        %v2321 = vld [vmem:[%s222 + $0x3f50] sm:$0xff]
        %v2322 = vld [vmem:[%s222 + $0x3f58] sm:$0xff]
        %v2323 = vld [vmem:[%s222 + $0x3f60] sm:$0xff]
        %v2324 = vld [vmem:[%s222 + $0x3f68] sm:$0xff]
        %v2325 = vld [vmem:[%s222 + $0x3f70] sm:$0xff]
        %v2326 = vld [vmem:[%s222 + $0x3f78] sm:$0xff]
        %v2327 = vld [vmem:[%s222 + $0x3f80] sm:$0xff]
        %v2328 = vld [vmem:[%s222 + $0x3f88] sm:$0xff]
        %v2329 = vld [vmem:[%s222 + $0x3f90] sm:$0xff]
        %v2330 = vld [vmem:[%s222 + $0x3f98] sm:$0xff]
        %v2331 = vld [vmem:[%s222 + $0x3fa0] sm:$0xff]
        %v2332 = vld [vmem:[%s222 + $0x3fa8] sm:$0xff]
        %v2333 = vld [vmem:[%s222 + $0x3fb0] sm:$0xff]
        %v2334 = vld [vmem:[%s222 + $0x3fb8] sm:$0xff]
        %v2335 = vld [vmem:[%s222 + $0x3fc0] sm:$0xff]
        %v2336 = vld [vmem:[%s222 + $0x3fc8] sm:$0xff]
        %v2337 = vld [vmem:[%s222 + $0x3fd0] sm:$0xff]
        %v2338 = vld [vmem:[%s222 + $0x3fd8] sm:$0xff]
        %v2339 = vld [vmem:[%s222 + $0x3fe0] sm:$0xff]
        %v2340 = vld [vmem:[%s222 + $0x3fe8] sm:$0xff]
        %v2341 = vld [vmem:[%s222 + $0x3ff0] sm:$0xff]
        %v2342 = vld [vmem:[%s222 + $0x3ff8] sm:$0xff]
        %2375 = vst [vmem:[#allocation1] ss:$4 sm:$0xff] %v263
        %s2376 = scalar_lea.vmem [#allocation1], 32
        %2377 = vst [vmem:[%s2376] ss:$4 sm:$0xff] %v264
        %v2378 = vld.sshfl [vmem:[#allocation1] sm:$0xff pattern:$0x73625140]
        %v2379 = vld.sshfl [vmem:[#allocation1 + $0x8] sm:$0xff pattern:$0x73625140]
        %v2380 = vld.sshfl [vmem:[#allocation1 + $0x10] sm:$0xff pattern:$0x73625140]
        %v2381 = vld.sshfl [vmem:[#allocation1 + $0x18] sm:$0xff pattern:$0x73625140]
        %v2382 = vld.sshfl [vmem:[#allocation1 + $0x20] sm:$0xff pattern:$0x73625140]
        %v2383 = vld.sshfl [vmem:[#allocation1 + $0x28] sm:$0xff pattern:$0x73625140]
        %v2384 = vld.sshfl [vmem:[#allocation1 + $0x30] sm:$0xff pattern:$0x73625140]
        %v2385 = vld.sshfl [vmem:[#allocation1 + $0x38] sm:$0xff pattern:$0x73625140]
        %2386 = vst [vmem:[#allocation1] ss:$4 sm:$0xff] %v265
        %2387 = vst [vmem:[%s2376] ss:$4 sm:$0xff] %v266
        %v2388 = vld.sshfl [vmem:[#allocation1] sm:$0xff pattern:$0x73625140]
        %v2389 = vld.sshfl [vmem:[#allocation1 + $0x8] sm:$0xff pattern:$0x73625140]
        %v2390 = vld.sshfl [vmem:[#allocation1 + $0x10] sm:$0xff pattern:$0x73625140]
        %v2391 = vld.sshfl [vmem:[#allocation1 + $0x18] sm:$0xff pattern:$0x73625140]
        %v2392 = vld.sshfl [vmem:[#allocation1 + $0x20] sm:$0xff pattern:$0x73625140]
        %v2393 = vld.sshfl [vmem:[#allocation1 + $0x28] sm:$0xff pattern:$0x73625140]
        %v2394 = vld.sshfl [vmem:[#allocation1 + $0x30] sm:$0xff pattern:$0x73625140]
        %v2395 = vld.sshfl [vmem:[#allocation1 + $0x38] sm:$0xff pattern:$0x73625140]
        %2396 = vst [vmem:[#allocation1] ss:$4 sm:$0xff] %v267
        %2397 = vst [vmem:[%s2376] ss:$4 sm:$0xff] %v268
        %v2398 = vld.sshfl [vmem:[#allocation1] sm:$0xff pattern:$0x73625140]
        %v2399 = vld.sshfl [vmem:[#allocation1 + $0x8] sm:$0xff pattern:$0x73625140]
        %v2400 = vld.sshfl [vmem:[#allocation1 + $0x10] sm:$0xff pattern:$0x73625140]
        %v2401 = vld.sshfl [vmem:[#allocation1 + $0x18] sm:$0xff pattern:$0x73625140]
        %v2402 = vld.sshfl [vmem:[#allocation1 + $0x20] sm:$0xff pattern:$0x73625140]
        %v2403 = vld.sshfl [vmem:[#allocation1 + $0x28] sm:$0xff pattern:$0x73625140]
        %v2404 = vld.sshfl [vmem:[#allocation1 + $0x30] sm:$0xff pattern:$0x73625140]
        %v2405 = vld.sshfl [vmem:[#allocation1 + $0x38] sm:$0xff pattern:$0x73625140]
        %2406 = vst [vmem:[#allocation1] ss:$4 sm:$0xff] %v269
        %2407 = vst [vmem:[%s2376] ss:$4 sm:$0xff] %v270
        %v2408 = vld.sshfl [vmem:[#allocation1] sm:$0xff pattern:$0x73625140]
        %v2409 = vld.sshfl [vmem:[#allocation1 + $0x8] sm:$0xff pattern:$0x73625140]
        %v2410 = vld.sshfl [vmem:[#allocation1 + $0x10] sm:$0xff pattern:$0x73625140]
        %v2411 = vld.sshfl [vmem:[#allocation1 + $0x18] sm:$0xff pattern:$0x73625140]
        %v2412 = vld.sshfl [vmem:[#allocation1 + $0x20] sm:$0xff pattern:$0x73625140]
        %v2413 = vld.sshfl [vmem:[#allocation1 + $0x28] sm:$0xff pattern:$0x73625140]
        %v2414 = vld.sshfl [vmem:[#allocation1 + $0x30] sm:$0xff pattern:$0x73625140]
        %v2415 = vld.sshfl [vmem:[#allocation1 + $0x38] sm:$0xff pattern:$0x73625140]
        %2416 = vst [vmem:[#allocation1] ss:$4 sm:$0xff] %v271
        %2417 = vst [vmem:[%s2376] ss:$4 sm:$0xff] %v272
        %v2418 = vld.sshfl [vmem:[#allocation1] sm:$0xff pattern:$0x73625140]
        %v2419 = vld.sshfl [vmem:[#allocation1 + $0x8] sm:$0xff pattern:$0x73625140]
        %v2420 = vld.sshfl [vmem:[#allocation1 + $0x10] sm:$0xff pattern:$0x73625140]
        %v2421 = vld.sshfl [vmem:[#allocation1 + $0x18] sm:$0xff pattern:$0x73625140]
        %v2422 = vld.sshfl [vmem:[#allocation1 + $0x20] sm:$0xff pattern:$0x73625140]
        %v2423 = vld.sshfl [vmem:[#allocation1 + $0x28] sm:$0xff pattern:$0x73625140]
        %v2424 = vld.sshfl [vmem:[#allocation1 + $0x30] sm:$0xff pattern:$0x73625140]
        %v2425 = vld.sshfl [vmem:[#allocation1 + $0x38] sm:$0xff pattern:$0x73625140]
        %2426 = vst [vmem:[#allocation1] ss:$4 sm:$0xff] %v273
        %2427 = vst [vmem:[%s2376] ss:$4 sm:$0xff] %v274
        %v2428 = vld.sshfl [vmem:[#allocation1] sm:$0xff pattern:$0x73625140]
        %v2429 = vld.sshfl [vmem:[#allocation1 + $0x8] sm:$0xff pattern:$0x73625140]
        %v2430 = vld.sshfl [vmem:[#allocation1 + $0x10] sm:$0xff pattern:$0x73625140]
        %v2431 = vld.sshfl [vmem:[#allocation1 + $0x18] sm:$0xff pattern:$0x73625140]
        %v2432 = vld.sshfl [vmem:[#allocation1 + $0x20] sm:$0xff pattern:$0x73625140]
        %v2433 = vld.sshfl [vmem:[#allocation1 + $0x28] sm:$0xff pattern:$0x73625140]
        %v2434 = vld.sshfl [vmem:[#allocation1 + $0x30] sm:$0xff pattern:$0x73625140]
        %v2435 = vld.sshfl [vmem:[#allocation1 + $0x38] sm:$0xff pattern:$0x73625140]
        %2436 = vst [vmem:[#allocation1] ss:$4 sm:$0xff] %v275
        %2437 = vst [vmem:[%s2376] ss:$4 sm:$0xff] %v276
        %v2438 = vld.sshfl [vmem:[#allocation1] sm:$0xff pattern:$0x73625140]
        %v2439 = vld.sshfl [vmem:[#allocation1 + $0x8] sm:$0xff pattern:$0x73625140]
        %v2440 = vld.sshfl [vmem:[#allocation1 + $0x10] sm:$0xff pattern:$0x73625140]
        %v2441 = vld.sshfl [vmem:[#allocation1 + $0x18] sm:$0xff pattern:$0x73625140]
        %v2442 = vld.sshfl [vmem:[#allocation1 + $0x20] sm:$0xff pattern:$0x73625140]
        %v2443 = vld.sshfl [vmem:[#allocation1 + $0x28] sm:$0xff pattern:$0x73625140]
        %v2444 = vld.sshfl [vmem:[#allocation1 + $0x30] sm:$0xff pattern:$0x73625140]
        %v2445 = vld.sshfl [vmem:[#allocation1 + $0x38] sm:$0xff pattern:$0x73625140]
        %2446 = vst [vmem:[#allocation1] ss:$4 sm:$0xff] %v277
        %2447 = vst [vmem:[%s2376] ss:$4 sm:$0xff] %v278
        %v2448 = vld.sshfl [vmem:[#allocation1] sm:$0xff pattern:$0x73625140]
        %v2449 = vld.sshfl [vmem:[#allocation1 + $0x8] sm:$0xff pattern:$0x73625140]
        %v2450 = vld.sshfl [vmem:[#allocation1 + $0x10] sm:$0xff pattern:$0x73625140]
        %v2451 = vld.sshfl [vmem:[#allocation1 + $0x18] sm:$0xff pattern:$0x73625140]
        %v2452 = vld.sshfl [vmem:[#allocation1 + $0x20] sm:$0xff pattern:$0x73625140]
        %v2453 = vld.sshfl [vmem:[#allocation1 + $0x28] sm:$0xff pattern:$0x73625140]
        %v2454 = vld.sshfl [vmem:[#allocation1 + $0x30] sm:$0xff pattern:$0x73625140]
        %v2455 = vld.sshfl [vmem:[#allocation1 + $0x38] sm:$0xff pattern:$0x73625140]
        %2456 = vst [vmem:[#allocation1] ss:$4 sm:$0xff] %v279
        %2457 = vst [vmem:[%s2376] ss:$4 sm:$0xff] %v280
        %v2458 = vld.sshfl [vmem:[#allocation1] sm:$0xff pattern:$0x73625140]
        %v2459 = vld.sshfl [vmem:[#allocation1 + $0x8] sm:$0xff pattern:$0x73625140]
        %v2460 = vld.sshfl [vmem:[#allocation1 + $0x10] sm:$0xff pattern:$0x73625140]
        %v2461 = vld.sshfl [vmem:[#allocation1 + $0x18] sm:$0xff pattern:$0x73625140]
        %v2462 = vld.sshfl [vmem:[#allocation1 + $0x20] sm:$0xff pattern:$0x73625140]
        %v2463 = vld.sshfl [vmem:[#allocation1 + $0x28] sm:$0xff pattern:$0x73625140]
        %v2464 = vld.sshfl [vmem:[#allocation1 + $0x30] sm:$0xff pattern:$0x73625140]
        %v2465 = vld.sshfl [vmem:[#allocation1 + $0x38] sm:$0xff pattern:$0x73625140]
        %2466 = vst [vmem:[#allocation1] ss:$4 sm:$0xff] %v281
        %2467 = vst [vmem:[%s2376] ss:$4 sm:$0xff] %v282
        %v2468 = vld.sshfl [vmem:[#allocation1] sm:$0xff pattern:$0x73625140]
        %v2469 = vld.sshfl [vmem:[#allocation1 + $0x8] sm:$0xff pattern:$0x73625140]
        %v2470 = vld.sshfl [vmem:[#allocation1 + $0x10] sm:$0xff pattern:$0x73625140]
        %v2471 = vld.sshfl [vmem:[#allocation1 + $0x18] sm:$0xff pattern:$0x73625140]
        %v2472 = vld.sshfl [vmem:[#allocation1 + $0x20] sm:$0xff pattern:$0x73625140]
        %v2473 = vld.sshfl [vmem:[#allocation1 + $0x28] sm:$0xff pattern:$0x73625140]
        %v2474 = vld.sshfl [vmem:[#allocation1 + $0x30] sm:$0xff pattern:$0x73625140]
        %v2475 = vld.sshfl [vmem:[#allocation1 + $0x38] sm:$0xff pattern:$0x73625140]
        %2476 = vst [vmem:[#allocation1] ss:$4 sm:$0xff] %v283
        %2477 = vst [vmem:[%s2376] ss:$4 sm:$0xff] %v284
        %v2478 = vld.sshfl [vmem:[#allocation1] sm:$0xff pattern:$0x73625140]
        %v2479 = vld.sshfl [vmem:[#allocation1 + $0x8] sm:$0xff pattern:$0x73625140]
        %v2480 = vld.sshfl [vmem:[#allocation1 + $0x10] sm:$0xff pattern:$0x73625140]
        %v2481 = vld.sshfl [vmem:[#allocation1 + $0x18] sm:$0xff pattern:$0x73625140]
        %v2482 = vld.sshfl [vmem:[#allocation1 + $0x20] sm:$0xff pattern:$0x73625140]
        %v2483 = vld.sshfl [vmem:[#allocation1 + $0x28] sm:$0xff pattern:$0x73625140]
        %v2484 = vld.sshfl [vmem:[#allocation1 + $0x30] sm:$0xff pattern:$0x73625140]
        %v2485 = vld.sshfl [vmem:[#allocation1 + $0x38] sm:$0xff pattern:$0x73625140]
        %2486 = vst [vmem:[#allocation1] ss:$4 sm:$0xff] %v285
        %2487 = vst [vmem:[%s2376] ss:$4 sm:$0xff] %v286
        %v2488 = vld.sshfl [vmem:[#allocation1] sm:$0xff pattern:$0x73625140]
        %v2489 = vld.sshfl [vmem:[#allocation1 + $0x8] sm:$0xff pattern:$0x73625140]
        %v2490 = vld.sshfl [vmem:[#allocation1 + $0x10] sm:$0xff pattern:$0x73625140]
        %v2491 = vld.sshfl [vmem:[#allocation1 + $0x18] sm:$0xff pattern:$0x73625140]
        %v2492 = vld.sshfl [vmem:[#allocation1 + $0x20] sm:$0xff pattern:$0x73625140]
        %v2493 = vld.sshfl [vmem:[#allocation1 + $0x28] sm:$0xff pattern:$0x73625140]
        %v2494 = vld.sshfl [vmem:[#allocation1 + $0x30] sm:$0xff pattern:$0x73625140]
        %v2495 = vld.sshfl [vmem:[#allocation1 + $0x38] sm:$0xff pattern:$0x73625140]
        %2496 = vst [vmem:[#allocation1] ss:$4 sm:$0xff] %v287
        %2497 = vst [vmem:[%s2376] ss:$4 sm:$0xff] %v288
        %v2498 = vld.sshfl [vmem:[#allocation1] sm:$0xff pattern:$0x73625140]
        %v2499 = vld.sshfl [vmem:[#allocation1 + $0x8] sm:$0xff pattern:$0x73625140]
        %v2500 = vld.sshfl [vmem:[#allocation1 + $0x10] sm:$0xff pattern:$0x73625140]
        %v2501 = vld.sshfl [vmem:[#allocation1 + $0x18] sm:$0xff pattern:$0x73625140]
        %v2502 = vld.sshfl [vmem:[#allocation1 + $0x20] sm:$0xff pattern:$0x73625140]
        %v2503 = vld.sshfl [vmem:[#allocation1 + $0x28] sm:$0xff pattern:$0x73625140]
        %v2504 = vld.sshfl [vmem:[#allocation1 + $0x30] sm:$0xff pattern:$0x73625140]
        %v2505 = vld.sshfl [vmem:[#allocation1 + $0x38] sm:$0xff pattern:$0x73625140]
        %2506 = vst [vmem:[#allocation1] ss:$4 sm:$0xff] %v289
        %2507 = vst [vmem:[%s2376] ss:$4 sm:$0xff] %v290
        %v2508 = vld.sshfl [vmem:[#allocation1] sm:$0xff pattern:$0x73625140]
        %v2509 = vld.sshfl [vmem:[#allocation1 + $0x8] sm:$0xff pattern:$0x73625140]
        %v2510 = vld.sshfl [vmem:[#allocation1 + $0x10] sm:$0xff pattern:$0x73625140]
        %v2511 = vld.sshfl [vmem:[#allocation1 + $0x18] sm:$0xff pattern:$0x73625140]
        %v2512 = vld.sshfl [vmem:[#allocation1 + $0x20] sm:$0xff pattern:$0x73625140]
        %v2513 = vld.sshfl [vmem:[#allocation1 + $0x28] sm:$0xff pattern:$0x73625140]
        %v2514 = vld.sshfl [vmem:[#allocation1 + $0x30] sm:$0xff pattern:$0x73625140]
        %v2515 = vld.sshfl [vmem:[#allocation1 + $0x38] sm:$0xff pattern:$0x73625140]
        %2516 = vst [vmem:[#allocation1] ss:$4 sm:$0xff] %v291
        %2517 = vst [vmem:[%s2376] ss:$4 sm:$0xff] %v292
        %v2518 = vld.sshfl [vmem:[#allocation1] sm:$0xff pattern:$0x73625140]
        %v2519 = vld.sshfl [vmem:[#allocation1 + $0x8] sm:$0xff pattern:$0x73625140]
        %v2520 = vld.sshfl [vmem:[#allocation1 + $0x10] sm:$0xff pattern:$0x73625140]
        %v2521 = vld.sshfl [vmem:[#allocation1 + $0x18] sm:$0xff pattern:$0x73625140]
        %v2522 = vld.sshfl [vmem:[#allocation1 + $0x20] sm:$0xff pattern:$0x73625140]
        %v2523 = vld.sshfl [vmem:[#allocation1 + $0x28] sm:$0xff pattern:$0x73625140]
        %v2524 = vld.sshfl [vmem:[#allocation1 + $0x30] sm:$0xff pattern:$0x73625140]
        %v2525 = vld.sshfl [vmem:[#allocation1 + $0x38] sm:$0xff pattern:$0x73625140]
        %2526 = vst [vmem:[#allocation1] ss:$4 sm:$0xff] %v293
        %2527 = vst [vmem:[%s2376] ss:$4 sm:$0xff] %v294
        %v2528 = vld.sshfl [vmem:[#allocation1] sm:$0xff pattern:$0x73625140]
        %v2529 = vld.sshfl [vmem:[#allocation1 + $0x8] sm:$0xff pattern:$0x73625140]
        %v2530 = vld.sshfl [vmem:[#allocation1 + $0x10] sm:$0xff pattern:$0x73625140]
        %v2531 = vld.sshfl [vmem:[#allocation1 + $0x18] sm:$0xff pattern:$0x73625140]
        %v2532 = vld.sshfl [vmem:[#allocation1 + $0x20] sm:$0xff pattern:$0x73625140]
        %v2533 = vld.sshfl [vmem:[#allocation1 + $0x28] sm:$0xff pattern:$0x73625140]
        %v2534 = vld.sshfl [vmem:[#allocation1 + $0x30] sm:$0xff pattern:$0x73625140]
        %v2535 = vld.sshfl [vmem:[#allocation1 + $0x38] sm:$0xff pattern:$0x73625140]
        %2664 = vmatpush.msra.mxu0 %v310
        %2665 = vmatpush.msra.mxu0 %v309
        %2666 = vmatpush.msra.mxu0 %v308
        %2667 = vmatpush.msra.mxu0 %v307
        %2668 = vmatpush.msra.mxu0 %v306
        %2669 = vmatpush.msra.mxu0 %v305
        %2670 = vmatpush.msra.mxu0 %v304
        %2671 = vmatpush.msra.mxu0 %v303
        %2672 = vmatpush.msra.mxu0 %v302
        %2673 = vmatpush.msra.mxu0 %v301
        %2674 = vmatpush.msra.mxu0 %v300
        %2675 = vmatpush.msra.mxu0 %v299
        %2676 = vmatpush.msra.mxu0 %v298
        %2677 = vmatpush.msra.mxu0 %v297
        %2678 = vmatpush.msra.mxu0 %v296
        %2679 = vmatpush.msra.mxu0 %v295
        %2680 = vmatmul.f32.gmra.mxu0 %v2378
        %v2681 = vpop.f32.mrf.mxu0
        %v2682 = vadd.f32 0.0, %v2681
        %2683 = vdwg.mxu0
        %2684 = vmatpush.msra.mxu0 %v326
        %2685 = vmatpush.msra.mxu0 %v325
        %2686 = vmatpush.msra.mxu0 %v324
        %2687 = vmatpush.msra.mxu0 %v323
        %2688 = vmatpush.msra.mxu0 %v322
        %2689 = vmatpush.msra.mxu0 %v321
        %2690 = vmatpush.msra.mxu0 %v320
        %2691 = vmatpush.msra.mxu0 %v319
        %2692 = vmatpush.msra.mxu0 %v318
        %2693 = vmatpush.msra.mxu0 %v317
        %2694 = vmatpush.msra.mxu0 %v316
        %2695 = vmatpush.msra.mxu0 %v315
        %2696 = vmatpush.msra.mxu0 %v314
        %2697 = vmatpush.msra.mxu0 %v313
        %2698 = vmatpush.msra.mxu0 %v312
        %2699 = vmatpush.msra.mxu0 %v311
        %2700 = vmatmul.f32.gmra.mxu0 %v2379
        %v2701 = vpop.f32.mrf.mxu0
        %v2702 = vadd.f32 %v2682, %v2701
        %2703 = vdwg.mxu0
        %2704 = vmatpush.msra.mxu0 %v342
        %2705 = vmatpush.msra.mxu0 %v341
        %2706 = vmatpush.msra.mxu0 %v340
        %2707 = vmatpush.msra.mxu0 %v339
        %2708 = vmatpush.msra.mxu0 %v338
        %2709 = vmatpush.msra.mxu0 %v337
        %2710 = vmatpush.msra.mxu0 %v336
        %2711 = vmatpush.msra.mxu0 %v335
        %2712 = vmatpush.msra.mxu0 %v334
        %2713 = vmatpush.msra.mxu0 %v333
        %2714 = vmatpush.msra.mxu0 %v332
        %2715 = vmatpush.msra.mxu0 %v331
        %2716 = vmatpush.msra.mxu0 %v330
        %2717 = vmatpush.msra.mxu0 %v329
        %2718 = vmatpush.msra.mxu0 %v328
        %2719 = vmatpush.msra.mxu0 %v327
        %2720 = vmatmul.f32.gmra.mxu0 %v2380
        %v2721 = vpop.f32.mrf.mxu0
        %v2722 = vadd.f32 %v2702, %v2721
        %2723 = vdwg.mxu0
        %2724 = vmatpush.msra.mxu0 %v358
        %2725 = vmatpush.msra.mxu0 %v357
        %2726 = vmatpush.msra.mxu0 %v356
        %2727 = vmatpush.msra.mxu0 %v355
        %2728 = vmatpush.msra.mxu0 %v354
        %2729 = vmatpush.msra.mxu0 %v353
        %2730 = vmatpush.msra.mxu0 %v352
        %2731 = vmatpush.msra.mxu0 %v351
        %2732 = vmatpush.msra.mxu0 %v350
        %2733 = vmatpush.msra.mxu0 %v349
        %2734 = vmatpush.msra.mxu0 %v348
        %2735 = vmatpush.msra.mxu0 %v347
        %2736 = vmatpush.msra.mxu0 %v346
        %2737 = vmatpush.msra.mxu0 %v345
        %2738 = vmatpush.msra.mxu0 %v344
        %2739 = vmatpush.msra.mxu0 %v343
        %2740 = vmatmul.f32.gmra.mxu0 %v2381
        %v2741 = vpop.f32.mrf.mxu0
        %v2742 = vadd.f32 %v2722, %v2741
        %2743 = vdwg.mxu0
        %2744 = vmatpush.msra.mxu0 %v374
        %2745 = vmatpush.msra.mxu0 %v373
        %2746 = vmatpush.msra.mxu0 %v372
        %2747 = vmatpush.msra.mxu0 %v371
        %2748 = vmatpush.msra.mxu0 %v370
        %2749 = vmatpush.msra.mxu0 %v369
        %2750 = vmatpush.msra.mxu0 %v368
        %2751 = vmatpush.msra.mxu0 %v367
        %2752 = vmatpush.msra.mxu0 %v366
        %2753 = vmatpush.msra.mxu0 %v365
        %2754 = vmatpush.msra.mxu0 %v364
        %2755 = vmatpush.msra.mxu0 %v363
        %2756 = vmatpush.msra.mxu0 %v362
        %2757 = vmatpush.msra.mxu0 %v361
        %2758 = vmatpush.msra.mxu0 %v360
        %2759 = vmatpush.msra.mxu0 %v359
        %2760 = vmatmul.f32.gmra.mxu0 %v2382
        %v2761 = vpop.f32.mrf.mxu0
        %v2762 = vadd.f32 %v2742, %v2761
        %2763 = vdwg.mxu0
        %2764 = vmatpush.msra.mxu0 %v390
        %2765 = vmatpush.msra.mxu0 %v389
        %2766 = vmatpush.msra.mxu0 %v388
        %2767 = vmatpush.msra.mxu0 %v387
        %2768 = vmatpush.msra.mxu0 %v386
        %2769 = vmatpush.msra.mxu0 %v385
        %2770 = vmatpush.msra.mxu0 %v384
        %2771 = vmatpush.msra.mxu0 %v383
        %2772 = vmatpush.msra.mxu0 %v382
        %2773 = vmatpush.msra.mxu0 %v381
        %2774 = vmatpush.msra.mxu0 %v380
        %2775 = vmatpush.msra.mxu0 %v379
        %2776 = vmatpush.msra.mxu0 %v378
        %2777 = vmatpush.msra.mxu0 %v377
        %2778 = vmatpush.msra.mxu0 %v376
        %2779 = vmatpush.msra.mxu0 %v375
        %2780 = vmatmul.f32.gmra.mxu0 %v2383
        %v2781 = vpop.f32.mrf.mxu0
        %v2782 = vadd.f32 %v2762, %v2781
        %2783 = vdwg.mxu0
        %2784 = vmatpush.msra.mxu0 %v406
        %2785 = vmatpush.msra.mxu0 %v405
        %2786 = vmatpush.msra.mxu0 %v404
        %2787 = vmatpush.msra.mxu0 %v403
        %2788 = vmatpush.msra.mxu0 %v402
        %2789 = vmatpush.msra.mxu0 %v401
        %2790 = vmatpush.msra.mxu0 %v400
        %2791 = vmatpush.msra.mxu0 %v399
        %2792 = vmatpush.msra.mxu0 %v398
        %2793 = vmatpush.msra.mxu0 %v397
        %2794 = vmatpush.msra.mxu0 %v396
        %2795 = vmatpush.msra.mxu0 %v395
        %2796 = vmatpush.msra.mxu0 %v394
        %2797 = vmatpush.msra.mxu0 %v393
        %2798 = vmatpush.msra.mxu0 %v392
        %2799 = vmatpush.msra.mxu0 %v391
        %2800 = vmatmul.f32.gmra.mxu0 %v2384
        %v2801 = vpop.f32.mrf.mxu0
        %v2802 = vadd.f32 %v2782, %v2801
        %2803 = vdwg.mxu0
        %2804 = vmatpush.msra.mxu0 %v422
        %2805 = vmatpush.msra.mxu0 %v421
        %2806 = vmatpush.msra.mxu0 %v420
        %2807 = vmatpush.msra.mxu0 %v419
        %2808 = vmatpush.msra.mxu0 %v418
        %2809 = vmatpush.msra.mxu0 %v417
        %2810 = vmatpush.msra.mxu0 %v416
        %2811 = vmatpush.msra.mxu0 %v415
        %2812 = vmatpush.msra.mxu0 %v414
        %2813 = vmatpush.msra.mxu0 %v413
        %2814 = vmatpush.msra.mxu0 %v412
        %2815 = vmatpush.msra.mxu0 %v411
        %2816 = vmatpush.msra.mxu0 %v410
        %2817 = vmatpush.msra.mxu0 %v409
        %2818 = vmatpush.msra.mxu0 %v408
        %2819 = vmatpush.msra.mxu0 %v407
        %2820 = vmatmul.f32.gmra.mxu0 %v2385
        %v2821 = vpop.f32.mrf.mxu0
        %v2822 = vadd.f32 %v2802, %v2821
        %2823 = vdwg.mxu0
        %2824 = vmatpush.msra.mxu0 %v438
        %2825 = vmatpush.msra.mxu0 %v437
        %2826 = vmatpush.msra.mxu0 %v436
        %2827 = vmatpush.msra.mxu0 %v435
        %2828 = vmatpush.msra.mxu0 %v434
        %2829 = vmatpush.msra.mxu0 %v433
        %2830 = vmatpush.msra.mxu0 %v432
        %2831 = vmatpush.msra.mxu0 %v431
        %2832 = vmatpush.msra.mxu0 %v430
        %2833 = vmatpush.msra.mxu0 %v429
        %2834 = vmatpush.msra.mxu0 %v428
        %2835 = vmatpush.msra.mxu0 %v427
        %2836 = vmatpush.msra.mxu0 %v426
        %2837 = vmatpush.msra.mxu0 %v425
        %2838 = vmatpush.msra.mxu0 %v424
        %2839 = vmatpush.msra.mxu0 %v423
        %2840 = vmatmul.f32.gmra.mxu0 %v2388
        %v2841 = vpop.f32.mrf.mxu0
        %v2842 = vadd.f32 %v2822, %v2841
        %2843 = vdwg.mxu0
        %2844 = vmatpush.msra.mxu0 %v454
        %2845 = vmatpush.msra.mxu0 %v453
        %2846 = vmatpush.msra.mxu0 %v452
        %2847 = vmatpush.msra.mxu0 %v451
        %2848 = vmatpush.msra.mxu0 %v450
        %2849 = vmatpush.msra.mxu0 %v449
        %2850 = vmatpush.msra.mxu0 %v448
        %2851 = vmatpush.msra.mxu0 %v447
        %2852 = vmatpush.msra.mxu0 %v446
        %2853 = vmatpush.msra.mxu0 %v445
        %2854 = vmatpush.msra.mxu0 %v444
        %2855 = vmatpush.msra.mxu0 %v443
        %2856 = vmatpush.msra.mxu0 %v442
        %2857 = vmatpush.msra.mxu0 %v441
        %2858 = vmatpush.msra.mxu0 %v440
        %2859 = vmatpush.msra.mxu0 %v439
        %2860 = vmatmul.f32.gmra.mxu0 %v2389
        %v2861 = vpop.f32.mrf.mxu0
        %v2862 = vadd.f32 %v2842, %v2861
        %2863 = vdwg.mxu0
        %2864 = vmatpush.msra.mxu0 %v470
        %2865 = vmatpush.msra.mxu0 %v469
        %2866 = vmatpush.msra.mxu0 %v468
        %2867 = vmatpush.msra.mxu0 %v467
        %2868 = vmatpush.msra.mxu0 %v466
        %2869 = vmatpush.msra.mxu0 %v465
        %2870 = vmatpush.msra.mxu0 %v464
        %2871 = vmatpush.msra.mxu0 %v463
        %2872 = vmatpush.msra.mxu0 %v462
        %2873 = vmatpush.msra.mxu0 %v461
        %2874 = vmatpush.msra.mxu0 %v460
        %2875 = vmatpush.msra.mxu0 %v459
        %2876 = vmatpush.msra.mxu0 %v458
        %2877 = vmatpush.msra.mxu0 %v457
        %2878 = vmatpush.msra.mxu0 %v456
        %2879 = vmatpush.msra.mxu0 %v455
        %2880 = vmatmul.f32.gmra.mxu0 %v2390
        %v2881 = vpop.f32.mrf.mxu0
        %v2882 = vadd.f32 %v2862, %v2881
        %2883 = vdwg.mxu0
        %2884 = vmatpush.msra.mxu0 %v486
        %2885 = vmatpush.msra.mxu0 %v485
        %2886 = vmatpush.msra.mxu0 %v484
        %2887 = vmatpush.msra.mxu0 %v483
        %2888 = vmatpush.msra.mxu0 %v482
        %2889 = vmatpush.msra.mxu0 %v481
        %2890 = vmatpush.msra.mxu0 %v480
        %2891 = vmatpush.msra.mxu0 %v479
        %2892 = vmatpush.msra.mxu0 %v478
        %2893 = vmatpush.msra.mxu0 %v477
        %2894 = vmatpush.msra.mxu0 %v476
        %2895 = vmatpush.msra.mxu0 %v475
        %2896 = vmatpush.msra.mxu0 %v474
        %2897 = vmatpush.msra.mxu0 %v473
        %2898 = vmatpush.msra.mxu0 %v472
        %2899 = vmatpush.msra.mxu0 %v471
        %2900 = vmatmul.f32.gmra.mxu0 %v2391
        %v2901 = vpop.f32.mrf.mxu0
        %v2902 = vadd.f32 %v2882, %v2901
        %2903 = vdwg.mxu0
        %2904 = vmatpush.msra.mxu0 %v502
        %2905 = vmatpush.msra.mxu0 %v501
        %2906 = vmatpush.msra.mxu0 %v500
        %2907 = vmatpush.msra.mxu0 %v499
        %2908 = vmatpush.msra.mxu0 %v498
        %2909 = vmatpush.msra.mxu0 %v497
        %2910 = vmatpush.msra.mxu0 %v496
        %2911 = vmatpush.msra.mxu0 %v495
        %2912 = vmatpush.msra.mxu0 %v494
        %2913 = vmatpush.msra.mxu0 %v493
        %2914 = vmatpush.msra.mxu0 %v492
        %2915 = vmatpush.msra.mxu0 %v491
        %2916 = vmatpush.msra.mxu0 %v490
        %2917 = vmatpush.msra.mxu0 %v489
        %2918 = vmatpush.msra.mxu0 %v488
        %2919 = vmatpush.msra.mxu0 %v487
        %2920 = vmatmul.f32.gmra.mxu0 %v2392
        %v2921 = vpop.f32.mrf.mxu0
        %v2922 = vadd.f32 %v2902, %v2921
        %2923 = vdwg.mxu0
        %2924 = vmatpush.msra.mxu0 %v518
        %2925 = vmatpush.msra.mxu0 %v517
        %2926 = vmatpush.msra.mxu0 %v516
        %2927 = vmatpush.msra.mxu0 %v515
        %2928 = vmatpush.msra.mxu0 %v514
        %2929 = vmatpush.msra.mxu0 %v513
        %2930 = vmatpush.msra.mxu0 %v512
        %2931 = vmatpush.msra.mxu0 %v511
        %2932 = vmatpush.msra.mxu0 %v510
        %2933 = vmatpush.msra.mxu0 %v509
        %2934 = vmatpush.msra.mxu0 %v508
        %2935 = vmatpush.msra.mxu0 %v507
        %2936 = vmatpush.msra.mxu0 %v506
        %2937 = vmatpush.msra.mxu0 %v505
        %2938 = vmatpush.msra.mxu0 %v504
        %2939 = vmatpush.msra.mxu0 %v503
        %2940 = vmatmul.f32.gmra.mxu0 %v2393
        %v2941 = vpop.f32.mrf.mxu0
        %v2942 = vadd.f32 %v2922, %v2941
        %2943 = vdwg.mxu0
        %2944 = vmatpush.msra.mxu0 %v534
        %2945 = vmatpush.msra.mxu0 %v533
        %2946 = vmatpush.msra.mxu0 %v532
        %2947 = vmatpush.msra.mxu0 %v531
        %2948 = vmatpush.msra.mxu0 %v530
        %2949 = vmatpush.msra.mxu0 %v529
        %2950 = vmatpush.msra.mxu0 %v528
        %2951 = vmatpush.msra.mxu0 %v527
        %2952 = vmatpush.msra.mxu0 %v526
        %2953 = vmatpush.msra.mxu0 %v525
        %2954 = vmatpush.msra.mxu0 %v524
        %2955 = vmatpush.msra.mxu0 %v523
        %2956 = vmatpush.msra.mxu0 %v522
        %2957 = vmatpush.msra.mxu0 %v521
        %2958 = vmatpush.msra.mxu0 %v520
        %2959 = vmatpush.msra.mxu0 %v519
        %2960 = vmatmul.f32.gmra.mxu0 %v2394
        %v2961 = vpop.f32.mrf.mxu0
        %v2962 = vadd.f32 %v2942, %v2961
        %2963 = vdwg.mxu0
        %2964 = vmatpush.msra.mxu0 %v550
        %2965 = vmatpush.msra.mxu0 %v549
        %2966 = vmatpush.msra.mxu0 %v548
        %2967 = vmatpush.msra.mxu0 %v547
        %2968 = vmatpush.msra.mxu0 %v546
        %2969 = vmatpush.msra.mxu0 %v545
        %2970 = vmatpush.msra.mxu0 %v544
        %2971 = vmatpush.msra.mxu0 %v543
        %2972 = vmatpush.msra.mxu0 %v542
        %2973 = vmatpush.msra.mxu0 %v541
        %2974 = vmatpush.msra.mxu0 %v540
        %2975 = vmatpush.msra.mxu0 %v539
        %2976 = vmatpush.msra.mxu0 %v538
        %2977 = vmatpush.msra.mxu0 %v537
        %2978 = vmatpush.msra.mxu0 %v536
        %2979 = vmatpush.msra.mxu0 %v535
        %2980 = vmatmul.f32.gmra.mxu0 %v2395
        %v2981 = vpop.f32.mrf.mxu0
        %v2982 = vadd.f32 %v2962, %v2981
        %2983 = vdwg.mxu0
        %2984 = vmatpush.msra.mxu0 %v566
        %2985 = vmatpush.msra.mxu0 %v565
        %2986 = vmatpush.msra.mxu0 %v564
        %2987 = vmatpush.msra.mxu0 %v563
        %2988 = vmatpush.msra.mxu0 %v562
        %2989 = vmatpush.msra.mxu0 %v561
        %2990 = vmatpush.msra.mxu0 %v560
        %2991 = vmatpush.msra.mxu0 %v559
        %2992 = vmatpush.msra.mxu0 %v558
        %2993 = vmatpush.msra.mxu0 %v557
        %2994 = vmatpush.msra.mxu0 %v556
        %2995 = vmatpush.msra.mxu0 %v555
        %2996 = vmatpush.msra.mxu0 %v554
        %2997 = vmatpush.msra.mxu0 %v553
        %2998 = vmatpush.msra.mxu0 %v552
        %2999 = vmatpush.msra.mxu0 %v551
        %3000 = vmatmul.f32.gmra.mxu0 %v2398
        %v3001 = vpop.f32.mrf.mxu0
        %v3002 = vadd.f32 %v2982, %v3001
        %3003 = vdwg.mxu0
        %3004 = vmatpush.msra.mxu0 %v582
        %3005 = vmatpush.msra.mxu0 %v581
        %3006 = vmatpush.msra.mxu0 %v580
        %3007 = vmatpush.msra.mxu0 %v579
        %3008 = vmatpush.msra.mxu0 %v578
        %3009 = vmatpush.msra.mxu0 %v577
        %3010 = vmatpush.msra.mxu0 %v576
        %3011 = vmatpush.msra.mxu0 %v575
        %3012 = vmatpush.msra.mxu0 %v574
        %3013 = vmatpush.msra.mxu0 %v573
        %3014 = vmatpush.msra.mxu0 %v572
        %3015 = vmatpush.msra.mxu0 %v571
        %3016 = vmatpush.msra.mxu0 %v570
        %3017 = vmatpush.msra.mxu0 %v569
        %3018 = vmatpush.msra.mxu0 %v568
        %3019 = vmatpush.msra.mxu0 %v567
        %3020 = vmatmul.f32.gmra.mxu0 %v2399
        %v3021 = vpop.f32.mrf.mxu0
        %v3022 = vadd.f32 %v3002, %v3021
        %3023 = vdwg.mxu0
        %3024 = vmatpush.msra.mxu0 %v598
        %3025 = vmatpush.msra.mxu0 %v597
        %3026 = vmatpush.msra.mxu0 %v596
        %3027 = vmatpush.msra.mxu0 %v595
        %3028 = vmatpush.msra.mxu0 %v594
        %3029 = vmatpush.msra.mxu0 %v593
        %3030 = vmatpush.msra.mxu0 %v592
        %3031 = vmatpush.msra.mxu0 %v591
        %3032 = vmatpush.msra.mxu0 %v590
        %3033 = vmatpush.msra.mxu0 %v589
        %3034 = vmatpush.msra.mxu0 %v588
        %3035 = vmatpush.msra.mxu0 %v587
        %3036 = vmatpush.msra.mxu0 %v586
        %3037 = vmatpush.msra.mxu0 %v585
        %3038 = vmatpush.msra.mxu0 %v584
        %3039 = vmatpush.msra.mxu0 %v583
        %3040 = vmatmul.f32.gmra.mxu0 %v2400
        %v3041 = vpop.f32.mrf.mxu0
        %v3042 = vadd.f32 %v3022, %v3041
        %3043 = vdwg.mxu0
        %3044 = vmatpush.msra.mxu0 %v614
        %3045 = vmatpush.msra.mxu0 %v613
        %3046 = vmatpush.msra.mxu0 %v612
        %3047 = vmatpush.msra.mxu0 %v611
        %3048 = vmatpush.msra.mxu0 %v610
        %3049 = vmatpush.msra.mxu0 %v609
        %3050 = vmatpush.msra.mxu0 %v608
        %3051 = vmatpush.msra.mxu0 %v607
        %3052 = vmatpush.msra.mxu0 %v606
        %3053 = vmatpush.msra.mxu0 %v605
        %3054 = vmatpush.msra.mxu0 %v604
        %3055 = vmatpush.msra.mxu0 %v603
        %3056 = vmatpush.msra.mxu0 %v602
        %3057 = vmatpush.msra.mxu0 %v601
        %3058 = vmatpush.msra.mxu0 %v600
        %3059 = vmatpush.msra.mxu0 %v599
        %3060 = vmatmul.f32.gmra.mxu0 %v2401
        %v3061 = vpop.f32.mrf.mxu0
        %v3062 = vadd.f32 %v3042, %v3061
        %3063 = vdwg.mxu0
        %3064 = vmatpush.msra.mxu0 %v630
        %3065 = vmatpush.msra.mxu0 %v629
        %3066 = vmatpush.msra.mxu0 %v628
        %3067 = vmatpush.msra.mxu0 %v627
        %3068 = vmatpush.msra.mxu0 %v626
        %3069 = vmatpush.msra.mxu0 %v625
        %3070 = vmatpush.msra.mxu0 %v624
        %3071 = vmatpush.msra.mxu0 %v623
        %3072 = vmatpush.msra.mxu0 %v622
        %3073 = vmatpush.msra.mxu0 %v621
        %3074 = vmatpush.msra.mxu0 %v620
        %3075 = vmatpush.msra.mxu0 %v619
        %3076 = vmatpush.msra.mxu0 %v618
        %3077 = vmatpush.msra.mxu0 %v617
        %3078 = vmatpush.msra.mxu0 %v616
        %3079 = vmatpush.msra.mxu0 %v615
        %3080 = vmatmul.f32.gmra.mxu0 %v2402
        %v3081 = vpop.f32.mrf.mxu0
        %v3082 = vadd.f32 %v3062, %v3081
        %3083 = vdwg.mxu0
        %3084 = vmatpush.msra.mxu0 %v646
        %3085 = vmatpush.msra.mxu0 %v645
        %3086 = vmatpush.msra.mxu0 %v644
        %3087 = vmatpush.msra.mxu0 %v643
        %3088 = vmatpush.msra.mxu0 %v642
        %3089 = vmatpush.msra.mxu0 %v641
        %3090 = vmatpush.msra.mxu0 %v640
        %3091 = vmatpush.msra.mxu0 %v639
        %3092 = vmatpush.msra.mxu0 %v638
        %3093 = vmatpush.msra.mxu0 %v637
        %3094 = vmatpush.msra.mxu0 %v636
        %3095 = vmatpush.msra.mxu0 %v635
        %3096 = vmatpush.msra.mxu0 %v634
        %3097 = vmatpush.msra.mxu0 %v633
        %3098 = vmatpush.msra.mxu0 %v632
        %3099 = vmatpush.msra.mxu0 %v631
        %3100 = vmatmul.f32.gmra.mxu0 %v2403
        %v3101 = vpop.f32.mrf.mxu0
        %v3102 = vadd.f32 %v3082, %v3101
        %3103 = vdwg.mxu0
        %3104 = vmatpush.msra.mxu0 %v662
        %3105 = vmatpush.msra.mxu0 %v661
        %3106 = vmatpush.msra.mxu0 %v660
        %3107 = vmatpush.msra.mxu0 %v659
        %3108 = vmatpush.msra.mxu0 %v658
        %3109 = vmatpush.msra.mxu0 %v657
        %3110 = vmatpush.msra.mxu0 %v656
        %3111 = vmatpush.msra.mxu0 %v655
        %3112 = vmatpush.msra.mxu0 %v654
        %3113 = vmatpush.msra.mxu0 %v653
        %3114 = vmatpush.msra.mxu0 %v652
        %3115 = vmatpush.msra.mxu0 %v651
        %3116 = vmatpush.msra.mxu0 %v650
        %3117 = vmatpush.msra.mxu0 %v649
        %3118 = vmatpush.msra.mxu0 %v648
        %3119 = vmatpush.msra.mxu0 %v647
        %3120 = vmatmul.f32.gmra.mxu0 %v2404
        %v3121 = vpop.f32.mrf.mxu0
        %v3122 = vadd.f32 %v3102, %v3121
        %3123 = vdwg.mxu0
        %3124 = vmatpush.msra.mxu0 %v678
        %3125 = vmatpush.msra.mxu0 %v677
        %3126 = vmatpush.msra.mxu0 %v676
        %3127 = vmatpush.msra.mxu0 %v675
        %3128 = vmatpush.msra.mxu0 %v674
        %3129 = vmatpush.msra.mxu0 %v673
        %3130 = vmatpush.msra.mxu0 %v672
        %3131 = vmatpush.msra.mxu0 %v671
        %3132 = vmatpush.msra.mxu0 %v670
        %3133 = vmatpush.msra.mxu0 %v669
        %3134 = vmatpush.msra.mxu0 %v668
        %3135 = vmatpush.msra.mxu0 %v667
        %3136 = vmatpush.msra.mxu0 %v666
        %3137 = vmatpush.msra.mxu0 %v665
        %3138 = vmatpush.msra.mxu0 %v664
        %3139 = vmatpush.msra.mxu0 %v663
        %3140 = vmatmul.f32.gmra.mxu0 %v2405
        %v3141 = vpop.f32.mrf.mxu0
        %v3142 = vadd.f32 %v3122, %v3141
        %3143 = vdwg.mxu0
        %3144 = vmatpush.msra.mxu0 %v694
        %3145 = vmatpush.msra.mxu0 %v693
        %3146 = vmatpush.msra.mxu0 %v692
        %3147 = vmatpush.msra.mxu0 %v691
        %3148 = vmatpush.msra.mxu0 %v690
        %3149 = vmatpush.msra.mxu0 %v689
        %3150 = vmatpush.msra.mxu0 %v688
        %3151 = vmatpush.msra.mxu0 %v687
        %3152 = vmatpush.msra.mxu0 %v686
        %3153 = vmatpush.msra.mxu0 %v685
        %3154 = vmatpush.msra.mxu0 %v684
        %3155 = vmatpush.msra.mxu0 %v683
        %3156 = vmatpush.msra.mxu0 %v682
        %3157 = vmatpush.msra.mxu0 %v681
        %3158 = vmatpush.msra.mxu0 %v680
        %3159 = vmatpush.msra.mxu0 %v679
        %3160 = vmatmul.f32.gmra.mxu0 %v2408
        %v3161 = vpop.f32.mrf.mxu0
        %v3162 = vadd.f32 %v3142, %v3161
        %3163 = vdwg.mxu0
        %3164 = vmatpush.msra.mxu0 %v710
        %3165 = vmatpush.msra.mxu0 %v709
        %3166 = vmatpush.msra.mxu0 %v708
        %3167 = vmatpush.msra.mxu0 %v707
        %3168 = vmatpush.msra.mxu0 %v706
        %3169 = vmatpush.msra.mxu0 %v705
        %3170 = vmatpush.msra.mxu0 %v704
        %3171 = vmatpush.msra.mxu0 %v703
        %3172 = vmatpush.msra.mxu0 %v702
        %3173 = vmatpush.msra.mxu0 %v701
        %3174 = vmatpush.msra.mxu0 %v700
        %3175 = vmatpush.msra.mxu0 %v699
        %3176 = vmatpush.msra.mxu0 %v698
        %3177 = vmatpush.msra.mxu0 %v697
        %3178 = vmatpush.msra.mxu0 %v696
        %3179 = vmatpush.msra.mxu0 %v695
        %3180 = vmatmul.f32.gmra.mxu0 %v2409
        %v3181 = vpop.f32.mrf.mxu0
        %v3182 = vadd.f32 %v3162, %v3181
        %3183 = vdwg.mxu0
        %3184 = vmatpush.msra.mxu0 %v726
        %3185 = vmatpush.msra.mxu0 %v725
        %3186 = vmatpush.msra.mxu0 %v724
        %3187 = vmatpush.msra.mxu0 %v723
        %3188 = vmatpush.msra.mxu0 %v722
        %3189 = vmatpush.msra.mxu0 %v721
        %3190 = vmatpush.msra.mxu0 %v720
        %3191 = vmatpush.msra.mxu0 %v719
        %3192 = vmatpush.msra.mxu0 %v718
        %3193 = vmatpush.msra.mxu0 %v717
        %3194 = vmatpush.msra.mxu0 %v716
        %3195 = vmatpush.msra.mxu0 %v715
        %3196 = vmatpush.msra.mxu0 %v714
        %3197 = vmatpush.msra.mxu0 %v713
        %3198 = vmatpush.msra.mxu0 %v712
        %3199 = vmatpush.msra.mxu0 %v711
        %3200 = vmatmul.f32.gmra.mxu0 %v2410
        %v3201 = vpop.f32.mrf.mxu0
        %v3202 = vadd.f32 %v3182, %v3201
        %3203 = vdwg.mxu0
        %3204 = vmatpush.msra.mxu0 %v742
        %3205 = vmatpush.msra.mxu0 %v741
        %3206 = vmatpush.msra.mxu0 %v740
        %3207 = vmatpush.msra.mxu0 %v739
        %3208 = vmatpush.msra.mxu0 %v738
        %3209 = vmatpush.msra.mxu0 %v737
        %3210 = vmatpush.msra.mxu0 %v736
        %3211 = vmatpush.msra.mxu0 %v735
        %3212 = vmatpush.msra.mxu0 %v734
        %3213 = vmatpush.msra.mxu0 %v733
        %3214 = vmatpush.msra.mxu0 %v732
        %3215 = vmatpush.msra.mxu0 %v731
        %3216 = vmatpush.msra.mxu0 %v730
        %3217 = vmatpush.msra.mxu0 %v729
        %3218 = vmatpush.msra.mxu0 %v728
        %3219 = vmatpush.msra.mxu0 %v727
        %3220 = vmatmul.f32.gmra.mxu0 %v2411
        %v3221 = vpop.f32.mrf.mxu0
        %v3222 = vadd.f32 %v3202, %v3221
        %3223 = vdwg.mxu0
        %3224 = vmatpush.msra.mxu0 %v758
        %3225 = vmatpush.msra.mxu0 %v757
        %3226 = vmatpush.msra.mxu0 %v756
        %3227 = vmatpush.msra.mxu0 %v755
        %3228 = vmatpush.msra.mxu0 %v754
        %3229 = vmatpush.msra.mxu0 %v753
        %3230 = vmatpush.msra.mxu0 %v752
        %3231 = vmatpush.msra.mxu0 %v751
        %3232 = vmatpush.msra.mxu0 %v750
        %3233 = vmatpush.msra.mxu0 %v749
        %3234 = vmatpush.msra.mxu0 %v748
        %3235 = vmatpush.msra.mxu0 %v747
        %3236 = vmatpush.msra.mxu0 %v746
        %3237 = vmatpush.msra.mxu0 %v745
        %3238 = vmatpush.msra.mxu0 %v744
        %3239 = vmatpush.msra.mxu0 %v743
        %3240 = vmatmul.f32.gmra.mxu0 %v2412
        %v3241 = vpop.f32.mrf.mxu0
        %v3242 = vadd.f32 %v3222, %v3241
        %3243 = vdwg.mxu0
        %3244 = vmatpush.msra.mxu0 %v774
        %3245 = vmatpush.msra.mxu0 %v773
        %3246 = vmatpush.msra.mxu0 %v772
        %3247 = vmatpush.msra.mxu0 %v771
        %3248 = vmatpush.msra.mxu0 %v770
        %3249 = vmatpush.msra.mxu0 %v769
        %3250 = vmatpush.msra.mxu0 %v768
        %3251 = vmatpush.msra.mxu0 %v767
        %3252 = vmatpush.msra.mxu0 %v766
        %3253 = vmatpush.msra.mxu0 %v765
        %3254 = vmatpush.msra.mxu0 %v764
        %3255 = vmatpush.msra.mxu0 %v763
        %3256 = vmatpush.msra.mxu0 %v762
        %3257 = vmatpush.msra.mxu0 %v761
        %3258 = vmatpush.msra.mxu0 %v760
        %3259 = vmatpush.msra.mxu0 %v759
        %3260 = vmatmul.f32.gmra.mxu0 %v2413
        %v3261 = vpop.f32.mrf.mxu0
        %v3262 = vadd.f32 %v3242, %v3261
        %3263 = vdwg.mxu0
        %3264 = vmatpush.msra.mxu0 %v790
        %3265 = vmatpush.msra.mxu0 %v789
        %3266 = vmatpush.msra.mxu0 %v788
        %3267 = vmatpush.msra.mxu0 %v787
        %3268 = vmatpush.msra.mxu0 %v786
        %3269 = vmatpush.msra.mxu0 %v785
        %3270 = vmatpush.msra.mxu0 %v784
        %3271 = vmatpush.msra.mxu0 %v783
        %3272 = vmatpush.msra.mxu0 %v782
        %3273 = vmatpush.msra.mxu0 %v781
        %3274 = vmatpush.msra.mxu0 %v780
        %3275 = vmatpush.msra.mxu0 %v779
        %3276 = vmatpush.msra.mxu0 %v778
        %3277 = vmatpush.msra.mxu0 %v777
        %3278 = vmatpush.msra.mxu0 %v776
        %3279 = vmatpush.msra.mxu0 %v775
        %3280 = vmatmul.f32.gmra.mxu0 %v2414
        %v3281 = vpop.f32.mrf.mxu0
        %v3282 = vadd.f32 %v3262, %v3281
        %3283 = vdwg.mxu0
        %3284 = vmatpush.msra.mxu0 %v806
        %3285 = vmatpush.msra.mxu0 %v805
        %3286 = vmatpush.msra.mxu0 %v804
        %3287 = vmatpush.msra.mxu0 %v803
        %3288 = vmatpush.msra.mxu0 %v802
        %3289 = vmatpush.msra.mxu0 %v801
        %3290 = vmatpush.msra.mxu0 %v800
        %3291 = vmatpush.msra.mxu0 %v799
        %3292 = vmatpush.msra.mxu0 %v798
        %3293 = vmatpush.msra.mxu0 %v797
        %3294 = vmatpush.msra.mxu0 %v796
        %3295 = vmatpush.msra.mxu0 %v795
        %3296 = vmatpush.msra.mxu0 %v794
        %3297 = vmatpush.msra.mxu0 %v793
        %3298 = vmatpush.msra.mxu0 %v792
        %3299 = vmatpush.msra.mxu0 %v791
        %3300 = vmatmul.f32.gmra.mxu0 %v2415
        %v3301 = vpop.f32.mrf.mxu0
        %v3302 = vadd.f32 %v3282, %v3301
        %3303 = vdwg.mxu0
        %3304 = vmatpush.msra.mxu0 %v822
        %3305 = vmatpush.msra.mxu0 %v821
        %3306 = vmatpush.msra.mxu0 %v820
        %3307 = vmatpush.msra.mxu0 %v819
        %3308 = vmatpush.msra.mxu0 %v818
        %3309 = vmatpush.msra.mxu0 %v817
        %3310 = vmatpush.msra.mxu0 %v816
        %3311 = vmatpush.msra.mxu0 %v815
        %3312 = vmatpush.msra.mxu0 %v814
        %3313 = vmatpush.msra.mxu0 %v813
        %3314 = vmatpush.msra.mxu0 %v812
        %3315 = vmatpush.msra.mxu0 %v811
        %3316 = vmatpush.msra.mxu0 %v810
        %3317 = vmatpush.msra.mxu0 %v809
        %3318 = vmatpush.msra.mxu0 %v808
        %3319 = vmatpush.msra.mxu0 %v807
        %3320 = vmatmul.f32.gmra.mxu0 %v2418
        %v3321 = vpop.f32.mrf.mxu0
        %v3322 = vadd.f32 %v3302, %v3321
        %3323 = vdwg.mxu0
        %3324 = vmatpush.msra.mxu0 %v838
        %3325 = vmatpush.msra.mxu0 %v837
        %3326 = vmatpush.msra.mxu0 %v836
        %3327 = vmatpush.msra.mxu0 %v835
        %3328 = vmatpush.msra.mxu0 %v834
        %3329 = vmatpush.msra.mxu0 %v833
        %3330 = vmatpush.msra.mxu0 %v832
        %3331 = vmatpush.msra.mxu0 %v831
        %3332 = vmatpush.msra.mxu0 %v830
        %3333 = vmatpush.msra.mxu0 %v829
        %3334 = vmatpush.msra.mxu0 %v828
        %3335 = vmatpush.msra.mxu0 %v827
        %3336 = vmatpush.msra.mxu0 %v826
        %3337 = vmatpush.msra.mxu0 %v825
        %3338 = vmatpush.msra.mxu0 %v824
        %3339 = vmatpush.msra.mxu0 %v823
        %3340 = vmatmul.f32.gmra.mxu0 %v2419
        %v3341 = vpop.f32.mrf.mxu0
        %v3342 = vadd.f32 %v3322, %v3341
        %3343 = vdwg.mxu0
        %3344 = vmatpush.msra.mxu0 %v854
        %3345 = vmatpush.msra.mxu0 %v853
        %3346 = vmatpush.msra.mxu0 %v852
        %3347 = vmatpush.msra.mxu0 %v851
        %3348 = vmatpush.msra.mxu0 %v850
        %3349 = vmatpush.msra.mxu0 %v849
        %3350 = vmatpush.msra.mxu0 %v848
        %3351 = vmatpush.msra.mxu0 %v847
        %3352 = vmatpush.msra.mxu0 %v846
        %3353 = vmatpush.msra.mxu0 %v845
        %3354 = vmatpush.msra.mxu0 %v844
        %3355 = vmatpush.msra.mxu0 %v843
        %3356 = vmatpush.msra.mxu0 %v842
        %3357 = vmatpush.msra.mxu0 %v841
        %3358 = vmatpush.msra.mxu0 %v840
        %3359 = vmatpush.msra.mxu0 %v839
        %3360 = vmatmul.f32.gmra.mxu0 %v2420
        %v3361 = vpop.f32.mrf.mxu0
        %v3362 = vadd.f32 %v3342, %v3361
        %3363 = vdwg.mxu0
        %3364 = vmatpush.msra.mxu0 %v870
        %3365 = vmatpush.msra.mxu0 %v869
        %3366 = vmatpush.msra.mxu0 %v868
        %3367 = vmatpush.msra.mxu0 %v867
        %3368 = vmatpush.msra.mxu0 %v866
        %3369 = vmatpush.msra.mxu0 %v865
        %3370 = vmatpush.msra.mxu0 %v864
        %3371 = vmatpush.msra.mxu0 %v863
        %3372 = vmatpush.msra.mxu0 %v862
        %3373 = vmatpush.msra.mxu0 %v861
        %3374 = vmatpush.msra.mxu0 %v860
        %3375 = vmatpush.msra.mxu0 %v859
        %3376 = vmatpush.msra.mxu0 %v858
        %3377 = vmatpush.msra.mxu0 %v857
        %3378 = vmatpush.msra.mxu0 %v856
        %3379 = vmatpush.msra.mxu0 %v855
        %3380 = vmatmul.f32.gmra.mxu0 %v2421
        %v3381 = vpop.f32.mrf.mxu0
        %v3382 = vadd.f32 %v3362, %v3381
        %3383 = vdwg.mxu0
        %3384 = vmatpush.msra.mxu0 %v886
        %3385 = vmatpush.msra.mxu0 %v885
        %3386 = vmatpush.msra.mxu0 %v884
        %3387 = vmatpush.msra.mxu0 %v883
        %3388 = vmatpush.msra.mxu0 %v882
        %3389 = vmatpush.msra.mxu0 %v881
        %3390 = vmatpush.msra.mxu0 %v880
        %3391 = vmatpush.msra.mxu0 %v879
        %3392 = vmatpush.msra.mxu0 %v878
        %3393 = vmatpush.msra.mxu0 %v877
        %3394 = vmatpush.msra.mxu0 %v876
        %3395 = vmatpush.msra.mxu0 %v875
        %3396 = vmatpush.msra.mxu0 %v874
        %3397 = vmatpush.msra.mxu0 %v873
        %3398 = vmatpush.msra.mxu0 %v872
        %3399 = vmatpush.msra.mxu0 %v871
        %3400 = vmatmul.f32.gmra.mxu0 %v2422
        %v3401 = vpop.f32.mrf.mxu0
        %v3402 = vadd.f32 %v3382, %v3401
        %3403 = vdwg.mxu0
        %3404 = vmatpush.msra.mxu0 %v902
        %3405 = vmatpush.msra.mxu0 %v901
        %3406 = vmatpush.msra.mxu0 %v900
        %3407 = vmatpush.msra.mxu0 %v899
        %3408 = vmatpush.msra.mxu0 %v898
        %3409 = vmatpush.msra.mxu0 %v897
        %3410 = vmatpush.msra.mxu0 %v896
        %3411 = vmatpush.msra.mxu0 %v895
        %3412 = vmatpush.msra.mxu0 %v894
        %3413 = vmatpush.msra.mxu0 %v893
        %3414 = vmatpush.msra.mxu0 %v892
        %3415 = vmatpush.msra.mxu0 %v891
        %3416 = vmatpush.msra.mxu0 %v890
        %3417 = vmatpush.msra.mxu0 %v889
        %3418 = vmatpush.msra.mxu0 %v888
        %3419 = vmatpush.msra.mxu0 %v887
        %3420 = vmatmul.f32.gmra.mxu0 %v2423
        %v3421 = vpop.f32.mrf.mxu0
        %v3422 = vadd.f32 %v3402, %v3421
        %3423 = vdwg.mxu0
        %3424 = vmatpush.msra.mxu0 %v918
        %3425 = vmatpush.msra.mxu0 %v917
        %3426 = vmatpush.msra.mxu0 %v916
        %3427 = vmatpush.msra.mxu0 %v915
        %3428 = vmatpush.msra.mxu0 %v914
        %3429 = vmatpush.msra.mxu0 %v913
        %3430 = vmatpush.msra.mxu0 %v912
        %3431 = vmatpush.msra.mxu0 %v911
        %3432 = vmatpush.msra.mxu0 %v910
        %3433 = vmatpush.msra.mxu0 %v909
        %3434 = vmatpush.msra.mxu0 %v908
        %3435 = vmatpush.msra.mxu0 %v907
        %3436 = vmatpush.msra.mxu0 %v906
        %3437 = vmatpush.msra.mxu0 %v905
        %3438 = vmatpush.msra.mxu0 %v904
        %3439 = vmatpush.msra.mxu0 %v903
        %3440 = vmatmul.f32.gmra.mxu0 %v2424
        %v3441 = vpop.f32.mrf.mxu0
        %v3442 = vadd.f32 %v3422, %v3441
        %3443 = vdwg.mxu0
        %3444 = vmatpush.msra.mxu0 %v934
        %3445 = vmatpush.msra.mxu0 %v933
        %3446 = vmatpush.msra.mxu0 %v932
        %3447 = vmatpush.msra.mxu0 %v931
        %3448 = vmatpush.msra.mxu0 %v930
        %3449 = vmatpush.msra.mxu0 %v929
        %3450 = vmatpush.msra.mxu0 %v928
        %3451 = vmatpush.msra.mxu0 %v927
        %3452 = vmatpush.msra.mxu0 %v926
        %3453 = vmatpush.msra.mxu0 %v925
        %3454 = vmatpush.msra.mxu0 %v924
        %3455 = vmatpush.msra.mxu0 %v923
        %3456 = vmatpush.msra.mxu0 %v922
        %3457 = vmatpush.msra.mxu0 %v921
        %3458 = vmatpush.msra.mxu0 %v920
        %3459 = vmatpush.msra.mxu0 %v919
        %3460 = vmatmul.f32.gmra.mxu0 %v2425
        %v3461 = vpop.f32.mrf.mxu0
        %v3462 = vadd.f32 %v3442, %v3461
        %3463 = vdwg.mxu0
        %3464 = vmatpush.msra.mxu0 %v950
        %3465 = vmatpush.msra.mxu0 %v949
        %3466 = vmatpush.msra.mxu0 %v948
        %3467 = vmatpush.msra.mxu0 %v947
        %3468 = vmatpush.msra.mxu0 %v946
        %3469 = vmatpush.msra.mxu0 %v945
        %3470 = vmatpush.msra.mxu0 %v944
        %3471 = vmatpush.msra.mxu0 %v943
        %3472 = vmatpush.msra.mxu0 %v942
        %3473 = vmatpush.msra.mxu0 %v941
        %3474 = vmatpush.msra.mxu0 %v940
        %3475 = vmatpush.msra.mxu0 %v939
        %3476 = vmatpush.msra.mxu0 %v938
        %3477 = vmatpush.msra.mxu0 %v937
        %3478 = vmatpush.msra.mxu0 %v936
        %3479 = vmatpush.msra.mxu0 %v935
        %3480 = vmatmul.f32.gmra.mxu0 %v2428
        %v3481 = vpop.f32.mrf.mxu0
        %v3482 = vadd.f32 %v3462, %v3481
        %3483 = vdwg.mxu0
        %3484 = vmatpush.msra.mxu0 %v966
        %3485 = vmatpush.msra.mxu0 %v965
        %3486 = vmatpush.msra.mxu0 %v964
        %3487 = vmatpush.msra.mxu0 %v963
        %3488 = vmatpush.msra.mxu0 %v962
        %3489 = vmatpush.msra.mxu0 %v961
        %3490 = vmatpush.msra.mxu0 %v960
        %3491 = vmatpush.msra.mxu0 %v959
        %3492 = vmatpush.msra.mxu0 %v958
        %3493 = vmatpush.msra.mxu0 %v957
        %3494 = vmatpush.msra.mxu0 %v956
        %3495 = vmatpush.msra.mxu0 %v955
        %3496 = vmatpush.msra.mxu0 %v954
        %3497 = vmatpush.msra.mxu0 %v953
        %3498 = vmatpush.msra.mxu0 %v952
        %3499 = vmatpush.msra.mxu0 %v951
        %3500 = vmatmul.f32.gmra.mxu0 %v2429
        %v3501 = vpop.f32.mrf.mxu0
        %v3502 = vadd.f32 %v3482, %v3501
        %3503 = vdwg.mxu0
        %3504 = vmatpush.msra.mxu0 %v982
        %3505 = vmatpush.msra.mxu0 %v981
        %3506 = vmatpush.msra.mxu0 %v980
        %3507 = vmatpush.msra.mxu0 %v979
        %3508 = vmatpush.msra.mxu0 %v978
        %3509 = vmatpush.msra.mxu0 %v977
        %3510 = vmatpush.msra.mxu0 %v976
        %3511 = vmatpush.msra.mxu0 %v975
        %3512 = vmatpush.msra.mxu0 %v974
        %3513 = vmatpush.msra.mxu0 %v973
        %3514 = vmatpush.msra.mxu0 %v972
        %3515 = vmatpush.msra.mxu0 %v971
        %3516 = vmatpush.msra.mxu0 %v970
        %3517 = vmatpush.msra.mxu0 %v969
        %3518 = vmatpush.msra.mxu0 %v968
        %3519 = vmatpush.msra.mxu0 %v967
        %3520 = vmatmul.f32.gmra.mxu0 %v2430
        %v3521 = vpop.f32.mrf.mxu0
        %v3522 = vadd.f32 %v3502, %v3521
        %3523 = vdwg.mxu0
        %3524 = vmatpush.msra.mxu0 %v998
        %3525 = vmatpush.msra.mxu0 %v997
        %3526 = vmatpush.msra.mxu0 %v996
        %3527 = vmatpush.msra.mxu0 %v995
        %3528 = vmatpush.msra.mxu0 %v994
        %3529 = vmatpush.msra.mxu0 %v993
        %3530 = vmatpush.msra.mxu0 %v992
        %3531 = vmatpush.msra.mxu0 %v991
        %3532 = vmatpush.msra.mxu0 %v990
        %3533 = vmatpush.msra.mxu0 %v989
        %3534 = vmatpush.msra.mxu0 %v988
        %3535 = vmatpush.msra.mxu0 %v987
        %3536 = vmatpush.msra.mxu0 %v986
        %3537 = vmatpush.msra.mxu0 %v985
        %3538 = vmatpush.msra.mxu0 %v984
        %3539 = vmatpush.msra.mxu0 %v983
        %3540 = vmatmul.f32.gmra.mxu0 %v2431
        %v3541 = vpop.f32.mrf.mxu0
        %v3542 = vadd.f32 %v3522, %v3541
        %3543 = vdwg.mxu0
        %3544 = vmatpush.msra.mxu0 %v1014
        %3545 = vmatpush.msra.mxu0 %v1013
        %3546 = vmatpush.msra.mxu0 %v1012
        %3547 = vmatpush.msra.mxu0 %v1011
        %3548 = vmatpush.msra.mxu0 %v1010
        %3549 = vmatpush.msra.mxu0 %v1009
        %3550 = vmatpush.msra.mxu0 %v1008
        %3551 = vmatpush.msra.mxu0 %v1007
        %3552 = vmatpush.msra.mxu0 %v1006
        %3553 = vmatpush.msra.mxu0 %v1005
        %3554 = vmatpush.msra.mxu0 %v1004
        %3555 = vmatpush.msra.mxu0 %v1003
        %3556 = vmatpush.msra.mxu0 %v1002
        %3557 = vmatpush.msra.mxu0 %v1001
        %3558 = vmatpush.msra.mxu0 %v1000
        %3559 = vmatpush.msra.mxu0 %v999
        %3560 = vmatmul.f32.gmra.mxu0 %v2432
        %v3561 = vpop.f32.mrf.mxu0
        %v3562 = vadd.f32 %v3542, %v3561
        %3563 = vdwg.mxu0
        %3564 = vmatpush.msra.mxu0 %v1030
        %3565 = vmatpush.msra.mxu0 %v1029
        %3566 = vmatpush.msra.mxu0 %v1028
        %3567 = vmatpush.msra.mxu0 %v1027
        %3568 = vmatpush.msra.mxu0 %v1026
        %3569 = vmatpush.msra.mxu0 %v1025
        %3570 = vmatpush.msra.mxu0 %v1024
        %3571 = vmatpush.msra.mxu0 %v1023
        %3572 = vmatpush.msra.mxu0 %v1022
        %3573 = vmatpush.msra.mxu0 %v1021
        %3574 = vmatpush.msra.mxu0 %v1020
        %3575 = vmatpush.msra.mxu0 %v1019
        %3576 = vmatpush.msra.mxu0 %v1018
        %3577 = vmatpush.msra.mxu0 %v1017
        %3578 = vmatpush.msra.mxu0 %v1016
        %3579 = vmatpush.msra.mxu0 %v1015
        %3580 = vmatmul.f32.gmra.mxu0 %v2433
        %v3581 = vpop.f32.mrf.mxu0
        %v3582 = vadd.f32 %v3562, %v3581
        %3583 = vdwg.mxu0
        %3584 = vmatpush.msra.mxu0 %v1046
        %3585 = vmatpush.msra.mxu0 %v1045
        %3586 = vmatpush.msra.mxu0 %v1044
        %3587 = vmatpush.msra.mxu0 %v1043
        %3588 = vmatpush.msra.mxu0 %v1042
        %3589 = vmatpush.msra.mxu0 %v1041
        %3590 = vmatpush.msra.mxu0 %v1040
        %3591 = vmatpush.msra.mxu0 %v1039
        %3592 = vmatpush.msra.mxu0 %v1038
        %3593 = vmatpush.msra.mxu0 %v1037
        %3594 = vmatpush.msra.mxu0 %v1036
        %3595 = vmatpush.msra.mxu0 %v1035
        %3596 = vmatpush.msra.mxu0 %v1034
        %3597 = vmatpush.msra.mxu0 %v1033
        %3598 = vmatpush.msra.mxu0 %v1032
        %3599 = vmatpush.msra.mxu0 %v1031
        %3600 = vmatmul.f32.gmra.mxu0 %v2434
        %v3601 = vpop.f32.mrf.mxu0
        %v3602 = vadd.f32 %v3582, %v3601
        %3603 = vdwg.mxu0
        %3604 = vmatpush.msra.mxu0 %v1062
        %3605 = vmatpush.msra.mxu0 %v1061
        %3606 = vmatpush.msra.mxu0 %v1060
        %3607 = vmatpush.msra.mxu0 %v1059
        %3608 = vmatpush.msra.mxu0 %v1058
        %3609 = vmatpush.msra.mxu0 %v1057
        %3610 = vmatpush.msra.mxu0 %v1056
        %3611 = vmatpush.msra.mxu0 %v1055
        %3612 = vmatpush.msra.mxu0 %v1054
        %3613 = vmatpush.msra.mxu0 %v1053
        %3614 = vmatpush.msra.mxu0 %v1052
        %3615 = vmatpush.msra.mxu0 %v1051
        %3616 = vmatpush.msra.mxu0 %v1050
        %3617 = vmatpush.msra.mxu0 %v1049
        %3618 = vmatpush.msra.mxu0 %v1048
        %3619 = vmatpush.msra.mxu0 %v1047
        %3620 = vmatmul.f32.gmra.mxu0 %v2435
        %v3621 = vpop.f32.mrf.mxu0
        %v3622 = vadd.f32 %v3602, %v3621
        %3623 = vdwg.mxu0
        %3624 = vmatpush.msra.mxu0 %v1078
        %3625 = vmatpush.msra.mxu0 %v1077
        %3626 = vmatpush.msra.mxu0 %v1076
        %3627 = vmatpush.msra.mxu0 %v1075
        %3628 = vmatpush.msra.mxu0 %v1074
        %3629 = vmatpush.msra.mxu0 %v1073
        %3630 = vmatpush.msra.mxu0 %v1072
        %3631 = vmatpush.msra.mxu0 %v1071
        %3632 = vmatpush.msra.mxu0 %v1070
        %3633 = vmatpush.msra.mxu0 %v1069
        %3634 = vmatpush.msra.mxu0 %v1068
        %3635 = vmatpush.msra.mxu0 %v1067
        %3636 = vmatpush.msra.mxu0 %v1066
        %3637 = vmatpush.msra.mxu0 %v1065
        %3638 = vmatpush.msra.mxu0 %v1064
        %3639 = vmatpush.msra.mxu0 %v1063
        %3640 = vmatmul.f32.gmra.mxu0 %v2438
        %v3641 = vpop.f32.mrf.mxu0
        %v3642 = vadd.f32 %v3622, %v3641
        %3643 = vdwg.mxu0
        %3644 = vmatpush.msra.mxu0 %v1094
        %3645 = vmatpush.msra.mxu0 %v1093
        %3646 = vmatpush.msra.mxu0 %v1092
        %3647 = vmatpush.msra.mxu0 %v1091
        %3648 = vmatpush.msra.mxu0 %v1090
        %3649 = vmatpush.msra.mxu0 %v1089
        %3650 = vmatpush.msra.mxu0 %v1088
        %3651 = vmatpush.msra.mxu0 %v1087
        %3652 = vmatpush.msra.mxu0 %v1086
        %3653 = vmatpush.msra.mxu0 %v1085
        %3654 = vmatpush.msra.mxu0 %v1084
        %3655 = vmatpush.msra.mxu0 %v1083
        %3656 = vmatpush.msra.mxu0 %v1082
        %3657 = vmatpush.msra.mxu0 %v1081
        %3658 = vmatpush.msra.mxu0 %v1080
        %3659 = vmatpush.msra.mxu0 %v1079
        %3660 = vmatmul.f32.gmra.mxu0 %v2439
        %v3661 = vpop.f32.mrf.mxu0
        %v3662 = vadd.f32 %v3642, %v3661
        %3663 = vdwg.mxu0
        %3664 = vmatpush.msra.mxu0 %v1110
        %3665 = vmatpush.msra.mxu0 %v1109
        %3666 = vmatpush.msra.mxu0 %v1108
        %3667 = vmatpush.msra.mxu0 %v1107
        %3668 = vmatpush.msra.mxu0 %v1106
        %3669 = vmatpush.msra.mxu0 %v1105
        %3670 = vmatpush.msra.mxu0 %v1104
        %3671 = vmatpush.msra.mxu0 %v1103
        %3672 = vmatpush.msra.mxu0 %v1102
        %3673 = vmatpush.msra.mxu0 %v1101
        %3674 = vmatpush.msra.mxu0 %v1100
        %3675 = vmatpush.msra.mxu0 %v1099
        %3676 = vmatpush.msra.mxu0 %v1098
        %3677 = vmatpush.msra.mxu0 %v1097
        %3678 = vmatpush.msra.mxu0 %v1096
        %3679 = vmatpush.msra.mxu0 %v1095
        %3680 = vmatmul.f32.gmra.mxu0 %v2440
        %v3681 = vpop.f32.mrf.mxu0
        %v3682 = vadd.f32 %v3662, %v3681
        %3683 = vdwg.mxu0
        %3684 = vmatpush.msra.mxu0 %v1126
        %3685 = vmatpush.msra.mxu0 %v1125
        %3686 = vmatpush.msra.mxu0 %v1124
        %3687 = vmatpush.msra.mxu0 %v1123
        %3688 = vmatpush.msra.mxu0 %v1122
        %3689 = vmatpush.msra.mxu0 %v1121
        %3690 = vmatpush.msra.mxu0 %v1120
        %3691 = vmatpush.msra.mxu0 %v1119
        %3692 = vmatpush.msra.mxu0 %v1118
        %3693 = vmatpush.msra.mxu0 %v1117
        %3694 = vmatpush.msra.mxu0 %v1116
        %3695 = vmatpush.msra.mxu0 %v1115
        %3696 = vmatpush.msra.mxu0 %v1114
        %3697 = vmatpush.msra.mxu0 %v1113
        %3698 = vmatpush.msra.mxu0 %v1112
        %3699 = vmatpush.msra.mxu0 %v1111
        %3700 = vmatmul.f32.gmra.mxu0 %v2441
        %v3701 = vpop.f32.mrf.mxu0
        %v3702 = vadd.f32 %v3682, %v3701
        %3703 = vdwg.mxu0
        %3704 = vmatpush.msra.mxu0 %v1142
        %3705 = vmatpush.msra.mxu0 %v1141
        %3706 = vmatpush.msra.mxu0 %v1140
        %3707 = vmatpush.msra.mxu0 %v1139
        %3708 = vmatpush.msra.mxu0 %v1138
        %3709 = vmatpush.msra.mxu0 %v1137
        %3710 = vmatpush.msra.mxu0 %v1136
        %3711 = vmatpush.msra.mxu0 %v1135
        %3712 = vmatpush.msra.mxu0 %v1134
        %3713 = vmatpush.msra.mxu0 %v1133
        %3714 = vmatpush.msra.mxu0 %v1132
        %3715 = vmatpush.msra.mxu0 %v1131
        %3716 = vmatpush.msra.mxu0 %v1130
        %3717 = vmatpush.msra.mxu0 %v1129
        %3718 = vmatpush.msra.mxu0 %v1128
        %3719 = vmatpush.msra.mxu0 %v1127
        %3720 = vmatmul.f32.gmra.mxu0 %v2442
        %v3721 = vpop.f32.mrf.mxu0
        %v3722 = vadd.f32 %v3702, %v3721
        %3723 = vdwg.mxu0
        %3724 = vmatpush.msra.mxu0 %v1158
        %3725 = vmatpush.msra.mxu0 %v1157
        %3726 = vmatpush.msra.mxu0 %v1156
        %3727 = vmatpush.msra.mxu0 %v1155
        %3728 = vmatpush.msra.mxu0 %v1154
        %3729 = vmatpush.msra.mxu0 %v1153
        %3730 = vmatpush.msra.mxu0 %v1152
        %3731 = vmatpush.msra.mxu0 %v1151
        %3732 = vmatpush.msra.mxu0 %v1150
        %3733 = vmatpush.msra.mxu0 %v1149
        %3734 = vmatpush.msra.mxu0 %v1148
        %3735 = vmatpush.msra.mxu0 %v1147
        %3736 = vmatpush.msra.mxu0 %v1146
        %3737 = vmatpush.msra.mxu0 %v1145
        %3738 = vmatpush.msra.mxu0 %v1144
        %3739 = vmatpush.msra.mxu0 %v1143
        %3740 = vmatmul.f32.gmra.mxu0 %v2443
        %v3741 = vpop.f32.mrf.mxu0
        %v3742 = vadd.f32 %v3722, %v3741
        %3743 = vdwg.mxu0
        %3744 = vmatpush.msra.mxu0 %v1174
        %3745 = vmatpush.msra.mxu0 %v1173
        %3746 = vmatpush.msra.mxu0 %v1172
        %3747 = vmatpush.msra.mxu0 %v1171
        %3748 = vmatpush.msra.mxu0 %v1170
        %3749 = vmatpush.msra.mxu0 %v1169
        %3750 = vmatpush.msra.mxu0 %v1168
        %3751 = vmatpush.msra.mxu0 %v1167
        %3752 = vmatpush.msra.mxu0 %v1166
        %3753 = vmatpush.msra.mxu0 %v1165
        %3754 = vmatpush.msra.mxu0 %v1164
        %3755 = vmatpush.msra.mxu0 %v1163
        %3756 = vmatpush.msra.mxu0 %v1162
        %3757 = vmatpush.msra.mxu0 %v1161
        %3758 = vmatpush.msra.mxu0 %v1160
        %3759 = vmatpush.msra.mxu0 %v1159
        %3760 = vmatmul.f32.gmra.mxu0 %v2444
        %v3761 = vpop.f32.mrf.mxu0
        %v3762 = vadd.f32 %v3742, %v3761
        %3763 = vdwg.mxu0
        %3764 = vmatpush.msra.mxu0 %v1190
        %3765 = vmatpush.msra.mxu0 %v1189
        %3766 = vmatpush.msra.mxu0 %v1188
        %3767 = vmatpush.msra.mxu0 %v1187
        %3768 = vmatpush.msra.mxu0 %v1186
        %3769 = vmatpush.msra.mxu0 %v1185
        %3770 = vmatpush.msra.mxu0 %v1184
        %3771 = vmatpush.msra.mxu0 %v1183
        %3772 = vmatpush.msra.mxu0 %v1182
        %3773 = vmatpush.msra.mxu0 %v1181
        %3774 = vmatpush.msra.mxu0 %v1180
        %3775 = vmatpush.msra.mxu0 %v1179
        %3776 = vmatpush.msra.mxu0 %v1178
        %3777 = vmatpush.msra.mxu0 %v1177
        %3778 = vmatpush.msra.mxu0 %v1176
        %3779 = vmatpush.msra.mxu0 %v1175
        %3780 = vmatmul.f32.gmra.mxu0 %v2445
        %v3781 = vpop.f32.mrf.mxu0
        %v3782 = vadd.f32 %v3762, %v3781
        %3783 = vdwg.mxu0
        %3784 = vmatpush.msra.mxu0 %v1206
        %3785 = vmatpush.msra.mxu0 %v1205
        %3786 = vmatpush.msra.mxu0 %v1204
        %3787 = vmatpush.msra.mxu0 %v1203
        %3788 = vmatpush.msra.mxu0 %v1202
        %3789 = vmatpush.msra.mxu0 %v1201
        %3790 = vmatpush.msra.mxu0 %v1200
        %3791 = vmatpush.msra.mxu0 %v1199
        %3792 = vmatpush.msra.mxu0 %v1198
        %3793 = vmatpush.msra.mxu0 %v1197
        %3794 = vmatpush.msra.mxu0 %v1196
        %3795 = vmatpush.msra.mxu0 %v1195
        %3796 = vmatpush.msra.mxu0 %v1194
        %3797 = vmatpush.msra.mxu0 %v1193
        %3798 = vmatpush.msra.mxu0 %v1192
        %3799 = vmatpush.msra.mxu0 %v1191
        %3800 = vmatmul.f32.gmra.mxu0 %v2448
        %v3801 = vpop.f32.mrf.mxu0
        %v3802 = vadd.f32 %v3782, %v3801
        %3803 = vdwg.mxu0
        %3804 = vmatpush.msra.mxu0 %v1222
        %3805 = vmatpush.msra.mxu0 %v1221
        %3806 = vmatpush.msra.mxu0 %v1220
        %3807 = vmatpush.msra.mxu0 %v1219
        %3808 = vmatpush.msra.mxu0 %v1218
        %3809 = vmatpush.msra.mxu0 %v1217
        %3810 = vmatpush.msra.mxu0 %v1216
        %3811 = vmatpush.msra.mxu0 %v1215
        %3812 = vmatpush.msra.mxu0 %v1214
        %3813 = vmatpush.msra.mxu0 %v1213
        %3814 = vmatpush.msra.mxu0 %v1212
        %3815 = vmatpush.msra.mxu0 %v1211
        %3816 = vmatpush.msra.mxu0 %v1210
        %3817 = vmatpush.msra.mxu0 %v1209
        %3818 = vmatpush.msra.mxu0 %v1208
        %3819 = vmatpush.msra.mxu0 %v1207
        %3820 = vmatmul.f32.gmra.mxu0 %v2449
        %v3821 = vpop.f32.mrf.mxu0
        %v3822 = vadd.f32 %v3802, %v3821
        %3823 = vdwg.mxu0
        %3824 = vmatpush.msra.mxu0 %v1238
        %3825 = vmatpush.msra.mxu0 %v1237
        %3826 = vmatpush.msra.mxu0 %v1236
        %3827 = vmatpush.msra.mxu0 %v1235
        %3828 = vmatpush.msra.mxu0 %v1234
        %3829 = vmatpush.msra.mxu0 %v1233
        %3830 = vmatpush.msra.mxu0 %v1232
        %3831 = vmatpush.msra.mxu0 %v1231
        %3832 = vmatpush.msra.mxu0 %v1230
        %3833 = vmatpush.msra.mxu0 %v1229
        %3834 = vmatpush.msra.mxu0 %v1228
        %3835 = vmatpush.msra.mxu0 %v1227
        %3836 = vmatpush.msra.mxu0 %v1226
        %3837 = vmatpush.msra.mxu0 %v1225
        %3838 = vmatpush.msra.mxu0 %v1224
        %3839 = vmatpush.msra.mxu0 %v1223
        %3840 = vmatmul.f32.gmra.mxu0 %v2450
        %v3841 = vpop.f32.mrf.mxu0
        %v3842 = vadd.f32 %v3822, %v3841
        %3843 = vdwg.mxu0
        %3844 = vmatpush.msra.mxu0 %v1254
        %3845 = vmatpush.msra.mxu0 %v1253
        %3846 = vmatpush.msra.mxu0 %v1252
        %3847 = vmatpush.msra.mxu0 %v1251
        %3848 = vmatpush.msra.mxu0 %v1250
        %3849 = vmatpush.msra.mxu0 %v1249
        %3850 = vmatpush.msra.mxu0 %v1248
        %3851 = vmatpush.msra.mxu0 %v1247
        %3852 = vmatpush.msra.mxu0 %v1246
        %3853 = vmatpush.msra.mxu0 %v1245
        %3854 = vmatpush.msra.mxu0 %v1244
        %3855 = vmatpush.msra.mxu0 %v1243
        %3856 = vmatpush.msra.mxu0 %v1242
        %3857 = vmatpush.msra.mxu0 %v1241
        %3858 = vmatpush.msra.mxu0 %v1240
        %3859 = vmatpush.msra.mxu0 %v1239
        %3860 = vmatmul.f32.gmra.mxu0 %v2451
        %v3861 = vpop.f32.mrf.mxu0
        %v3862 = vadd.f32 %v3842, %v3861
        %3863 = vdwg.mxu0
        %3864 = vmatpush.msra.mxu0 %v1270
        %3865 = vmatpush.msra.mxu0 %v1269
        %3866 = vmatpush.msra.mxu0 %v1268
        %3867 = vmatpush.msra.mxu0 %v1267
        %3868 = vmatpush.msra.mxu0 %v1266
        %3869 = vmatpush.msra.mxu0 %v1265
        %3870 = vmatpush.msra.mxu0 %v1264
        %3871 = vmatpush.msra.mxu0 %v1263
        %3872 = vmatpush.msra.mxu0 %v1262
        %3873 = vmatpush.msra.mxu0 %v1261
        %3874 = vmatpush.msra.mxu0 %v1260
        %3875 = vmatpush.msra.mxu0 %v1259
        %3876 = vmatpush.msra.mxu0 %v1258
        %3877 = vmatpush.msra.mxu0 %v1257
        %3878 = vmatpush.msra.mxu0 %v1256
        %3879 = vmatpush.msra.mxu0 %v1255
        %3880 = vmatmul.f32.gmra.mxu0 %v2452
        %v3881 = vpop.f32.mrf.mxu0
        %v3882 = vadd.f32 %v3862, %v3881
        %3883 = vdwg.mxu0
        %3884 = vmatpush.msra.mxu0 %v1286
        %3885 = vmatpush.msra.mxu0 %v1285
        %3886 = vmatpush.msra.mxu0 %v1284
        %3887 = vmatpush.msra.mxu0 %v1283
        %3888 = vmatpush.msra.mxu0 %v1282
        %3889 = vmatpush.msra.mxu0 %v1281
        %3890 = vmatpush.msra.mxu0 %v1280
        %3891 = vmatpush.msra.mxu0 %v1279
        %3892 = vmatpush.msra.mxu0 %v1278
        %3893 = vmatpush.msra.mxu0 %v1277
        %3894 = vmatpush.msra.mxu0 %v1276
        %3895 = vmatpush.msra.mxu0 %v1275
        %3896 = vmatpush.msra.mxu0 %v1274
        %3897 = vmatpush.msra.mxu0 %v1273
        %3898 = vmatpush.msra.mxu0 %v1272
        %3899 = vmatpush.msra.mxu0 %v1271
        %3900 = vmatmul.f32.gmra.mxu0 %v2453
        %v3901 = vpop.f32.mrf.mxu0
        %v3902 = vadd.f32 %v3882, %v3901
        %3903 = vdwg.mxu0
        %3904 = vmatpush.msra.mxu0 %v1302
        %3905 = vmatpush.msra.mxu0 %v1301
        %3906 = vmatpush.msra.mxu0 %v1300
        %3907 = vmatpush.msra.mxu0 %v1299
        %3908 = vmatpush.msra.mxu0 %v1298
        %3909 = vmatpush.msra.mxu0 %v1297
        %3910 = vmatpush.msra.mxu0 %v1296
        %3911 = vmatpush.msra.mxu0 %v1295
        %3912 = vmatpush.msra.mxu0 %v1294
        %3913 = vmatpush.msra.mxu0 %v1293
        %3914 = vmatpush.msra.mxu0 %v1292
        %3915 = vmatpush.msra.mxu0 %v1291
        %3916 = vmatpush.msra.mxu0 %v1290
        %3917 = vmatpush.msra.mxu0 %v1289
        %3918 = vmatpush.msra.mxu0 %v1288
        %3919 = vmatpush.msra.mxu0 %v1287
        %3920 = vmatmul.f32.gmra.mxu0 %v2454
        %v3921 = vpop.f32.mrf.mxu0
        %v3922 = vadd.f32 %v3902, %v3921
        %3923 = vdwg.mxu0
        %3924 = vmatpush.msra.mxu0 %v1318
        %3925 = vmatpush.msra.mxu0 %v1317
        %3926 = vmatpush.msra.mxu0 %v1316
        %3927 = vmatpush.msra.mxu0 %v1315
        %3928 = vmatpush.msra.mxu0 %v1314
        %3929 = vmatpush.msra.mxu0 %v1313
        %3930 = vmatpush.msra.mxu0 %v1312
        %3931 = vmatpush.msra.mxu0 %v1311
        %3932 = vmatpush.msra.mxu0 %v1310
        %3933 = vmatpush.msra.mxu0 %v1309
        %3934 = vmatpush.msra.mxu0 %v1308
        %3935 = vmatpush.msra.mxu0 %v1307
        %3936 = vmatpush.msra.mxu0 %v1306
        %3937 = vmatpush.msra.mxu0 %v1305
        %3938 = vmatpush.msra.mxu0 %v1304
        %3939 = vmatpush.msra.mxu0 %v1303
        %3940 = vmatmul.f32.gmra.mxu0 %v2455
        %v3941 = vpop.f32.mrf.mxu0
        %v3942 = vadd.f32 %v3922, %v3941
        %3943 = vdwg.mxu0
        %3944 = vmatpush.msra.mxu0 %v1334
        %3945 = vmatpush.msra.mxu0 %v1333
        %3946 = vmatpush.msra.mxu0 %v1332
        %3947 = vmatpush.msra.mxu0 %v1331
        %3948 = vmatpush.msra.mxu0 %v1330
        %3949 = vmatpush.msra.mxu0 %v1329
        %3950 = vmatpush.msra.mxu0 %v1328
        %3951 = vmatpush.msra.mxu0 %v1327
        %3952 = vmatpush.msra.mxu0 %v1326
        %3953 = vmatpush.msra.mxu0 %v1325
        %3954 = vmatpush.msra.mxu0 %v1324
        %3955 = vmatpush.msra.mxu0 %v1323
        %3956 = vmatpush.msra.mxu0 %v1322
        %3957 = vmatpush.msra.mxu0 %v1321
        %3958 = vmatpush.msra.mxu0 %v1320
        %3959 = vmatpush.msra.mxu0 %v1319
        %3960 = vmatmul.f32.gmra.mxu0 %v2458
        %v3961 = vpop.f32.mrf.mxu0
        %v3962 = vadd.f32 %v3942, %v3961
        %3963 = vdwg.mxu0
        %3964 = vmatpush.msra.mxu0 %v1350
        %3965 = vmatpush.msra.mxu0 %v1349
        %3966 = vmatpush.msra.mxu0 %v1348
        %3967 = vmatpush.msra.mxu0 %v1347
        %3968 = vmatpush.msra.mxu0 %v1346
        %3969 = vmatpush.msra.mxu0 %v1345
        %3970 = vmatpush.msra.mxu0 %v1344
        %3971 = vmatpush.msra.mxu0 %v1343
        %3972 = vmatpush.msra.mxu0 %v1342
        %3973 = vmatpush.msra.mxu0 %v1341
        %3974 = vmatpush.msra.mxu0 %v1340
        %3975 = vmatpush.msra.mxu0 %v1339
        %3976 = vmatpush.msra.mxu0 %v1338
        %3977 = vmatpush.msra.mxu0 %v1337
        %3978 = vmatpush.msra.mxu0 %v1336
        %3979 = vmatpush.msra.mxu0 %v1335
        %3980 = vmatmul.f32.gmra.mxu0 %v2459
        %v3981 = vpop.f32.mrf.mxu0
        %v3982 = vadd.f32 %v3962, %v3981
        %3983 = vdwg.mxu0
        %3984 = vmatpush.msra.mxu0 %v1366
        %3985 = vmatpush.msra.mxu0 %v1365
        %3986 = vmatpush.msra.mxu0 %v1364
        %3987 = vmatpush.msra.mxu0 %v1363
        %3988 = vmatpush.msra.mxu0 %v1362
        %3989 = vmatpush.msra.mxu0 %v1361
        %3990 = vmatpush.msra.mxu0 %v1360
        %3991 = vmatpush.msra.mxu0 %v1359
        %3992 = vmatpush.msra.mxu0 %v1358
        %3993 = vmatpush.msra.mxu0 %v1357
        %3994 = vmatpush.msra.mxu0 %v1356
        %3995 = vmatpush.msra.mxu0 %v1355
        %3996 = vmatpush.msra.mxu0 %v1354
        %3997 = vmatpush.msra.mxu0 %v1353
        %3998 = vmatpush.msra.mxu0 %v1352
        %3999 = vmatpush.msra.mxu0 %v1351
        %4000 = vmatmul.f32.gmra.mxu0 %v2460
        %v4001 = vpop.f32.mrf.mxu0
        %v4002 = vadd.f32 %v3982, %v4001
        %4003 = vdwg.mxu0
        %4004 = vmatpush.msra.mxu0 %v1382
        %4005 = vmatpush.msra.mxu0 %v1381
        %4006 = vmatpush.msra.mxu0 %v1380
        %4007 = vmatpush.msra.mxu0 %v1379
        %4008 = vmatpush.msra.mxu0 %v1378
        %4009 = vmatpush.msra.mxu0 %v1377
        %4010 = vmatpush.msra.mxu0 %v1376
        %4011 = vmatpush.msra.mxu0 %v1375
        %4012 = vmatpush.msra.mxu0 %v1374
        %4013 = vmatpush.msra.mxu0 %v1373
        %4014 = vmatpush.msra.mxu0 %v1372
        %4015 = vmatpush.msra.mxu0 %v1371
        %4016 = vmatpush.msra.mxu0 %v1370
        %4017 = vmatpush.msra.mxu0 %v1369
        %4018 = vmatpush.msra.mxu0 %v1368
        %4019 = vmatpush.msra.mxu0 %v1367
        %4020 = vmatmul.f32.gmra.mxu0 %v2461
        %v4021 = vpop.f32.mrf.mxu0
        %v4022 = vadd.f32 %v4002, %v4021
        %4023 = vdwg.mxu0
        %4024 = vmatpush.msra.mxu0 %v1398
        %4025 = vmatpush.msra.mxu0 %v1397
        %4026 = vmatpush.msra.mxu0 %v1396
        %4027 = vmatpush.msra.mxu0 %v1395
        %4028 = vmatpush.msra.mxu0 %v1394
        %4029 = vmatpush.msra.mxu0 %v1393
        %4030 = vmatpush.msra.mxu0 %v1392
        %4031 = vmatpush.msra.mxu0 %v1391
        %4032 = vmatpush.msra.mxu0 %v1390
        %4033 = vmatpush.msra.mxu0 %v1389
        %4034 = vmatpush.msra.mxu0 %v1388
        %4035 = vmatpush.msra.mxu0 %v1387
        %4036 = vmatpush.msra.mxu0 %v1386
        %4037 = vmatpush.msra.mxu0 %v1385
        %4038 = vmatpush.msra.mxu0 %v1384
        %4039 = vmatpush.msra.mxu0 %v1383
        %4040 = vmatmul.f32.gmra.mxu0 %v2462
        %v4041 = vpop.f32.mrf.mxu0
        %v4042 = vadd.f32 %v4022, %v4041
        %4043 = vdwg.mxu0
        %4044 = vmatpush.msra.mxu0 %v1414
        %4045 = vmatpush.msra.mxu0 %v1413
        %4046 = vmatpush.msra.mxu0 %v1412
        %4047 = vmatpush.msra.mxu0 %v1411
        %4048 = vmatpush.msra.mxu0 %v1410
        %4049 = vmatpush.msra.mxu0 %v1409
        %4050 = vmatpush.msra.mxu0 %v1408
        %4051 = vmatpush.msra.mxu0 %v1407
        %4052 = vmatpush.msra.mxu0 %v1406
        %4053 = vmatpush.msra.mxu0 %v1405
        %4054 = vmatpush.msra.mxu0 %v1404
        %4055 = vmatpush.msra.mxu0 %v1403
        %4056 = vmatpush.msra.mxu0 %v1402
        %4057 = vmatpush.msra.mxu0 %v1401
        %4058 = vmatpush.msra.mxu0 %v1400
        %4059 = vmatpush.msra.mxu0 %v1399
        %4060 = vmatmul.f32.gmra.mxu0 %v2463
        %v4061 = vpop.f32.mrf.mxu0
        %v4062 = vadd.f32 %v4042, %v4061
        %4063 = vdwg.mxu0
        %4064 = vmatpush.msra.mxu0 %v1430
        %4065 = vmatpush.msra.mxu0 %v1429
        %4066 = vmatpush.msra.mxu0 %v1428
        %4067 = vmatpush.msra.mxu0 %v1427
        %4068 = vmatpush.msra.mxu0 %v1426
        %4069 = vmatpush.msra.mxu0 %v1425
        %4070 = vmatpush.msra.mxu0 %v1424
        %4071 = vmatpush.msra.mxu0 %v1423
        %4072 = vmatpush.msra.mxu0 %v1422
        %4073 = vmatpush.msra.mxu0 %v1421
        %4074 = vmatpush.msra.mxu0 %v1420
        %4075 = vmatpush.msra.mxu0 %v1419
        %4076 = vmatpush.msra.mxu0 %v1418
        %4077 = vmatpush.msra.mxu0 %v1417
        %4078 = vmatpush.msra.mxu0 %v1416
        %4079 = vmatpush.msra.mxu0 %v1415
        %4080 = vmatmul.f32.gmra.mxu0 %v2464
        %v4081 = vpop.f32.mrf.mxu0
        %v4082 = vadd.f32 %v4062, %v4081
        %4083 = vdwg.mxu0
        %4084 = vmatpush.msra.mxu0 %v1446
        %4085 = vmatpush.msra.mxu0 %v1445
        %4086 = vmatpush.msra.mxu0 %v1444
        %4087 = vmatpush.msra.mxu0 %v1443
        %4088 = vmatpush.msra.mxu0 %v1442
        %4089 = vmatpush.msra.mxu0 %v1441
        %4090 = vmatpush.msra.mxu0 %v1440
        %4091 = vmatpush.msra.mxu0 %v1439
        %4092 = vmatpush.msra.mxu0 %v1438
        %4093 = vmatpush.msra.mxu0 %v1437
        %4094 = vmatpush.msra.mxu0 %v1436
        %4095 = vmatpush.msra.mxu0 %v1435
        %4096 = vmatpush.msra.mxu0 %v1434
        %4097 = vmatpush.msra.mxu0 %v1433
        %4098 = vmatpush.msra.mxu0 %v1432
        %4099 = vmatpush.msra.mxu0 %v1431
        %4100 = vmatmul.f32.gmra.mxu0 %v2465
        %v4101 = vpop.f32.mrf.mxu0
        %v4102 = vadd.f32 %v4082, %v4101
        %4103 = vdwg.mxu0
        %4104 = vmatpush.msra.mxu0 %v1462
        %4105 = vmatpush.msra.mxu0 %v1461
        %4106 = vmatpush.msra.mxu0 %v1460
        %4107 = vmatpush.msra.mxu0 %v1459
        %4108 = vmatpush.msra.mxu0 %v1458
        %4109 = vmatpush.msra.mxu0 %v1457
        %4110 = vmatpush.msra.mxu0 %v1456
        %4111 = vmatpush.msra.mxu0 %v1455
        %4112 = vmatpush.msra.mxu0 %v1454
        %4113 = vmatpush.msra.mxu0 %v1453
        %4114 = vmatpush.msra.mxu0 %v1452
        %4115 = vmatpush.msra.mxu0 %v1451
        %4116 = vmatpush.msra.mxu0 %v1450
        %4117 = vmatpush.msra.mxu0 %v1449
        %4118 = vmatpush.msra.mxu0 %v1448
        %4119 = vmatpush.msra.mxu0 %v1447
        %4120 = vmatmul.f32.gmra.mxu0 %v2468
        %v4121 = vpop.f32.mrf.mxu0
        %v4122 = vadd.f32 %v4102, %v4121
        %4123 = vdwg.mxu0
        %4124 = vmatpush.msra.mxu0 %v1478
        %4125 = vmatpush.msra.mxu0 %v1477
        %4126 = vmatpush.msra.mxu0 %v1476
        %4127 = vmatpush.msra.mxu0 %v1475
        %4128 = vmatpush.msra.mxu0 %v1474
        %4129 = vmatpush.msra.mxu0 %v1473
        %4130 = vmatpush.msra.mxu0 %v1472
        %4131 = vmatpush.msra.mxu0 %v1471
        %4132 = vmatpush.msra.mxu0 %v1470
        %4133 = vmatpush.msra.mxu0 %v1469
        %4134 = vmatpush.msra.mxu0 %v1468
        %4135 = vmatpush.msra.mxu0 %v1467
        %4136 = vmatpush.msra.mxu0 %v1466
        %4137 = vmatpush.msra.mxu0 %v1465
        %4138 = vmatpush.msra.mxu0 %v1464
        %4139 = vmatpush.msra.mxu0 %v1463
        %4140 = vmatmul.f32.gmra.mxu0 %v2469
        %v4141 = vpop.f32.mrf.mxu0
        %v4142 = vadd.f32 %v4122, %v4141
        %4143 = vdwg.mxu0
        %4144 = vmatpush.msra.mxu0 %v1494
        %4145 = vmatpush.msra.mxu0 %v1493
        %4146 = vmatpush.msra.mxu0 %v1492
        %4147 = vmatpush.msra.mxu0 %v1491
        %4148 = vmatpush.msra.mxu0 %v1490
        %4149 = vmatpush.msra.mxu0 %v1489
        %4150 = vmatpush.msra.mxu0 %v1488
        %4151 = vmatpush.msra.mxu0 %v1487
        %4152 = vmatpush.msra.mxu0 %v1486
        %4153 = vmatpush.msra.mxu0 %v1485
        %4154 = vmatpush.msra.mxu0 %v1484
        %4155 = vmatpush.msra.mxu0 %v1483
        %4156 = vmatpush.msra.mxu0 %v1482
        %4157 = vmatpush.msra.mxu0 %v1481
        %4158 = vmatpush.msra.mxu0 %v1480
        %4159 = vmatpush.msra.mxu0 %v1479
        %4160 = vmatmul.f32.gmra.mxu0 %v2470
        %v4161 = vpop.f32.mrf.mxu0
        %v4162 = vadd.f32 %v4142, %v4161
        %4163 = vdwg.mxu0
        %4164 = vmatpush.msra.mxu0 %v1510
        %4165 = vmatpush.msra.mxu0 %v1509
        %4166 = vmatpush.msra.mxu0 %v1508
        %4167 = vmatpush.msra.mxu0 %v1507
        %4168 = vmatpush.msra.mxu0 %v1506
        %4169 = vmatpush.msra.mxu0 %v1505
        %4170 = vmatpush.msra.mxu0 %v1504
        %4171 = vmatpush.msra.mxu0 %v1503
        %4172 = vmatpush.msra.mxu0 %v1502
        %4173 = vmatpush.msra.mxu0 %v1501
        %4174 = vmatpush.msra.mxu0 %v1500
        %4175 = vmatpush.msra.mxu0 %v1499
        %4176 = vmatpush.msra.mxu0 %v1498
        %4177 = vmatpush.msra.mxu0 %v1497
        %4178 = vmatpush.msra.mxu0 %v1496
        %4179 = vmatpush.msra.mxu0 %v1495
        %4180 = vmatmul.f32.gmra.mxu0 %v2471
        %v4181 = vpop.f32.mrf.mxu0
        %v4182 = vadd.f32 %v4162, %v4181
        %4183 = vdwg.mxu0
        %4184 = vmatpush.msra.mxu0 %v1526
        %4185 = vmatpush.msra.mxu0 %v1525
        %4186 = vmatpush.msra.mxu0 %v1524
        %4187 = vmatpush.msra.mxu0 %v1523
        %4188 = vmatpush.msra.mxu0 %v1522
        %4189 = vmatpush.msra.mxu0 %v1521
        %4190 = vmatpush.msra.mxu0 %v1520
        %4191 = vmatpush.msra.mxu0 %v1519
        %4192 = vmatpush.msra.mxu0 %v1518
        %4193 = vmatpush.msra.mxu0 %v1517
        %4194 = vmatpush.msra.mxu0 %v1516
        %4195 = vmatpush.msra.mxu0 %v1515
        %4196 = vmatpush.msra.mxu0 %v1514
        %4197 = vmatpush.msra.mxu0 %v1513
        %4198 = vmatpush.msra.mxu0 %v1512
        %4199 = vmatpush.msra.mxu0 %v1511
        %4200 = vmatmul.f32.gmra.mxu0 %v2472
        %v4201 = vpop.f32.mrf.mxu0
        %v4202 = vadd.f32 %v4182, %v4201
        %4203 = vdwg.mxu0
        %4204 = vmatpush.msra.mxu0 %v1542
        %4205 = vmatpush.msra.mxu0 %v1541
        %4206 = vmatpush.msra.mxu0 %v1540
        %4207 = vmatpush.msra.mxu0 %v1539
        %4208 = vmatpush.msra.mxu0 %v1538
        %4209 = vmatpush.msra.mxu0 %v1537
        %4210 = vmatpush.msra.mxu0 %v1536
        %4211 = vmatpush.msra.mxu0 %v1535
        %4212 = vmatpush.msra.mxu0 %v1534
        %4213 = vmatpush.msra.mxu0 %v1533
        %4214 = vmatpush.msra.mxu0 %v1532
        %4215 = vmatpush.msra.mxu0 %v1531
        %4216 = vmatpush.msra.mxu0 %v1530
        %4217 = vmatpush.msra.mxu0 %v1529
        %4218 = vmatpush.msra.mxu0 %v1528
        %4219 = vmatpush.msra.mxu0 %v1527
        %4220 = vmatmul.f32.gmra.mxu0 %v2473
        %v4221 = vpop.f32.mrf.mxu0
        %v4222 = vadd.f32 %v4202, %v4221
        %4223 = vdwg.mxu0
        %4224 = vmatpush.msra.mxu0 %v1558
        %4225 = vmatpush.msra.mxu0 %v1557
        %4226 = vmatpush.msra.mxu0 %v1556
        %4227 = vmatpush.msra.mxu0 %v1555
        %4228 = vmatpush.msra.mxu0 %v1554
        %4229 = vmatpush.msra.mxu0 %v1553
        %4230 = vmatpush.msra.mxu0 %v1552
        %4231 = vmatpush.msra.mxu0 %v1551
        %4232 = vmatpush.msra.mxu0 %v1550
        %4233 = vmatpush.msra.mxu0 %v1549
        %4234 = vmatpush.msra.mxu0 %v1548
        %4235 = vmatpush.msra.mxu0 %v1547
        %4236 = vmatpush.msra.mxu0 %v1546
        %4237 = vmatpush.msra.mxu0 %v1545
        %4238 = vmatpush.msra.mxu0 %v1544
        %4239 = vmatpush.msra.mxu0 %v1543
        %4240 = vmatmul.f32.gmra.mxu0 %v2474
        %v4241 = vpop.f32.mrf.mxu0
        %v4242 = vadd.f32 %v4222, %v4241
        %4243 = vdwg.mxu0
        %4244 = vmatpush.msra.mxu0 %v1574
        %4245 = vmatpush.msra.mxu0 %v1573
        %4246 = vmatpush.msra.mxu0 %v1572
        %4247 = vmatpush.msra.mxu0 %v1571
        %4248 = vmatpush.msra.mxu0 %v1570
        %4249 = vmatpush.msra.mxu0 %v1569
        %4250 = vmatpush.msra.mxu0 %v1568
        %4251 = vmatpush.msra.mxu0 %v1567
        %4252 = vmatpush.msra.mxu0 %v1566
        %4253 = vmatpush.msra.mxu0 %v1565
        %4254 = vmatpush.msra.mxu0 %v1564
        %4255 = vmatpush.msra.mxu0 %v1563
        %4256 = vmatpush.msra.mxu0 %v1562
        %4257 = vmatpush.msra.mxu0 %v1561
        %4258 = vmatpush.msra.mxu0 %v1560
        %4259 = vmatpush.msra.mxu0 %v1559
        %4260 = vmatmul.f32.gmra.mxu0 %v2475
        %v4261 = vpop.f32.mrf.mxu0
        %v4262 = vadd.f32 %v4242, %v4261
        %4263 = vdwg.mxu0
        %4264 = vmatpush.msra.mxu0 %v1590
        %4265 = vmatpush.msra.mxu0 %v1589
        %4266 = vmatpush.msra.mxu0 %v1588
        %4267 = vmatpush.msra.mxu0 %v1587
        %4268 = vmatpush.msra.mxu0 %v1586
        %4269 = vmatpush.msra.mxu0 %v1585
        %4270 = vmatpush.msra.mxu0 %v1584
        %4271 = vmatpush.msra.mxu0 %v1583
        %4272 = vmatpush.msra.mxu0 %v1582
        %4273 = vmatpush.msra.mxu0 %v1581
        %4274 = vmatpush.msra.mxu0 %v1580
        %4275 = vmatpush.msra.mxu0 %v1579
        %4276 = vmatpush.msra.mxu0 %v1578
        %4277 = vmatpush.msra.mxu0 %v1577
        %4278 = vmatpush.msra.mxu0 %v1576
        %4279 = vmatpush.msra.mxu0 %v1575
        %4280 = vmatmul.f32.gmra.mxu0 %v2478
        %v4281 = vpop.f32.mrf.mxu0
        %v4282 = vadd.f32 %v4262, %v4281
        %4283 = vdwg.mxu0
        %4284 = vmatpush.msra.mxu0 %v1606
        %4285 = vmatpush.msra.mxu0 %v1605
        %4286 = vmatpush.msra.mxu0 %v1604
        %4287 = vmatpush.msra.mxu0 %v1603
        %4288 = vmatpush.msra.mxu0 %v1602
        %4289 = vmatpush.msra.mxu0 %v1601
        %4290 = vmatpush.msra.mxu0 %v1600
        %4291 = vmatpush.msra.mxu0 %v1599
        %4292 = vmatpush.msra.mxu0 %v1598
        %4293 = vmatpush.msra.mxu0 %v1597
        %4294 = vmatpush.msra.mxu0 %v1596
        %4295 = vmatpush.msra.mxu0 %v1595
        %4296 = vmatpush.msra.mxu0 %v1594
        %4297 = vmatpush.msra.mxu0 %v1593
        %4298 = vmatpush.msra.mxu0 %v1592
        %4299 = vmatpush.msra.mxu0 %v1591
        %4300 = vmatmul.f32.gmra.mxu0 %v2479
        %v4301 = vpop.f32.mrf.mxu0
        %v4302 = vadd.f32 %v4282, %v4301
        %4303 = vdwg.mxu0
        %4304 = vmatpush.msra.mxu0 %v1622
        %4305 = vmatpush.msra.mxu0 %v1621
        %4306 = vmatpush.msra.mxu0 %v1620
        %4307 = vmatpush.msra.mxu0 %v1619
        %4308 = vmatpush.msra.mxu0 %v1618
        %4309 = vmatpush.msra.mxu0 %v1617
        %4310 = vmatpush.msra.mxu0 %v1616
        %4311 = vmatpush.msra.mxu0 %v1615
        %4312 = vmatpush.msra.mxu0 %v1614
        %4313 = vmatpush.msra.mxu0 %v1613
        %4314 = vmatpush.msra.mxu0 %v1612
        %4315 = vmatpush.msra.mxu0 %v1611
        %4316 = vmatpush.msra.mxu0 %v1610
        %4317 = vmatpush.msra.mxu0 %v1609
        %4318 = vmatpush.msra.mxu0 %v1608
        %4319 = vmatpush.msra.mxu0 %v1607
        %4320 = vmatmul.f32.gmra.mxu0 %v2480
        %v4321 = vpop.f32.mrf.mxu0
        %v4322 = vadd.f32 %v4302, %v4321
        %4323 = vdwg.mxu0
        %4324 = vmatpush.msra.mxu0 %v1638
        %4325 = vmatpush.msra.mxu0 %v1637
        %4326 = vmatpush.msra.mxu0 %v1636
        %4327 = vmatpush.msra.mxu0 %v1635
        %4328 = vmatpush.msra.mxu0 %v1634
        %4329 = vmatpush.msra.mxu0 %v1633
        %4330 = vmatpush.msra.mxu0 %v1632
        %4331 = vmatpush.msra.mxu0 %v1631
        %4332 = vmatpush.msra.mxu0 %v1630
        %4333 = vmatpush.msra.mxu0 %v1629
        %4334 = vmatpush.msra.mxu0 %v1628
        %4335 = vmatpush.msra.mxu0 %v1627
        %4336 = vmatpush.msra.mxu0 %v1626
        %4337 = vmatpush.msra.mxu0 %v1625
        %4338 = vmatpush.msra.mxu0 %v1624
        %4339 = vmatpush.msra.mxu0 %v1623
        %4340 = vmatmul.f32.gmra.mxu0 %v2481
        %v4341 = vpop.f32.mrf.mxu0
        %v4342 = vadd.f32 %v4322, %v4341
        %4343 = vdwg.mxu0
        %4344 = vmatpush.msra.mxu0 %v1654
        %4345 = vmatpush.msra.mxu0 %v1653
        %4346 = vmatpush.msra.mxu0 %v1652
        %4347 = vmatpush.msra.mxu0 %v1651
        %4348 = vmatpush.msra.mxu0 %v1650
        %4349 = vmatpush.msra.mxu0 %v1649
        %4350 = vmatpush.msra.mxu0 %v1648
        %4351 = vmatpush.msra.mxu0 %v1647
        %4352 = vmatpush.msra.mxu0 %v1646
        %4353 = vmatpush.msra.mxu0 %v1645
        %4354 = vmatpush.msra.mxu0 %v1644
        %4355 = vmatpush.msra.mxu0 %v1643
        %4356 = vmatpush.msra.mxu0 %v1642
        %4357 = vmatpush.msra.mxu0 %v1641
        %4358 = vmatpush.msra.mxu0 %v1640
        %4359 = vmatpush.msra.mxu0 %v1639
        %4360 = vmatmul.f32.gmra.mxu0 %v2482
        %v4361 = vpop.f32.mrf.mxu0
        %v4362 = vadd.f32 %v4342, %v4361
        %4363 = vdwg.mxu0
        %4364 = vmatpush.msra.mxu0 %v1670
        %4365 = vmatpush.msra.mxu0 %v1669
        %4366 = vmatpush.msra.mxu0 %v1668
        %4367 = vmatpush.msra.mxu0 %v1667
        %4368 = vmatpush.msra.mxu0 %v1666
        %4369 = vmatpush.msra.mxu0 %v1665
        %4370 = vmatpush.msra.mxu0 %v1664
        %4371 = vmatpush.msra.mxu0 %v1663
        %4372 = vmatpush.msra.mxu0 %v1662
        %4373 = vmatpush.msra.mxu0 %v1661
        %4374 = vmatpush.msra.mxu0 %v1660
        %4375 = vmatpush.msra.mxu0 %v1659
        %4376 = vmatpush.msra.mxu0 %v1658
        %4377 = vmatpush.msra.mxu0 %v1657
        %4378 = vmatpush.msra.mxu0 %v1656
        %4379 = vmatpush.msra.mxu0 %v1655
        %4380 = vmatmul.f32.gmra.mxu0 %v2483
        %v4381 = vpop.f32.mrf.mxu0
        %v4382 = vadd.f32 %v4362, %v4381
        %4383 = vdwg.mxu0
        %4384 = vmatpush.msra.mxu0 %v1686
        %4385 = vmatpush.msra.mxu0 %v1685
        %4386 = vmatpush.msra.mxu0 %v1684
        %4387 = vmatpush.msra.mxu0 %v1683
        %4388 = vmatpush.msra.mxu0 %v1682
        %4389 = vmatpush.msra.mxu0 %v1681
        %4390 = vmatpush.msra.mxu0 %v1680
        %4391 = vmatpush.msra.mxu0 %v1679
        %4392 = vmatpush.msra.mxu0 %v1678
        %4393 = vmatpush.msra.mxu0 %v1677
        %4394 = vmatpush.msra.mxu0 %v1676
        %4395 = vmatpush.msra.mxu0 %v1675
        %4396 = vmatpush.msra.mxu0 %v1674
        %4397 = vmatpush.msra.mxu0 %v1673
        %4398 = vmatpush.msra.mxu0 %v1672
        %4399 = vmatpush.msra.mxu0 %v1671
        %4400 = vmatmul.f32.gmra.mxu0 %v2484
        %v4401 = vpop.f32.mrf.mxu0
        %v4402 = vadd.f32 %v4382, %v4401
        %4403 = vdwg.mxu0
        %4404 = vmatpush.msra.mxu0 %v1702
        %4405 = vmatpush.msra.mxu0 %v1701
        %4406 = vmatpush.msra.mxu0 %v1700
        %4407 = vmatpush.msra.mxu0 %v1699
        %4408 = vmatpush.msra.mxu0 %v1698
        %4409 = vmatpush.msra.mxu0 %v1697
        %4410 = vmatpush.msra.mxu0 %v1696
        %4411 = vmatpush.msra.mxu0 %v1695
        %4412 = vmatpush.msra.mxu0 %v1694
        %4413 = vmatpush.msra.mxu0 %v1693
        %4414 = vmatpush.msra.mxu0 %v1692
        %4415 = vmatpush.msra.mxu0 %v1691
        %4416 = vmatpush.msra.mxu0 %v1690
        %4417 = vmatpush.msra.mxu0 %v1689
        %4418 = vmatpush.msra.mxu0 %v1688
        %4419 = vmatpush.msra.mxu0 %v1687
        %4420 = vmatmul.f32.gmra.mxu0 %v2485
        %v4421 = vpop.f32.mrf.mxu0
        %v4422 = vadd.f32 %v4402, %v4421
        %4423 = vdwg.mxu0
        %4424 = vmatpush.msra.mxu0 %v1718
        %4425 = vmatpush.msra.mxu0 %v1717
        %4426 = vmatpush.msra.mxu0 %v1716
        %4427 = vmatpush.msra.mxu0 %v1715
        %4428 = vmatpush.msra.mxu0 %v1714
        %4429 = vmatpush.msra.mxu0 %v1713
        %4430 = vmatpush.msra.mxu0 %v1712
        %4431 = vmatpush.msra.mxu0 %v1711
        %4432 = vmatpush.msra.mxu0 %v1710
        %4433 = vmatpush.msra.mxu0 %v1709
        %4434 = vmatpush.msra.mxu0 %v1708
        %4435 = vmatpush.msra.mxu0 %v1707
        %4436 = vmatpush.msra.mxu0 %v1706
        %4437 = vmatpush.msra.mxu0 %v1705
        %4438 = vmatpush.msra.mxu0 %v1704
        %4439 = vmatpush.msra.mxu0 %v1703
        %4440 = vmatmul.f32.gmra.mxu0 %v2488
        %v4441 = vpop.f32.mrf.mxu0
        %v4442 = vadd.f32 %v4422, %v4441
        %4443 = vdwg.mxu0
        %4444 = vmatpush.msra.mxu0 %v1734
        %4445 = vmatpush.msra.mxu0 %v1733
        %4446 = vmatpush.msra.mxu0 %v1732
        %4447 = vmatpush.msra.mxu0 %v1731
        %4448 = vmatpush.msra.mxu0 %v1730
        %4449 = vmatpush.msra.mxu0 %v1729
        %4450 = vmatpush.msra.mxu0 %v1728
        %4451 = vmatpush.msra.mxu0 %v1727
        %4452 = vmatpush.msra.mxu0 %v1726
        %4453 = vmatpush.msra.mxu0 %v1725
        %4454 = vmatpush.msra.mxu0 %v1724
        %4455 = vmatpush.msra.mxu0 %v1723
        %4456 = vmatpush.msra.mxu0 %v1722
        %4457 = vmatpush.msra.mxu0 %v1721
        %4458 = vmatpush.msra.mxu0 %v1720
        %4459 = vmatpush.msra.mxu0 %v1719
        %4460 = vmatmul.f32.gmra.mxu0 %v2489
        %v4461 = vpop.f32.mrf.mxu0
        %v4462 = vadd.f32 %v4442, %v4461
        %4463 = vdwg.mxu0
        %4464 = vmatpush.msra.mxu0 %v1750
        %4465 = vmatpush.msra.mxu0 %v1749
        %4466 = vmatpush.msra.mxu0 %v1748
        %4467 = vmatpush.msra.mxu0 %v1747
        %4468 = vmatpush.msra.mxu0 %v1746
        %4469 = vmatpush.msra.mxu0 %v1745
        %4470 = vmatpush.msra.mxu0 %v1744
        %4471 = vmatpush.msra.mxu0 %v1743
        %4472 = vmatpush.msra.mxu0 %v1742
        %4473 = vmatpush.msra.mxu0 %v1741
        %4474 = vmatpush.msra.mxu0 %v1740
        %4475 = vmatpush.msra.mxu0 %v1739
        %4476 = vmatpush.msra.mxu0 %v1738
        %4477 = vmatpush.msra.mxu0 %v1737
        %4478 = vmatpush.msra.mxu0 %v1736
        %4479 = vmatpush.msra.mxu0 %v1735
        %4480 = vmatmul.f32.gmra.mxu0 %v2490
        %v4481 = vpop.f32.mrf.mxu0
        %v4482 = vadd.f32 %v4462, %v4481
        %4483 = vdwg.mxu0
        %4484 = vmatpush.msra.mxu0 %v1766
        %4485 = vmatpush.msra.mxu0 %v1765
        %4486 = vmatpush.msra.mxu0 %v1764
        %4487 = vmatpush.msra.mxu0 %v1763
        %4488 = vmatpush.msra.mxu0 %v1762
        %4489 = vmatpush.msra.mxu0 %v1761
        %4490 = vmatpush.msra.mxu0 %v1760
        %4491 = vmatpush.msra.mxu0 %v1759
        %4492 = vmatpush.msra.mxu0 %v1758
        %4493 = vmatpush.msra.mxu0 %v1757
        %4494 = vmatpush.msra.mxu0 %v1756
        %4495 = vmatpush.msra.mxu0 %v1755
        %4496 = vmatpush.msra.mxu0 %v1754
        %4497 = vmatpush.msra.mxu0 %v1753
        %4498 = vmatpush.msra.mxu0 %v1752
        %4499 = vmatpush.msra.mxu0 %v1751
        %4500 = vmatmul.f32.gmra.mxu0 %v2491
        %v4501 = vpop.f32.mrf.mxu0
        %v4502 = vadd.f32 %v4482, %v4501
        %4503 = vdwg.mxu0
        %4504 = vmatpush.msra.mxu0 %v1782
        %4505 = vmatpush.msra.mxu0 %v1781
        %4506 = vmatpush.msra.mxu0 %v1780
        %4507 = vmatpush.msra.mxu0 %v1779
        %4508 = vmatpush.msra.mxu0 %v1778
        %4509 = vmatpush.msra.mxu0 %v1777
        %4510 = vmatpush.msra.mxu0 %v1776
        %4511 = vmatpush.msra.mxu0 %v1775
        %4512 = vmatpush.msra.mxu0 %v1774
        %4513 = vmatpush.msra.mxu0 %v1773
        %4514 = vmatpush.msra.mxu0 %v1772
        %4515 = vmatpush.msra.mxu0 %v1771
        %4516 = vmatpush.msra.mxu0 %v1770
        %4517 = vmatpush.msra.mxu0 %v1769
        %4518 = vmatpush.msra.mxu0 %v1768
        %4519 = vmatpush.msra.mxu0 %v1767
        %4520 = vmatmul.f32.gmra.mxu0 %v2492
        %v4521 = vpop.f32.mrf.mxu0
        %v4522 = vadd.f32 %v4502, %v4521
        %4523 = vdwg.mxu0
        %4524 = vmatpush.msra.mxu0 %v1798
        %4525 = vmatpush.msra.mxu0 %v1797
        %4526 = vmatpush.msra.mxu0 %v1796
        %4527 = vmatpush.msra.mxu0 %v1795
        %4528 = vmatpush.msra.mxu0 %v1794
        %4529 = vmatpush.msra.mxu0 %v1793
        %4530 = vmatpush.msra.mxu0 %v1792
        %4531 = vmatpush.msra.mxu0 %v1791
        %4532 = vmatpush.msra.mxu0 %v1790
        %4533 = vmatpush.msra.mxu0 %v1789
        %4534 = vmatpush.msra.mxu0 %v1788
        %4535 = vmatpush.msra.mxu0 %v1787
        %4536 = vmatpush.msra.mxu0 %v1786
        %4537 = vmatpush.msra.mxu0 %v1785
        %4538 = vmatpush.msra.mxu0 %v1784
        %4539 = vmatpush.msra.mxu0 %v1783
        %4540 = vmatmul.f32.gmra.mxu0 %v2493
        %v4541 = vpop.f32.mrf.mxu0
        %v4542 = vadd.f32 %v4522, %v4541
        %4543 = vdwg.mxu0
        %4544 = vmatpush.msra.mxu0 %v1814
        %4545 = vmatpush.msra.mxu0 %v1813
        %4546 = vmatpush.msra.mxu0 %v1812
        %4547 = vmatpush.msra.mxu0 %v1811
        %4548 = vmatpush.msra.mxu0 %v1810
        %4549 = vmatpush.msra.mxu0 %v1809
        %4550 = vmatpush.msra.mxu0 %v1808
        %4551 = vmatpush.msra.mxu0 %v1807
        %4552 = vmatpush.msra.mxu0 %v1806
        %4553 = vmatpush.msra.mxu0 %v1805
        %4554 = vmatpush.msra.mxu0 %v1804
        %4555 = vmatpush.msra.mxu0 %v1803
        %4556 = vmatpush.msra.mxu0 %v1802
        %4557 = vmatpush.msra.mxu0 %v1801
        %4558 = vmatpush.msra.mxu0 %v1800
        %4559 = vmatpush.msra.mxu0 %v1799
        %4560 = vmatmul.f32.gmra.mxu0 %v2494
        %v4561 = vpop.f32.mrf.mxu0
        %v4562 = vadd.f32 %v4542, %v4561
        %4563 = vdwg.mxu0
        %4564 = vmatpush.msra.mxu0 %v1830
        %4565 = vmatpush.msra.mxu0 %v1829
        %4566 = vmatpush.msra.mxu0 %v1828
        %4567 = vmatpush.msra.mxu0 %v1827
        %4568 = vmatpush.msra.mxu0 %v1826
        %4569 = vmatpush.msra.mxu0 %v1825
        %4570 = vmatpush.msra.mxu0 %v1824
        %4571 = vmatpush.msra.mxu0 %v1823
        %4572 = vmatpush.msra.mxu0 %v1822
        %4573 = vmatpush.msra.mxu0 %v1821
        %4574 = vmatpush.msra.mxu0 %v1820
        %4575 = vmatpush.msra.mxu0 %v1819
        %4576 = vmatpush.msra.mxu0 %v1818
        %4577 = vmatpush.msra.mxu0 %v1817
        %4578 = vmatpush.msra.mxu0 %v1816
        %4579 = vmatpush.msra.mxu0 %v1815
        %4580 = vmatmul.f32.gmra.mxu0 %v2495
        %v4581 = vpop.f32.mrf.mxu0
        %v4582 = vadd.f32 %v4562, %v4581
        %4583 = vdwg.mxu0
        %4584 = vmatpush.msra.mxu0 %v1846
        %4585 = vmatpush.msra.mxu0 %v1845
        %4586 = vmatpush.msra.mxu0 %v1844
        %4587 = vmatpush.msra.mxu0 %v1843
        %4588 = vmatpush.msra.mxu0 %v1842
        %4589 = vmatpush.msra.mxu0 %v1841
        %4590 = vmatpush.msra.mxu0 %v1840
        %4591 = vmatpush.msra.mxu0 %v1839
        %4592 = vmatpush.msra.mxu0 %v1838
        %4593 = vmatpush.msra.mxu0 %v1837
        %4594 = vmatpush.msra.mxu0 %v1836
        %4595 = vmatpush.msra.mxu0 %v1835
        %4596 = vmatpush.msra.mxu0 %v1834
        %4597 = vmatpush.msra.mxu0 %v1833
        %4598 = vmatpush.msra.mxu0 %v1832
        %4599 = vmatpush.msra.mxu0 %v1831
        %4600 = vmatmul.f32.gmra.mxu0 %v2498
        %v4601 = vpop.f32.mrf.mxu0
        %v4602 = vadd.f32 %v4582, %v4601
        %4603 = vdwg.mxu0
        %4604 = vmatpush.msra.mxu0 %v1862
        %4605 = vmatpush.msra.mxu0 %v1861
        %4606 = vmatpush.msra.mxu0 %v1860
        %4607 = vmatpush.msra.mxu0 %v1859
        %4608 = vmatpush.msra.mxu0 %v1858
        %4609 = vmatpush.msra.mxu0 %v1857
        %4610 = vmatpush.msra.mxu0 %v1856
        %4611 = vmatpush.msra.mxu0 %v1855
        %4612 = vmatpush.msra.mxu0 %v1854
        %4613 = vmatpush.msra.mxu0 %v1853
        %4614 = vmatpush.msra.mxu0 %v1852
        %4615 = vmatpush.msra.mxu0 %v1851
        %4616 = vmatpush.msra.mxu0 %v1850
        %4617 = vmatpush.msra.mxu0 %v1849
        %4618 = vmatpush.msra.mxu0 %v1848
        %4619 = vmatpush.msra.mxu0 %v1847
        %4620 = vmatmul.f32.gmra.mxu0 %v2499
        %v4621 = vpop.f32.mrf.mxu0
        %v4622 = vadd.f32 %v4602, %v4621
        %4623 = vdwg.mxu0
        %4624 = vmatpush.msra.mxu0 %v1878
        %4625 = vmatpush.msra.mxu0 %v1877
        %4626 = vmatpush.msra.mxu0 %v1876
        %4627 = vmatpush.msra.mxu0 %v1875
        %4628 = vmatpush.msra.mxu0 %v1874
        %4629 = vmatpush.msra.mxu0 %v1873
        %4630 = vmatpush.msra.mxu0 %v1872
        %4631 = vmatpush.msra.mxu0 %v1871
        %4632 = vmatpush.msra.mxu0 %v1870
        %4633 = vmatpush.msra.mxu0 %v1869
        %4634 = vmatpush.msra.mxu0 %v1868
        %4635 = vmatpush.msra.mxu0 %v1867
        %4636 = vmatpush.msra.mxu0 %v1866
        %4637 = vmatpush.msra.mxu0 %v1865
        %4638 = vmatpush.msra.mxu0 %v1864
        %4639 = vmatpush.msra.mxu0 %v1863
        %4640 = vmatmul.f32.gmra.mxu0 %v2500
        %v4641 = vpop.f32.mrf.mxu0
        %v4642 = vadd.f32 %v4622, %v4641
        %4643 = vdwg.mxu0
        %4644 = vmatpush.msra.mxu0 %v1894
        %4645 = vmatpush.msra.mxu0 %v1893
        %4646 = vmatpush.msra.mxu0 %v1892
        %4647 = vmatpush.msra.mxu0 %v1891
        %4648 = vmatpush.msra.mxu0 %v1890
        %4649 = vmatpush.msra.mxu0 %v1889
        %4650 = vmatpush.msra.mxu0 %v1888
        %4651 = vmatpush.msra.mxu0 %v1887
        %4652 = vmatpush.msra.mxu0 %v1886
        %4653 = vmatpush.msra.mxu0 %v1885
        %4654 = vmatpush.msra.mxu0 %v1884
        %4655 = vmatpush.msra.mxu0 %v1883
        %4656 = vmatpush.msra.mxu0 %v1882
        %4657 = vmatpush.msra.mxu0 %v1881
        %4658 = vmatpush.msra.mxu0 %v1880
        %4659 = vmatpush.msra.mxu0 %v1879
        %4660 = vmatmul.f32.gmra.mxu0 %v2501
        %v4661 = vpop.f32.mrf.mxu0
        %v4662 = vadd.f32 %v4642, %v4661
        %4663 = vdwg.mxu0
        %4664 = vmatpush.msra.mxu0 %v1910
        %4665 = vmatpush.msra.mxu0 %v1909
        %4666 = vmatpush.msra.mxu0 %v1908
        %4667 = vmatpush.msra.mxu0 %v1907
        %4668 = vmatpush.msra.mxu0 %v1906
        %4669 = vmatpush.msra.mxu0 %v1905
        %4670 = vmatpush.msra.mxu0 %v1904
        %4671 = vmatpush.msra.mxu0 %v1903
        %4672 = vmatpush.msra.mxu0 %v1902
        %4673 = vmatpush.msra.mxu0 %v1901
        %4674 = vmatpush.msra.mxu0 %v1900
        %4675 = vmatpush.msra.mxu0 %v1899
        %4676 = vmatpush.msra.mxu0 %v1898
        %4677 = vmatpush.msra.mxu0 %v1897
        %4678 = vmatpush.msra.mxu0 %v1896
        %4679 = vmatpush.msra.mxu0 %v1895
        %4680 = vmatmul.f32.gmra.mxu0 %v2502
        %v4681 = vpop.f32.mrf.mxu0
        %v4682 = vadd.f32 %v4662, %v4681
        %4683 = vdwg.mxu0
        %4684 = vmatpush.msra.mxu0 %v1926
        %4685 = vmatpush.msra.mxu0 %v1925
        %4686 = vmatpush.msra.mxu0 %v1924
        %4687 = vmatpush.msra.mxu0 %v1923
        %4688 = vmatpush.msra.mxu0 %v1922
        %4689 = vmatpush.msra.mxu0 %v1921
        %4690 = vmatpush.msra.mxu0 %v1920
        %4691 = vmatpush.msra.mxu0 %v1919
        %4692 = vmatpush.msra.mxu0 %v1918
        %4693 = vmatpush.msra.mxu0 %v1917
        %4694 = vmatpush.msra.mxu0 %v1916
        %4695 = vmatpush.msra.mxu0 %v1915
        %4696 = vmatpush.msra.mxu0 %v1914
        %4697 = vmatpush.msra.mxu0 %v1913
        %4698 = vmatpush.msra.mxu0 %v1912
        %4699 = vmatpush.msra.mxu0 %v1911
        %4700 = vmatmul.f32.gmra.mxu0 %v2503
        %v4701 = vpop.f32.mrf.mxu0
        %v4702 = vadd.f32 %v4682, %v4701
        %4703 = vdwg.mxu0
        %4704 = vmatpush.msra.mxu0 %v1942
        %4705 = vmatpush.msra.mxu0 %v1941
        %4706 = vmatpush.msra.mxu0 %v1940
        %4707 = vmatpush.msra.mxu0 %v1939
        %4708 = vmatpush.msra.mxu0 %v1938
        %4709 = vmatpush.msra.mxu0 %v1937
        %4710 = vmatpush.msra.mxu0 %v1936
        %4711 = vmatpush.msra.mxu0 %v1935
        %4712 = vmatpush.msra.mxu0 %v1934
        %4713 = vmatpush.msra.mxu0 %v1933
        %4714 = vmatpush.msra.mxu0 %v1932
        %4715 = vmatpush.msra.mxu0 %v1931
        %4716 = vmatpush.msra.mxu0 %v1930
        %4717 = vmatpush.msra.mxu0 %v1929
        %4718 = vmatpush.msra.mxu0 %v1928
        %4719 = vmatpush.msra.mxu0 %v1927
        %4720 = vmatmul.f32.gmra.mxu0 %v2504
        %v4721 = vpop.f32.mrf.mxu0
        %v4722 = vadd.f32 %v4702, %v4721
        %4723 = vdwg.mxu0
        %4724 = vmatpush.msra.mxu0 %v1958
        %4725 = vmatpush.msra.mxu0 %v1957
        %4726 = vmatpush.msra.mxu0 %v1956
        %4727 = vmatpush.msra.mxu0 %v1955
        %4728 = vmatpush.msra.mxu0 %v1954
        %4729 = vmatpush.msra.mxu0 %v1953
        %4730 = vmatpush.msra.mxu0 %v1952
        %4731 = vmatpush.msra.mxu0 %v1951
        %4732 = vmatpush.msra.mxu0 %v1950
        %4733 = vmatpush.msra.mxu0 %v1949
        %4734 = vmatpush.msra.mxu0 %v1948
        %4735 = vmatpush.msra.mxu0 %v1947
        %4736 = vmatpush.msra.mxu0 %v1946
        %4737 = vmatpush.msra.mxu0 %v1945
        %4738 = vmatpush.msra.mxu0 %v1944
        %4739 = vmatpush.msra.mxu0 %v1943
        %4740 = vmatmul.f32.gmra.mxu0 %v2505
        %v4741 = vpop.f32.mrf.mxu0
        %v4742 = vadd.f32 %v4722, %v4741
        %4743 = vdwg.mxu0
        %4744 = vmatpush.msra.mxu0 %v1974
        %4745 = vmatpush.msra.mxu0 %v1973
        %4746 = vmatpush.msra.mxu0 %v1972
        %4747 = vmatpush.msra.mxu0 %v1971
        %4748 = vmatpush.msra.mxu0 %v1970
        %4749 = vmatpush.msra.mxu0 %v1969
        %4750 = vmatpush.msra.mxu0 %v1968
        %4751 = vmatpush.msra.mxu0 %v1967
        %4752 = vmatpush.msra.mxu0 %v1966
        %4753 = vmatpush.msra.mxu0 %v1965
        %4754 = vmatpush.msra.mxu0 %v1964
        %4755 = vmatpush.msra.mxu0 %v1963
        %4756 = vmatpush.msra.mxu0 %v1962
        %4757 = vmatpush.msra.mxu0 %v1961
        %4758 = vmatpush.msra.mxu0 %v1960
        %4759 = vmatpush.msra.mxu0 %v1959
        %4760 = vmatmul.f32.gmra.mxu0 %v2508
        %v4761 = vpop.f32.mrf.mxu0
        %v4762 = vadd.f32 %v4742, %v4761
        %4763 = vdwg.mxu0
        %4764 = vmatpush.msra.mxu0 %v1990
        %4765 = vmatpush.msra.mxu0 %v1989
        %4766 = vmatpush.msra.mxu0 %v1988
        %4767 = vmatpush.msra.mxu0 %v1987
        %4768 = vmatpush.msra.mxu0 %v1986
        %4769 = vmatpush.msra.mxu0 %v1985
        %4770 = vmatpush.msra.mxu0 %v1984
        %4771 = vmatpush.msra.mxu0 %v1983
        %4772 = vmatpush.msra.mxu0 %v1982
        %4773 = vmatpush.msra.mxu0 %v1981
        %4774 = vmatpush.msra.mxu0 %v1980
        %4775 = vmatpush.msra.mxu0 %v1979
        %4776 = vmatpush.msra.mxu0 %v1978
        %4777 = vmatpush.msra.mxu0 %v1977
        %4778 = vmatpush.msra.mxu0 %v1976
        %4779 = vmatpush.msra.mxu0 %v1975
        %4780 = vmatmul.f32.gmra.mxu0 %v2509
        %v4781 = vpop.f32.mrf.mxu0
        %v4782 = vadd.f32 %v4762, %v4781
        %4783 = vdwg.mxu0
        %4784 = vmatpush.msra.mxu0 %v2006
        %4785 = vmatpush.msra.mxu0 %v2005
        %4786 = vmatpush.msra.mxu0 %v2004
        %4787 = vmatpush.msra.mxu0 %v2003
        %4788 = vmatpush.msra.mxu0 %v2002
        %4789 = vmatpush.msra.mxu0 %v2001
        %4790 = vmatpush.msra.mxu0 %v2000
        %4791 = vmatpush.msra.mxu0 %v1999
        %4792 = vmatpush.msra.mxu0 %v1998
        %4793 = vmatpush.msra.mxu0 %v1997
        %4794 = vmatpush.msra.mxu0 %v1996
        %4795 = vmatpush.msra.mxu0 %v1995
        %4796 = vmatpush.msra.mxu0 %v1994
        %4797 = vmatpush.msra.mxu0 %v1993
        %4798 = vmatpush.msra.mxu0 %v1992
        %4799 = vmatpush.msra.mxu0 %v1991
        %4800 = vmatmul.f32.gmra.mxu0 %v2510
        %v4801 = vpop.f32.mrf.mxu0
        %v4802 = vadd.f32 %v4782, %v4801
        %4803 = vdwg.mxu0
        %4804 = vmatpush.msra.mxu0 %v2022
        %4805 = vmatpush.msra.mxu0 %v2021
        %4806 = vmatpush.msra.mxu0 %v2020
        %4807 = vmatpush.msra.mxu0 %v2019
        %4808 = vmatpush.msra.mxu0 %v2018
        %4809 = vmatpush.msra.mxu0 %v2017
        %4810 = vmatpush.msra.mxu0 %v2016
        %4811 = vmatpush.msra.mxu0 %v2015
        %4812 = vmatpush.msra.mxu0 %v2014
        %4813 = vmatpush.msra.mxu0 %v2013
        %4814 = vmatpush.msra.mxu0 %v2012
        %4815 = vmatpush.msra.mxu0 %v2011
        %4816 = vmatpush.msra.mxu0 %v2010
        %4817 = vmatpush.msra.mxu0 %v2009
        %4818 = vmatpush.msra.mxu0 %v2008
        %4819 = vmatpush.msra.mxu0 %v2007
        %4820 = vmatmul.f32.gmra.mxu0 %v2511
        %v4821 = vpop.f32.mrf.mxu0
        %v4822 = vadd.f32 %v4802, %v4821
        %4823 = vdwg.mxu0
        %4824 = vmatpush.msra.mxu0 %v2038
        %4825 = vmatpush.msra.mxu0 %v2037
        %4826 = vmatpush.msra.mxu0 %v2036
        %4827 = vmatpush.msra.mxu0 %v2035
        %4828 = vmatpush.msra.mxu0 %v2034
        %4829 = vmatpush.msra.mxu0 %v2033
        %4830 = vmatpush.msra.mxu0 %v2032
        %4831 = vmatpush.msra.mxu0 %v2031
        %4832 = vmatpush.msra.mxu0 %v2030
        %4833 = vmatpush.msra.mxu0 %v2029
        %4834 = vmatpush.msra.mxu0 %v2028
        %4835 = vmatpush.msra.mxu0 %v2027
        %4836 = vmatpush.msra.mxu0 %v2026
        %4837 = vmatpush.msra.mxu0 %v2025
        %4838 = vmatpush.msra.mxu0 %v2024
        %4839 = vmatpush.msra.mxu0 %v2023
        %4840 = vmatmul.f32.gmra.mxu0 %v2512
        %v4841 = vpop.f32.mrf.mxu0
        %v4842 = vadd.f32 %v4822, %v4841
        %4843 = vdwg.mxu0
        %4844 = vmatpush.msra.mxu0 %v2054
        %4845 = vmatpush.msra.mxu0 %v2053
        %4846 = vmatpush.msra.mxu0 %v2052
        %4847 = vmatpush.msra.mxu0 %v2051
        %4848 = vmatpush.msra.mxu0 %v2050
        %4849 = vmatpush.msra.mxu0 %v2049
        %4850 = vmatpush.msra.mxu0 %v2048
        %4851 = vmatpush.msra.mxu0 %v2047
        %4852 = vmatpush.msra.mxu0 %v2046
        %4853 = vmatpush.msra.mxu0 %v2045
        %4854 = vmatpush.msra.mxu0 %v2044
        %4855 = vmatpush.msra.mxu0 %v2043
        %4856 = vmatpush.msra.mxu0 %v2042
        %4857 = vmatpush.msra.mxu0 %v2041
        %4858 = vmatpush.msra.mxu0 %v2040
        %4859 = vmatpush.msra.mxu0 %v2039
        %4860 = vmatmul.f32.gmra.mxu0 %v2513
        %v4861 = vpop.f32.mrf.mxu0
        %v4862 = vadd.f32 %v4842, %v4861
        %4863 = vdwg.mxu0
        %4864 = vmatpush.msra.mxu0 %v2070
        %4865 = vmatpush.msra.mxu0 %v2069
        %4866 = vmatpush.msra.mxu0 %v2068
        %4867 = vmatpush.msra.mxu0 %v2067
        %4868 = vmatpush.msra.mxu0 %v2066
        %4869 = vmatpush.msra.mxu0 %v2065
        %4870 = vmatpush.msra.mxu0 %v2064
        %4871 = vmatpush.msra.mxu0 %v2063
        %4872 = vmatpush.msra.mxu0 %v2062
        %4873 = vmatpush.msra.mxu0 %v2061
        %4874 = vmatpush.msra.mxu0 %v2060
        %4875 = vmatpush.msra.mxu0 %v2059
        %4876 = vmatpush.msra.mxu0 %v2058
        %4877 = vmatpush.msra.mxu0 %v2057
        %4878 = vmatpush.msra.mxu0 %v2056
        %4879 = vmatpush.msra.mxu0 %v2055
        %4880 = vmatmul.f32.gmra.mxu0 %v2514
        %v4881 = vpop.f32.mrf.mxu0
        %v4882 = vadd.f32 %v4862, %v4881
        %4883 = vdwg.mxu0
        %4884 = vmatpush.msra.mxu0 %v2086
        %4885 = vmatpush.msra.mxu0 %v2085
        %4886 = vmatpush.msra.mxu0 %v2084
        %4887 = vmatpush.msra.mxu0 %v2083
        %4888 = vmatpush.msra.mxu0 %v2082
        %4889 = vmatpush.msra.mxu0 %v2081
        %4890 = vmatpush.msra.mxu0 %v2080
        %4891 = vmatpush.msra.mxu0 %v2079
        %4892 = vmatpush.msra.mxu0 %v2078
        %4893 = vmatpush.msra.mxu0 %v2077
        %4894 = vmatpush.msra.mxu0 %v2076
        %4895 = vmatpush.msra.mxu0 %v2075
        %4896 = vmatpush.msra.mxu0 %v2074
        %4897 = vmatpush.msra.mxu0 %v2073
        %4898 = vmatpush.msra.mxu0 %v2072
        %4899 = vmatpush.msra.mxu0 %v2071
        %4900 = vmatmul.f32.gmra.mxu0 %v2515
        %v4901 = vpop.f32.mrf.mxu0
        %v4902 = vadd.f32 %v4882, %v4901
        %4903 = vdwg.mxu0
        %4904 = vmatpush.msra.mxu0 %v2102
        %4905 = vmatpush.msra.mxu0 %v2101
        %4906 = vmatpush.msra.mxu0 %v2100
        %4907 = vmatpush.msra.mxu0 %v2099
        %4908 = vmatpush.msra.mxu0 %v2098
        %4909 = vmatpush.msra.mxu0 %v2097
        %4910 = vmatpush.msra.mxu0 %v2096
        %4911 = vmatpush.msra.mxu0 %v2095
        %4912 = vmatpush.msra.mxu0 %v2094
        %4913 = vmatpush.msra.mxu0 %v2093
        %4914 = vmatpush.msra.mxu0 %v2092
        %4915 = vmatpush.msra.mxu0 %v2091
        %4916 = vmatpush.msra.mxu0 %v2090
        %4917 = vmatpush.msra.mxu0 %v2089
        %4918 = vmatpush.msra.mxu0 %v2088
        %4919 = vmatpush.msra.mxu0 %v2087
        %4920 = vmatmul.f32.gmra.mxu0 %v2518
        %v4921 = vpop.f32.mrf.mxu0
        %v4922 = vadd.f32 %v4902, %v4921
        %4923 = vdwg.mxu0
        %4924 = vmatpush.msra.mxu0 %v2118
        %4925 = vmatpush.msra.mxu0 %v2117
        %4926 = vmatpush.msra.mxu0 %v2116
        %4927 = vmatpush.msra.mxu0 %v2115
        %4928 = vmatpush.msra.mxu0 %v2114
        %4929 = vmatpush.msra.mxu0 %v2113
        %4930 = vmatpush.msra.mxu0 %v2112
        %4931 = vmatpush.msra.mxu0 %v2111
        %4932 = vmatpush.msra.mxu0 %v2110
        %4933 = vmatpush.msra.mxu0 %v2109
        %4934 = vmatpush.msra.mxu0 %v2108
        %4935 = vmatpush.msra.mxu0 %v2107
        %4936 = vmatpush.msra.mxu0 %v2106
        %4937 = vmatpush.msra.mxu0 %v2105
        %4938 = vmatpush.msra.mxu0 %v2104
        %4939 = vmatpush.msra.mxu0 %v2103
        %4940 = vmatmul.f32.gmra.mxu0 %v2519
        %v4941 = vpop.f32.mrf.mxu0
        %v4942 = vadd.f32 %v4922, %v4941
        %4943 = vdwg.mxu0
        %4944 = vmatpush.msra.mxu0 %v2134
        %4945 = vmatpush.msra.mxu0 %v2133
        %4946 = vmatpush.msra.mxu0 %v2132
        %4947 = vmatpush.msra.mxu0 %v2131
        %4948 = vmatpush.msra.mxu0 %v2130
        %4949 = vmatpush.msra.mxu0 %v2129
        %4950 = vmatpush.msra.mxu0 %v2128
        %4951 = vmatpush.msra.mxu0 %v2127
        %4952 = vmatpush.msra.mxu0 %v2126
        %4953 = vmatpush.msra.mxu0 %v2125
        %4954 = vmatpush.msra.mxu0 %v2124
        %4955 = vmatpush.msra.mxu0 %v2123
        %4956 = vmatpush.msra.mxu0 %v2122
        %4957 = vmatpush.msra.mxu0 %v2121
        %4958 = vmatpush.msra.mxu0 %v2120
        %4959 = vmatpush.msra.mxu0 %v2119
        %4960 = vmatmul.f32.gmra.mxu0 %v2520
        %v4961 = vpop.f32.mrf.mxu0
        %v4962 = vadd.f32 %v4942, %v4961
        %4963 = vdwg.mxu0
        %4964 = vmatpush.msra.mxu0 %v2150
        %4965 = vmatpush.msra.mxu0 %v2149
        %4966 = vmatpush.msra.mxu0 %v2148
        %4967 = vmatpush.msra.mxu0 %v2147
        %4968 = vmatpush.msra.mxu0 %v2146
        %4969 = vmatpush.msra.mxu0 %v2145
        %4970 = vmatpush.msra.mxu0 %v2144
        %4971 = vmatpush.msra.mxu0 %v2143
        %4972 = vmatpush.msra.mxu0 %v2142
        %4973 = vmatpush.msra.mxu0 %v2141
        %4974 = vmatpush.msra.mxu0 %v2140
        %4975 = vmatpush.msra.mxu0 %v2139
        %4976 = vmatpush.msra.mxu0 %v2138
        %4977 = vmatpush.msra.mxu0 %v2137
        %4978 = vmatpush.msra.mxu0 %v2136
        %4979 = vmatpush.msra.mxu0 %v2135
        %4980 = vmatmul.f32.gmra.mxu0 %v2521
        %v4981 = vpop.f32.mrf.mxu0
        %v4982 = vadd.f32 %v4962, %v4981
        %4983 = vdwg.mxu0
        %4984 = vmatpush.msra.mxu0 %v2166
        %4985 = vmatpush.msra.mxu0 %v2165
        %4986 = vmatpush.msra.mxu0 %v2164
        %4987 = vmatpush.msra.mxu0 %v2163
        %4988 = vmatpush.msra.mxu0 %v2162
        %4989 = vmatpush.msra.mxu0 %v2161
        %4990 = vmatpush.msra.mxu0 %v2160
        %4991 = vmatpush.msra.mxu0 %v2159
        %4992 = vmatpush.msra.mxu0 %v2158
        %4993 = vmatpush.msra.mxu0 %v2157
        %4994 = vmatpush.msra.mxu0 %v2156
        %4995 = vmatpush.msra.mxu0 %v2155
        %4996 = vmatpush.msra.mxu0 %v2154
        %4997 = vmatpush.msra.mxu0 %v2153
        %4998 = vmatpush.msra.mxu0 %v2152
        %4999 = vmatpush.msra.mxu0 %v2151
        %5000 = vmatmul.f32.gmra.mxu0 %v2522
        %v5001 = vpop.f32.mrf.mxu0
        %v5002 = vadd.f32 %v4982, %v5001
        %5003 = vdwg.mxu0
        %5004 = vmatpush.msra.mxu0 %v2182
        %5005 = vmatpush.msra.mxu0 %v2181
        %5006 = vmatpush.msra.mxu0 %v2180
        %5007 = vmatpush.msra.mxu0 %v2179
        %5008 = vmatpush.msra.mxu0 %v2178
        %5009 = vmatpush.msra.mxu0 %v2177
        %5010 = vmatpush.msra.mxu0 %v2176
        %5011 = vmatpush.msra.mxu0 %v2175
        %5012 = vmatpush.msra.mxu0 %v2174
        %5013 = vmatpush.msra.mxu0 %v2173
        %5014 = vmatpush.msra.mxu0 %v2172
        %5015 = vmatpush.msra.mxu0 %v2171
        %5016 = vmatpush.msra.mxu0 %v2170
        %5017 = vmatpush.msra.mxu0 %v2169
        %5018 = vmatpush.msra.mxu0 %v2168
        %5019 = vmatpush.msra.mxu0 %v2167
        %5020 = vmatmul.f32.gmra.mxu0 %v2523
        %v5021 = vpop.f32.mrf.mxu0
        %v5022 = vadd.f32 %v5002, %v5021
        %5023 = vdwg.mxu0
        %5024 = vmatpush.msra.mxu0 %v2198
        %5025 = vmatpush.msra.mxu0 %v2197
        %5026 = vmatpush.msra.mxu0 %v2196
        %5027 = vmatpush.msra.mxu0 %v2195
        %5028 = vmatpush.msra.mxu0 %v2194
        %5029 = vmatpush.msra.mxu0 %v2193
        %5030 = vmatpush.msra.mxu0 %v2192
        %5031 = vmatpush.msra.mxu0 %v2191
        %5032 = vmatpush.msra.mxu0 %v2190
        %5033 = vmatpush.msra.mxu0 %v2189
        %5034 = vmatpush.msra.mxu0 %v2188
        %5035 = vmatpush.msra.mxu0 %v2187
        %5036 = vmatpush.msra.mxu0 %v2186
        %5037 = vmatpush.msra.mxu0 %v2185
        %5038 = vmatpush.msra.mxu0 %v2184
        %5039 = vmatpush.msra.mxu0 %v2183
        %5040 = vmatmul.f32.gmra.mxu0 %v2524
        %v5041 = vpop.f32.mrf.mxu0
        %v5042 = vadd.f32 %v5022, %v5041
        %5043 = vdwg.mxu0
        %5044 = vmatpush.msra.mxu0 %v2214
        %5045 = vmatpush.msra.mxu0 %v2213
        %5046 = vmatpush.msra.mxu0 %v2212
        %5047 = vmatpush.msra.mxu0 %v2211
        %5048 = vmatpush.msra.mxu0 %v2210
        %5049 = vmatpush.msra.mxu0 %v2209
        %5050 = vmatpush.msra.mxu0 %v2208
        %5051 = vmatpush.msra.mxu0 %v2207
        %5052 = vmatpush.msra.mxu0 %v2206
        %5053 = vmatpush.msra.mxu0 %v2205
        %5054 = vmatpush.msra.mxu0 %v2204
        %5055 = vmatpush.msra.mxu0 %v2203
        %5056 = vmatpush.msra.mxu0 %v2202
        %5057 = vmatpush.msra.mxu0 %v2201
        %5058 = vmatpush.msra.mxu0 %v2200
        %5059 = vmatpush.msra.mxu0 %v2199
        %5060 = vmatmul.f32.gmra.mxu0 %v2525
        %v5061 = vpop.f32.mrf.mxu0
        %v5062 = vadd.f32 %v5042, %v5061
        %5063 = vdwg.mxu0
        %5064 = vmatpush.msra.mxu0 %v2230
        %5065 = vmatpush.msra.mxu0 %v2229
        %5066 = vmatpush.msra.mxu0 %v2228
        %5067 = vmatpush.msra.mxu0 %v2227
        %5068 = vmatpush.msra.mxu0 %v2226
        %5069 = vmatpush.msra.mxu0 %v2225
        %5070 = vmatpush.msra.mxu0 %v2224
        %5071 = vmatpush.msra.mxu0 %v2223
        %5072 = vmatpush.msra.mxu0 %v2222
        %5073 = vmatpush.msra.mxu0 %v2221
        %5074 = vmatpush.msra.mxu0 %v2220
        %5075 = vmatpush.msra.mxu0 %v2219
        %5076 = vmatpush.msra.mxu0 %v2218
        %5077 = vmatpush.msra.mxu0 %v2217
        %5078 = vmatpush.msra.mxu0 %v2216
        %5079 = vmatpush.msra.mxu0 %v2215
        %5080 = vmatmul.f32.gmra.mxu0 %v2528
        %v5081 = vpop.f32.mrf.mxu0
        %v5082 = vadd.f32 %v5062, %v5081
        %5083 = vdwg.mxu0
        %5084 = vmatpush.msra.mxu0 %v2246
        %5085 = vmatpush.msra.mxu0 %v2245
        %5086 = vmatpush.msra.mxu0 %v2244
        %5087 = vmatpush.msra.mxu0 %v2243
        %5088 = vmatpush.msra.mxu0 %v2242
        %5089 = vmatpush.msra.mxu0 %v2241
        %5090 = vmatpush.msra.mxu0 %v2240
        %5091 = vmatpush.msra.mxu0 %v2239
        %5092 = vmatpush.msra.mxu0 %v2238
        %5093 = vmatpush.msra.mxu0 %v2237
        %5094 = vmatpush.msra.mxu0 %v2236
        %5095 = vmatpush.msra.mxu0 %v2235
        %5096 = vmatpush.msra.mxu0 %v2234
        %5097 = vmatpush.msra.mxu0 %v2233
        %5098 = vmatpush.msra.mxu0 %v2232
        %5099 = vmatpush.msra.mxu0 %v2231
        %5100 = vmatmul.f32.gmra.mxu0 %v2529
        %v5101 = vpop.f32.mrf.mxu0
        %v5102 = vadd.f32 %v5082, %v5101
        %5103 = vdwg.mxu0
        %5104 = vmatpush.msra.mxu0 %v2262
        %5105 = vmatpush.msra.mxu0 %v2261
        %5106 = vmatpush.msra.mxu0 %v2260
        %5107 = vmatpush.msra.mxu0 %v2259
        %5108 = vmatpush.msra.mxu0 %v2258
        %5109 = vmatpush.msra.mxu0 %v2257
        %5110 = vmatpush.msra.mxu0 %v2256
        %5111 = vmatpush.msra.mxu0 %v2255
        %5112 = vmatpush.msra.mxu0 %v2254
        %5113 = vmatpush.msra.mxu0 %v2253
        %5114 = vmatpush.msra.mxu0 %v2252
        %5115 = vmatpush.msra.mxu0 %v2251
        %5116 = vmatpush.msra.mxu0 %v2250
        %5117 = vmatpush.msra.mxu0 %v2249
        %5118 = vmatpush.msra.mxu0 %v2248
        %5119 = vmatpush.msra.mxu0 %v2247
        %5120 = vmatmul.f32.gmra.mxu0 %v2530
        %v5121 = vpop.f32.mrf.mxu0
        %v5122 = vadd.f32 %v5102, %v5121
        %5123 = vdwg.mxu0
        %5124 = vmatpush.msra.mxu0 %v2278
        %5125 = vmatpush.msra.mxu0 %v2277
        %5126 = vmatpush.msra.mxu0 %v2276
        %5127 = vmatpush.msra.mxu0 %v2275
        %5128 = vmatpush.msra.mxu0 %v2274
        %5129 = vmatpush.msra.mxu0 %v2273
        %5130 = vmatpush.msra.mxu0 %v2272
        %5131 = vmatpush.msra.mxu0 %v2271
        %5132 = vmatpush.msra.mxu0 %v2270
        %5133 = vmatpush.msra.mxu0 %v2269
        %5134 = vmatpush.msra.mxu0 %v2268
        %5135 = vmatpush.msra.mxu0 %v2267
        %5136 = vmatpush.msra.mxu0 %v2266
        %5137 = vmatpush.msra.mxu0 %v2265
        %5138 = vmatpush.msra.mxu0 %v2264
        %5139 = vmatpush.msra.mxu0 %v2263
        %5140 = vmatmul.f32.gmra.mxu0 %v2531
        %v5141 = vpop.f32.mrf.mxu0
        %v5142 = vadd.f32 %v5122, %v5141
        %5143 = vdwg.mxu0
        %5144 = vmatpush.msra.mxu0 %v2294
        %5145 = vmatpush.msra.mxu0 %v2293
        %5146 = vmatpush.msra.mxu0 %v2292
        %5147 = vmatpush.msra.mxu0 %v2291
        %5148 = vmatpush.msra.mxu0 %v2290
        %5149 = vmatpush.msra.mxu0 %v2289
        %5150 = vmatpush.msra.mxu0 %v2288
        %5151 = vmatpush.msra.mxu0 %v2287
        %5152 = vmatpush.msra.mxu0 %v2286
        %5153 = vmatpush.msra.mxu0 %v2285
        %5154 = vmatpush.msra.mxu0 %v2284
        %5155 = vmatpush.msra.mxu0 %v2283
        %5156 = vmatpush.msra.mxu0 %v2282
        %5157 = vmatpush.msra.mxu0 %v2281
        %5158 = vmatpush.msra.mxu0 %v2280
        %5159 = vmatpush.msra.mxu0 %v2279
        %5160 = vmatmul.f32.gmra.mxu0 %v2532
        %v5161 = vpop.f32.mrf.mxu0
        %v5162 = vadd.f32 %v5142, %v5161
        %5163 = vdwg.mxu0
        %5164 = vmatpush.msra.mxu0 %v2310
        %5165 = vmatpush.msra.mxu0 %v2309
        %5166 = vmatpush.msra.mxu0 %v2308
        %5167 = vmatpush.msra.mxu0 %v2307
        %5168 = vmatpush.msra.mxu0 %v2306
        %5169 = vmatpush.msra.mxu0 %v2305
        %5170 = vmatpush.msra.mxu0 %v2304
        %5171 = vmatpush.msra.mxu0 %v2303
        %5172 = vmatpush.msra.mxu0 %v2302
        %5173 = vmatpush.msra.mxu0 %v2301
        %5174 = vmatpush.msra.mxu0 %v2300
        %5175 = vmatpush.msra.mxu0 %v2299
        %5176 = vmatpush.msra.mxu0 %v2298
        %5177 = vmatpush.msra.mxu0 %v2297
        %5178 = vmatpush.msra.mxu0 %v2296
        %5179 = vmatpush.msra.mxu0 %v2295
        %5180 = vmatmul.f32.gmra.mxu0 %v2533
        %v5181 = vpop.f32.mrf.mxu0
        %v5182 = vadd.f32 %v5162, %v5181
        %5183 = vdwg.mxu0
        %5184 = vmatpush.msra.mxu0 %v2326
        %5185 = vmatpush.msra.mxu0 %v2325
        %5186 = vmatpush.msra.mxu0 %v2324
        %5187 = vmatpush.msra.mxu0 %v2323
        %5188 = vmatpush.msra.mxu0 %v2322
        %5189 = vmatpush.msra.mxu0 %v2321
        %5190 = vmatpush.msra.mxu0 %v2320
        %5191 = vmatpush.msra.mxu0 %v2319
        %5192 = vmatpush.msra.mxu0 %v2318
        %5193 = vmatpush.msra.mxu0 %v2317
        %5194 = vmatpush.msra.mxu0 %v2316
        %5195 = vmatpush.msra.mxu0 %v2315
        %5196 = vmatpush.msra.mxu0 %v2314
        %5197 = vmatpush.msra.mxu0 %v2313
        %5198 = vmatpush.msra.mxu0 %v2312
        %5199 = vmatpush.msra.mxu0 %v2311
        %5200 = vmatmul.f32.gmra.mxu0 %v2534
        %v5201 = vpop.f32.mrf.mxu0
        %v5202 = vadd.f32 %v5182, %v5201
        %5203 = vdwg.mxu0
        %5204 = vmatpush.msra.mxu0 %v2342
        %5205 = vmatpush.msra.mxu0 %v2341
        %5206 = vmatpush.msra.mxu0 %v2340
        %5207 = vmatpush.msra.mxu0 %v2339
        %5208 = vmatpush.msra.mxu0 %v2338
        %5209 = vmatpush.msra.mxu0 %v2337
        %5210 = vmatpush.msra.mxu0 %v2336
        %5211 = vmatpush.msra.mxu0 %v2335
        %5212 = vmatpush.msra.mxu0 %v2334
        %5213 = vmatpush.msra.mxu0 %v2333
        %5214 = vmatpush.msra.mxu0 %v2332
        %5215 = vmatpush.msra.mxu0 %v2331
        %5216 = vmatpush.msra.mxu0 %v2330
        %5217 = vmatpush.msra.mxu0 %v2329
        %5218 = vmatpush.msra.mxu0 %v2328
        %5219 = vmatpush.msra.mxu0 %v2327
        %5220 = vmatmul.f32.gmra.mxu0 %v2535
        %v5221 = vpop.f32.mrf.mxu0
        %v5222 = vadd.f32 %v5202, %v5221
        %5223 = vdwg.mxu0
        %v5224 = vadd.f32 %v262, %v5222
        %5225 = vst [vmem:[#allocation2] sm:$0x3] %v5224
        %p5226 = scmp.eq.s32.totalorder %s21, 9
        // Predicated region
        $region49: #{forward.3} parent=39 // pred_check
          %p5227 = pneg %p5226
        $region50: #{forward.3} parent=39 // pred_check_branch
          %5229 = sbr.rel (%p5227) target = $region52
        $region51: #{forward.3} parent=39 // pred_region
          %v5230 = vld [vmem:[#allocation2] sm:$0x3]
          %v5231 = vld [vmem:[%s2] sm:$0x1]
          %v5233 = vperm.slane %v5231, 0
          %v5235 = vadd.f32 %v5230, %v5233
          %v5236 = vmax.f32 %v5235, 0.0
          %v5237 = vld [vmem:[%s3] sm:$0x1]
          %v5239 = vperm.slane %v5237, 0
          %v5241 = vmul.f32 %v5236, %v5239
          %vm5242 = vcmask 1041408
          %v5243 = vsel %vm5242, %v5241, 0.0
          %5244 = vadd.xlane.f32.xlu0 %v5243
          %v5245 = vpop.xlane.xlu0 %5244
          %v5246 = vld [vmem:[#allocation3] sm:$0x1]
          %v5248 = vperm.slane %v5246, 0
          %v5250 = vadd.f32 %v5245, %v5248
          %v5251 = vsub.f32 0.0, %v5250
          %v5252 = vmul.f32 %v5251, 1.442695
          %v5253 = vpow.pop %v5252
          %v5254 = vadd.f32 %v5253, 1.0
          %v5255 = vrcp.pop %v5254
          %v5256 = vmul.f32 %v5254, %v5255
          %v5257 = vsub.f32 1.0, %v5256
          %v5258 = vmul.f32 %v5255, %v5257
          %v5259 = vadd.f32 %v5255, %v5258
          %vm5260 = vweird.f32 %v5254
          %vm5261 = vweird.f32 %v5255
          %vm5262 = vmor %vm5260, %vm5261
          %v5263 = vsel %vm5262, %v5255, %v5259
          %v5264 = vand.u32 2147483647, %v5254
          %vm5265 = vcmp.eq.f32.partialorder %v5264, 8.507059e+37
          %v5266 = vand.u32 %v5254, 2147483648
          %v5267 = vor.u32 1.1754944e-38, %v5266
          %v5268 = vsel %vm5265, %v5267, %v5263
          %v5269 = vmul.f32 1.0, %v5268
          %vm5270 = vcmask 1024
          %5271 = vst.msk [vmem:[%s5] sm:$0x3] %vm5270, %v5269
        $region52: #{forward.3} parent=39 // pred_fallthru
          _
        // Predicated region
        $region53: #{forward.3} parent=39 // pred_check
          %p5272 = pneg %p149
        $region54: #{forward.3} parent=39 // pred_check_branch
          %5274 = sbr.rel (%p5272) target = $region56
        $region55: #{forward.3} parent=39 // pred_region
          _
        $region56: #{forward.3} parent=39 // pred_fallthru
          _
        // Predicated region
        $region57: #{forward.3} parent=39 // pred_check
          %p5275 = pneg %p149
        $region58: #{forward.3} parent=39 // pred_check_branch
          %5277 = sbr.rel (%p5275) target = $region60
        $region59: #{forward.3} parent=39 // pred_region
          _
        $region60: #{forward.3} parent=39 // pred_fallthru
          _
      $region40: #{forward.3} parent=5 // pred_fallthru
        _
      %p5278 = scmp.le.s32.totalorder 2, %s16
      // Predicated region
      $region61: #{forward.3} parent=5 // pred_check
        %p5279 = pneg %p5278
      $region62: #{forward.3} parent=5 // pred_check_branch
        %5281 = sbr.rel (%p5279) target = $region64
      $region63: #{forward.3} parent=5 // pred_region
        %s5282 = ssub.s32 %s16, 2
      $region64: #{forward.3} parent=5 // pred_fallthru
        _
    $region6: #{forward.3} parent=1 // loop_footer
      %s20 = sadd.s32 1, %s16
    $region7: #{forward.3} parent=1 // loop_footer_branch
      %15 = sbr.rel target = $region3
    $region8: #{forward.3} parent=1 // loop_exit
      _
    %5283 = vsyncpa [#allocation5], 1
    %s5284 = scalar_lea.sflag [#allocation5], 1
    %5285 = vsyncpa %s5284, 1

</llo_original>
